<compile_context>
chip_gen: v7x
topology: tpu7x:2x2x1
jax: 0.10.0
libtpu: 0.0.40
codegen_flags: <defaults>
</compile_context>

<pallas_src>
import jax
import jax.numpy as jnp
from jax.experimental import pallas as pl
from jax.experimental.pallas import tpu as pltpu


# ---------------------------------------------------------------------------
# Kernel body: 4 fused Linear layers, ReLU after the first three.
# All matmuls accumulate in f32 on the MXU; biases are f32 and are added to the
# f32 accumulator before the ReLU, matching PyTorch nn.Linear semantics.
# ---------------------------------------------------------------------------
def _mlp_kernel(x_ref, w1_ref, b1_ref, w2_ref, b2_ref,
                w3_ref, b3_ref, w4_ref, b4_ref, o_ref):
    cdt = w1_ref.dtype                                  # MXU operand dtype
    prec = jax.lax.Precision.HIGHEST if cdt == jnp.float32 else None

    def dense(h, w_ref, b_ref, relu):
        y = jnp.dot(h.astype(cdt), w_ref[...],
                    preferred_element_type=jnp.float32, precision=prec)
        y = y + b_ref[...]
        return jnp.maximum(y, 0.0) if relu else y

    h = dense(x_ref[...], w1_ref, b1_ref, relu=True)    # layer1 + ReLU
    h = dense(h, w2_ref, b2_ref, relu=True)             # layer2 + ReLU
    h = dense(h, w3_ref, b3_ref, relu=True)             # layer3 + ReLU
    out = dense(h, w4_ref, b4_ref, relu=False)          # layer4
    o_ref[...] = out.astype(o_ref.dtype)


def _round_up(x, m):
    return -(-x // m) * m


# ---------------------------------------------------------------------------
# One-time parameter prep: cast to the MXU operand dtype and lane-pack.
# ---------------------------------------------------------------------------
def prepare_params(params, *, pack=4, compute_dtype=jnp.bfloat16,
                   lane_multiple=128):
    """Call once; reuse the result across forward calls.

    params: dict with w1..w4 stored as [in, out] (transpose of torch's
            [out, in]) and b1..b4 as [1, out] or [out], float32.
    pack:   lane-packing factor (4 for v6e/v7x's 256-wide MXU, 2 for v5e).
    """
    cdt = jnp.dtype(compute_dtype)
    packed = {}
    eye = jnp.eye(pack, dtype=jnp.float32)
    out_cols = None
    for i in range(1, 5):
        w = jnp.asarray(params[f"w{i}"], jnp.float32)            # [in, out]
        b = jnp.asarray(params[f"b{i}"], jnp.float32).reshape(1, -1)
        if pack > 1:
            w = jnp.kron(eye, w)                                 # block-diag
            b = jnp.tile(b, (1, pack))
        if i == 4:
            out_cols = int(w.shape[1])                           # pack*out_dim
            pad = _round_up(out_cols, lane_multiple) - out_cols
            if pad:                                              # lane-dense out
                w = jnp.pad(w, ((0, 0), (0, pad)))
                b = jnp.pad(b, ((0, 0), (0, pad)))
        packed[f"w{i}"] = w.astype(cdt)
        packed[f"b{i}"] = b                                      # stays f32
    meta = {
        "pack": int(pack),
        "in_dim": int(jnp.asarray(params["w1"]).shape[0]),
        "out_dim": int(jnp.asarray(params["w4"]).shape[1]),
        "out_cols": out_cols,                                    # valid columns
    }
    return packed, meta


_DEFAULT_TILE_CAP = 2048      # packed rows per grid step (~13 MiB incl. buffers)


def est_depth_forward(x, packed, meta, *, tile_cap=_DEFAULT_TILE_CAP,
                      min_steps=1):
    """Fused forward pass.  x: [B, in_dim] (f32 or bf16).

    min_steps=1 is best on single-TensorCore parts (v5e/v6e); pass min_steps=2
    on v7x so the "parallel" batch axis shards across both TensorCores.
    """
    B, in_dim = x.shape
    pack, out_dim, out_cols = meta["pack"], meta["out_dim"], meta["out_cols"]
    assert in_dim == meta["in_dim"], "x feature dim mismatch"
    k_in = pack * in_dim                              # lane width of packed x
    lane_out = packed["w4"].shape[1]                  # lane-padded output width

    # ---- batch tiling: cdiv grid, large tiles, zero-padded ragged tail ----
    m_rows = pl.cdiv(B, pack)
    steps = max(pl.cdiv(m_rows, tile_cap), min_steps)
    tm = _round_up(pl.cdiv(m_rows, steps), 8)         # sublane-aligned rows
    steps = max(pl.cdiv(m_rows, tm), min_steps)
    m_padded = steps * tm
    b_padded = m_padded * pack
    if b_padded != B:
        x = jnp.pad(x, ((0, b_padded - B), (0, 0)))
    xp = x.reshape(m_padded, k_in)                    # free row-major repack

    def inv(a):                                       # grid-invariant block
        return pl.BlockSpec(a.shape, lambda i: (0, 0))

    flops = 2 * m_padded * sum(
        packed[f"w{i}"].shape[0] * packed[f"w{i}"].shape[1] for i in (1, 2, 3, 4))
    bytes_accessed = (xp.size * xp.dtype.itemsize
                      + m_padded * lane_out * x.dtype.itemsize
                      + sum(a.size * a.dtype.itemsize for a in packed.values()))

    out = pl.pallas_call(
        _mlp_kernel,
        out_shape=jax.ShapeDtypeStruct((m_padded, lane_out), x.dtype),
        grid_spec=pltpu.PrefetchScalarGridSpec(
            num_scalar_prefetch=0,
            grid=(steps,),
            in_specs=[
                pl.BlockSpec((tm, k_in), lambda i: (i, 0)),    # x tile (batch)
                inv(packed["w1"]), inv(packed["b1"]),
                inv(packed["w2"]), inv(packed["b2"]),
                inv(packed["w3"]), inv(packed["b3"]),
                inv(packed["w4"]), inv(packed["b4"]),
            ],
            out_specs=pl.BlockSpec((tm, lane_out), lambda i: (i, 0)),
        ),
        compiler_params=pltpu.CompilerParams(
            dimension_semantics=("parallel",),         # batch steps independent
            vmem_limit_bytes=32 * 1024 * 1024,
        ),
        cost_estimate=pl.CostEstimate(
            flops=flops, transcendentals=0, bytes_accessed=bytes_accessed),
    )(xp, packed["w1"], packed["b1"], packed["w2"], packed["b2"],
      packed["w3"], packed["b3"], packed["w4"], packed["b4"])

    # Undo lane packing / padding: slice valid columns, reinterpret rows, trim.
    y = out[:, :out_cols].reshape(b_padded, out_dim)
    return y[:B] if b_padded != B else y


# ---------------------------------------------------------------------------
# Deterministic synthetic init (PyTorch-Linear-like uniform bounds) + reference
# ---------------------------------------------------------------------------
def init_params(key, in_dim, n_hidden_1, n_hidden_2, n_hidden_3, out_dim):
    dims = [(in_dim, n_hidden_1), (n_hidden_1, n_hidden_2),
            (n_hidden_2, n_hidden_3), (n_hidden_3, out_dim)]
    params = {}
    for idx, (fan_in, fan_out) in enumerate(dims, start=1):
        key, kw, kb = jax.random.split(key, 3)
        bound = 1.0 / jnp.sqrt(float(fan_in))
        # stored as [in, out] (transpose of PyTorch's [out, in])
        params[f"w{idx}"] = jax.random.uniform(
            kw, (fan_in, fan_out), jnp.float32, -bound, bound)
        params[f"b{idx}"] = jax.random.uniform(
            kb, (1, fan_out), jnp.float32, -bound, bound)
    return params


def reference_forward(x, params):
    p = jax.lax.Precision.HIGHEST
    h = jnp.maximum(jnp.dot(x, params["w1"], precision=p) + params["b1"], 0.0)
    h = jnp.maximum(jnp.dot(h, params["w2"], precision=p) + params["b2"], 0.0)
    h = jnp.maximum(jnp.dot(h, params["w3"], precision=p) + params["b3"], 0.0)
    return jnp.dot(h, params["w4"], precision=p) + params["b4"]


if __name__ == "__main__":
    # Small-but-representative shapes: 1024 "pixels", 32-feature input,
    # hidden sizes 64/64/32, out_dim 8 (consistent with the module's ctor).
    B, in_dim = 1024, 32
    n_h1, n_h2, n_h3, out_dim = 64, 64, 32, 8

    key = jax.random.PRNGKey(0)
    key, kx = jax.random.split(key)
    x = jax.random.normal(kx, (B, in_dim), jnp.float32)
    params = init_params(key, in_dim, n_h1, n_h2, n_h3, out_dim)

    y_ref = reference_forward(x, params)

    # f32 operands, pack=4 (v6e/v7x), single grid step, HIGHEST precision.
    packed_f32, meta4 = prepare_params(params, pack=4,
                                       compute_dtype=jnp.float32)
    y_f32 = jax.block_until_ready(est_depth_forward(x, packed_f32, meta4))
    assert y_f32.shape == (B, out_dim)
    assert jnp.allclose(y_f32, y_ref, atol=1e-3, rtol=1e-3), "f32 mismatch"

    # Default bf16 operand path (MXU-native on v6e/v7x), f32 accumulation.
    packed_bf16, _ = prepare_params(params, pack=4)
    y_bf16 = jax.block_until_ready(est_depth_forward(x, packed_bf16, meta4))
    assert y_bf16.shape == (B, out_dim)
    assert jnp.allclose(y_bf16, y_ref, atol=5e-2, rtol=5e-2), "bf16 mismatch"

    # Ragged batch (B not a multiple of 8 or pack) + pack=2 (v5e flavour):
    # exercises the cdiv grid / zero-padded tail path.
    xr = x[:1000]
    packed2, meta2 = prepare_params(params, pack=2, compute_dtype=jnp.float32)
    y_r = jax.block_until_ready(est_depth_forward(xr, packed2, meta2))
    assert y_r.shape == (1000, out_dim)
    assert jnp.allclose(y_r, y_ref[:1000], atol=1e-3, rtol=1e-3), "ragged mismatch"

    # Small tile_cap -> multi-step pipelined grid (exercises double-buffering).
    y_ms = jax.block_until_ready(
        est_depth_forward(x, packed_f32, meta4, tile_cap=64))
    assert jnp.allclose(y_ms, y_ref, atol=1e-3, rtol=1e-3), "multi-step mismatch"

    # min_steps=2 (v7x megacore sharding of the batch axis).
    y_mc = jax.block_until_ready(
        est_depth_forward(x, packed_f32, meta4, min_steps=2))
    assert jnp.allclose(y_mc, y_ref, atol=1e-3, rtol=1e-3), "min_steps mismatch"

    print("KERNEL_OK")
</pallas_src>

<mosaic_0001>
module attributes {stable_mosaic.version = 11 : i64} {
  func.func @_mlp_kernel(%arg0: i32, %arg1: memref<256x128xf32, #tpu.memory_space<vmem>>, %arg2: memref<128x256xf32, #tpu.memory_space<vmem>>, %arg3: memref<1x256xf32, #tpu.memory_space<vmem>>, %arg4: memref<256x256xf32, #tpu.memory_space<vmem>>, %arg5: memref<1x256xf32, #tpu.memory_space<vmem>>, %arg6: memref<256x128xf32, #tpu.memory_space<vmem>>, %arg7: memref<1x128xf32, #tpu.memory_space<vmem>>, %arg8: memref<128x128xf32, #tpu.memory_space<vmem>>, %arg9: memref<1x128xf32, #tpu.memory_space<vmem>>, %arg10: memref<256x128xf32, #tpu.memory_space<vmem>>) attributes {dimension_semantics = [#tpu.dimension_semantics<parallel>], iteration_bounds = array<i64: 1>, scalar_prefetch = 0 : i64, scratch_operands = 0 : i64, tpu.core_type = #tpu.core_type<tc>, window_params = [{transform_indices = @transform_0, window_bounds = array<i64: 256, 128>}, {pipeline_mode = #tpu.pipeline_mode<synchronous>, transform_indices = @transform_1, window_bounds = array<i64: 128, 256>}, {pipeline_mode = #tpu.pipeline_mode<synchronous>, transform_indices = @transform_2, window_bounds = array<i64: 1, 256>}, {pipeline_mode = #tpu.pipeline_mode<synchronous>, transform_indices = @transform_3, window_bounds = array<i64: 256, 256>}, {pipeline_mode = #tpu.pipeline_mode<synchronous>, transform_indices = @transform_4, window_bounds = array<i64: 1, 256>}, {pipeline_mode = #tpu.pipeline_mode<synchronous>, transform_indices = @transform_5, window_bounds = array<i64: 256, 128>}, {pipeline_mode = #tpu.pipeline_mode<synchronous>, transform_indices = @transform_6, window_bounds = array<i64: 1, 128>}, {pipeline_mode = #tpu.pipeline_mode<synchronous>, transform_indices = @transform_7, window_bounds = array<i64: 128, 128>}, {pipeline_mode = #tpu.pipeline_mode<synchronous>, transform_indices = @transform_8, window_bounds = array<i64: 1, 128>}, {transform_indices = @transform_9, window_bounds = array<i64: 256, 128>}]} {
    %c0 = arith.constant 0 : index
    %c0_0 = arith.constant 0 : index
    %0 = vector.load %arg1[%c0, %c0_0] : memref<256x128xf32, #tpu.memory_space<vmem>>, vector<256x128xf32>
    %c0_1 = arith.constant 0 : index
    %c0_2 = arith.constant 0 : index
    %1 = vector.load %arg2[%c0_1, %c0_2] : memref<128x256xf32, #tpu.memory_space<vmem>>, vector<128x256xf32>
    %cst = arith.constant dense<0.000000e+00> : vector<256x256xf32>
    %2 = tpu.matmul %0, %1, %cst {dimension_numbers = #tpu.dot_dimension_numbers<[1], [0], [0], [1], [0, 0, 1, 1], [], []>, precision = #tpu.contract_precision<fp32>} : vector<256x128xf32>, vector<128x256xf32>, vector<256x256xf32> -> vector<256x256xf32>
    %c0_3 = arith.constant 0 : index
    %c0_4 = arith.constant 0 : index
    %3 = vector.load %arg3[%c0_3, %c0_4] : memref<1x256xf32, #tpu.memory_space<vmem>>, vector<1x256xf32>
    %4 = vector.broadcast %3 : vector<1x256xf32> to vector<256x256xf32>
    %5 = arith.addf %2, %4 : vector<256x256xf32>
    %cst_5 = arith.constant 0.000000e+00 : f32
    %6 = vector.broadcast %cst_5 : f32 to vector<256x256xf32>
    %7 = arith.maximumf %5, %6 : vector<256x256xf32>
    %c0_6 = arith.constant 0 : index
    %c0_7 = arith.constant 0 : index
    %8 = vector.load %arg4[%c0_6, %c0_7] : memref<256x256xf32, #tpu.memory_space<vmem>>, vector<256x256xf32>
    %cst_8 = arith.constant dense<0.000000e+00> : vector<256x256xf32>
    %9 = tpu.matmul %7, %8, %cst_8 {dimension_numbers = #tpu.dot_dimension_numbers<[1], [0], [0], [1], [0, 0, 1, 1], [], []>, precision = #tpu.contract_precision<fp32>} : vector<256x256xf32>, vector<256x256xf32>, vector<256x256xf32> -> vector<256x256xf32>
    %c0_9 = arith.constant 0 : index
    %c0_10 = arith.constant 0 : index
    %10 = vector.load %arg5[%c0_9, %c0_10] : memref<1x256xf32, #tpu.memory_space<vmem>>, vector<1x256xf32>
    %11 = vector.broadcast %10 : vector<1x256xf32> to vector<256x256xf32>
    %12 = arith.addf %9, %11 : vector<256x256xf32>
    %cst_11 = arith.constant 0.000000e+00 : f32
    %13 = vector.broadcast %cst_11 : f32 to vector<256x256xf32>
    %14 = arith.maximumf %12, %13 : vector<256x256xf32>
    %c0_12 = arith.constant 0 : index
    %c0_13 = arith.constant 0 : index
    %15 = vector.load %arg6[%c0_12, %c0_13] : memref<256x128xf32, #tpu.memory_space<vmem>>, vector<256x128xf32>
    %cst_14 = arith.constant dense<0.000000e+00> : vector<256x128xf32>
    %16 = tpu.matmul %14, %15, %cst_14 {dimension_numbers = #tpu.dot_dimension_numbers<[1], [0], [0], [1], [0, 0, 1, 1], [], []>, precision = #tpu.contract_precision<fp32>} : vector<256x256xf32>, vector<256x128xf32>, vector<256x128xf32> -> vector<256x128xf32>
    %c0_15 = arith.constant 0 : index
    %c0_16 = arith.constant 0 : index
    %17 = vector.load %arg7[%c0_15, %c0_16] : memref<1x128xf32, #tpu.memory_space<vmem>>, vector<1x128xf32>
    %18 = vector.broadcast %17 : vector<1x128xf32> to vector<256x128xf32>
    %19 = arith.addf %16, %18 : vector<256x128xf32>
    %cst_17 = arith.constant 0.000000e+00 : f32
    %20 = vector.broadcast %cst_17 : f32 to vector<256x128xf32>
    %21 = arith.maximumf %19, %20 : vector<256x128xf32>
    %c0_18 = arith.constant 0 : index
    %c0_19 = arith.constant 0 : index
    %22 = vector.load %arg8[%c0_18, %c0_19] : memref<128x128xf32, #tpu.memory_space<vmem>>, vector<128x128xf32>
    %cst_20 = arith.constant dense<0.000000e+00> : vector<256x128xf32>
    %23 = tpu.matmul %21, %22, %cst_20 {dimension_numbers = #tpu.dot_dimension_numbers<[1], [0], [0], [1], [0, 0, 1, 1], [], []>, precision = #tpu.contract_precision<fp32>} : vector<256x128xf32>, vector<128x128xf32>, vector<256x128xf32> -> vector<256x128xf32>
    %c0_21 = arith.constant 0 : index
    %c0_22 = arith.constant 0 : index
    %24 = vector.load %arg9[%c0_21, %c0_22] : memref<1x128xf32, #tpu.memory_space<vmem>>, vector<1x128xf32>
    %25 = vector.broadcast %24 : vector<1x128xf32> to vector<256x128xf32>
    %26 = arith.addf %23, %25 : vector<256x128xf32>
    %c0_23 = arith.constant 0 : index
    %c0_24 = arith.constant 0 : index
    %27 = vector.load %arg10[%c0_23, %c0_24] : memref<256x128xf32, #tpu.memory_space<vmem>>, vector<256x128xf32>
    tpu.vector_store %arg10[%c0_23, %c0_24], %26 {strides = array<i32>} : memref<256x128xf32, #tpu.memory_space<vmem>>, vector<256x128xf32>,
    return
  }
  func.func @transform_0(%arg0: i32) -> (i32, i32) {
    %c0_i32 = arith.constant 0 : i32
    %c0_i32_0 = arith.constant 0 : i32
    return %arg0, %c0_i32 : i32, i32
  }
  func.func @transform_1(%arg0: i32) -> (i32, i32) {
    %c0_i32 = arith.constant 0 : i32
    %c0_i32_0 = arith.constant 0 : i32
    %c0_i32_1 = arith.constant 0 : i32
    return %c0_i32, %c0_i32_0 : i32, i32
  }
  func.func @transform_2(%arg0: i32) -> (i32, i32) {
    %c0_i32 = arith.constant 0 : i32
    %c0_i32_0 = arith.constant 0 : i32
    %c0_i32_1 = arith.constant 0 : i32
    return %c0_i32, %c0_i32_0 : i32, i32
  }
  func.func @transform_3(%arg0: i32) -> (i32, i32) {
    %c0_i32 = arith.constant 0 : i32
    %c0_i32_0 = arith.constant 0 : i32
    %c0_i32_1 = arith.constant 0 : i32
    return %c0_i32, %c0_i32_0 : i32, i32
  }
  func.func @transform_4(%arg0: i32) -> (i32, i32) {
    %c0_i32 = arith.constant 0 : i32
    %c0_i32_0 = arith.constant 0 : i32
    %c0_i32_1 = arith.constant 0 : i32
    return %c0_i32, %c0_i32_0 : i32, i32
  }
  func.func @transform_5(%arg0: i32) -> (i32, i32) {
    %c0_i32 = arith.constant 0 : i32
    %c0_i32_0 = arith.constant 0 : i32
    %c0_i32_1 = arith.constant 0 : i32
    return %c0_i32, %c0_i32_0 : i32, i32
  }
  func.func @transform_6(%arg0: i32) -> (i32, i32) {
    %c0_i32 = arith.constant 0 : i32
    %c0_i32_0 = arith.constant 0 : i32
    %c0_i32_1 = arith.constant 0 : i32
    return %c0_i32, %c0_i32_0 : i32, i32
  }
  func.func @transform_7(%arg0: i32) -> (i32, i32) {
    %c0_i32 = arith.constant 0 : i32
    %c0_i32_0 = arith.constant 0 : i32
    %c0_i32_1 = arith.constant 0 : i32
    return %c0_i32, %c0_i32_0 : i32, i32
  }
  func.func @transform_8(%arg0: i32) -> (i32, i32) {
    %c0_i32 = arith.constant 0 : i32
    %c0_i32_0 = arith.constant 0 : i32
    %c0_i32_1 = arith.constant 0 : i32
    return %c0_i32, %c0_i32_0 : i32, i32
  }
  func.func @transform_9(%arg0: i32) -> (i32, i32) {
    %c0_i32 = arith.constant 0 : i32
    %c0_i32_0 = arith.constant 0 : i32
    return %arg0, %c0_i32 : i32, i32
  }
}

</mosaic_0001>

<llo_original>
// kernel: tpu_custom_call.1
$region0: #{tpu_custom_call.1}
  #allocation0 [shape = 'u32[]', space=smem, size = 0x4, offset = 0x4, fixed_abs, tag = 'smem constant byte address 0x4 - core index']
  #allocation1 [shape = 'u32[144,128]{1,0:T(1,128)}', space=vmem, size = 0x12000, scoped, tag = 'internal scratch']
  %s0 = inlined_call_operand.hbm [shape: f32[256,128], index: 0, kind: input, shape index: {}]
  %s1 = inlined_call_operand.hbm [shape: f32[128,256], index: 1, kind: input, shape index: {}]
  %s2 = inlined_call_operand.vmem [shape: f32[1,256], index: 2, kind: input, shape index: {}]
  %s3 = inlined_call_operand.hbm [shape: f32[256,256], index: 3, kind: input, shape index: {}]
  %s4 = inlined_call_operand.vmem [shape: f32[1,256], index: 4, kind: input, shape index: {}]
  %s5 = inlined_call_operand.hbm [shape: f32[256,128], index: 5, kind: input, shape index: {}]
  %s6 = inlined_call_operand.vmem [shape: f32[1,128], index: 6, kind: input, shape index: {}]
  %s7 = inlined_call_operand.hbm [shape: f32[128,128], index: 7, kind: input, shape index: {}]
  %s8 = inlined_call_operand.vmem [shape: f32[1,128], index: 8, kind: input, shape index: {}]
  %s9 = inlined_call_operand.hbm [shape: f32[256,128], index: 9, kind: output, shape index: {}]
  %s10 = sld [smem:[#allocation0]]
  $region66: #{tpu_custom_call.1} parent=0
    _
  %s12 = ssub.s32 1, %s10
  %s13 = scalar_select 0, %s12, %s10
  $region1: #{tpu_custom_call.1} parent=0
    #allocation2 [shape = 'u8[131072]{0}', space=vmem, size = 0x20000, scoped, tag = 'input window, operand 0, single buffered']
    #allocation3 [shape = 's32[1]{0}', space=sflag, size = 0x4, scoped, tag = 'scoped memory for tpu_custom_call.1']
    #allocation4 [shape = 's32[1]{0}', space=sflag, size = 0x4, scoped, tag = 'scoped memory for tpu_custom_call.1']
    #allocation5 [shape = 'u8[131072]{0}', space=vmem, size = 0x20000, scoped, tag = 'input window, operand 1, single buffered']
    #allocation6 [shape = 's32[1]{0}', space=sflag, size = 0x4, scoped, tag = 'scoped memory for tpu_custom_call.1']
    #allocation7 [shape = 'u8[262144]{0}', space=vmem, size = 0x40000, scoped, tag = 'input window, operand 3, single buffered']
    #allocation8 [shape = 'u8[131072]{0}', space=vmem, size = 0x20000, scoped, tag = 'input window, operand 5, single buffered']
    #allocation9 [shape = 's32[1]{0}', space=sflag, size = 0x4, scoped, tag = 'scoped memory for tpu_custom_call.1']
    #allocation10 [shape = 'u8[65536]{0}', space=vmem, size = 0x10000, scoped, tag = 'input window, operand 7, single buffered']
    #allocation11 [shape = 'u8[131072]{0}', space=vmem, size = 0x20000, scoped, tag = 'output window, operand 0, single buffered']
    %14 = vsyncpa [#allocation3], 0
    %15 = vsyncpa [#allocation6], 0
    %16 = vsyncpa [#allocation9], 0
    %17 = vsyncpa [#allocation4], 0
    // Predicated region
    $region2: #{tpu_custom_call.1} parent=1 // pred_check
      _
    $region3: #{tpu_custom_call.1} parent=1 // pred_check_branch
      %19 = sbr.rel (0) target = $region5
    $region4: #{tpu_custom_call.1} parent=1 // pred_region
      %s21 = ssub.s32 4096, 4096
      %22 = vsyncadd [#allocation3], %s21
      %s23 = sshll.u32 [#allocation2], 4
      %s24 = int_to_ptr.vmem [resolvable:$true] %s23
      %29 = dma.hbm_to_vmem [thread:$0]  %s0, 4096, %s24, [#allocation3], 128, 128, 8
    $region5: #{tpu_custom_call.1} parent=1 // pred_fallthru
      _
    // Predicated region
    $region6: #{tpu_custom_call.1} parent=1 // pred_check
      _
    $region7: #{tpu_custom_call.1} parent=1 // pred_check_branch
      %31 = sbr.rel (0) target = $region9
    $region8: #{tpu_custom_call.1} parent=1 // pred_region
      %s33 = ssub.s32 4096, 4096
      %34 = vsyncadd [#allocation6], %s33
      %s35 = sshll.u32 [#allocation5], 4
      %s36 = int_to_ptr.vmem [resolvable:$true] %s35
      %41 = dma.hbm_to_vmem [thread:$0]  %s1, 4096, %s36, [#allocation6], 256, 256, 16
    $region9: #{tpu_custom_call.1} parent=1 // pred_fallthru
      _
    // Predicated region
    $region10: #{tpu_custom_call.1} parent=1 // pred_check
      _
    $region11: #{tpu_custom_call.1} parent=1 // pred_check_branch
      %43 = sbr.rel (0) target = $region13
    $region12: #{tpu_custom_call.1} parent=1 // pred_region
      _
    $region13: #{tpu_custom_call.1} parent=1 // pred_fallthru
      _
    // Predicated region
    $region14: #{tpu_custom_call.1} parent=1 // pred_check
      _
    $region15: #{tpu_custom_call.1} parent=1 // pred_check_branch
      %45 = sbr.rel (0) target = $region17
    $region16: #{tpu_custom_call.1} parent=1 // pred_region
      %s47 = ssub.s32 8192, 8192
      %48 = vsyncadd [#allocation6], %s47
      %s49 = sshll.u32 [#allocation7], 4
      %s50 = int_to_ptr.vmem [resolvable:$true] %s49
      %55 = dma.hbm_to_vmem [thread:$0]  %s3, 8192, %s50, [#allocation6], 256, 256, 16
    $region17: #{tpu_custom_call.1} parent=1 // pred_fallthru
      _
    // Predicated region
    $region18: #{tpu_custom_call.1} parent=1 // pred_check
      _
    $region19: #{tpu_custom_call.1} parent=1 // pred_check_branch
      %57 = sbr.rel (0) target = $region21
    $region20: #{tpu_custom_call.1} parent=1 // pred_region
      _
    $region21: #{tpu_custom_call.1} parent=1 // pred_fallthru
      _
    // Predicated region
    $region22: #{tpu_custom_call.1} parent=1 // pred_check
      _
    $region23: #{tpu_custom_call.1} parent=1 // pred_check_branch
      %59 = sbr.rel (0) target = $region25
    $region24: #{tpu_custom_call.1} parent=1 // pred_region
      %s61 = ssub.s32 4096, 4096
      %62 = vsyncadd [#allocation9], %s61
      %s63 = sshll.u32 [#allocation8], 4
      %s64 = int_to_ptr.vmem [resolvable:$true] %s63
      %69 = dma.hbm_to_vmem [thread:$0]  %s5, 4096, %s64, [#allocation9], 128, 128, 8
    $region25: #{tpu_custom_call.1} parent=1 // pred_fallthru
      _
    // Predicated region
    $region26: #{tpu_custom_call.1} parent=1 // pred_check
      _
    $region27: #{tpu_custom_call.1} parent=1 // pred_check_branch
      %71 = sbr.rel (0) target = $region29
    $region28: #{tpu_custom_call.1} parent=1 // pred_region
      _
    $region29: #{tpu_custom_call.1} parent=1 // pred_fallthru
      _
    // Predicated region
    $region30: #{tpu_custom_call.1} parent=1 // pred_check
      _
    $region31: #{tpu_custom_call.1} parent=1 // pred_check_branch
      %73 = sbr.rel (0) target = $region33
    $region32: #{tpu_custom_call.1} parent=1 // pred_region
      %s75 = ssub.s32 2048, 2048
      %76 = vsyncadd [#allocation9], %s75
      %s77 = sshll.u32 [#allocation10], 4
      %s78 = int_to_ptr.vmem [resolvable:$true] %s77
      %83 = dma.hbm_to_vmem [thread:$0]  %s7, 2048, %s78, [#allocation9], 128, 128, 8
    $region33: #{tpu_custom_call.1} parent=1 // pred_fallthru
      _
    // Predicated region
    $region34: #{tpu_custom_call.1} parent=1 // pred_check
      _
    $region35: #{tpu_custom_call.1} parent=1 // pred_check_branch
      %85 = sbr.rel (0) target = $region37
    $region36: #{tpu_custom_call.1} parent=1 // pred_region
      _
    $region37: #{tpu_custom_call.1} parent=1 // pred_fallthru
      _
    // Predicated region
    $region38: #{tpu_custom_call.1} parent=1 // pred_check
      _
    $region39: #{tpu_custom_call.1} parent=1 // pred_check_branch
      %87 = sbr.rel (0) target = $region41
    $region40: #{tpu_custom_call.1} parent=1 // pred_region
      %88 = dma.done [#allocation3], 4096
    $region41: #{tpu_custom_call.1} parent=1 // pred_fallthru
      _
    // Predicated region
    $region42: #{tpu_custom_call.1} parent=1 // pred_check
      _
    $region43: #{tpu_custom_call.1} parent=1 // pred_check_branch
      %90 = sbr.rel (0) target = $region45
    $region44: #{tpu_custom_call.1} parent=1 // pred_region
      %91 = dma.done [#allocation6], 4096
    $region45: #{tpu_custom_call.1} parent=1 // pred_fallthru
      _
    // Predicated region
    $region46: #{tpu_custom_call.1} parent=1 // pred_check
      _
    $region47: #{tpu_custom_call.1} parent=1 // pred_check_branch
      %93 = sbr.rel (0) target = $region49
    $region48: #{tpu_custom_call.1} parent=1 // pred_region
      %94 = dma.done [#allocation6], 8192
    $region49: #{tpu_custom_call.1} parent=1 // pred_fallthru
      _
    // Predicated region
    $region50: #{tpu_custom_call.1} parent=1 // pred_check
      _
    $region51: #{tpu_custom_call.1} parent=1 // pred_check_branch
      %96 = sbr.rel (0) target = $region53
    $region52: #{tpu_custom_call.1} parent=1 // pred_region
      %97 = dma.done [#allocation9], 4096
    $region53: #{tpu_custom_call.1} parent=1 // pred_fallthru
      _
    // Predicated region
    $region54: #{tpu_custom_call.1} parent=1 // pred_check
      _
    $region55: #{tpu_custom_call.1} parent=1 // pred_check_branch
      %99 = sbr.rel (0) target = $region57
    $region56: #{tpu_custom_call.1} parent=1 // pred_region
      %100 = dma.done [#allocation9], 2048
    $region57: #{tpu_custom_call.1} parent=1 // pred_fallthru
      _
    %v101 = vld [vmem:[#allocation2] sm:$0xff]
    %v102 = vld [vmem:[#allocation2 + $0x8] sm:$0xff]
    %v103 = vld [vmem:[#allocation2 + $0x10] sm:$0xff]
    %v104 = vld [vmem:[#allocation2 + $0x18] sm:$0xff]
    %v105 = vld [vmem:[#allocation2 + $0x20] sm:$0xff]
    %v106 = vld [vmem:[#allocation2 + $0x28] sm:$0xff]
    %v107 = vld [vmem:[#allocation2 + $0x30] sm:$0xff]
    %v108 = vld [vmem:[#allocation2 + $0x38] sm:$0xff]
    %v109 = vld [vmem:[#allocation2 + $0x40] sm:$0xff]
    %v110 = vld [vmem:[#allocation2 + $0x48] sm:$0xff]
    %v111 = vld [vmem:[#allocation2 + $0x50] sm:$0xff]
    %v112 = vld [vmem:[#allocation2 + $0x58] sm:$0xff]
    %v113 = vld [vmem:[#allocation2 + $0x60] sm:$0xff]
    %v114 = vld [vmem:[#allocation2 + $0x68] sm:$0xff]
    %v115 = vld [vmem:[#allocation2 + $0x70] sm:$0xff]
    %v116 = vld [vmem:[#allocation2 + $0x78] sm:$0xff]
    %v117 = vld [vmem:[#allocation2 + $0x80] sm:$0xff]
    %v118 = vld [vmem:[#allocation2 + $0x88] sm:$0xff]
    %v119 = vld [vmem:[#allocation2 + $0x90] sm:$0xff]
    %v120 = vld [vmem:[#allocation2 + $0x98] sm:$0xff]
    %v121 = vld [vmem:[#allocation2 + $0xa0] sm:$0xff]
    %v122 = vld [vmem:[#allocation2 + $0xa8] sm:$0xff]
    %v123 = vld [vmem:[#allocation2 + $0xb0] sm:$0xff]
    %v124 = vld [vmem:[#allocation2 + $0xb8] sm:$0xff]
    %v125 = vld [vmem:[#allocation2 + $0xc0] sm:$0xff]
    %v126 = vld [vmem:[#allocation2 + $0xc8] sm:$0xff]
    %v127 = vld [vmem:[#allocation2 + $0xd0] sm:$0xff]
    %v128 = vld [vmem:[#allocation2 + $0xd8] sm:$0xff]
    %v129 = vld [vmem:[#allocation2 + $0xe0] sm:$0xff]
    %v130 = vld [vmem:[#allocation2 + $0xe8] sm:$0xff]
    %v131 = vld [vmem:[#allocation2 + $0xf0] sm:$0xff]
    %v132 = vld [vmem:[#allocation2 + $0xf8] sm:$0xff]
    %v133 = vld [vmem:[#allocation5] sm:$0xff]
    %v134 = vld [vmem:[#allocation5 + $0x8] sm:$0xff]
    %v135 = vld [vmem:[#allocation5 + $0x10] sm:$0xff]
    %v136 = vld [vmem:[#allocation5 + $0x18] sm:$0xff]
    %v137 = vld [vmem:[#allocation5 + $0x20] sm:$0xff]
    %v138 = vld [vmem:[#allocation5 + $0x28] sm:$0xff]
    %v139 = vld [vmem:[#allocation5 + $0x30] sm:$0xff]
    %v140 = vld [vmem:[#allocation5 + $0x38] sm:$0xff]
    %v141 = vld [vmem:[#allocation5 + $0x40] sm:$0xff]
    %v142 = vld [vmem:[#allocation5 + $0x48] sm:$0xff]
    %v143 = vld [vmem:[#allocation5 + $0x50] sm:$0xff]
    %v144 = vld [vmem:[#allocation5 + $0x58] sm:$0xff]
    %v145 = vld [vmem:[#allocation5 + $0x60] sm:$0xff]
    %v146 = vld [vmem:[#allocation5 + $0x68] sm:$0xff]
    %v147 = vld [vmem:[#allocation5 + $0x70] sm:$0xff]
    %v148 = vld [vmem:[#allocation5 + $0x78] sm:$0xff]
    %v149 = vld [vmem:[#allocation5 + $0x80] sm:$0xff]
    %v150 = vld [vmem:[#allocation5 + $0x88] sm:$0xff]
    %v151 = vld [vmem:[#allocation5 + $0x90] sm:$0xff]
    %v152 = vld [vmem:[#allocation5 + $0x98] sm:$0xff]
    %v153 = vld [vmem:[#allocation5 + $0xa0] sm:$0xff]
    %v154 = vld [vmem:[#allocation5 + $0xa8] sm:$0xff]
    %v155 = vld [vmem:[#allocation5 + $0xb0] sm:$0xff]
    %v156 = vld [vmem:[#allocation5 + $0xb8] sm:$0xff]
    %v157 = vld [vmem:[#allocation5 + $0xc0] sm:$0xff]
    %v158 = vld [vmem:[#allocation5 + $0xc8] sm:$0xff]
    %v159 = vld [vmem:[#allocation5 + $0xd0] sm:$0xff]
    %v160 = vld [vmem:[#allocation5 + $0xd8] sm:$0xff]
    %v161 = vld [vmem:[#allocation5 + $0xe0] sm:$0xff]
    %v162 = vld [vmem:[#allocation5 + $0xe8] sm:$0xff]
    %v163 = vld [vmem:[#allocation5 + $0xf0] sm:$0xff]
    %v164 = vld [vmem:[#allocation5 + $0xf8] sm:$0xff]
    %v165 = vld [vmem:[%s2] sm:$0x3]
    %v167 = vlaneseq
    %v168 = vshrl.u32 %v167, 7
    %v169 = vsub.s32 0, %v168
    %v170 = vrot.slane %v165, %v169
    %v171 = vlaneseq
    %v172 = vshrl.u32 %v171, 7
    %v173 = vsub.s32 1, %v172
    %v174 = vrot.slane %v165, %v173
    %v177 = vand.u32 %v134, 4294901760
    %178 = vmatprep.subr.mxu0 %v177
    %v179 = vand.u32 %v133, 4294901760
    %180 = vmatpush1.msra.mxu0 %v179
    %v181 = vand.u32 %v136, 4294901760
    %182 = vmatprep.subr.mxu0 %v181
    %v183 = vand.u32 %v135, 4294901760
    %184 = vmatpush1.msra.mxu0 %v183
    %v185 = vand.u32 %v138, 4294901760
    %186 = vmatprep.subr.mxu0 %v185
    %v187 = vand.u32 %v137, 4294901760
    %188 = vmatpush1.msra.mxu0 %v187
    %v189 = vand.u32 %v140, 4294901760
    %190 = vmatprep.subr.mxu0 %v189
    %v191 = vand.u32 %v139, 4294901760
    %192 = vmatpush1.msra.mxu0 %v191
    %v193 = vand.u32 %v142, 4294901760
    %194 = vmatprep.subr.mxu0 %v193
    %v195 = vand.u32 %v141, 4294901760
    %196 = vmatpush1.msra.mxu0 %v195
    %v197 = vand.u32 %v144, 4294901760
    %198 = vmatprep.subr.mxu0 %v197
    %v199 = vand.u32 %v143, 4294901760
    %200 = vmatpush1.msra.mxu0 %v199
    %v201 = vand.u32 %v146, 4294901760
    %202 = vmatprep.subr.mxu0 %v201
    %v203 = vand.u32 %v145, 4294901760
    %204 = vmatpush1.msra.mxu0 %v203
    %v205 = vand.u32 %v148, 4294901760
    %206 = vmatprep.subr.mxu0 %v205
    %v207 = vand.u32 %v147, 4294901760
    %208 = vmatpush1.msra.mxu0 %v207
    %v209 = vand.u32 %v150, 4294901760
    %210 = vmatprep.subr.mxu0 %v209
    %v211 = vand.u32 %v149, 4294901760
    %212 = vmatpush1.msra.mxu0 %v211
    %v213 = vand.u32 %v152, 4294901760
    %214 = vmatprep.subr.mxu0 %v213
    %v215 = vand.u32 %v151, 4294901760
    %216 = vmatpush1.msra.mxu0 %v215
    %v217 = vand.u32 %v154, 4294901760
    %218 = vmatprep.subr.mxu0 %v217
    %v219 = vand.u32 %v153, 4294901760
    %220 = vmatpush1.msra.mxu0 %v219
    %v221 = vand.u32 %v156, 4294901760
    %222 = vmatprep.subr.mxu0 %v221
    %v223 = vand.u32 %v155, 4294901760
    %224 = vmatpush1.msra.mxu0 %v223
    %v225 = vand.u32 %v158, 4294901760
    %226 = vmatprep.subr.mxu0 %v225
    %v227 = vand.u32 %v157, 4294901760
    %228 = vmatpush1.msra.mxu0 %v227
    %v229 = vand.u32 %v160, 4294901760
    %230 = vmatprep.subr.mxu0 %v229
    %v231 = vand.u32 %v159, 4294901760
    %232 = vmatpush1.msra.mxu0 %v231
    %v233 = vand.u32 %v162, 4294901760
    %234 = vmatprep.subr.mxu0 %v233
    %v235 = vand.u32 %v161, 4294901760
    %236 = vmatpush1.msra.mxu0 %v235
    %v237 = vand.u32 %v164, 4294901760
    %238 = vmatprep.subr.mxu0 %v237
    %v239 = vand.u32 %v163, 4294901760
    %240 = vmatpush1.msra.mxu0 %v239
    %241 = vmatprep.subr.mxu0 0.0
    %242 = vmatpush1.msra.mxu0 0.0
    %243 = vmatprep.subr.mxu0 0.0
    %244 = vmatpush1.msra.mxu0 0.0
    %245 = vmatprep.subr.mxu0 0.0
    %246 = vmatpush1.msra.mxu0 0.0
    %247 = vmatprep.subr.mxu0 0.0
    %248 = vmatpush1.msra.mxu0 0.0
    %249 = vmatprep.subr.mxu0 0.0
    %250 = vmatpush1.msra.mxu0 0.0
    %251 = vmatprep.subr.mxu0 0.0
    %252 = vmatpush1.msra.mxu0 0.0
    %253 = vmatprep.subr.mxu0 0.0
    %254 = vmatpush1.msra.mxu0 0.0
    %255 = vmatprep.subr.mxu0 0.0
    %256 = vmatpush1.msra.mxu0 0.0
    %257 = vmatprep.subr.mxu0 0.0
    %258 = vmatpush1.msra.mxu0 0.0
    %259 = vmatprep.subr.mxu0 0.0
    %260 = vmatpush1.msra.mxu0 0.0
    %261 = vmatprep.subr.mxu0 0.0
    %262 = vmatpush1.msra.mxu0 0.0
    %263 = vmatprep.subr.mxu0 0.0
    %264 = vmatpush1.msra.mxu0 0.0
    %265 = vmatprep.subr.mxu0 0.0
    %266 = vmatpush1.msra.mxu0 0.0
    %267 = vmatprep.subr.mxu0 0.0
    %268 = vmatpush1.msra.mxu0 0.0
    %269 = vmatprep.subr.mxu0 0.0
    %270 = vmatpush1.msra.mxu0 0.0
    %271 = vmatprep.subr.mxu0 0.0
    %272 = vmatpush1.msra.mxu0 0.0
    %273 = vmatprep.mubr.f32.mxu0 0.0
    %v274 = vand.u32 %v101, 4294901760
    %v275 = vsub.f32 %v101, %v274
    %v276 = vand.u32 %v275, 4294901760
    %v277 = vsub.f32 %v275, %v276
    %v278 = vand.u32 %v277, 4294901760
    %279 = vmatmul.mubr.f32.gmra.mrb[0].mxu0 %v278
    %v280 = vpop.f32.mrb[0].mxu0
    %v281 = vadd.f32 %v170, %v280
    %v282 = vpop.f32.mrb[0].mxu0
    %v283 = vadd.f32 %v174, %v282
    %284 = vmatprep.mubr.f32.mxu0 0.0
    %v285 = vand.u32 %v102, 4294901760
    %v286 = vsub.f32 %v102, %v285
    %v287 = vand.u32 %v286, 4294901760
    %v288 = vsub.f32 %v286, %v287
    %v289 = vand.u32 %v288, 4294901760
    %290 = vmatmul.mubr.f32.gmra.mrb[0].mxu0 %v289
    %v291 = vpop.f32.mrb[0].mxu0
    %v292 = vadd.f32 %v170, %v291
    %v293 = vpop.f32.mrb[0].mxu0
    %v294 = vadd.f32 %v174, %v293
    %295 = vmatprep.mubr.f32.mxu0 0.0
    %v296 = vand.u32 %v103, 4294901760
    %v297 = vsub.f32 %v103, %v296
    %v298 = vand.u32 %v297, 4294901760
    %v299 = vsub.f32 %v297, %v298
    %v300 = vand.u32 %v299, 4294901760
    %301 = vmatmul.mubr.f32.gmra.mrb[0].mxu0 %v300
    %v302 = vpop.f32.mrb[0].mxu0
    %v303 = vadd.f32 %v170, %v302
    %v304 = vpop.f32.mrb[0].mxu0
    %v305 = vadd.f32 %v174, %v304
    %306 = vmatprep.mubr.f32.mxu0 0.0
    %v307 = vand.u32 %v104, 4294901760
    %v308 = vsub.f32 %v104, %v307
    %v309 = vand.u32 %v308, 4294901760
    %v310 = vsub.f32 %v308, %v309
    %v311 = vand.u32 %v310, 4294901760
    %312 = vmatmul.mubr.f32.gmra.mrb[0].mxu0 %v311
    %v313 = vpop.f32.mrb[0].mxu0
    %v314 = vadd.f32 %v170, %v313
    %v315 = vpop.f32.mrb[0].mxu0
    %v316 = vadd.f32 %v174, %v315
    %317 = vmatprep.mubr.f32.mxu0 0.0
    %v318 = vand.u32 %v105, 4294901760
    %v319 = vsub.f32 %v105, %v318
    %v320 = vand.u32 %v319, 4294901760
    %v321 = vsub.f32 %v319, %v320
    %v322 = vand.u32 %v321, 4294901760
    %323 = vmatmul.mubr.f32.gmra.mrb[0].mxu0 %v322
    %v324 = vpop.f32.mrb[0].mxu0
    %v325 = vadd.f32 %v170, %v324
    %v326 = vpop.f32.mrb[0].mxu0
    %v327 = vadd.f32 %v174, %v326
    %328 = vmatprep.mubr.f32.mxu0 0.0
    %v329 = vand.u32 %v106, 4294901760
    %v330 = vsub.f32 %v106, %v329
    %v331 = vand.u32 %v330, 4294901760
    %v332 = vsub.f32 %v330, %v331
    %v333 = vand.u32 %v332, 4294901760
    %334 = vmatmul.mubr.f32.gmra.mrb[0].mxu0 %v333
    %v335 = vpop.f32.mrb[0].mxu0
    %v336 = vadd.f32 %v170, %v335
    %v337 = vpop.f32.mrb[0].mxu0
    %v338 = vadd.f32 %v174, %v337
    %339 = vmatprep.mubr.f32.mxu0 0.0
    %v340 = vand.u32 %v107, 4294901760
    %v341 = vsub.f32 %v107, %v340
    %v342 = vand.u32 %v341, 4294901760
    %v343 = vsub.f32 %v341, %v342
    %v344 = vand.u32 %v343, 4294901760
    %345 = vmatmul.mubr.f32.gmra.mrb[0].mxu0 %v344
    %v346 = vpop.f32.mrb[0].mxu0
    %v347 = vadd.f32 %v170, %v346
    %v348 = vpop.f32.mrb[0].mxu0
    %v349 = vadd.f32 %v174, %v348
    %350 = vmatprep.mubr.f32.mxu0 0.0
    %v351 = vand.u32 %v108, 4294901760
    %v352 = vsub.f32 %v108, %v351
    %v353 = vand.u32 %v352, 4294901760
    %v354 = vsub.f32 %v352, %v353
    %v355 = vand.u32 %v354, 4294901760
    %356 = vmatmul.mubr.f32.gmra.mrb[0].mxu0 %v355
    %v357 = vpop.f32.mrb[0].mxu0
    %v358 = vadd.f32 %v170, %v357
    %v359 = vpop.f32.mrb[0].mxu0
    %v360 = vadd.f32 %v174, %v359
    %361 = vmatprep.mubr.f32.mxu0 0.0
    %v362 = vand.u32 %v109, 4294901760
    %v363 = vsub.f32 %v109, %v362
    %v364 = vand.u32 %v363, 4294901760
    %v365 = vsub.f32 %v363, %v364
    %v366 = vand.u32 %v365, 4294901760
    %367 = vmatmul.mubr.f32.gmra.mrb[0].mxu0 %v366
    %v368 = vpop.f32.mrb[0].mxu0
    %v369 = vadd.f32 %v170, %v368
    %v370 = vpop.f32.mrb[0].mxu0
    %v371 = vadd.f32 %v174, %v370
    %372 = vmatprep.mubr.f32.mxu0 0.0
    %v373 = vand.u32 %v110, 4294901760
    %v374 = vsub.f32 %v110, %v373
    %v375 = vand.u32 %v374, 4294901760
    %v376 = vsub.f32 %v374, %v375
    %v377 = vand.u32 %v376, 4294901760
    %378 = vmatmul.mubr.f32.gmra.mrb[0].mxu0 %v377
    %v379 = vpop.f32.mrb[0].mxu0
    %v380 = vadd.f32 %v170, %v379
    %v381 = vpop.f32.mrb[0].mxu0
    %v382 = vadd.f32 %v174, %v381
    %383 = vmatprep.mubr.f32.mxu0 0.0
    %v384 = vand.u32 %v111, 4294901760
    %v385 = vsub.f32 %v111, %v384
    %v386 = vand.u32 %v385, 4294901760
    %v387 = vsub.f32 %v385, %v386
    %v388 = vand.u32 %v387, 4294901760
    %389 = vmatmul.mubr.f32.gmra.mrb[0].mxu0 %v388
    %v390 = vpop.f32.mrb[0].mxu0
    %v391 = vadd.f32 %v170, %v390
    %v392 = vpop.f32.mrb[0].mxu0
    %v393 = vadd.f32 %v174, %v392
    %394 = vmatprep.mubr.f32.mxu0 0.0
    %v395 = vand.u32 %v112, 4294901760
    %v396 = vsub.f32 %v112, %v395
    %v397 = vand.u32 %v396, 4294901760
    %v398 = vsub.f32 %v396, %v397
    %v399 = vand.u32 %v398, 4294901760
    %400 = vmatmul.mubr.f32.gmra.mrb[0].mxu0 %v399
    %v401 = vpop.f32.mrb[0].mxu0
    %v402 = vadd.f32 %v170, %v401
    %v403 = vpop.f32.mrb[0].mxu0
    %v404 = vadd.f32 %v174, %v403
    %405 = vmatprep.mubr.f32.mxu0 0.0
    %v406 = vand.u32 %v113, 4294901760
    %v407 = vsub.f32 %v113, %v406
    %v408 = vand.u32 %v407, 4294901760
    %v409 = vsub.f32 %v407, %v408
    %v410 = vand.u32 %v409, 4294901760
    %411 = vmatmul.mubr.f32.gmra.mrb[0].mxu0 %v410
    %v412 = vpop.f32.mrb[0].mxu0
    %v413 = vadd.f32 %v170, %v412
    %v414 = vpop.f32.mrb[0].mxu0
    %v415 = vadd.f32 %v174, %v414
    %416 = vmatprep.mubr.f32.mxu0 0.0
    %v417 = vand.u32 %v114, 4294901760
    %v418 = vsub.f32 %v114, %v417
    %v419 = vand.u32 %v418, 4294901760
    %v420 = vsub.f32 %v418, %v419
    %v421 = vand.u32 %v420, 4294901760
    %422 = vmatmul.mubr.f32.gmra.mrb[0].mxu0 %v421
    %v423 = vpop.f32.mrb[0].mxu0
    %v424 = vadd.f32 %v170, %v423
    %v425 = vpop.f32.mrb[0].mxu0
    %v426 = vadd.f32 %v174, %v425
    %427 = vmatprep.mubr.f32.mxu0 0.0
    %v428 = vand.u32 %v115, 4294901760
    %v429 = vsub.f32 %v115, %v428
    %v430 = vand.u32 %v429, 4294901760
    %v431 = vsub.f32 %v429, %v430
    %v432 = vand.u32 %v431, 4294901760
    %433 = vmatmul.mubr.f32.gmra.mrb[0].mxu0 %v432
    %v434 = vpop.f32.mrb[0].mxu0
    %v435 = vadd.f32 %v170, %v434
    %v436 = vpop.f32.mrb[0].mxu0
    %v437 = vadd.f32 %v174, %v436
    %438 = vmatprep.mubr.f32.mxu0 0.0
    %v439 = vand.u32 %v116, 4294901760
    %v440 = vsub.f32 %v116, %v439
    %v441 = vand.u32 %v440, 4294901760
    %v442 = vsub.f32 %v440, %v441
    %v443 = vand.u32 %v442, 4294901760
    %444 = vmatmul.mubr.f32.gmra.mrb[0].mxu0 %v443
    %v445 = vpop.f32.mrb[0].mxu0
    %v446 = vadd.f32 %v170, %v445
    %v447 = vpop.f32.mrb[0].mxu0
    %v448 = vadd.f32 %v174, %v447
    %449 = vmatprep.mubr.f32.mxu0 0.0
    %v450 = vand.u32 %v117, 4294901760
    %v451 = vsub.f32 %v117, %v450
    %v452 = vand.u32 %v451, 4294901760
    %v453 = vsub.f32 %v451, %v452
    %v454 = vand.u32 %v453, 4294901760
    %455 = vmatmul.mubr.f32.gmra.mrb[0].mxu0 %v454
    %v456 = vpop.f32.mrb[0].mxu0
    %v457 = vadd.f32 %v170, %v456
    %v458 = vpop.f32.mrb[0].mxu0
    %v459 = vadd.f32 %v174, %v458
    %460 = vmatprep.mubr.f32.mxu0 0.0
    %v461 = vand.u32 %v118, 4294901760
    %v462 = vsub.f32 %v118, %v461
    %v463 = vand.u32 %v462, 4294901760
    %v464 = vsub.f32 %v462, %v463
    %v465 = vand.u32 %v464, 4294901760
    %466 = vmatmul.mubr.f32.gmra.mrb[0].mxu0 %v465
    %v467 = vpop.f32.mrb[0].mxu0
    %v468 = vadd.f32 %v170, %v467
    %v469 = vpop.f32.mrb[0].mxu0
    %v470 = vadd.f32 %v174, %v469
    %471 = vmatprep.mubr.f32.mxu0 0.0
    %v472 = vand.u32 %v119, 4294901760
    %v473 = vsub.f32 %v119, %v472
    %v474 = vand.u32 %v473, 4294901760
    %v475 = vsub.f32 %v473, %v474
    %v476 = vand.u32 %v475, 4294901760
    %477 = vmatmul.mubr.f32.gmra.mrb[0].mxu0 %v476
    %v478 = vpop.f32.mrb[0].mxu0
    %v479 = vadd.f32 %v170, %v478
    %v480 = vpop.f32.mrb[0].mxu0
    %v481 = vadd.f32 %v174, %v480
    %482 = vmatprep.mubr.f32.mxu0 0.0
    %v483 = vand.u32 %v120, 4294901760
    %v484 = vsub.f32 %v120, %v483
    %v485 = vand.u32 %v484, 4294901760
    %v486 = vsub.f32 %v484, %v485
    %v487 = vand.u32 %v486, 4294901760
    %488 = vmatmul.mubr.f32.gmra.mrb[0].mxu0 %v487
    %v489 = vpop.f32.mrb[0].mxu0
    %v490 = vadd.f32 %v170, %v489
    %v491 = vpop.f32.mrb[0].mxu0
    %v492 = vadd.f32 %v174, %v491
    %493 = vmatprep.mubr.f32.mxu0 0.0
    %v494 = vand.u32 %v121, 4294901760
    %v495 = vsub.f32 %v121, %v494
    %v496 = vand.u32 %v495, 4294901760
    %v497 = vsub.f32 %v495, %v496
    %v498 = vand.u32 %v497, 4294901760
    %499 = vmatmul.mubr.f32.gmra.mrb[0].mxu0 %v498
    %v500 = vpop.f32.mrb[0].mxu0
    %v501 = vadd.f32 %v170, %v500
    %v502 = vpop.f32.mrb[0].mxu0
    %v503 = vadd.f32 %v174, %v502
    %504 = vmatprep.mubr.f32.mxu0 0.0
    %v505 = vand.u32 %v122, 4294901760
    %v506 = vsub.f32 %v122, %v505
    %v507 = vand.u32 %v506, 4294901760
    %v508 = vsub.f32 %v506, %v507
    %v509 = vand.u32 %v508, 4294901760
    %510 = vmatmul.mubr.f32.gmra.mrb[0].mxu0 %v509
    %v511 = vpop.f32.mrb[0].mxu0
    %v512 = vadd.f32 %v170, %v511
    %v513 = vpop.f32.mrb[0].mxu0
    %v514 = vadd.f32 %v174, %v513
    %515 = vmatprep.mubr.f32.mxu0 0.0
    %v516 = vand.u32 %v123, 4294901760
    %v517 = vsub.f32 %v123, %v516
    %v518 = vand.u32 %v517, 4294901760
    %v519 = vsub.f32 %v517, %v518
    %v520 = vand.u32 %v519, 4294901760
    %521 = vmatmul.mubr.f32.gmra.mrb[0].mxu0 %v520
    %v522 = vpop.f32.mrb[0].mxu0
    %v523 = vadd.f32 %v170, %v522
    %v524 = vpop.f32.mrb[0].mxu0
    %v525 = vadd.f32 %v174, %v524
    %526 = vmatprep.mubr.f32.mxu0 0.0
    %v527 = vand.u32 %v124, 4294901760
    %v528 = vsub.f32 %v124, %v527
    %v529 = vand.u32 %v528, 4294901760
    %v530 = vsub.f32 %v528, %v529
    %v531 = vand.u32 %v530, 4294901760
    %532 = vmatmul.mubr.f32.gmra.mrb[0].mxu0 %v531
    %v533 = vpop.f32.mrb[0].mxu0
    %v534 = vadd.f32 %v170, %v533
    %v535 = vpop.f32.mrb[0].mxu0
    %v536 = vadd.f32 %v174, %v535
    %537 = vmatprep.mubr.f32.mxu0 0.0
    %v538 = vand.u32 %v125, 4294901760
    %v539 = vsub.f32 %v125, %v538
    %v540 = vand.u32 %v539, 4294901760
    %v541 = vsub.f32 %v539, %v540
    %v542 = vand.u32 %v541, 4294901760
    %543 = vmatmul.mubr.f32.gmra.mrb[0].mxu0 %v542
    %v544 = vpop.f32.mrb[0].mxu0
    %v545 = vadd.f32 %v170, %v544
    %v546 = vpop.f32.mrb[0].mxu0
    %v547 = vadd.f32 %v174, %v546
    %548 = vmatprep.mubr.f32.mxu0 0.0
    %v549 = vand.u32 %v126, 4294901760
    %v550 = vsub.f32 %v126, %v549
    %v551 = vand.u32 %v550, 4294901760
    %v552 = vsub.f32 %v550, %v551
    %v553 = vand.u32 %v552, 4294901760
    %554 = vmatmul.mubr.f32.gmra.mrb[0].mxu0 %v553
    %v555 = vpop.f32.mrb[0].mxu0
    %v556 = vadd.f32 %v170, %v555
    %v557 = vpop.f32.mrb[0].mxu0
    %v558 = vadd.f32 %v174, %v557
    %559 = vmatprep.mubr.f32.mxu0 0.0
    %v560 = vand.u32 %v127, 4294901760
    %v561 = vsub.f32 %v127, %v560
    %v562 = vand.u32 %v561, 4294901760
    %v563 = vsub.f32 %v561, %v562
    %v564 = vand.u32 %v563, 4294901760
    %565 = vmatmul.mubr.f32.gmra.mrb[0].mxu0 %v564
    %v566 = vpop.f32.mrb[0].mxu0
    %v567 = vadd.f32 %v170, %v566
    %v568 = vpop.f32.mrb[0].mxu0
    %v569 = vadd.f32 %v174, %v568
    %570 = vmatprep.mubr.f32.mxu0 0.0
    %v571 = vand.u32 %v128, 4294901760
    %v572 = vsub.f32 %v128, %v571
    %v573 = vand.u32 %v572, 4294901760
    %v574 = vsub.f32 %v572, %v573
    %v575 = vand.u32 %v574, 4294901760
    %576 = vmatmul.mubr.f32.gmra.mrb[0].mxu0 %v575
    %v577 = vpop.f32.mrb[0].mxu0
    %v578 = vadd.f32 %v170, %v577
    %v579 = vpop.f32.mrb[0].mxu0
    %v580 = vadd.f32 %v174, %v579
    %581 = vmatprep.mubr.f32.mxu0 0.0
    %v582 = vand.u32 %v129, 4294901760
    %v583 = vsub.f32 %v129, %v582
    %v584 = vand.u32 %v583, 4294901760
    %v585 = vsub.f32 %v583, %v584
    %v586 = vand.u32 %v585, 4294901760
    %587 = vmatmul.mubr.f32.gmra.mrb[0].mxu0 %v586
    %v588 = vpop.f32.mrb[0].mxu0
    %v589 = vadd.f32 %v170, %v588
    %v590 = vpop.f32.mrb[0].mxu0
    %v591 = vadd.f32 %v174, %v590
    %592 = vmatprep.mubr.f32.mxu0 0.0
    %v593 = vand.u32 %v130, 4294901760
    %v594 = vsub.f32 %v130, %v593
    %v595 = vand.u32 %v594, 4294901760
    %v596 = vsub.f32 %v594, %v595
    %v597 = vand.u32 %v596, 4294901760
    %598 = vmatmul.mubr.f32.gmra.mrb[0].mxu0 %v597
    %v599 = vpop.f32.mrb[0].mxu0
    %v600 = vadd.f32 %v170, %v599
    %v601 = vpop.f32.mrb[0].mxu0
    %v602 = vadd.f32 %v174, %v601
    %603 = vmatprep.mubr.f32.mxu0 0.0
    %v604 = vand.u32 %v131, 4294901760
    %v605 = vsub.f32 %v131, %v604
    %v606 = vand.u32 %v605, 4294901760
    %v607 = vsub.f32 %v605, %v606
    %v608 = vand.u32 %v607, 4294901760
    %609 = vmatmul.mubr.f32.gmra.mrb[0].mxu0 %v608
    %v610 = vpop.f32.mrb[0].mxu0
    %v611 = vadd.f32 %v170, %v610
    %v612 = vpop.f32.mrb[0].mxu0
    %v613 = vadd.f32 %v174, %v612
    %614 = vmatprep.mubr.f32.mxu0 0.0
    %v615 = vand.u32 %v132, 4294901760
    %v616 = vsub.f32 %v132, %v615
    %v617 = vand.u32 %v616, 4294901760
    %v618 = vsub.f32 %v616, %v617
    %v619 = vand.u32 %v618, 4294901760
    %620 = vmatmul.mubr.f32.gmra.mrb[0].mxu0 %v619
    %v621 = vpop.f32.mrb[0].mxu0
    %v622 = vadd.f32 %v170, %v621
    %v623 = vpop.f32.mrb[0].mxu0
    %v624 = vadd.f32 %v174, %v623
    %625 = vdwg.mxu0
    %v626 = vand.u32 %v134, 4294901760
    %v627 = vsub.f32 %v134, %v626
    %v628 = vand.u32 %v627, 4294901760
    %v629 = vsub.f32 %v627, %v628
    %v630 = vand.u32 %v629, 4294901760
    %631 = vmatprep.subr.mxu0 %v630
    %v632 = vand.u32 %v133, 4294901760
    %v633 = vsub.f32 %v133, %v632
    %v634 = vand.u32 %v633, 4294901760
    %v635 = vsub.f32 %v633, %v634
    %v636 = vand.u32 %v635, 4294901760
    %637 = vmatpush1.msra.mxu0 %v636
    %v638 = vand.u32 %v136, 4294901760
    %v639 = vsub.f32 %v136, %v638
    %v640 = vand.u32 %v639, 4294901760
    %v641 = vsub.f32 %v639, %v640
    %v642 = vand.u32 %v641, 4294901760
    %643 = vmatprep.subr.mxu0 %v642
    %v644 = vand.u32 %v135, 4294901760
    %v645 = vsub.f32 %v135, %v644
    %v646 = vand.u32 %v645, 4294901760
    %v647 = vsub.f32 %v645, %v646
    %v648 = vand.u32 %v647, 4294901760
    %649 = vmatpush1.msra.mxu0 %v648
    %v650 = vand.u32 %v138, 4294901760
    %v651 = vsub.f32 %v138, %v650
    %v652 = vand.u32 %v651, 4294901760
    %v653 = vsub.f32 %v651, %v652
    %v654 = vand.u32 %v653, 4294901760
    %655 = vmatprep.subr.mxu0 %v654
    %v656 = vand.u32 %v137, 4294901760
    %v657 = vsub.f32 %v137, %v656
    %v658 = vand.u32 %v657, 4294901760
    %v659 = vsub.f32 %v657, %v658
    %v660 = vand.u32 %v659, 4294901760
    %661 = vmatpush1.msra.mxu0 %v660
    %v662 = vand.u32 %v140, 4294901760
    %v663 = vsub.f32 %v140, %v662
    %v664 = vand.u32 %v663, 4294901760
    %v665 = vsub.f32 %v663, %v664
    %v666 = vand.u32 %v665, 4294901760
    %667 = vmatprep.subr.mxu0 %v666
    %v668 = vand.u32 %v139, 4294901760
    %v669 = vsub.f32 %v139, %v668
    %v670 = vand.u32 %v669, 4294901760
    %v671 = vsub.f32 %v669, %v670
    %v672 = vand.u32 %v671, 4294901760
    %673 = vmatpush1.msra.mxu0 %v672
    %v674 = vand.u32 %v142, 4294901760
    %v675 = vsub.f32 %v142, %v674
    %v676 = vand.u32 %v675, 4294901760
    %v677 = vsub.f32 %v675, %v676
    %v678 = vand.u32 %v677, 4294901760
    %679 = vmatprep.subr.mxu0 %v678
    %v680 = vand.u32 %v141, 4294901760
    %v681 = vsub.f32 %v141, %v680
    %v682 = vand.u32 %v681, 4294901760
    %v683 = vsub.f32 %v681, %v682
    %v684 = vand.u32 %v683, 4294901760
    %685 = vmatpush1.msra.mxu0 %v684
    %v686 = vand.u32 %v144, 4294901760
    %v687 = vsub.f32 %v144, %v686
    %v688 = vand.u32 %v687, 4294901760
    %v689 = vsub.f32 %v687, %v688
    %v690 = vand.u32 %v689, 4294901760
    %691 = vmatprep.subr.mxu0 %v690
    %v692 = vand.u32 %v143, 4294901760
    %v693 = vsub.f32 %v143, %v692
    %v694 = vand.u32 %v693, 4294901760
    %v695 = vsub.f32 %v693, %v694
    %v696 = vand.u32 %v695, 4294901760
    %697 = vmatpush1.msra.mxu0 %v696
    %v698 = vand.u32 %v146, 4294901760
    %v699 = vsub.f32 %v146, %v698
    %v700 = vand.u32 %v699, 4294901760
    %v701 = vsub.f32 %v699, %v700
    %v702 = vand.u32 %v701, 4294901760
    %703 = vmatprep.subr.mxu0 %v702
    %v704 = vand.u32 %v145, 4294901760
    %v705 = vsub.f32 %v145, %v704
    %v706 = vand.u32 %v705, 4294901760
    %v707 = vsub.f32 %v705, %v706
    %v708 = vand.u32 %v707, 4294901760
    %709 = vmatpush1.msra.mxu0 %v708
    %v710 = vand.u32 %v148, 4294901760
    %v711 = vsub.f32 %v148, %v710
    %v712 = vand.u32 %v711, 4294901760
    %v713 = vsub.f32 %v711, %v712
    %v714 = vand.u32 %v713, 4294901760
    %715 = vmatprep.subr.mxu0 %v714
    %v716 = vand.u32 %v147, 4294901760
    %v717 = vsub.f32 %v147, %v716
    %v718 = vand.u32 %v717, 4294901760
    %v719 = vsub.f32 %v717, %v718
    %v720 = vand.u32 %v719, 4294901760
    %721 = vmatpush1.msra.mxu0 %v720
    %v722 = vand.u32 %v150, 4294901760
    %v723 = vsub.f32 %v150, %v722
    %v724 = vand.u32 %v723, 4294901760
    %v725 = vsub.f32 %v723, %v724
    %v726 = vand.u32 %v725, 4294901760
    %727 = vmatprep.subr.mxu0 %v726
    %v728 = vand.u32 %v149, 4294901760
    %v729 = vsub.f32 %v149, %v728
    %v730 = vand.u32 %v729, 4294901760
    %v731 = vsub.f32 %v729, %v730
    %v732 = vand.u32 %v731, 4294901760
    %733 = vmatpush1.msra.mxu0 %v732
    %v734 = vand.u32 %v152, 4294901760
    %v735 = vsub.f32 %v152, %v734
    %v736 = vand.u32 %v735, 4294901760
    %v737 = vsub.f32 %v735, %v736
    %v738 = vand.u32 %v737, 4294901760
    %739 = vmatprep.subr.mxu0 %v738
    %v740 = vand.u32 %v151, 4294901760
    %v741 = vsub.f32 %v151, %v740
    %v742 = vand.u32 %v741, 4294901760
    %v743 = vsub.f32 %v741, %v742
    %v744 = vand.u32 %v743, 4294901760
    %745 = vmatpush1.msra.mxu0 %v744
    %v746 = vand.u32 %v154, 4294901760
    %v747 = vsub.f32 %v154, %v746
    %v748 = vand.u32 %v747, 4294901760
    %v749 = vsub.f32 %v747, %v748
    %v750 = vand.u32 %v749, 4294901760
    %751 = vmatprep.subr.mxu0 %v750
    %v752 = vand.u32 %v153, 4294901760
    %v753 = vsub.f32 %v153, %v752
    %v754 = vand.u32 %v753, 4294901760
    %v755 = vsub.f32 %v753, %v754
    %v756 = vand.u32 %v755, 4294901760
    %757 = vmatpush1.msra.mxu0 %v756
    %v758 = vand.u32 %v156, 4294901760
    %v759 = vsub.f32 %v156, %v758
    %v760 = vand.u32 %v759, 4294901760
    %v761 = vsub.f32 %v759, %v760
    %v762 = vand.u32 %v761, 4294901760
    %763 = vmatprep.subr.mxu0 %v762
    %v764 = vand.u32 %v155, 4294901760
    %v765 = vsub.f32 %v155, %v764
    %v766 = vand.u32 %v765, 4294901760
    %v767 = vsub.f32 %v765, %v766
    %v768 = vand.u32 %v767, 4294901760
    %769 = vmatpush1.msra.mxu0 %v768
    %v770 = vand.u32 %v158, 4294901760
    %v771 = vsub.f32 %v158, %v770
    %v772 = vand.u32 %v771, 4294901760
    %v773 = vsub.f32 %v771, %v772
    %v774 = vand.u32 %v773, 4294901760
    %775 = vmatprep.subr.mxu0 %v774
    %v776 = vand.u32 %v157, 4294901760
    %v777 = vsub.f32 %v157, %v776
    %v778 = vand.u32 %v777, 4294901760
    %v779 = vsub.f32 %v777, %v778
    %v780 = vand.u32 %v779, 4294901760
    %781 = vmatpush1.msra.mxu0 %v780
    %v782 = vand.u32 %v160, 4294901760
    %v783 = vsub.f32 %v160, %v782
    %v784 = vand.u32 %v783, 4294901760
    %v785 = vsub.f32 %v783, %v784
    %v786 = vand.u32 %v785, 4294901760
    %787 = vmatprep.subr.mxu0 %v786
    %v788 = vand.u32 %v159, 4294901760
    %v789 = vsub.f32 %v159, %v788
    %v790 = vand.u32 %v789, 4294901760
    %v791 = vsub.f32 %v789, %v790
    %v792 = vand.u32 %v791, 4294901760
    %793 = vmatpush1.msra.mxu0 %v792
    %v794 = vand.u32 %v162, 4294901760
    %v795 = vsub.f32 %v162, %v794
    %v796 = vand.u32 %v795, 4294901760
    %v797 = vsub.f32 %v795, %v796
    %v798 = vand.u32 %v797, 4294901760
    %799 = vmatprep.subr.mxu0 %v798
    %v800 = vand.u32 %v161, 4294901760
    %v801 = vsub.f32 %v161, %v800
    %v802 = vand.u32 %v801, 4294901760
    %v803 = vsub.f32 %v801, %v802
    %v804 = vand.u32 %v803, 4294901760
    %805 = vmatpush1.msra.mxu0 %v804
    %v806 = vand.u32 %v164, 4294901760
    %v807 = vsub.f32 %v164, %v806
    %v808 = vand.u32 %v807, 4294901760
    %v809 = vsub.f32 %v807, %v808
    %v810 = vand.u32 %v809, 4294901760
    %811 = vmatprep.subr.mxu0 %v810
    %v812 = vand.u32 %v163, 4294901760
    %v813 = vsub.f32 %v163, %v812
    %v814 = vand.u32 %v813, 4294901760
    %v815 = vsub.f32 %v813, %v814
    %v816 = vand.u32 %v815, 4294901760
    %817 = vmatpush1.msra.mxu0 %v816
    %818 = vmatprep.subr.mxu0 0.0
    %819 = vmatpush1.msra.mxu0 0.0
    %820 = vmatprep.subr.mxu0 0.0
    %821 = vmatpush1.msra.mxu0 0.0
    %822 = vmatprep.subr.mxu0 0.0
    %823 = vmatpush1.msra.mxu0 0.0
    %824 = vmatprep.subr.mxu0 0.0
    %825 = vmatpush1.msra.mxu0 0.0
    %826 = vmatprep.subr.mxu0 0.0
    %827 = vmatpush1.msra.mxu0 0.0
    %828 = vmatprep.subr.mxu0 0.0
    %829 = vmatpush1.msra.mxu0 0.0
    %830 = vmatprep.subr.mxu0 0.0
    %831 = vmatpush1.msra.mxu0 0.0
    %832 = vmatprep.subr.mxu0 0.0
    %833 = vmatpush1.msra.mxu0 0.0
    %834 = vmatprep.subr.mxu0 0.0
    %835 = vmatpush1.msra.mxu0 0.0
    %836 = vmatprep.subr.mxu0 0.0
    %837 = vmatpush1.msra.mxu0 0.0
    %838 = vmatprep.subr.mxu0 0.0
    %839 = vmatpush1.msra.mxu0 0.0
    %840 = vmatprep.subr.mxu0 0.0
    %841 = vmatpush1.msra.mxu0 0.0
    %842 = vmatprep.subr.mxu0 0.0
    %843 = vmatpush1.msra.mxu0 0.0
    %844 = vmatprep.subr.mxu0 0.0
    %845 = vmatpush1.msra.mxu0 0.0
    %846 = vmatprep.subr.mxu0 0.0
    %847 = vmatpush1.msra.mxu0 0.0
    %848 = vmatprep.subr.mxu0 0.0
    %849 = vmatpush1.msra.mxu0 0.0
    %850 = vmatprep.mubr.f32.mxu0 0.0
    %v851 = vand.u32 %v101, 4294901760
    %852 = vmatmul.mubr.f32.gmra.mrb[0].mxu0 %v851
    %v853 = vpop.f32.mrb[0].mxu0
    %v854 = vadd.f32 %v281, %v853
    %v855 = vpop.f32.mrb[0].mxu0
    %v856 = vadd.f32 %v283, %v855
    %857 = vmatprep.mubr.f32.mxu0 0.0
    %v858 = vand.u32 %v102, 4294901760
    %859 = vmatmul.mubr.f32.gmra.mrb[0].mxu0 %v858
    %v860 = vpop.f32.mrb[0].mxu0
    %v861 = vadd.f32 %v292, %v860
    %v862 = vpop.f32.mrb[0].mxu0
    %v863 = vadd.f32 %v294, %v862
    %864 = vmatprep.mubr.f32.mxu0 0.0
    %v865 = vand.u32 %v103, 4294901760
    %866 = vmatmul.mubr.f32.gmra.mrb[0].mxu0 %v865
    %v867 = vpop.f32.mrb[0].mxu0
    %v868 = vadd.f32 %v303, %v867
    %v869 = vpop.f32.mrb[0].mxu0
    %v870 = vadd.f32 %v305, %v869
    %871 = vmatprep.mubr.f32.mxu0 0.0
    %v872 = vand.u32 %v104, 4294901760
    %873 = vmatmul.mubr.f32.gmra.mrb[0].mxu0 %v872
    %v874 = vpop.f32.mrb[0].mxu0
    %v875 = vadd.f32 %v314, %v874
    %v876 = vpop.f32.mrb[0].mxu0
    %v877 = vadd.f32 %v316, %v876
    %878 = vmatprep.mubr.f32.mxu0 0.0
    %v879 = vand.u32 %v105, 4294901760
    %880 = vmatmul.mubr.f32.gmra.mrb[0].mxu0 %v879
    %v881 = vpop.f32.mrb[0].mxu0
    %v882 = vadd.f32 %v325, %v881
    %v883 = vpop.f32.mrb[0].mxu0
    %v884 = vadd.f32 %v327, %v883
    %885 = vmatprep.mubr.f32.mxu0 0.0
    %v886 = vand.u32 %v106, 4294901760
    %887 = vmatmul.mubr.f32.gmra.mrb[0].mxu0 %v886
    %v888 = vpop.f32.mrb[0].mxu0
    %v889 = vadd.f32 %v336, %v888
    %v890 = vpop.f32.mrb[0].mxu0
    %v891 = vadd.f32 %v338, %v890
    %892 = vmatprep.mubr.f32.mxu0 0.0
    %v893 = vand.u32 %v107, 4294901760
    %894 = vmatmul.mubr.f32.gmra.mrb[0].mxu0 %v893
    %v895 = vpop.f32.mrb[0].mxu0
    %v896 = vadd.f32 %v347, %v895
    %v897 = vpop.f32.mrb[0].mxu0
    %v898 = vadd.f32 %v349, %v897
    %899 = vmatprep.mubr.f32.mxu0 0.0
    %v900 = vand.u32 %v108, 4294901760
    %901 = vmatmul.mubr.f32.gmra.mrb[0].mxu0 %v900
    %v902 = vpop.f32.mrb[0].mxu0
    %v903 = vadd.f32 %v358, %v902
    %v904 = vpop.f32.mrb[0].mxu0
    %v905 = vadd.f32 %v360, %v904
    %906 = vmatprep.mubr.f32.mxu0 0.0
    %v907 = vand.u32 %v109, 4294901760
    %908 = vmatmul.mubr.f32.gmra.mrb[0].mxu0 %v907
    %v909 = vpop.f32.mrb[0].mxu0
    %v910 = vadd.f32 %v369, %v909
    %v911 = vpop.f32.mrb[0].mxu0
    %v912 = vadd.f32 %v371, %v911
    %913 = vmatprep.mubr.f32.mxu0 0.0
    %v914 = vand.u32 %v110, 4294901760
    %915 = vmatmul.mubr.f32.gmra.mrb[0].mxu0 %v914
    %v916 = vpop.f32.mrb[0].mxu0
    %v917 = vadd.f32 %v380, %v916
    %v918 = vpop.f32.mrb[0].mxu0
    %v919 = vadd.f32 %v382, %v918
    %920 = vmatprep.mubr.f32.mxu0 0.0
    %v921 = vand.u32 %v111, 4294901760
    %922 = vmatmul.mubr.f32.gmra.mrb[0].mxu0 %v921
    %v923 = vpop.f32.mrb[0].mxu0
    %v924 = vadd.f32 %v391, %v923
    %v925 = vpop.f32.mrb[0].mxu0
    %v926 = vadd.f32 %v393, %v925
    %927 = vmatprep.mubr.f32.mxu0 0.0
    %v928 = vand.u32 %v112, 4294901760
    %929 = vmatmul.mubr.f32.gmra.mrb[0].mxu0 %v928
    %v930 = vpop.f32.mrb[0].mxu0
    %v931 = vadd.f32 %v402, %v930
    %v932 = vpop.f32.mrb[0].mxu0
    %v933 = vadd.f32 %v404, %v932
    %934 = vmatprep.mubr.f32.mxu0 0.0
    %v935 = vand.u32 %v113, 4294901760
    %936 = vmatmul.mubr.f32.gmra.mrb[0].mxu0 %v935
    %v937 = vpop.f32.mrb[0].mxu0
    %v938 = vadd.f32 %v413, %v937
    %v939 = vpop.f32.mrb[0].mxu0
    %v940 = vadd.f32 %v415, %v939
    %941 = vmatprep.mubr.f32.mxu0 0.0
    %v942 = vand.u32 %v114, 4294901760
    %943 = vmatmul.mubr.f32.gmra.mrb[0].mxu0 %v942
    %v944 = vpop.f32.mrb[0].mxu0
    %v945 = vadd.f32 %v424, %v944
    %v946 = vpop.f32.mrb[0].mxu0
    %v947 = vadd.f32 %v426, %v946
    %948 = vmatprep.mubr.f32.mxu0 0.0
    %v949 = vand.u32 %v115, 4294901760
    %950 = vmatmul.mubr.f32.gmra.mrb[0].mxu0 %v949
    %v951 = vpop.f32.mrb[0].mxu0
    %v952 = vadd.f32 %v435, %v951
    %v953 = vpop.f32.mrb[0].mxu0
    %v954 = vadd.f32 %v437, %v953
    %955 = vmatprep.mubr.f32.mxu0 0.0
    %v956 = vand.u32 %v116, 4294901760
    %957 = vmatmul.mubr.f32.gmra.mrb[0].mxu0 %v956
    %v958 = vpop.f32.mrb[0].mxu0
    %v959 = vadd.f32 %v446, %v958
    %v960 = vpop.f32.mrb[0].mxu0
    %v961 = vadd.f32 %v448, %v960
    %962 = vmatprep.mubr.f32.mxu0 0.0
    %v963 = vand.u32 %v117, 4294901760
    %964 = vmatmul.mubr.f32.gmra.mrb[0].mxu0 %v963
    %v965 = vpop.f32.mrb[0].mxu0
    %v966 = vadd.f32 %v457, %v965
    %v967 = vpop.f32.mrb[0].mxu0
    %v968 = vadd.f32 %v459, %v967
    %969 = vmatprep.mubr.f32.mxu0 0.0
    %v970 = vand.u32 %v118, 4294901760
    %971 = vmatmul.mubr.f32.gmra.mrb[0].mxu0 %v970
    %v972 = vpop.f32.mrb[0].mxu0
    %v973 = vadd.f32 %v468, %v972
    %v974 = vpop.f32.mrb[0].mxu0
    %v975 = vadd.f32 %v470, %v974
    %976 = vmatprep.mubr.f32.mxu0 0.0
    %v977 = vand.u32 %v119, 4294901760
    %978 = vmatmul.mubr.f32.gmra.mrb[0].mxu0 %v977
    %v979 = vpop.f32.mrb[0].mxu0
    %v980 = vadd.f32 %v479, %v979
    %v981 = vpop.f32.mrb[0].mxu0
    %v982 = vadd.f32 %v481, %v981
    %983 = vmatprep.mubr.f32.mxu0 0.0
    %v984 = vand.u32 %v120, 4294901760
    %985 = vmatmul.mubr.f32.gmra.mrb[0].mxu0 %v984
    %v986 = vpop.f32.mrb[0].mxu0
    %v987 = vadd.f32 %v490, %v986
    %v988 = vpop.f32.mrb[0].mxu0
    %v989 = vadd.f32 %v492, %v988
    %990 = vmatprep.mubr.f32.mxu0 0.0
    %v991 = vand.u32 %v121, 4294901760
    %992 = vmatmul.mubr.f32.gmra.mrb[0].mxu0 %v991
    %v993 = vpop.f32.mrb[0].mxu0
    %v994 = vadd.f32 %v501, %v993
    %v995 = vpop.f32.mrb[0].mxu0
    %v996 = vadd.f32 %v503, %v995
    %997 = vmatprep.mubr.f32.mxu0 0.0
    %v998 = vand.u32 %v122, 4294901760
    %999 = vmatmul.mubr.f32.gmra.mrb[0].mxu0 %v998
    %v1000 = vpop.f32.mrb[0].mxu0
    %v1001 = vadd.f32 %v512, %v1000
    %v1002 = vpop.f32.mrb[0].mxu0
    %v1003 = vadd.f32 %v514, %v1002
    %1004 = vmatprep.mubr.f32.mxu0 0.0
    %v1005 = vand.u32 %v123, 4294901760
    %1006 = vmatmul.mubr.f32.gmra.mrb[0].mxu0 %v1005
    %v1007 = vpop.f32.mrb[0].mxu0
    %v1008 = vadd.f32 %v523, %v1007
    %v1009 = vpop.f32.mrb[0].mxu0
    %v1010 = vadd.f32 %v525, %v1009
    %1011 = vmatprep.mubr.f32.mxu0 0.0
    %v1012 = vand.u32 %v124, 4294901760
    %1013 = vmatmul.mubr.f32.gmra.mrb[0].mxu0 %v1012
    %v1014 = vpop.f32.mrb[0].mxu0
    %v1015 = vadd.f32 %v534, %v1014
    %v1016 = vpop.f32.mrb[0].mxu0
    %v1017 = vadd.f32 %v536, %v1016
    %1018 = vmatprep.mubr.f32.mxu0 0.0
    %v1019 = vand.u32 %v125, 4294901760
    %1020 = vmatmul.mubr.f32.gmra.mrb[0].mxu0 %v1019
    %v1021 = vpop.f32.mrb[0].mxu0
    %v1022 = vadd.f32 %v545, %v1021
    %v1023 = vpop.f32.mrb[0].mxu0
    %v1024 = vadd.f32 %v547, %v1023
    %1025 = vmatprep.mubr.f32.mxu0 0.0
    %v1026 = vand.u32 %v126, 4294901760
    %1027 = vmatmul.mubr.f32.gmra.mrb[0].mxu0 %v1026
    %v1028 = vpop.f32.mrb[0].mxu0
    %v1029 = vadd.f32 %v556, %v1028
    %v1030 = vpop.f32.mrb[0].mxu0
    %v1031 = vadd.f32 %v558, %v1030
    %1032 = vmatprep.mubr.f32.mxu0 0.0
    %v1033 = vand.u32 %v127, 4294901760
    %1034 = vmatmul.mubr.f32.gmra.mrb[0].mxu0 %v1033
    %v1035 = vpop.f32.mrb[0].mxu0
    %v1036 = vadd.f32 %v567, %v1035
    %v1037 = vpop.f32.mrb[0].mxu0
    %v1038 = vadd.f32 %v569, %v1037
    %1039 = vmatprep.mubr.f32.mxu0 0.0
    %v1040 = vand.u32 %v128, 4294901760
    %1041 = vmatmul.mubr.f32.gmra.mrb[0].mxu0 %v1040
    %v1042 = vpop.f32.mrb[0].mxu0
    %v1043 = vadd.f32 %v578, %v1042
    %v1044 = vpop.f32.mrb[0].mxu0
    %v1045 = vadd.f32 %v580, %v1044
    %1046 = vmatprep.mubr.f32.mxu0 0.0
    %v1047 = vand.u32 %v129, 4294901760
    %1048 = vmatmul.mubr.f32.gmra.mrb[0].mxu0 %v1047
    %v1049 = vpop.f32.mrb[0].mxu0
    %v1050 = vadd.f32 %v589, %v1049
    %v1051 = vpop.f32.mrb[0].mxu0
    %v1052 = vadd.f32 %v591, %v1051
    %1053 = vmatprep.mubr.f32.mxu0 0.0
    %v1054 = vand.u32 %v130, 4294901760
    %1055 = vmatmul.mubr.f32.gmra.mrb[0].mxu0 %v1054
    %v1056 = vpop.f32.mrb[0].mxu0
    %v1057 = vadd.f32 %v600, %v1056
    %v1058 = vpop.f32.mrb[0].mxu0
    %v1059 = vadd.f32 %v602, %v1058
    %1060 = vmatprep.mubr.f32.mxu0 0.0
    %v1061 = vand.u32 %v131, 4294901760
    %1062 = vmatmul.mubr.f32.gmra.mrb[0].mxu0 %v1061
    %v1063 = vpop.f32.mrb[0].mxu0
    %v1064 = vadd.f32 %v611, %v1063
    %v1065 = vpop.f32.mrb[0].mxu0
    %v1066 = vadd.f32 %v613, %v1065
    %1067 = vmatprep.mubr.f32.mxu0 0.0
    %v1068 = vand.u32 %v132, 4294901760
    %1069 = vmatmul.mubr.f32.gmra.mrb[0].mxu0 %v1068
    %v1070 = vpop.f32.mrb[0].mxu0
    %v1071 = vadd.f32 %v622, %v1070
    %v1072 = vpop.f32.mrb[0].mxu0
    %v1073 = vadd.f32 %v624, %v1072
    %1074 = vdwg.mxu0
    %v1075 = vand.u32 %v134, 4294901760
    %v1076 = vsub.f32 %v134, %v1075
    %1077 = vmatprep.subr.mxu0 %v1076
    %v1078 = vand.u32 %v133, 4294901760
    %v1079 = vsub.f32 %v133, %v1078
    %1080 = vmatpush1.msra.mxu0 %v1079
    %v1081 = vand.u32 %v136, 4294901760
    %v1082 = vsub.f32 %v136, %v1081
    %1083 = vmatprep.subr.mxu0 %v1082
    %v1084 = vand.u32 %v135, 4294901760
    %v1085 = vsub.f32 %v135, %v1084
    %1086 = vmatpush1.msra.mxu0 %v1085
    %v1087 = vand.u32 %v138, 4294901760
    %v1088 = vsub.f32 %v138, %v1087
    %1089 = vmatprep.subr.mxu0 %v1088
    %v1090 = vand.u32 %v137, 4294901760
    %v1091 = vsub.f32 %v137, %v1090
    %1092 = vmatpush1.msra.mxu0 %v1091
    %v1093 = vand.u32 %v140, 4294901760
    %v1094 = vsub.f32 %v140, %v1093
    %1095 = vmatprep.subr.mxu0 %v1094
    %v1096 = vand.u32 %v139, 4294901760
    %v1097 = vsub.f32 %v139, %v1096
    %1098 = vmatpush1.msra.mxu0 %v1097
    %v1099 = vand.u32 %v142, 4294901760
    %v1100 = vsub.f32 %v142, %v1099
    %1101 = vmatprep.subr.mxu0 %v1100
    %v1102 = vand.u32 %v141, 4294901760
    %v1103 = vsub.f32 %v141, %v1102
    %1104 = vmatpush1.msra.mxu0 %v1103
    %v1105 = vand.u32 %v144, 4294901760
    %v1106 = vsub.f32 %v144, %v1105
    %1107 = vmatprep.subr.mxu0 %v1106
    %v1108 = vand.u32 %v143, 4294901760
    %v1109 = vsub.f32 %v143, %v1108
    %1110 = vmatpush1.msra.mxu0 %v1109
    %v1111 = vand.u32 %v146, 4294901760
    %v1112 = vsub.f32 %v146, %v1111
    %1113 = vmatprep.subr.mxu0 %v1112
    %v1114 = vand.u32 %v145, 4294901760
    %v1115 = vsub.f32 %v145, %v1114
    %1116 = vmatpush1.msra.mxu0 %v1115
    %v1117 = vand.u32 %v148, 4294901760
    %v1118 = vsub.f32 %v148, %v1117
    %1119 = vmatprep.subr.mxu0 %v1118
    %v1120 = vand.u32 %v147, 4294901760
    %v1121 = vsub.f32 %v147, %v1120
    %1122 = vmatpush1.msra.mxu0 %v1121
    %v1123 = vand.u32 %v150, 4294901760
    %v1124 = vsub.f32 %v150, %v1123
    %1125 = vmatprep.subr.mxu0 %v1124
    %v1126 = vand.u32 %v149, 4294901760
    %v1127 = vsub.f32 %v149, %v1126
    %1128 = vmatpush1.msra.mxu0 %v1127
    %v1129 = vand.u32 %v152, 4294901760
    %v1130 = vsub.f32 %v152, %v1129
    %1131 = vmatprep.subr.mxu0 %v1130
    %v1132 = vand.u32 %v151, 4294901760
    %v1133 = vsub.f32 %v151, %v1132
    %1134 = vmatpush1.msra.mxu0 %v1133
    %v1135 = vand.u32 %v154, 4294901760
    %v1136 = vsub.f32 %v154, %v1135
    %1137 = vmatprep.subr.mxu0 %v1136
    %v1138 = vand.u32 %v153, 4294901760
    %v1139 = vsub.f32 %v153, %v1138
    %1140 = vmatpush1.msra.mxu0 %v1139
    %v1141 = vand.u32 %v156, 4294901760
    %v1142 = vsub.f32 %v156, %v1141
    %1143 = vmatprep.subr.mxu0 %v1142
    %v1144 = vand.u32 %v155, 4294901760
    %v1145 = vsub.f32 %v155, %v1144
    %1146 = vmatpush1.msra.mxu0 %v1145
    %v1147 = vand.u32 %v158, 4294901760
    %v1148 = vsub.f32 %v158, %v1147
    %1149 = vmatprep.subr.mxu0 %v1148
    %v1150 = vand.u32 %v157, 4294901760
    %v1151 = vsub.f32 %v157, %v1150
    %1152 = vmatpush1.msra.mxu0 %v1151
    %v1153 = vand.u32 %v160, 4294901760
    %v1154 = vsub.f32 %v160, %v1153
    %1155 = vmatprep.subr.mxu0 %v1154
    %v1156 = vand.u32 %v159, 4294901760
    %v1157 = vsub.f32 %v159, %v1156
    %1158 = vmatpush1.msra.mxu0 %v1157
    %v1159 = vand.u32 %v162, 4294901760
    %v1160 = vsub.f32 %v162, %v1159
    %1161 = vmatprep.subr.mxu0 %v1160
    %v1162 = vand.u32 %v161, 4294901760
    %v1163 = vsub.f32 %v161, %v1162
    %1164 = vmatpush1.msra.mxu0 %v1163
    %v1165 = vand.u32 %v164, 4294901760
    %v1166 = vsub.f32 %v164, %v1165
    %1167 = vmatprep.subr.mxu0 %v1166
    %v1168 = vand.u32 %v163, 4294901760
    %v1169 = vsub.f32 %v163, %v1168
    %1170 = vmatpush1.msra.mxu0 %v1169
    %1171 = vmatprep.subr.mxu0 0.0
    %1172 = vmatpush1.msra.mxu0 0.0
    %1173 = vmatprep.subr.mxu0 0.0
    %1174 = vmatpush1.msra.mxu0 0.0
    %1175 = vmatprep.subr.mxu0 0.0
    %1176 = vmatpush1.msra.mxu0 0.0
    %1177 = vmatprep.subr.mxu0 0.0
    %1178 = vmatpush1.msra.mxu0 0.0
    %1179 = vmatprep.subr.mxu0 0.0
    %1180 = vmatpush1.msra.mxu0 0.0
    %1181 = vmatprep.subr.mxu0 0.0
    %1182 = vmatpush1.msra.mxu0 0.0
    %1183 = vmatprep.subr.mxu0 0.0
    %1184 = vmatpush1.msra.mxu0 0.0
    %1185 = vmatprep.subr.mxu0 0.0
    %1186 = vmatpush1.msra.mxu0 0.0
    %1187 = vmatprep.subr.mxu0 0.0
    %1188 = vmatpush1.msra.mxu0 0.0
    %1189 = vmatprep.subr.mxu0 0.0
    %1190 = vmatpush1.msra.mxu0 0.0
    %1191 = vmatprep.subr.mxu0 0.0
    %1192 = vmatpush1.msra.mxu0 0.0
    %1193 = vmatprep.subr.mxu0 0.0
    %1194 = vmatpush1.msra.mxu0 0.0
    %1195 = vmatprep.subr.mxu0 0.0
    %1196 = vmatpush1.msra.mxu0 0.0
    %1197 = vmatprep.subr.mxu0 0.0
    %1198 = vmatpush1.msra.mxu0 0.0
    %1199 = vmatprep.subr.mxu0 0.0
    %1200 = vmatpush1.msra.mxu0 0.0
    %1201 = vmatprep.subr.mxu0 0.0
    %1202 = vmatpush1.msra.mxu0 0.0
    %1203 = vmatprep.mubr.f32.mxu0 0.0
    %v1204 = vand.u32 %v101, 4294901760
    %v1205 = vsub.f32 %v101, %v1204
    %1206 = vmatmul.mubr.f32.gmra.mrb[0].mxu0 %v1205
    %v1207 = vpop.f32.mrb[0].mxu0
    %v1208 = vadd.f32 %v854, %v1207
    %v1209 = vpop.f32.mrb[0].mxu0
    %v1210 = vadd.f32 %v856, %v1209
    %1211 = vmatprep.mubr.f32.mxu0 0.0
    %v1212 = vand.u32 %v102, 4294901760
    %v1213 = vsub.f32 %v102, %v1212
    %1214 = vmatmul.mubr.f32.gmra.mrb[0].mxu0 %v1213
    %v1215 = vpop.f32.mrb[0].mxu0
    %v1216 = vadd.f32 %v861, %v1215
    %v1217 = vpop.f32.mrb[0].mxu0
    %v1218 = vadd.f32 %v863, %v1217
    %1219 = vmatprep.mubr.f32.mxu0 0.0
    %v1220 = vand.u32 %v103, 4294901760
    %v1221 = vsub.f32 %v103, %v1220
    %1222 = vmatmul.mubr.f32.gmra.mrb[0].mxu0 %v1221
    %v1223 = vpop.f32.mrb[0].mxu0
    %v1224 = vadd.f32 %v868, %v1223
    %v1225 = vpop.f32.mrb[0].mxu0
    %v1226 = vadd.f32 %v870, %v1225
    %1227 = vmatprep.mubr.f32.mxu0 0.0
    %v1228 = vand.u32 %v104, 4294901760
    %v1229 = vsub.f32 %v104, %v1228
    %1230 = vmatmul.mubr.f32.gmra.mrb[0].mxu0 %v1229
    %v1231 = vpop.f32.mrb[0].mxu0
    %v1232 = vadd.f32 %v875, %v1231
    %v1233 = vpop.f32.mrb[0].mxu0
    %v1234 = vadd.f32 %v877, %v1233
    %1235 = vmatprep.mubr.f32.mxu0 0.0
    %v1236 = vand.u32 %v105, 4294901760
    %v1237 = vsub.f32 %v105, %v1236
    %1238 = vmatmul.mubr.f32.gmra.mrb[0].mxu0 %v1237
    %v1239 = vpop.f32.mrb[0].mxu0
    %v1240 = vadd.f32 %v882, %v1239
    %v1241 = vpop.f32.mrb[0].mxu0
    %v1242 = vadd.f32 %v884, %v1241
    %1243 = vmatprep.mubr.f32.mxu0 0.0
    %v1244 = vand.u32 %v106, 4294901760
    %v1245 = vsub.f32 %v106, %v1244
    %1246 = vmatmul.mubr.f32.gmra.mrb[0].mxu0 %v1245
    %v1247 = vpop.f32.mrb[0].mxu0
    %v1248 = vadd.f32 %v889, %v1247
    %v1249 = vpop.f32.mrb[0].mxu0
    %v1250 = vadd.f32 %v891, %v1249
    %1251 = vmatprep.mubr.f32.mxu0 0.0
    %v1252 = vand.u32 %v107, 4294901760
    %v1253 = vsub.f32 %v107, %v1252
    %1254 = vmatmul.mubr.f32.gmra.mrb[0].mxu0 %v1253
    %v1255 = vpop.f32.mrb[0].mxu0
    %v1256 = vadd.f32 %v896, %v1255
    %v1257 = vpop.f32.mrb[0].mxu0
    %v1258 = vadd.f32 %v898, %v1257
    %1259 = vmatprep.mubr.f32.mxu0 0.0
    %v1260 = vand.u32 %v108, 4294901760
    %v1261 = vsub.f32 %v108, %v1260
    %1262 = vmatmul.mubr.f32.gmra.mrb[0].mxu0 %v1261
    %v1263 = vpop.f32.mrb[0].mxu0
    %v1264 = vadd.f32 %v903, %v1263
    %v1265 = vpop.f32.mrb[0].mxu0
    %v1266 = vadd.f32 %v905, %v1265
    %1267 = vmatprep.mubr.f32.mxu0 0.0
    %v1268 = vand.u32 %v109, 4294901760
    %v1269 = vsub.f32 %v109, %v1268
    %1270 = vmatmul.mubr.f32.gmra.mrb[0].mxu0 %v1269
    %v1271 = vpop.f32.mrb[0].mxu0
    %v1272 = vadd.f32 %v910, %v1271
    %v1273 = vpop.f32.mrb[0].mxu0
    %v1274 = vadd.f32 %v912, %v1273
    %1275 = vmatprep.mubr.f32.mxu0 0.0
    %v1276 = vand.u32 %v110, 4294901760
    %v1277 = vsub.f32 %v110, %v1276
    %1278 = vmatmul.mubr.f32.gmra.mrb[0].mxu0 %v1277
    %v1279 = vpop.f32.mrb[0].mxu0
    %v1280 = vadd.f32 %v917, %v1279
    %v1281 = vpop.f32.mrb[0].mxu0
    %v1282 = vadd.f32 %v919, %v1281
    %1283 = vmatprep.mubr.f32.mxu0 0.0
    %v1284 = vand.u32 %v111, 4294901760
    %v1285 = vsub.f32 %v111, %v1284
    %1286 = vmatmul.mubr.f32.gmra.mrb[0].mxu0 %v1285
    %v1287 = vpop.f32.mrb[0].mxu0
    %v1288 = vadd.f32 %v924, %v1287
    %v1289 = vpop.f32.mrb[0].mxu0
    %v1290 = vadd.f32 %v926, %v1289
    %1291 = vmatprep.mubr.f32.mxu0 0.0
    %v1292 = vand.u32 %v112, 4294901760
    %v1293 = vsub.f32 %v112, %v1292
    %1294 = vmatmul.mubr.f32.gmra.mrb[0].mxu0 %v1293
    %v1295 = vpop.f32.mrb[0].mxu0
    %v1296 = vadd.f32 %v931, %v1295
    %v1297 = vpop.f32.mrb[0].mxu0
    %v1298 = vadd.f32 %v933, %v1297
    %1299 = vmatprep.mubr.f32.mxu0 0.0
    %v1300 = vand.u32 %v113, 4294901760
    %v1301 = vsub.f32 %v113, %v1300
    %1302 = vmatmul.mubr.f32.gmra.mrb[0].mxu0 %v1301
    %v1303 = vpop.f32.mrb[0].mxu0
    %v1304 = vadd.f32 %v938, %v1303
    %v1305 = vpop.f32.mrb[0].mxu0
    %v1306 = vadd.f32 %v940, %v1305
    %1307 = vmatprep.mubr.f32.mxu0 0.0
    %v1308 = vand.u32 %v114, 4294901760
    %v1309 = vsub.f32 %v114, %v1308
    %1310 = vmatmul.mubr.f32.gmra.mrb[0].mxu0 %v1309
    %v1311 = vpop.f32.mrb[0].mxu0
    %v1312 = vadd.f32 %v945, %v1311
    %v1313 = vpop.f32.mrb[0].mxu0
    %v1314 = vadd.f32 %v947, %v1313
    %1315 = vmatprep.mubr.f32.mxu0 0.0
    %v1316 = vand.u32 %v115, 4294901760
    %v1317 = vsub.f32 %v115, %v1316
    %1318 = vmatmul.mubr.f32.gmra.mrb[0].mxu0 %v1317
    %v1319 = vpop.f32.mrb[0].mxu0
    %v1320 = vadd.f32 %v952, %v1319
    %v1321 = vpop.f32.mrb[0].mxu0
    %v1322 = vadd.f32 %v954, %v1321
    %1323 = vmatprep.mubr.f32.mxu0 0.0
    %v1324 = vand.u32 %v116, 4294901760
    %v1325 = vsub.f32 %v116, %v1324
    %1326 = vmatmul.mubr.f32.gmra.mrb[0].mxu0 %v1325
    %v1327 = vpop.f32.mrb[0].mxu0
    %v1328 = vadd.f32 %v959, %v1327
    %v1329 = vpop.f32.mrb[0].mxu0
    %v1330 = vadd.f32 %v961, %v1329
    %1331 = vmatprep.mubr.f32.mxu0 0.0
    %v1332 = vand.u32 %v117, 4294901760
    %v1333 = vsub.f32 %v117, %v1332
    %1334 = vmatmul.mubr.f32.gmra.mrb[0].mxu0 %v1333
    %v1335 = vpop.f32.mrb[0].mxu0
    %v1336 = vadd.f32 %v966, %v1335
    %v1337 = vpop.f32.mrb[0].mxu0
    %v1338 = vadd.f32 %v968, %v1337
    %1339 = vmatprep.mubr.f32.mxu0 0.0
    %v1340 = vand.u32 %v118, 4294901760
    %v1341 = vsub.f32 %v118, %v1340
    %1342 = vmatmul.mubr.f32.gmra.mrb[0].mxu0 %v1341
    %v1343 = vpop.f32.mrb[0].mxu0
    %v1344 = vadd.f32 %v973, %v1343
    %v1345 = vpop.f32.mrb[0].mxu0
    %v1346 = vadd.f32 %v975, %v1345
    %1347 = vmatprep.mubr.f32.mxu0 0.0
    %v1348 = vand.u32 %v119, 4294901760
    %v1349 = vsub.f32 %v119, %v1348
    %1350 = vmatmul.mubr.f32.gmra.mrb[0].mxu0 %v1349
    %v1351 = vpop.f32.mrb[0].mxu0
    %v1352 = vadd.f32 %v980, %v1351
    %v1353 = vpop.f32.mrb[0].mxu0
    %v1354 = vadd.f32 %v982, %v1353
    %1355 = vmatprep.mubr.f32.mxu0 0.0
    %v1356 = vand.u32 %v120, 4294901760
    %v1357 = vsub.f32 %v120, %v1356
    %1358 = vmatmul.mubr.f32.gmra.mrb[0].mxu0 %v1357
    %v1359 = vpop.f32.mrb[0].mxu0
    %v1360 = vadd.f32 %v987, %v1359
    %v1361 = vpop.f32.mrb[0].mxu0
    %v1362 = vadd.f32 %v989, %v1361
    %1363 = vmatprep.mubr.f32.mxu0 0.0
    %v1364 = vand.u32 %v121, 4294901760
    %v1365 = vsub.f32 %v121, %v1364
    %1366 = vmatmul.mubr.f32.gmra.mrb[0].mxu0 %v1365
    %v1367 = vpop.f32.mrb[0].mxu0
    %v1368 = vadd.f32 %v994, %v1367
    %v1369 = vpop.f32.mrb[0].mxu0
    %v1370 = vadd.f32 %v996, %v1369
    %1371 = vmatprep.mubr.f32.mxu0 0.0
    %v1372 = vand.u32 %v122, 4294901760
    %v1373 = vsub.f32 %v122, %v1372
    %1374 = vmatmul.mubr.f32.gmra.mrb[0].mxu0 %v1373
    %v1375 = vpop.f32.mrb[0].mxu0
    %v1376 = vadd.f32 %v1001, %v1375
    %v1377 = vpop.f32.mrb[0].mxu0
    %v1378 = vadd.f32 %v1003, %v1377
    %1379 = vmatprep.mubr.f32.mxu0 0.0
    %v1380 = vand.u32 %v123, 4294901760
    %v1381 = vsub.f32 %v123, %v1380
    %1382 = vmatmul.mubr.f32.gmra.mrb[0].mxu0 %v1381
    %v1383 = vpop.f32.mrb[0].mxu0
    %v1384 = vadd.f32 %v1008, %v1383
    %v1385 = vpop.f32.mrb[0].mxu0
    %v1386 = vadd.f32 %v1010, %v1385
    %1387 = vmatprep.mubr.f32.mxu0 0.0
    %v1388 = vand.u32 %v124, 4294901760
    %v1389 = vsub.f32 %v124, %v1388
    %1390 = vmatmul.mubr.f32.gmra.mrb[0].mxu0 %v1389
    %v1391 = vpop.f32.mrb[0].mxu0
    %v1392 = vadd.f32 %v1015, %v1391
    %v1393 = vpop.f32.mrb[0].mxu0
    %v1394 = vadd.f32 %v1017, %v1393
    %1395 = vmatprep.mubr.f32.mxu0 0.0
    %v1396 = vand.u32 %v125, 4294901760
    %v1397 = vsub.f32 %v125, %v1396
    %1398 = vmatmul.mubr.f32.gmra.mrb[0].mxu0 %v1397
    %v1399 = vpop.f32.mrb[0].mxu0
    %v1400 = vadd.f32 %v1022, %v1399
    %v1401 = vpop.f32.mrb[0].mxu0
    %v1402 = vadd.f32 %v1024, %v1401
    %1403 = vmatprep.mubr.f32.mxu0 0.0
    %v1404 = vand.u32 %v126, 4294901760
    %v1405 = vsub.f32 %v126, %v1404
    %1406 = vmatmul.mubr.f32.gmra.mrb[0].mxu0 %v1405
    %v1407 = vpop.f32.mrb[0].mxu0
    %v1408 = vadd.f32 %v1029, %v1407
    %v1409 = vpop.f32.mrb[0].mxu0
    %v1410 = vadd.f32 %v1031, %v1409
    %1411 = vmatprep.mubr.f32.mxu0 0.0
    %v1412 = vand.u32 %v127, 4294901760
    %v1413 = vsub.f32 %v127, %v1412
    %1414 = vmatmul.mubr.f32.gmra.mrb[0].mxu0 %v1413
    %v1415 = vpop.f32.mrb[0].mxu0
    %v1416 = vadd.f32 %v1036, %v1415
    %v1417 = vpop.f32.mrb[0].mxu0
    %v1418 = vadd.f32 %v1038, %v1417
    %1419 = vmatprep.mubr.f32.mxu0 0.0
    %v1420 = vand.u32 %v128, 4294901760
    %v1421 = vsub.f32 %v128, %v1420
    %1422 = vmatmul.mubr.f32.gmra.mrb[0].mxu0 %v1421
    %v1423 = vpop.f32.mrb[0].mxu0
    %v1424 = vadd.f32 %v1043, %v1423
    %v1425 = vpop.f32.mrb[0].mxu0
    %v1426 = vadd.f32 %v1045, %v1425
    %1427 = vmatprep.mubr.f32.mxu0 0.0
    %v1428 = vand.u32 %v129, 4294901760
    %v1429 = vsub.f32 %v129, %v1428
    %1430 = vmatmul.mubr.f32.gmra.mrb[0].mxu0 %v1429
    %v1431 = vpop.f32.mrb[0].mxu0
    %v1432 = vadd.f32 %v1050, %v1431
    %v1433 = vpop.f32.mrb[0].mxu0
    %v1434 = vadd.f32 %v1052, %v1433
    %1435 = vmatprep.mubr.f32.mxu0 0.0
    %v1436 = vand.u32 %v130, 4294901760
    %v1437 = vsub.f32 %v130, %v1436
    %1438 = vmatmul.mubr.f32.gmra.mrb[0].mxu0 %v1437
    %v1439 = vpop.f32.mrb[0].mxu0
    %v1440 = vadd.f32 %v1057, %v1439
    %v1441 = vpop.f32.mrb[0].mxu0
    %v1442 = vadd.f32 %v1059, %v1441
    %1443 = vmatprep.mubr.f32.mxu0 0.0
    %v1444 = vand.u32 %v131, 4294901760
    %v1445 = vsub.f32 %v131, %v1444
    %1446 = vmatmul.mubr.f32.gmra.mrb[0].mxu0 %v1445
    %v1447 = vpop.f32.mrb[0].mxu0
    %v1448 = vadd.f32 %v1064, %v1447
    %v1449 = vpop.f32.mrb[0].mxu0
    %v1450 = vadd.f32 %v1066, %v1449
    %1451 = vmatprep.mubr.f32.mxu0 0.0
    %v1452 = vand.u32 %v132, 4294901760
    %v1453 = vsub.f32 %v132, %v1452
    %1454 = vmatmul.mubr.f32.gmra.mrb[0].mxu0 %v1453
    %v1455 = vpop.f32.mrb[0].mxu0
    %v1456 = vadd.f32 %v1071, %v1455
    %v1457 = vpop.f32.mrb[0].mxu0
    %v1458 = vadd.f32 %v1073, %v1457
    %1459 = vdwg.mxu0
    %v1460 = vand.u32 %v134, 4294901760
    %1461 = vmatprep.subr.mxu0 %v1460
    %v1462 = vand.u32 %v133, 4294901760
    %1463 = vmatpush1.msra.mxu0 %v1462
    %v1464 = vand.u32 %v136, 4294901760
    %1465 = vmatprep.subr.mxu0 %v1464
    %v1466 = vand.u32 %v135, 4294901760
    %1467 = vmatpush1.msra.mxu0 %v1466
    %v1468 = vand.u32 %v138, 4294901760
    %1469 = vmatprep.subr.mxu0 %v1468
    %v1470 = vand.u32 %v137, 4294901760
    %1471 = vmatpush1.msra.mxu0 %v1470
    %v1472 = vand.u32 %v140, 4294901760
    %1473 = vmatprep.subr.mxu0 %v1472
    %v1474 = vand.u32 %v139, 4294901760
    %1475 = vmatpush1.msra.mxu0 %v1474
    %v1476 = vand.u32 %v142, 4294901760
    %1477 = vmatprep.subr.mxu0 %v1476
    %v1478 = vand.u32 %v141, 4294901760
    %1479 = vmatpush1.msra.mxu0 %v1478
    %v1480 = vand.u32 %v144, 4294901760
    %1481 = vmatprep.subr.mxu0 %v1480
    %v1482 = vand.u32 %v143, 4294901760
    %1483 = vmatpush1.msra.mxu0 %v1482
    %v1484 = vand.u32 %v146, 4294901760
    %1485 = vmatprep.subr.mxu0 %v1484
    %v1486 = vand.u32 %v145, 4294901760
    %1487 = vmatpush1.msra.mxu0 %v1486
    %v1488 = vand.u32 %v148, 4294901760
    %1489 = vmatprep.subr.mxu0 %v1488
    %v1490 = vand.u32 %v147, 4294901760
    %1491 = vmatpush1.msra.mxu0 %v1490
    %v1492 = vand.u32 %v150, 4294901760
    %1493 = vmatprep.subr.mxu0 %v1492
    %v1494 = vand.u32 %v149, 4294901760
    %1495 = vmatpush1.msra.mxu0 %v1494
    %v1496 = vand.u32 %v152, 4294901760
    %1497 = vmatprep.subr.mxu0 %v1496
    %v1498 = vand.u32 %v151, 4294901760
    %1499 = vmatpush1.msra.mxu0 %v1498
    %v1500 = vand.u32 %v154, 4294901760
    %1501 = vmatprep.subr.mxu0 %v1500
    %v1502 = vand.u32 %v153, 4294901760
    %1503 = vmatpush1.msra.mxu0 %v1502
    %v1504 = vand.u32 %v156, 4294901760
    %1505 = vmatprep.subr.mxu0 %v1504
    %v1506 = vand.u32 %v155, 4294901760
    %1507 = vmatpush1.msra.mxu0 %v1506
    %v1508 = vand.u32 %v158, 4294901760
    %1509 = vmatprep.subr.mxu0 %v1508
    %v1510 = vand.u32 %v157, 4294901760
    %1511 = vmatpush1.msra.mxu0 %v1510
    %v1512 = vand.u32 %v160, 4294901760
    %1513 = vmatprep.subr.mxu0 %v1512
    %v1514 = vand.u32 %v159, 4294901760
    %1515 = vmatpush1.msra.mxu0 %v1514
    %v1516 = vand.u32 %v162, 4294901760
    %1517 = vmatprep.subr.mxu0 %v1516
    %v1518 = vand.u32 %v161, 4294901760
    %1519 = vmatpush1.msra.mxu0 %v1518
    %v1520 = vand.u32 %v164, 4294901760
    %1521 = vmatprep.subr.mxu0 %v1520
    %v1522 = vand.u32 %v163, 4294901760
    %1523 = vmatpush1.msra.mxu0 %v1522
    %1524 = vmatprep.subr.mxu0 0.0
    %1525 = vmatpush1.msra.mxu0 0.0
    %1526 = vmatprep.subr.mxu0 0.0
    %1527 = vmatpush1.msra.mxu0 0.0
    %1528 = vmatprep.subr.mxu0 0.0
    %1529 = vmatpush1.msra.mxu0 0.0
    %1530 = vmatprep.subr.mxu0 0.0
    %1531 = vmatpush1.msra.mxu0 0.0
    %1532 = vmatprep.subr.mxu0 0.0
    %1533 = vmatpush1.msra.mxu0 0.0
    %1534 = vmatprep.subr.mxu0 0.0
    %1535 = vmatpush1.msra.mxu0 0.0
    %1536 = vmatprep.subr.mxu0 0.0
    %1537 = vmatpush1.msra.mxu0 0.0
    %1538 = vmatprep.subr.mxu0 0.0
    %1539 = vmatpush1.msra.mxu0 0.0
    %1540 = vmatprep.subr.mxu0 0.0
    %1541 = vmatpush1.msra.mxu0 0.0
    %1542 = vmatprep.subr.mxu0 0.0
    %1543 = vmatpush1.msra.mxu0 0.0
    %1544 = vmatprep.subr.mxu0 0.0
    %1545 = vmatpush1.msra.mxu0 0.0
    %1546 = vmatprep.subr.mxu0 0.0
    %1547 = vmatpush1.msra.mxu0 0.0
    %1548 = vmatprep.subr.mxu0 0.0
    %1549 = vmatpush1.msra.mxu0 0.0
    %1550 = vmatprep.subr.mxu0 0.0
    %1551 = vmatpush1.msra.mxu0 0.0
    %1552 = vmatprep.subr.mxu0 0.0
    %1553 = vmatpush1.msra.mxu0 0.0
    %1554 = vmatprep.subr.mxu0 0.0
    %1555 = vmatpush1.msra.mxu0 0.0
    %1556 = vmatprep.mubr.f32.mxu0 0.0
    %v1557 = vand.u32 %v101, 4294901760
    %v1558 = vsub.f32 %v101, %v1557
    %v1559 = vand.u32 %v1558, 4294901760
    %1560 = vmatmul.mubr.f32.gmra.mrb[0].mxu0 %v1559
    %v1561 = vpop.f32.mrb[0].mxu0
    %v1562 = vadd.f32 %v1208, %v1561
    %v1563 = vpop.f32.mrb[0].mxu0
    %v1564 = vadd.f32 %v1210, %v1563
    %1565 = vmatprep.mubr.f32.mxu0 0.0
    %v1566 = vand.u32 %v102, 4294901760
    %v1567 = vsub.f32 %v102, %v1566
    %v1568 = vand.u32 %v1567, 4294901760
    %1569 = vmatmul.mubr.f32.gmra.mrb[0].mxu0 %v1568
    %v1570 = vpop.f32.mrb[0].mxu0
    %v1571 = vadd.f32 %v1216, %v1570
    %v1572 = vpop.f32.mrb[0].mxu0
    %v1573 = vadd.f32 %v1218, %v1572
    %1574 = vmatprep.mubr.f32.mxu0 0.0
    %v1575 = vand.u32 %v103, 4294901760
    %v1576 = vsub.f32 %v103, %v1575
    %v1577 = vand.u32 %v1576, 4294901760
    %1578 = vmatmul.mubr.f32.gmra.mrb[0].mxu0 %v1577
    %v1579 = vpop.f32.mrb[0].mxu0
    %v1580 = vadd.f32 %v1224, %v1579
    %v1581 = vpop.f32.mrb[0].mxu0
    %v1582 = vadd.f32 %v1226, %v1581
    %1583 = vmatprep.mubr.f32.mxu0 0.0
    %v1584 = vand.u32 %v104, 4294901760
    %v1585 = vsub.f32 %v104, %v1584
    %v1586 = vand.u32 %v1585, 4294901760
    %1587 = vmatmul.mubr.f32.gmra.mrb[0].mxu0 %v1586
    %v1588 = vpop.f32.mrb[0].mxu0
    %v1589 = vadd.f32 %v1232, %v1588
    %v1590 = vpop.f32.mrb[0].mxu0
    %v1591 = vadd.f32 %v1234, %v1590
    %1592 = vmatprep.mubr.f32.mxu0 0.0
    %v1593 = vand.u32 %v105, 4294901760
    %v1594 = vsub.f32 %v105, %v1593
    %v1595 = vand.u32 %v1594, 4294901760
    %1596 = vmatmul.mubr.f32.gmra.mrb[0].mxu0 %v1595
    %v1597 = vpop.f32.mrb[0].mxu0
    %v1598 = vadd.f32 %v1240, %v1597
    %v1599 = vpop.f32.mrb[0].mxu0
    %v1600 = vadd.f32 %v1242, %v1599
    %1601 = vmatprep.mubr.f32.mxu0 0.0
    %v1602 = vand.u32 %v106, 4294901760
    %v1603 = vsub.f32 %v106, %v1602
    %v1604 = vand.u32 %v1603, 4294901760
    %1605 = vmatmul.mubr.f32.gmra.mrb[0].mxu0 %v1604
    %v1606 = vpop.f32.mrb[0].mxu0
    %v1607 = vadd.f32 %v1248, %v1606
    %v1608 = vpop.f32.mrb[0].mxu0
    %v1609 = vadd.f32 %v1250, %v1608
    %1610 = vmatprep.mubr.f32.mxu0 0.0
    %v1611 = vand.u32 %v107, 4294901760
    %v1612 = vsub.f32 %v107, %v1611
    %v1613 = vand.u32 %v1612, 4294901760
    %1614 = vmatmul.mubr.f32.gmra.mrb[0].mxu0 %v1613
    %v1615 = vpop.f32.mrb[0].mxu0
    %v1616 = vadd.f32 %v1256, %v1615
    %v1617 = vpop.f32.mrb[0].mxu0
    %v1618 = vadd.f32 %v1258, %v1617
    %1619 = vmatprep.mubr.f32.mxu0 0.0
    %v1620 = vand.u32 %v108, 4294901760
    %v1621 = vsub.f32 %v108, %v1620
    %v1622 = vand.u32 %v1621, 4294901760
    %1623 = vmatmul.mubr.f32.gmra.mrb[0].mxu0 %v1622
    %v1624 = vpop.f32.mrb[0].mxu0
    %v1625 = vadd.f32 %v1264, %v1624
    %v1626 = vpop.f32.mrb[0].mxu0
    %v1627 = vadd.f32 %v1266, %v1626
    %1628 = vmatprep.mubr.f32.mxu0 0.0
    %v1629 = vand.u32 %v109, 4294901760
    %v1630 = vsub.f32 %v109, %v1629
    %v1631 = vand.u32 %v1630, 4294901760
    %1632 = vmatmul.mubr.f32.gmra.mrb[0].mxu0 %v1631
    %v1633 = vpop.f32.mrb[0].mxu0
    %v1634 = vadd.f32 %v1272, %v1633
    %v1635 = vpop.f32.mrb[0].mxu0
    %v1636 = vadd.f32 %v1274, %v1635
    %1637 = vmatprep.mubr.f32.mxu0 0.0
    %v1638 = vand.u32 %v110, 4294901760
    %v1639 = vsub.f32 %v110, %v1638
    %v1640 = vand.u32 %v1639, 4294901760
    %1641 = vmatmul.mubr.f32.gmra.mrb[0].mxu0 %v1640
    %v1642 = vpop.f32.mrb[0].mxu0
    %v1643 = vadd.f32 %v1280, %v1642
    %v1644 = vpop.f32.mrb[0].mxu0
    %v1645 = vadd.f32 %v1282, %v1644
    %1646 = vmatprep.mubr.f32.mxu0 0.0
    %v1647 = vand.u32 %v111, 4294901760
    %v1648 = vsub.f32 %v111, %v1647
    %v1649 = vand.u32 %v1648, 4294901760
    %1650 = vmatmul.mubr.f32.gmra.mrb[0].mxu0 %v1649
    %v1651 = vpop.f32.mrb[0].mxu0
    %v1652 = vadd.f32 %v1288, %v1651
    %v1653 = vpop.f32.mrb[0].mxu0
    %v1654 = vadd.f32 %v1290, %v1653
    %1655 = vmatprep.mubr.f32.mxu0 0.0
    %v1656 = vand.u32 %v112, 4294901760
    %v1657 = vsub.f32 %v112, %v1656
    %v1658 = vand.u32 %v1657, 4294901760
    %1659 = vmatmul.mubr.f32.gmra.mrb[0].mxu0 %v1658
    %v1660 = vpop.f32.mrb[0].mxu0
    %v1661 = vadd.f32 %v1296, %v1660
    %v1662 = vpop.f32.mrb[0].mxu0
    %v1663 = vadd.f32 %v1298, %v1662
    %1664 = vmatprep.mubr.f32.mxu0 0.0
    %v1665 = vand.u32 %v113, 4294901760
    %v1666 = vsub.f32 %v113, %v1665
    %v1667 = vand.u32 %v1666, 4294901760
    %1668 = vmatmul.mubr.f32.gmra.mrb[0].mxu0 %v1667
    %v1669 = vpop.f32.mrb[0].mxu0
    %v1670 = vadd.f32 %v1304, %v1669
    %v1671 = vpop.f32.mrb[0].mxu0
    %v1672 = vadd.f32 %v1306, %v1671
    %1673 = vmatprep.mubr.f32.mxu0 0.0
    %v1674 = vand.u32 %v114, 4294901760
    %v1675 = vsub.f32 %v114, %v1674
    %v1676 = vand.u32 %v1675, 4294901760
    %1677 = vmatmul.mubr.f32.gmra.mrb[0].mxu0 %v1676
    %v1678 = vpop.f32.mrb[0].mxu0
    %v1679 = vadd.f32 %v1312, %v1678
    %v1680 = vpop.f32.mrb[0].mxu0
    %v1681 = vadd.f32 %v1314, %v1680
    %1682 = vmatprep.mubr.f32.mxu0 0.0
    %v1683 = vand.u32 %v115, 4294901760
    %v1684 = vsub.f32 %v115, %v1683
    %v1685 = vand.u32 %v1684, 4294901760
    %1686 = vmatmul.mubr.f32.gmra.mrb[0].mxu0 %v1685
    %v1687 = vpop.f32.mrb[0].mxu0
    %v1688 = vadd.f32 %v1320, %v1687
    %v1689 = vpop.f32.mrb[0].mxu0
    %v1690 = vadd.f32 %v1322, %v1689
    %1691 = vmatprep.mubr.f32.mxu0 0.0
    %v1692 = vand.u32 %v116, 4294901760
    %v1693 = vsub.f32 %v116, %v1692
    %v1694 = vand.u32 %v1693, 4294901760
    %1695 = vmatmul.mubr.f32.gmra.mrb[0].mxu0 %v1694
    %v1696 = vpop.f32.mrb[0].mxu0
    %v1697 = vadd.f32 %v1328, %v1696
    %v1698 = vpop.f32.mrb[0].mxu0
    %v1699 = vadd.f32 %v1330, %v1698
    %1700 = vmatprep.mubr.f32.mxu0 0.0
    %v1701 = vand.u32 %v117, 4294901760
    %v1702 = vsub.f32 %v117, %v1701
    %v1703 = vand.u32 %v1702, 4294901760
    %1704 = vmatmul.mubr.f32.gmra.mrb[0].mxu0 %v1703
    %v1705 = vpop.f32.mrb[0].mxu0
    %v1706 = vadd.f32 %v1336, %v1705
    %v1707 = vpop.f32.mrb[0].mxu0
    %v1708 = vadd.f32 %v1338, %v1707
    %1709 = vmatprep.mubr.f32.mxu0 0.0
    %v1710 = vand.u32 %v118, 4294901760
    %v1711 = vsub.f32 %v118, %v1710
    %v1712 = vand.u32 %v1711, 4294901760
    %1713 = vmatmul.mubr.f32.gmra.mrb[0].mxu0 %v1712
    %v1714 = vpop.f32.mrb[0].mxu0
    %v1715 = vadd.f32 %v1344, %v1714
    %v1716 = vpop.f32.mrb[0].mxu0
    %v1717 = vadd.f32 %v1346, %v1716
    %1718 = vmatprep.mubr.f32.mxu0 0.0
    %v1719 = vand.u32 %v119, 4294901760
    %v1720 = vsub.f32 %v119, %v1719
    %v1721 = vand.u32 %v1720, 4294901760
    %1722 = vmatmul.mubr.f32.gmra.mrb[0].mxu0 %v1721
    %v1723 = vpop.f32.mrb[0].mxu0
    %v1724 = vadd.f32 %v1352, %v1723
    %v1725 = vpop.f32.mrb[0].mxu0
    %v1726 = vadd.f32 %v1354, %v1725
    %1727 = vmatprep.mubr.f32.mxu0 0.0
    %v1728 = vand.u32 %v120, 4294901760
    %v1729 = vsub.f32 %v120, %v1728
    %v1730 = vand.u32 %v1729, 4294901760
    %1731 = vmatmul.mubr.f32.gmra.mrb[0].mxu0 %v1730
    %v1732 = vpop.f32.mrb[0].mxu0
    %v1733 = vadd.f32 %v1360, %v1732
    %v1734 = vpop.f32.mrb[0].mxu0
    %v1735 = vadd.f32 %v1362, %v1734
    %1736 = vmatprep.mubr.f32.mxu0 0.0
    %v1737 = vand.u32 %v121, 4294901760
    %v1738 = vsub.f32 %v121, %v1737
    %v1739 = vand.u32 %v1738, 4294901760
    %1740 = vmatmul.mubr.f32.gmra.mrb[0].mxu0 %v1739
    %v1741 = vpop.f32.mrb[0].mxu0
    %v1742 = vadd.f32 %v1368, %v1741
    %v1743 = vpop.f32.mrb[0].mxu0
    %v1744 = vadd.f32 %v1370, %v1743
    %1745 = vmatprep.mubr.f32.mxu0 0.0
    %v1746 = vand.u32 %v122, 4294901760
    %v1747 = vsub.f32 %v122, %v1746
    %v1748 = vand.u32 %v1747, 4294901760
    %1749 = vmatmul.mubr.f32.gmra.mrb[0].mxu0 %v1748
    %v1750 = vpop.f32.mrb[0].mxu0
    %v1751 = vadd.f32 %v1376, %v1750
    %v1752 = vpop.f32.mrb[0].mxu0
    %v1753 = vadd.f32 %v1378, %v1752
    %1754 = vmatprep.mubr.f32.mxu0 0.0
    %v1755 = vand.u32 %v123, 4294901760
    %v1756 = vsub.f32 %v123, %v1755
    %v1757 = vand.u32 %v1756, 4294901760
    %1758 = vmatmul.mubr.f32.gmra.mrb[0].mxu0 %v1757
    %v1759 = vpop.f32.mrb[0].mxu0
    %v1760 = vadd.f32 %v1384, %v1759
    %v1761 = vpop.f32.mrb[0].mxu0
    %v1762 = vadd.f32 %v1386, %v1761
    %1763 = vmatprep.mubr.f32.mxu0 0.0
    %v1764 = vand.u32 %v124, 4294901760
    %v1765 = vsub.f32 %v124, %v1764
    %v1766 = vand.u32 %v1765, 4294901760
    %1767 = vmatmul.mubr.f32.gmra.mrb[0].mxu0 %v1766
    %v1768 = vpop.f32.mrb[0].mxu0
    %v1769 = vadd.f32 %v1392, %v1768
    %v1770 = vpop.f32.mrb[0].mxu0
    %v1771 = vadd.f32 %v1394, %v1770
    %1772 = vmatprep.mubr.f32.mxu0 0.0
    %v1773 = vand.u32 %v125, 4294901760
    %v1774 = vsub.f32 %v125, %v1773
    %v1775 = vand.u32 %v1774, 4294901760
    %1776 = vmatmul.mubr.f32.gmra.mrb[0].mxu0 %v1775
    %v1777 = vpop.f32.mrb[0].mxu0
    %v1778 = vadd.f32 %v1400, %v1777
    %v1779 = vpop.f32.mrb[0].mxu0
    %v1780 = vadd.f32 %v1402, %v1779
    %1781 = vmatprep.mubr.f32.mxu0 0.0
    %v1782 = vand.u32 %v126, 4294901760
    %v1783 = vsub.f32 %v126, %v1782
    %v1784 = vand.u32 %v1783, 4294901760
    %1785 = vmatmul.mubr.f32.gmra.mrb[0].mxu0 %v1784
    %v1786 = vpop.f32.mrb[0].mxu0
    %v1787 = vadd.f32 %v1408, %v1786
    %v1788 = vpop.f32.mrb[0].mxu0
    %v1789 = vadd.f32 %v1410, %v1788
    %1790 = vmatprep.mubr.f32.mxu0 0.0
    %v1791 = vand.u32 %v127, 4294901760
    %v1792 = vsub.f32 %v127, %v1791
    %v1793 = vand.u32 %v1792, 4294901760
    %1794 = vmatmul.mubr.f32.gmra.mrb[0].mxu0 %v1793
    %v1795 = vpop.f32.mrb[0].mxu0
    %v1796 = vadd.f32 %v1416, %v1795
    %v1797 = vpop.f32.mrb[0].mxu0
    %v1798 = vadd.f32 %v1418, %v1797
    %1799 = vmatprep.mubr.f32.mxu0 0.0
    %v1800 = vand.u32 %v128, 4294901760
    %v1801 = vsub.f32 %v128, %v1800
    %v1802 = vand.u32 %v1801, 4294901760
    %1803 = vmatmul.mubr.f32.gmra.mrb[0].mxu0 %v1802
    %v1804 = vpop.f32.mrb[0].mxu0
    %v1805 = vadd.f32 %v1424, %v1804
    %v1806 = vpop.f32.mrb[0].mxu0
    %v1807 = vadd.f32 %v1426, %v1806
    %1808 = vmatprep.mubr.f32.mxu0 0.0
    %v1809 = vand.u32 %v129, 4294901760
    %v1810 = vsub.f32 %v129, %v1809
    %v1811 = vand.u32 %v1810, 4294901760
    %1812 = vmatmul.mubr.f32.gmra.mrb[0].mxu0 %v1811
    %v1813 = vpop.f32.mrb[0].mxu0
    %v1814 = vadd.f32 %v1432, %v1813
    %v1815 = vpop.f32.mrb[0].mxu0
    %v1816 = vadd.f32 %v1434, %v1815
    %1817 = vmatprep.mubr.f32.mxu0 0.0
    %v1818 = vand.u32 %v130, 4294901760
    %v1819 = vsub.f32 %v130, %v1818
    %v1820 = vand.u32 %v1819, 4294901760
    %1821 = vmatmul.mubr.f32.gmra.mrb[0].mxu0 %v1820
    %v1822 = vpop.f32.mrb[0].mxu0
    %v1823 = vadd.f32 %v1440, %v1822
    %v1824 = vpop.f32.mrb[0].mxu0
    %v1825 = vadd.f32 %v1442, %v1824
    %1826 = vmatprep.mubr.f32.mxu0 0.0
    %v1827 = vand.u32 %v131, 4294901760
    %v1828 = vsub.f32 %v131, %v1827
    %v1829 = vand.u32 %v1828, 4294901760
    %1830 = vmatmul.mubr.f32.gmra.mrb[0].mxu0 %v1829
    %v1831 = vpop.f32.mrb[0].mxu0
    %v1832 = vadd.f32 %v1448, %v1831
    %v1833 = vpop.f32.mrb[0].mxu0
    %v1834 = vadd.f32 %v1450, %v1833
    %1835 = vmatprep.mubr.f32.mxu0 0.0
    %v1836 = vand.u32 %v132, 4294901760
    %v1837 = vsub.f32 %v132, %v1836
    %v1838 = vand.u32 %v1837, 4294901760
    %1839 = vmatmul.mubr.f32.gmra.mrb[0].mxu0 %v1838
    %v1840 = vpop.f32.mrb[0].mxu0
    %v1841 = vadd.f32 %v1456, %v1840
    %v1842 = vpop.f32.mrb[0].mxu0
    %v1843 = vadd.f32 %v1458, %v1842
    %1844 = vdwg.mxu0
    %v1845 = vand.u32 %v134, 4294901760
    %v1846 = vsub.f32 %v134, %v1845
    %v1847 = vand.u32 %v1846, 4294901760
    %1848 = vmatprep.subr.mxu0 %v1847
    %v1849 = vand.u32 %v133, 4294901760
    %v1850 = vsub.f32 %v133, %v1849
    %v1851 = vand.u32 %v1850, 4294901760
    %1852 = vmatpush1.msra.mxu0 %v1851
    %v1853 = vand.u32 %v136, 4294901760
    %v1854 = vsub.f32 %v136, %v1853
    %v1855 = vand.u32 %v1854, 4294901760
    %1856 = vmatprep.subr.mxu0 %v1855
    %v1857 = vand.u32 %v135, 4294901760
    %v1858 = vsub.f32 %v135, %v1857
    %v1859 = vand.u32 %v1858, 4294901760
    %1860 = vmatpush1.msra.mxu0 %v1859
    %v1861 = vand.u32 %v138, 4294901760
    %v1862 = vsub.f32 %v138, %v1861
    %v1863 = vand.u32 %v1862, 4294901760
    %1864 = vmatprep.subr.mxu0 %v1863
    %v1865 = vand.u32 %v137, 4294901760
    %v1866 = vsub.f32 %v137, %v1865
    %v1867 = vand.u32 %v1866, 4294901760
    %1868 = vmatpush1.msra.mxu0 %v1867
    %v1869 = vand.u32 %v140, 4294901760
    %v1870 = vsub.f32 %v140, %v1869
    %v1871 = vand.u32 %v1870, 4294901760
    %1872 = vmatprep.subr.mxu0 %v1871
    %v1873 = vand.u32 %v139, 4294901760
    %v1874 = vsub.f32 %v139, %v1873
    %v1875 = vand.u32 %v1874, 4294901760
    %1876 = vmatpush1.msra.mxu0 %v1875
    %v1877 = vand.u32 %v142, 4294901760
    %v1878 = vsub.f32 %v142, %v1877
    %v1879 = vand.u32 %v1878, 4294901760
    %1880 = vmatprep.subr.mxu0 %v1879
    %v1881 = vand.u32 %v141, 4294901760
    %v1882 = vsub.f32 %v141, %v1881
    %v1883 = vand.u32 %v1882, 4294901760
    %1884 = vmatpush1.msra.mxu0 %v1883
    %v1885 = vand.u32 %v144, 4294901760
    %v1886 = vsub.f32 %v144, %v1885
    %v1887 = vand.u32 %v1886, 4294901760
    %1888 = vmatprep.subr.mxu0 %v1887
    %v1889 = vand.u32 %v143, 4294901760
    %v1890 = vsub.f32 %v143, %v1889
    %v1891 = vand.u32 %v1890, 4294901760
    %1892 = vmatpush1.msra.mxu0 %v1891
    %v1893 = vand.u32 %v146, 4294901760
    %v1894 = vsub.f32 %v146, %v1893
    %v1895 = vand.u32 %v1894, 4294901760
    %1896 = vmatprep.subr.mxu0 %v1895
    %v1897 = vand.u32 %v145, 4294901760
    %v1898 = vsub.f32 %v145, %v1897
    %v1899 = vand.u32 %v1898, 4294901760
    %1900 = vmatpush1.msra.mxu0 %v1899
    %v1901 = vand.u32 %v148, 4294901760
    %v1902 = vsub.f32 %v148, %v1901
    %v1903 = vand.u32 %v1902, 4294901760
    %1904 = vmatprep.subr.mxu0 %v1903
    %v1905 = vand.u32 %v147, 4294901760
    %v1906 = vsub.f32 %v147, %v1905
    %v1907 = vand.u32 %v1906, 4294901760
    %1908 = vmatpush1.msra.mxu0 %v1907
    %v1909 = vand.u32 %v150, 4294901760
    %v1910 = vsub.f32 %v150, %v1909
    %v1911 = vand.u32 %v1910, 4294901760
    %1912 = vmatprep.subr.mxu0 %v1911
    %v1913 = vand.u32 %v149, 4294901760
    %v1914 = vsub.f32 %v149, %v1913
    %v1915 = vand.u32 %v1914, 4294901760
    %1916 = vmatpush1.msra.mxu0 %v1915
    %v1917 = vand.u32 %v152, 4294901760
    %v1918 = vsub.f32 %v152, %v1917
    %v1919 = vand.u32 %v1918, 4294901760
    %1920 = vmatprep.subr.mxu0 %v1919
    %v1921 = vand.u32 %v151, 4294901760
    %v1922 = vsub.f32 %v151, %v1921
    %v1923 = vand.u32 %v1922, 4294901760
    %1924 = vmatpush1.msra.mxu0 %v1923
    %v1925 = vand.u32 %v154, 4294901760
    %v1926 = vsub.f32 %v154, %v1925
    %v1927 = vand.u32 %v1926, 4294901760
    %1928 = vmatprep.subr.mxu0 %v1927
    %v1929 = vand.u32 %v153, 4294901760
    %v1930 = vsub.f32 %v153, %v1929
    %v1931 = vand.u32 %v1930, 4294901760
    %1932 = vmatpush1.msra.mxu0 %v1931
    %v1933 = vand.u32 %v156, 4294901760
    %v1934 = vsub.f32 %v156, %v1933
    %v1935 = vand.u32 %v1934, 4294901760
    %1936 = vmatprep.subr.mxu0 %v1935
    %v1937 = vand.u32 %v155, 4294901760
    %v1938 = vsub.f32 %v155, %v1937
    %v1939 = vand.u32 %v1938, 4294901760
    %1940 = vmatpush1.msra.mxu0 %v1939
    %v1941 = vand.u32 %v158, 4294901760
    %v1942 = vsub.f32 %v158, %v1941
    %v1943 = vand.u32 %v1942, 4294901760
    %1944 = vmatprep.subr.mxu0 %v1943
    %v1945 = vand.u32 %v157, 4294901760
    %v1946 = vsub.f32 %v157, %v1945
    %v1947 = vand.u32 %v1946, 4294901760
    %1948 = vmatpush1.msra.mxu0 %v1947
    %v1949 = vand.u32 %v160, 4294901760
    %v1950 = vsub.f32 %v160, %v1949
    %v1951 = vand.u32 %v1950, 4294901760
    %1952 = vmatprep.subr.mxu0 %v1951
    %v1953 = vand.u32 %v159, 4294901760
    %v1954 = vsub.f32 %v159, %v1953
    %v1955 = vand.u32 %v1954, 4294901760
    %1956 = vmatpush1.msra.mxu0 %v1955
    %v1957 = vand.u32 %v162, 4294901760
    %v1958 = vsub.f32 %v162, %v1957
    %v1959 = vand.u32 %v1958, 4294901760
    %1960 = vmatprep.subr.mxu0 %v1959
    %v1961 = vand.u32 %v161, 4294901760
    %v1962 = vsub.f32 %v161, %v1961
    %v1963 = vand.u32 %v1962, 4294901760
    %1964 = vmatpush1.msra.mxu0 %v1963
    %v1965 = vand.u32 %v164, 4294901760
    %v1966 = vsub.f32 %v164, %v1965
    %v1967 = vand.u32 %v1966, 4294901760
    %1968 = vmatprep.subr.mxu0 %v1967
    %v1969 = vand.u32 %v163, 4294901760
    %v1970 = vsub.f32 %v163, %v1969
    %v1971 = vand.u32 %v1970, 4294901760
    %1972 = vmatpush1.msra.mxu0 %v1971
    %1973 = vmatprep.subr.mxu0 0.0
    %1974 = vmatpush1.msra.mxu0 0.0
    %1975 = vmatprep.subr.mxu0 0.0
    %1976 = vmatpush1.msra.mxu0 0.0
    %1977 = vmatprep.subr.mxu0 0.0
    %1978 = vmatpush1.msra.mxu0 0.0
    %1979 = vmatprep.subr.mxu0 0.0
    %1980 = vmatpush1.msra.mxu0 0.0
    %1981 = vmatprep.subr.mxu0 0.0
    %1982 = vmatpush1.msra.mxu0 0.0
    %1983 = vmatprep.subr.mxu0 0.0
    %1984 = vmatpush1.msra.mxu0 0.0
    %1985 = vmatprep.subr.mxu0 0.0
    %1986 = vmatpush1.msra.mxu0 0.0
    %1987 = vmatprep.subr.mxu0 0.0
    %1988 = vmatpush1.msra.mxu0 0.0
    %1989 = vmatprep.subr.mxu0 0.0
    %1990 = vmatpush1.msra.mxu0 0.0
    %1991 = vmatprep.subr.mxu0 0.0
    %1992 = vmatpush1.msra.mxu0 0.0
    %1993 = vmatprep.subr.mxu0 0.0
    %1994 = vmatpush1.msra.mxu0 0.0
    %1995 = vmatprep.subr.mxu0 0.0
    %1996 = vmatpush1.msra.mxu0 0.0
    %1997 = vmatprep.subr.mxu0 0.0
    %1998 = vmatpush1.msra.mxu0 0.0
    %1999 = vmatprep.subr.mxu0 0.0
    %2000 = vmatpush1.msra.mxu0 0.0
    %2001 = vmatprep.subr.mxu0 0.0
    %2002 = vmatpush1.msra.mxu0 0.0
    %2003 = vmatprep.subr.mxu0 0.0
    %2004 = vmatpush1.msra.mxu0 0.0
    %2005 = vmatprep.mubr.f32.mxu0 0.0
    %v2006 = vand.u32 %v101, 4294901760
    %2007 = vmatmul.mubr.f32.gmra.mrb[0].mxu0 %v2006
    %v2008 = vpop.f32.mrb[0].mxu0
    %v2009 = vadd.f32 %v1562, %v2008
    %v2010 = vpop.f32.mrb[0].mxu0
    %v2011 = vadd.f32 %v1564, %v2010
    %2012 = vmatprep.mubr.f32.mxu0 0.0
    %v2013 = vand.u32 %v102, 4294901760
    %2014 = vmatmul.mubr.f32.gmra.mrb[0].mxu0 %v2013
    %v2015 = vpop.f32.mrb[0].mxu0
    %v2016 = vadd.f32 %v1571, %v2015
    %v2017 = vpop.f32.mrb[0].mxu0
    %v2018 = vadd.f32 %v1573, %v2017
    %2019 = vmatprep.mubr.f32.mxu0 0.0
    %v2020 = vand.u32 %v103, 4294901760
    %2021 = vmatmul.mubr.f32.gmra.mrb[0].mxu0 %v2020
    %v2022 = vpop.f32.mrb[0].mxu0
    %v2023 = vadd.f32 %v1580, %v2022
    %v2024 = vpop.f32.mrb[0].mxu0
    %v2025 = vadd.f32 %v1582, %v2024
    %2026 = vmatprep.mubr.f32.mxu0 0.0
    %v2027 = vand.u32 %v104, 4294901760
    %2028 = vmatmul.mubr.f32.gmra.mrb[0].mxu0 %v2027
    %v2029 = vpop.f32.mrb[0].mxu0
    %v2030 = vadd.f32 %v1589, %v2029
    %v2031 = vpop.f32.mrb[0].mxu0
    %v2032 = vadd.f32 %v1591, %v2031
    %2033 = vmatprep.mubr.f32.mxu0 0.0
    %v2034 = vand.u32 %v105, 4294901760
    %2035 = vmatmul.mubr.f32.gmra.mrb[0].mxu0 %v2034
    %v2036 = vpop.f32.mrb[0].mxu0
    %v2037 = vadd.f32 %v1598, %v2036
    %v2038 = vpop.f32.mrb[0].mxu0
    %v2039 = vadd.f32 %v1600, %v2038
    %2040 = vmatprep.mubr.f32.mxu0 0.0
    %v2041 = vand.u32 %v106, 4294901760
    %2042 = vmatmul.mubr.f32.gmra.mrb[0].mxu0 %v2041
    %v2043 = vpop.f32.mrb[0].mxu0
    %v2044 = vadd.f32 %v1607, %v2043
    %v2045 = vpop.f32.mrb[0].mxu0
    %v2046 = vadd.f32 %v1609, %v2045
    %2047 = vmatprep.mubr.f32.mxu0 0.0
    %v2048 = vand.u32 %v107, 4294901760
    %2049 = vmatmul.mubr.f32.gmra.mrb[0].mxu0 %v2048
    %v2050 = vpop.f32.mrb[0].mxu0
    %v2051 = vadd.f32 %v1616, %v2050
    %v2052 = vpop.f32.mrb[0].mxu0
    %v2053 = vadd.f32 %v1618, %v2052
    %2054 = vmatprep.mubr.f32.mxu0 0.0
    %v2055 = vand.u32 %v108, 4294901760
    %2056 = vmatmul.mubr.f32.gmra.mrb[0].mxu0 %v2055
    %v2057 = vpop.f32.mrb[0].mxu0
    %v2058 = vadd.f32 %v1625, %v2057
    %v2059 = vpop.f32.mrb[0].mxu0
    %v2060 = vadd.f32 %v1627, %v2059
    %2061 = vmatprep.mubr.f32.mxu0 0.0
    %v2062 = vand.u32 %v109, 4294901760
    %2063 = vmatmul.mubr.f32.gmra.mrb[0].mxu0 %v2062
    %v2064 = vpop.f32.mrb[0].mxu0
    %v2065 = vadd.f32 %v1634, %v2064
    %v2066 = vpop.f32.mrb[0].mxu0
    %v2067 = vadd.f32 %v1636, %v2066
    %2068 = vmatprep.mubr.f32.mxu0 0.0
    %v2069 = vand.u32 %v110, 4294901760
    %2070 = vmatmul.mubr.f32.gmra.mrb[0].mxu0 %v2069
    %v2071 = vpop.f32.mrb[0].mxu0
    %v2072 = vadd.f32 %v1643, %v2071
    %v2073 = vpop.f32.mrb[0].mxu0
    %v2074 = vadd.f32 %v1645, %v2073
    %2075 = vmatprep.mubr.f32.mxu0 0.0
    %v2076 = vand.u32 %v111, 4294901760
    %2077 = vmatmul.mubr.f32.gmra.mrb[0].mxu0 %v2076
    %v2078 = vpop.f32.mrb[0].mxu0
    %v2079 = vadd.f32 %v1652, %v2078
    %v2080 = vpop.f32.mrb[0].mxu0
    %v2081 = vadd.f32 %v1654, %v2080
    %2082 = vmatprep.mubr.f32.mxu0 0.0
    %v2083 = vand.u32 %v112, 4294901760
    %2084 = vmatmul.mubr.f32.gmra.mrb[0].mxu0 %v2083
    %v2085 = vpop.f32.mrb[0].mxu0
    %v2086 = vadd.f32 %v1661, %v2085
    %v2087 = vpop.f32.mrb[0].mxu0
    %v2088 = vadd.f32 %v1663, %v2087
    %2089 = vmatprep.mubr.f32.mxu0 0.0
    %v2090 = vand.u32 %v113, 4294901760
    %2091 = vmatmul.mubr.f32.gmra.mrb[0].mxu0 %v2090
    %v2092 = vpop.f32.mrb[0].mxu0
    %v2093 = vadd.f32 %v1670, %v2092
    %v2094 = vpop.f32.mrb[0].mxu0
    %v2095 = vadd.f32 %v1672, %v2094
    %2096 = vmatprep.mubr.f32.mxu0 0.0
    %v2097 = vand.u32 %v114, 4294901760
    %2098 = vmatmul.mubr.f32.gmra.mrb[0].mxu0 %v2097
    %v2099 = vpop.f32.mrb[0].mxu0
    %v2100 = vadd.f32 %v1679, %v2099
    %v2101 = vpop.f32.mrb[0].mxu0
    %v2102 = vadd.f32 %v1681, %v2101
    %2103 = vmatprep.mubr.f32.mxu0 0.0
    %v2104 = vand.u32 %v115, 4294901760
    %2105 = vmatmul.mubr.f32.gmra.mrb[0].mxu0 %v2104
    %v2106 = vpop.f32.mrb[0].mxu0
    %v2107 = vadd.f32 %v1688, %v2106
    %v2108 = vpop.f32.mrb[0].mxu0
    %v2109 = vadd.f32 %v1690, %v2108
    %2110 = vmatprep.mubr.f32.mxu0 0.0
    %v2111 = vand.u32 %v116, 4294901760
    %2112 = vmatmul.mubr.f32.gmra.mrb[0].mxu0 %v2111
    %v2113 = vpop.f32.mrb[0].mxu0
    %v2114 = vadd.f32 %v1697, %v2113
    %v2115 = vpop.f32.mrb[0].mxu0
    %v2116 = vadd.f32 %v1699, %v2115
    %2117 = vmatprep.mubr.f32.mxu0 0.0
    %v2118 = vand.u32 %v117, 4294901760
    %2119 = vmatmul.mubr.f32.gmra.mrb[0].mxu0 %v2118
    %v2120 = vpop.f32.mrb[0].mxu0
    %v2121 = vadd.f32 %v1706, %v2120
    %v2122 = vpop.f32.mrb[0].mxu0
    %v2123 = vadd.f32 %v1708, %v2122
    %2124 = vmatprep.mubr.f32.mxu0 0.0
    %v2125 = vand.u32 %v118, 4294901760
    %2126 = vmatmul.mubr.f32.gmra.mrb[0].mxu0 %v2125
    %v2127 = vpop.f32.mrb[0].mxu0
    %v2128 = vadd.f32 %v1715, %v2127
    %v2129 = vpop.f32.mrb[0].mxu0
    %v2130 = vadd.f32 %v1717, %v2129
    %2131 = vmatprep.mubr.f32.mxu0 0.0
    %v2132 = vand.u32 %v119, 4294901760
    %2133 = vmatmul.mubr.f32.gmra.mrb[0].mxu0 %v2132
    %v2134 = vpop.f32.mrb[0].mxu0
    %v2135 = vadd.f32 %v1724, %v2134
    %v2136 = vpop.f32.mrb[0].mxu0
    %v2137 = vadd.f32 %v1726, %v2136
    %2138 = vmatprep.mubr.f32.mxu0 0.0
    %v2139 = vand.u32 %v120, 4294901760
    %2140 = vmatmul.mubr.f32.gmra.mrb[0].mxu0 %v2139
    %v2141 = vpop.f32.mrb[0].mxu0
    %v2142 = vadd.f32 %v1733, %v2141
    %v2143 = vpop.f32.mrb[0].mxu0
    %v2144 = vadd.f32 %v1735, %v2143
    %2145 = vmatprep.mubr.f32.mxu0 0.0
    %v2146 = vand.u32 %v121, 4294901760
    %2147 = vmatmul.mubr.f32.gmra.mrb[0].mxu0 %v2146
    %v2148 = vpop.f32.mrb[0].mxu0
    %v2149 = vadd.f32 %v1742, %v2148
    %v2150 = vpop.f32.mrb[0].mxu0
    %v2151 = vadd.f32 %v1744, %v2150
    %2152 = vmatprep.mubr.f32.mxu0 0.0
    %v2153 = vand.u32 %v122, 4294901760
    %2154 = vmatmul.mubr.f32.gmra.mrb[0].mxu0 %v2153
    %v2155 = vpop.f32.mrb[0].mxu0
    %v2156 = vadd.f32 %v1751, %v2155
    %v2157 = vpop.f32.mrb[0].mxu0
    %v2158 = vadd.f32 %v1753, %v2157
    %2159 = vmatprep.mubr.f32.mxu0 0.0
    %v2160 = vand.u32 %v123, 4294901760
    %2161 = vmatmul.mubr.f32.gmra.mrb[0].mxu0 %v2160
    %v2162 = vpop.f32.mrb[0].mxu0
    %v2163 = vadd.f32 %v1760, %v2162
    %v2164 = vpop.f32.mrb[0].mxu0
    %v2165 = vadd.f32 %v1762, %v2164
    %2166 = vmatprep.mubr.f32.mxu0 0.0
    %v2167 = vand.u32 %v124, 4294901760
    %2168 = vmatmul.mubr.f32.gmra.mrb[0].mxu0 %v2167
    %v2169 = vpop.f32.mrb[0].mxu0
    %v2170 = vadd.f32 %v1769, %v2169
    %v2171 = vpop.f32.mrb[0].mxu0
    %v2172 = vadd.f32 %v1771, %v2171
    %2173 = vmatprep.mubr.f32.mxu0 0.0
    %v2174 = vand.u32 %v125, 4294901760
    %2175 = vmatmul.mubr.f32.gmra.mrb[0].mxu0 %v2174
    %v2176 = vpop.f32.mrb[0].mxu0
    %v2177 = vadd.f32 %v1778, %v2176
    %v2178 = vpop.f32.mrb[0].mxu0
    %v2179 = vadd.f32 %v1780, %v2178
    %2180 = vmatprep.mubr.f32.mxu0 0.0
    %v2181 = vand.u32 %v126, 4294901760
    %2182 = vmatmul.mubr.f32.gmra.mrb[0].mxu0 %v2181
    %v2183 = vpop.f32.mrb[0].mxu0
    %v2184 = vadd.f32 %v1787, %v2183
    %v2185 = vpop.f32.mrb[0].mxu0
    %v2186 = vadd.f32 %v1789, %v2185
    %2187 = vmatprep.mubr.f32.mxu0 0.0
    %v2188 = vand.u32 %v127, 4294901760
    %2189 = vmatmul.mubr.f32.gmra.mrb[0].mxu0 %v2188
    %v2190 = vpop.f32.mrb[0].mxu0
    %v2191 = vadd.f32 %v1796, %v2190
    %v2192 = vpop.f32.mrb[0].mxu0
    %v2193 = vadd.f32 %v1798, %v2192
    %2194 = vmatprep.mubr.f32.mxu0 0.0
    %v2195 = vand.u32 %v128, 4294901760
    %2196 = vmatmul.mubr.f32.gmra.mrb[0].mxu0 %v2195
    %v2197 = vpop.f32.mrb[0].mxu0
    %v2198 = vadd.f32 %v1805, %v2197
    %v2199 = vpop.f32.mrb[0].mxu0
    %v2200 = vadd.f32 %v1807, %v2199
    %2201 = vmatprep.mubr.f32.mxu0 0.0
    %v2202 = vand.u32 %v129, 4294901760
    %2203 = vmatmul.mubr.f32.gmra.mrb[0].mxu0 %v2202
    %v2204 = vpop.f32.mrb[0].mxu0
    %v2205 = vadd.f32 %v1814, %v2204
    %v2206 = vpop.f32.mrb[0].mxu0
    %v2207 = vadd.f32 %v1816, %v2206
    %2208 = vmatprep.mubr.f32.mxu0 0.0
    %v2209 = vand.u32 %v130, 4294901760
    %2210 = vmatmul.mubr.f32.gmra.mrb[0].mxu0 %v2209
    %v2211 = vpop.f32.mrb[0].mxu0
    %v2212 = vadd.f32 %v1823, %v2211
    %v2213 = vpop.f32.mrb[0].mxu0
    %v2214 = vadd.f32 %v1825, %v2213
    %2215 = vmatprep.mubr.f32.mxu0 0.0
    %v2216 = vand.u32 %v131, 4294901760
    %2217 = vmatmul.mubr.f32.gmra.mrb[0].mxu0 %v2216
    %v2218 = vpop.f32.mrb[0].mxu0
    %v2219 = vadd.f32 %v1832, %v2218
    %v2220 = vpop.f32.mrb[0].mxu0
    %v2221 = vadd.f32 %v1834, %v2220
    %2222 = vmatprep.mubr.f32.mxu0 0.0
    %v2223 = vand.u32 %v132, 4294901760
    %2224 = vmatmul.mubr.f32.gmra.mrb[0].mxu0 %v2223
    %v2225 = vpop.f32.mrb[0].mxu0
    %v2226 = vadd.f32 %v1841, %v2225
    %v2227 = vpop.f32.mrb[0].mxu0
    %v2228 = vadd.f32 %v1843, %v2227
    %2229 = vdwg.mxu0
    %v2230 = vand.u32 %v134, 4294901760
    %2231 = vmatprep.subr.mxu0 %v2230
    %v2232 = vand.u32 %v133, 4294901760
    %2233 = vmatpush1.msra.mxu0 %v2232
    %v2234 = vand.u32 %v136, 4294901760
    %2235 = vmatprep.subr.mxu0 %v2234
    %v2236 = vand.u32 %v135, 4294901760
    %2237 = vmatpush1.msra.mxu0 %v2236
    %v2238 = vand.u32 %v138, 4294901760
    %2239 = vmatprep.subr.mxu0 %v2238
    %v2240 = vand.u32 %v137, 4294901760
    %2241 = vmatpush1.msra.mxu0 %v2240
    %v2242 = vand.u32 %v140, 4294901760
    %2243 = vmatprep.subr.mxu0 %v2242
    %v2244 = vand.u32 %v139, 4294901760
    %2245 = vmatpush1.msra.mxu0 %v2244
    %v2246 = vand.u32 %v142, 4294901760
    %2247 = vmatprep.subr.mxu0 %v2246
    %v2248 = vand.u32 %v141, 4294901760
    %2249 = vmatpush1.msra.mxu0 %v2248
    %v2250 = vand.u32 %v144, 4294901760
    %2251 = vmatprep.subr.mxu0 %v2250
    %v2252 = vand.u32 %v143, 4294901760
    %2253 = vmatpush1.msra.mxu0 %v2252
    %v2254 = vand.u32 %v146, 4294901760
    %2255 = vmatprep.subr.mxu0 %v2254
    %v2256 = vand.u32 %v145, 4294901760
    %2257 = vmatpush1.msra.mxu0 %v2256
    %v2258 = vand.u32 %v148, 4294901760
    %2259 = vmatprep.subr.mxu0 %v2258
    %v2260 = vand.u32 %v147, 4294901760
    %2261 = vmatpush1.msra.mxu0 %v2260
    %v2262 = vand.u32 %v150, 4294901760
    %2263 = vmatprep.subr.mxu0 %v2262
    %v2264 = vand.u32 %v149, 4294901760
    %2265 = vmatpush1.msra.mxu0 %v2264
    %v2266 = vand.u32 %v152, 4294901760
    %2267 = vmatprep.subr.mxu0 %v2266
    %v2268 = vand.u32 %v151, 4294901760
    %2269 = vmatpush1.msra.mxu0 %v2268
    %v2270 = vand.u32 %v154, 4294901760
    %2271 = vmatprep.subr.mxu0 %v2270
    %v2272 = vand.u32 %v153, 4294901760
    %2273 = vmatpush1.msra.mxu0 %v2272
    %v2274 = vand.u32 %v156, 4294901760
    %2275 = vmatprep.subr.mxu0 %v2274
    %v2276 = vand.u32 %v155, 4294901760
    %2277 = vmatpush1.msra.mxu0 %v2276
    %v2278 = vand.u32 %v158, 4294901760
    %2279 = vmatprep.subr.mxu0 %v2278
    %v2280 = vand.u32 %v157, 4294901760
    %2281 = vmatpush1.msra.mxu0 %v2280
    %v2282 = vand.u32 %v160, 4294901760
    %2283 = vmatprep.subr.mxu0 %v2282
    %v2284 = vand.u32 %v159, 4294901760
    %2285 = vmatpush1.msra.mxu0 %v2284
    %v2286 = vand.u32 %v162, 4294901760
    %2287 = vmatprep.subr.mxu0 %v2286
    %v2288 = vand.u32 %v161, 4294901760
    %2289 = vmatpush1.msra.mxu0 %v2288
    %v2290 = vand.u32 %v164, 4294901760
    %2291 = vmatprep.subr.mxu0 %v2290
    %v2292 = vand.u32 %v163, 4294901760
    %2293 = vmatpush1.msra.mxu0 %v2292
    %2294 = vmatprep.subr.mxu0 0.0
    %2295 = vmatpush1.msra.mxu0 0.0
    %2296 = vmatprep.subr.mxu0 0.0
    %2297 = vmatpush1.msra.mxu0 0.0
    %2298 = vmatprep.subr.mxu0 0.0
    %2299 = vmatpush1.msra.mxu0 0.0
    %2300 = vmatprep.subr.mxu0 0.0
    %2301 = vmatpush1.msra.mxu0 0.0
    %2302 = vmatprep.subr.mxu0 0.0
    %2303 = vmatpush1.msra.mxu0 0.0
    %2304 = vmatprep.subr.mxu0 0.0
    %2305 = vmatpush1.msra.mxu0 0.0
    %2306 = vmatprep.subr.mxu0 0.0
    %2307 = vmatpush1.msra.mxu0 0.0
    %2308 = vmatprep.subr.mxu0 0.0
    %2309 = vmatpush1.msra.mxu0 0.0
    %2310 = vmatprep.subr.mxu0 0.0
    %2311 = vmatpush1.msra.mxu0 0.0
    %2312 = vmatprep.subr.mxu0 0.0
    %2313 = vmatpush1.msra.mxu0 0.0
    %2314 = vmatprep.subr.mxu0 0.0
    %2315 = vmatpush1.msra.mxu0 0.0
    %2316 = vmatprep.subr.mxu0 0.0
    %2317 = vmatpush1.msra.mxu0 0.0
    %2318 = vmatprep.subr.mxu0 0.0
    %2319 = vmatpush1.msra.mxu0 0.0
    %2320 = vmatprep.subr.mxu0 0.0
    %2321 = vmatpush1.msra.mxu0 0.0
    %2322 = vmatprep.subr.mxu0 0.0
    %2323 = vmatpush1.msra.mxu0 0.0
    %2324 = vmatprep.subr.mxu0 0.0
    %2325 = vmatpush1.msra.mxu0 0.0
    %2326 = vmatprep.mubr.f32.mxu0 0.0
    %v2327 = vand.u32 %v101, 4294901760
    %2328 = vmatmul.mubr.f32.gmra.mrb[0].mxu0 %v2327
    %v2329 = vpop.f32.mrb[0].mxu0
    %v2330 = vadd.f32 %v2009, %v2329
    %v2331 = vpop.f32.mrb[0].mxu0
    %v2332 = vadd.f32 %v2011, %v2331
    %2333 = vmatprep.mubr.f32.mxu0 0.0
    %v2334 = vand.u32 %v102, 4294901760
    %2335 = vmatmul.mubr.f32.gmra.mrb[0].mxu0 %v2334
    %v2336 = vpop.f32.mrb[0].mxu0
    %v2337 = vadd.f32 %v2016, %v2336
    %v2338 = vpop.f32.mrb[0].mxu0
    %v2339 = vadd.f32 %v2018, %v2338
    %2340 = vmatprep.mubr.f32.mxu0 0.0
    %v2341 = vand.u32 %v103, 4294901760
    %2342 = vmatmul.mubr.f32.gmra.mrb[0].mxu0 %v2341
    %v2343 = vpop.f32.mrb[0].mxu0
    %v2344 = vadd.f32 %v2023, %v2343
    %v2345 = vpop.f32.mrb[0].mxu0
    %v2346 = vadd.f32 %v2025, %v2345
    %2347 = vmatprep.mubr.f32.mxu0 0.0
    %v2348 = vand.u32 %v104, 4294901760
    %2349 = vmatmul.mubr.f32.gmra.mrb[0].mxu0 %v2348
    %v2350 = vpop.f32.mrb[0].mxu0
    %v2351 = vadd.f32 %v2030, %v2350
    %v2352 = vpop.f32.mrb[0].mxu0
    %v2353 = vadd.f32 %v2032, %v2352
    %2354 = vmatprep.mubr.f32.mxu0 0.0
    %v2355 = vand.u32 %v105, 4294901760
    %2356 = vmatmul.mubr.f32.gmra.mrb[0].mxu0 %v2355
    %v2357 = vpop.f32.mrb[0].mxu0
    %v2358 = vadd.f32 %v2037, %v2357
    %v2359 = vpop.f32.mrb[0].mxu0
    %v2360 = vadd.f32 %v2039, %v2359
    %2361 = vmatprep.mubr.f32.mxu0 0.0
    %v2362 = vand.u32 %v106, 4294901760
    %2363 = vmatmul.mubr.f32.gmra.mrb[0].mxu0 %v2362
    %v2364 = vpop.f32.mrb[0].mxu0
    %v2365 = vadd.f32 %v2044, %v2364
    %v2366 = vpop.f32.mrb[0].mxu0
    %v2367 = vadd.f32 %v2046, %v2366
    %2368 = vmatprep.mubr.f32.mxu0 0.0
    %v2369 = vand.u32 %v107, 4294901760
    %2370 = vmatmul.mubr.f32.gmra.mrb[0].mxu0 %v2369
    %v2371 = vpop.f32.mrb[0].mxu0
    %v2372 = vadd.f32 %v2051, %v2371
    %v2373 = vpop.f32.mrb[0].mxu0
    %v2374 = vadd.f32 %v2053, %v2373
    %2375 = vmatprep.mubr.f32.mxu0 0.0
    %v2376 = vand.u32 %v108, 4294901760
    %2377 = vmatmul.mubr.f32.gmra.mrb[0].mxu0 %v2376
    %v2378 = vpop.f32.mrb[0].mxu0
    %v2379 = vadd.f32 %v2058, %v2378
    %v2380 = vpop.f32.mrb[0].mxu0
    %v2381 = vadd.f32 %v2060, %v2380
    %2382 = vmatprep.mubr.f32.mxu0 0.0
    %v2383 = vand.u32 %v109, 4294901760
    %2384 = vmatmul.mubr.f32.gmra.mrb[0].mxu0 %v2383
    %v2385 = vpop.f32.mrb[0].mxu0
    %v2386 = vadd.f32 %v2065, %v2385
    %v2387 = vpop.f32.mrb[0].mxu0
    %v2388 = vadd.f32 %v2067, %v2387
    %2389 = vmatprep.mubr.f32.mxu0 0.0
    %v2390 = vand.u32 %v110, 4294901760
    %2391 = vmatmul.mubr.f32.gmra.mrb[0].mxu0 %v2390
    %v2392 = vpop.f32.mrb[0].mxu0
    %v2393 = vadd.f32 %v2072, %v2392
    %v2394 = vpop.f32.mrb[0].mxu0
    %v2395 = vadd.f32 %v2074, %v2394
    %2396 = vmatprep.mubr.f32.mxu0 0.0
    %v2397 = vand.u32 %v111, 4294901760
    %2398 = vmatmul.mubr.f32.gmra.mrb[0].mxu0 %v2397
    %v2399 = vpop.f32.mrb[0].mxu0
    %v2400 = vadd.f32 %v2079, %v2399
    %v2401 = vpop.f32.mrb[0].mxu0
    %v2402 = vadd.f32 %v2081, %v2401
    %2403 = vmatprep.mubr.f32.mxu0 0.0
    %v2404 = vand.u32 %v112, 4294901760
    %2405 = vmatmul.mubr.f32.gmra.mrb[0].mxu0 %v2404
    %v2406 = vpop.f32.mrb[0].mxu0
    %v2407 = vadd.f32 %v2086, %v2406
    %v2408 = vpop.f32.mrb[0].mxu0
    %v2409 = vadd.f32 %v2088, %v2408
    %2410 = vmatprep.mubr.f32.mxu0 0.0
    %v2411 = vand.u32 %v113, 4294901760
    %2412 = vmatmul.mubr.f32.gmra.mrb[0].mxu0 %v2411
    %v2413 = vpop.f32.mrb[0].mxu0
    %v2414 = vadd.f32 %v2093, %v2413
    %v2415 = vpop.f32.mrb[0].mxu0
    %v2416 = vadd.f32 %v2095, %v2415
    %2417 = vmatprep.mubr.f32.mxu0 0.0
    %v2418 = vand.u32 %v114, 4294901760
    %2419 = vmatmul.mubr.f32.gmra.mrb[0].mxu0 %v2418
    %v2420 = vpop.f32.mrb[0].mxu0
    %v2421 = vadd.f32 %v2100, %v2420
    %v2422 = vpop.f32.mrb[0].mxu0
    %v2423 = vadd.f32 %v2102, %v2422
    %2424 = vmatprep.mubr.f32.mxu0 0.0
    %v2425 = vand.u32 %v115, 4294901760
    %2426 = vmatmul.mubr.f32.gmra.mrb[0].mxu0 %v2425
    %v2427 = vpop.f32.mrb[0].mxu0
    %v2428 = vadd.f32 %v2107, %v2427
    %v2429 = vpop.f32.mrb[0].mxu0
    %v2430 = vadd.f32 %v2109, %v2429
    %2431 = vmatprep.mubr.f32.mxu0 0.0
    %v2432 = vand.u32 %v116, 4294901760
    %2433 = vmatmul.mubr.f32.gmra.mrb[0].mxu0 %v2432
    %v2434 = vpop.f32.mrb[0].mxu0
    %v2435 = vadd.f32 %v2114, %v2434
    %v2436 = vpop.f32.mrb[0].mxu0
    %v2437 = vadd.f32 %v2116, %v2436
    %2438 = vmatprep.mubr.f32.mxu0 0.0
    %v2439 = vand.u32 %v117, 4294901760
    %2440 = vmatmul.mubr.f32.gmra.mrb[0].mxu0 %v2439
    %v2441 = vpop.f32.mrb[0].mxu0
    %v2442 = vadd.f32 %v2121, %v2441
    %v2443 = vpop.f32.mrb[0].mxu0
    %v2444 = vadd.f32 %v2123, %v2443
    %2445 = vmatprep.mubr.f32.mxu0 0.0
    %v2446 = vand.u32 %v118, 4294901760
    %2447 = vmatmul.mubr.f32.gmra.mrb[0].mxu0 %v2446
    %v2448 = vpop.f32.mrb[0].mxu0
    %v2449 = vadd.f32 %v2128, %v2448
    %v2450 = vpop.f32.mrb[0].mxu0
    %v2451 = vadd.f32 %v2130, %v2450
    %2452 = vmatprep.mubr.f32.mxu0 0.0
    %v2453 = vand.u32 %v119, 4294901760
    %2454 = vmatmul.mubr.f32.gmra.mrb[0].mxu0 %v2453
    %v2455 = vpop.f32.mrb[0].mxu0
    %v2456 = vadd.f32 %v2135, %v2455
    %v2457 = vpop.f32.mrb[0].mxu0
    %v2458 = vadd.f32 %v2137, %v2457
    %2459 = vmatprep.mubr.f32.mxu0 0.0
    %v2460 = vand.u32 %v120, 4294901760
    %2461 = vmatmul.mubr.f32.gmra.mrb[0].mxu0 %v2460
    %v2462 = vpop.f32.mrb[0].mxu0
    %v2463 = vadd.f32 %v2142, %v2462
    %v2464 = vpop.f32.mrb[0].mxu0
    %v2465 = vadd.f32 %v2144, %v2464
    %2466 = vmatprep.mubr.f32.mxu0 0.0
    %v2467 = vand.u32 %v121, 4294901760
    %2468 = vmatmul.mubr.f32.gmra.mrb[0].mxu0 %v2467
    %v2469 = vpop.f32.mrb[0].mxu0
    %v2470 = vadd.f32 %v2149, %v2469
    %v2471 = vpop.f32.mrb[0].mxu0
    %v2472 = vadd.f32 %v2151, %v2471
    %2473 = vmatprep.mubr.f32.mxu0 0.0
    %v2474 = vand.u32 %v122, 4294901760
    %2475 = vmatmul.mubr.f32.gmra.mrb[0].mxu0 %v2474
    %v2476 = vpop.f32.mrb[0].mxu0
    %v2477 = vadd.f32 %v2156, %v2476
    %v2478 = vpop.f32.mrb[0].mxu0
    %v2479 = vadd.f32 %v2158, %v2478
    %2480 = vmatprep.mubr.f32.mxu0 0.0
    %v2481 = vand.u32 %v123, 4294901760
    %2482 = vmatmul.mubr.f32.gmra.mrb[0].mxu0 %v2481
    %v2483 = vpop.f32.mrb[0].mxu0
    %v2484 = vadd.f32 %v2163, %v2483
    %v2485 = vpop.f32.mrb[0].mxu0
    %v2486 = vadd.f32 %v2165, %v2485
    %2487 = vmatprep.mubr.f32.mxu0 0.0
    %v2488 = vand.u32 %v124, 4294901760
    %2489 = vmatmul.mubr.f32.gmra.mrb[0].mxu0 %v2488
    %v2490 = vpop.f32.mrb[0].mxu0
    %v2491 = vadd.f32 %v2170, %v2490
    %v2492 = vpop.f32.mrb[0].mxu0
    %v2493 = vadd.f32 %v2172, %v2492
    %2494 = vmatprep.mubr.f32.mxu0 0.0
    %v2495 = vand.u32 %v125, 4294901760
    %2496 = vmatmul.mubr.f32.gmra.mrb[0].mxu0 %v2495
    %v2497 = vpop.f32.mrb[0].mxu0
    %v2498 = vadd.f32 %v2177, %v2497
    %v2499 = vpop.f32.mrb[0].mxu0
    %v2500 = vadd.f32 %v2179, %v2499
    %2501 = vmatprep.mubr.f32.mxu0 0.0
    %v2502 = vand.u32 %v126, 4294901760
    %2503 = vmatmul.mubr.f32.gmra.mrb[0].mxu0 %v2502
    %v2504 = vpop.f32.mrb[0].mxu0
    %v2505 = vadd.f32 %v2184, %v2504
    %v2506 = vpop.f32.mrb[0].mxu0
    %v2507 = vadd.f32 %v2186, %v2506
    %2508 = vmatprep.mubr.f32.mxu0 0.0
    %v2509 = vand.u32 %v127, 4294901760
    %2510 = vmatmul.mubr.f32.gmra.mrb[0].mxu0 %v2509
    %v2511 = vpop.f32.mrb[0].mxu0
    %v2512 = vadd.f32 %v2191, %v2511
    %v2513 = vpop.f32.mrb[0].mxu0
    %v2514 = vadd.f32 %v2193, %v2513
    %2515 = vmatprep.mubr.f32.mxu0 0.0
    %v2516 = vand.u32 %v128, 4294901760
    %2517 = vmatmul.mubr.f32.gmra.mrb[0].mxu0 %v2516
    %v2518 = vpop.f32.mrb[0].mxu0
    %v2519 = vadd.f32 %v2198, %v2518
    %v2520 = vpop.f32.mrb[0].mxu0
    %v2521 = vadd.f32 %v2200, %v2520
    %2522 = vmatprep.mubr.f32.mxu0 0.0
    %v2523 = vand.u32 %v129, 4294901760
    %2524 = vmatmul.mubr.f32.gmra.mrb[0].mxu0 %v2523
    %v2525 = vpop.f32.mrb[0].mxu0
    %v2526 = vadd.f32 %v2205, %v2525
    %v2527 = vpop.f32.mrb[0].mxu0
    %v2528 = vadd.f32 %v2207, %v2527
    %2529 = vmatprep.mubr.f32.mxu0 0.0
    %v2530 = vand.u32 %v130, 4294901760
    %2531 = vmatmul.mubr.f32.gmra.mrb[0].mxu0 %v2530
    %v2532 = vpop.f32.mrb[0].mxu0
    %v2533 = vadd.f32 %v2212, %v2532
    %v2534 = vpop.f32.mrb[0].mxu0
    %v2535 = vadd.f32 %v2214, %v2534
    %2536 = vmatprep.mubr.f32.mxu0 0.0
    %v2537 = vand.u32 %v131, 4294901760
    %2538 = vmatmul.mubr.f32.gmra.mrb[0].mxu0 %v2537
    %v2539 = vpop.f32.mrb[0].mxu0
    %v2540 = vadd.f32 %v2219, %v2539
    %v2541 = vpop.f32.mrb[0].mxu0
    %v2542 = vadd.f32 %v2221, %v2541
    %2543 = vmatprep.mubr.f32.mxu0 0.0
    %v2544 = vand.u32 %v132, 4294901760
    %2545 = vmatmul.mubr.f32.gmra.mrb[0].mxu0 %v2544
    %v2546 = vpop.f32.mrb[0].mxu0
    %v2547 = vadd.f32 %v2226, %v2546
    %v2548 = vpop.f32.mrb[0].mxu0
    %v2549 = vadd.f32 %v2228, %v2548
    %2550 = vdwg.mxu0
    %v2551 = vmax.f32 %v2330, 0.0
    %v2552 = vmax.f32 %v2332, 0.0
    %v2553 = vmax.f32 %v2337, 0.0
    %v2554 = vmax.f32 %v2339, 0.0
    %v2555 = vmax.f32 %v2344, 0.0
    %v2556 = vmax.f32 %v2346, 0.0
    %v2557 = vmax.f32 %v2351, 0.0
    %v2558 = vmax.f32 %v2353, 0.0
    %v2559 = vmax.f32 %v2358, 0.0
    %v2560 = vmax.f32 %v2360, 0.0
    %v2561 = vmax.f32 %v2365, 0.0
    %v2562 = vmax.f32 %v2367, 0.0
    %v2563 = vmax.f32 %v2372, 0.0
    %v2564 = vmax.f32 %v2374, 0.0
    %v2565 = vmax.f32 %v2379, 0.0
    %v2566 = vmax.f32 %v2381, 0.0
    %v2567 = vmax.f32 %v2386, 0.0
    %v2568 = vmax.f32 %v2388, 0.0
    %v2569 = vmax.f32 %v2393, 0.0
    %v2570 = vmax.f32 %v2395, 0.0
    %v2571 = vmax.f32 %v2400, 0.0
    %v2572 = vmax.f32 %v2402, 0.0
    %v2573 = vmax.f32 %v2407, 0.0
    %v2574 = vmax.f32 %v2409, 0.0
    %v2575 = vmax.f32 %v2414, 0.0
    %v2576 = vmax.f32 %v2416, 0.0
    %v2577 = vmax.f32 %v2421, 0.0
    %v2578 = vmax.f32 %v2423, 0.0
    %v2579 = vmax.f32 %v2428, 0.0
    %v2580 = vmax.f32 %v2430, 0.0
    %v2581 = vmax.f32 %v2435, 0.0
    %v2582 = vmax.f32 %v2437, 0.0
    %v2583 = vmax.f32 %v2442, 0.0
    %v2584 = vmax.f32 %v2444, 0.0
    %v2585 = vmax.f32 %v2449, 0.0
    %v2586 = vmax.f32 %v2451, 0.0
    %v2587 = vmax.f32 %v2456, 0.0
    %v2588 = vmax.f32 %v2458, 0.0
    %v2589 = vmax.f32 %v2463, 0.0
    %v2590 = vmax.f32 %v2465, 0.0
    %v2591 = vmax.f32 %v2470, 0.0
    %v2592 = vmax.f32 %v2472, 0.0
    %v2593 = vmax.f32 %v2477, 0.0
    %v2594 = vmax.f32 %v2479, 0.0
    %v2595 = vmax.f32 %v2484, 0.0
    %v2596 = vmax.f32 %v2486, 0.0
    %v2597 = vmax.f32 %v2491, 0.0
    %v2598 = vmax.f32 %v2493, 0.0
    %v2599 = vmax.f32 %v2498, 0.0
    %v2600 = vmax.f32 %v2500, 0.0
    %v2601 = vmax.f32 %v2505, 0.0
    %v2602 = vmax.f32 %v2507, 0.0
    %v2603 = vmax.f32 %v2512, 0.0
    %v2604 = vmax.f32 %v2514, 0.0
    %v2605 = vmax.f32 %v2519, 0.0
    %v2606 = vmax.f32 %v2521, 0.0
    %v2607 = vmax.f32 %v2526, 0.0
    %v2608 = vmax.f32 %v2528, 0.0
    %v2609 = vmax.f32 %v2533, 0.0
    %v2610 = vmax.f32 %v2535, 0.0
    %v2611 = vmax.f32 %v2540, 0.0
    %v2612 = vmax.f32 %v2542, 0.0
    %v2613 = vmax.f32 %v2547, 0.0
    %v2614 = vmax.f32 %v2549, 0.0
    %v2615 = vld [vmem:[#allocation7] sm:$0xff]
    %v2616 = vld [vmem:[#allocation7 + $0x8] sm:$0xff]
    %v2617 = vld [vmem:[#allocation7 + $0x10] sm:$0xff]
    %v2618 = vld [vmem:[#allocation7 + $0x18] sm:$0xff]
    %v2619 = vld [vmem:[#allocation7 + $0x20] sm:$0xff]
    %v2620 = vld [vmem:[#allocation7 + $0x28] sm:$0xff]
    %v2621 = vld [vmem:[#allocation7 + $0x30] sm:$0xff]
    %v2622 = vld [vmem:[#allocation7 + $0x38] sm:$0xff]
    %v2623 = vld [vmem:[#allocation7 + $0x40] sm:$0xff]
    %v2624 = vld [vmem:[#allocation7 + $0x48] sm:$0xff]
    %v2625 = vld [vmem:[#allocation7 + $0x50] sm:$0xff]
    %v2626 = vld [vmem:[#allocation7 + $0x58] sm:$0xff]
    %v2627 = vld [vmem:[#allocation7 + $0x60] sm:$0xff]
    %v2628 = vld [vmem:[#allocation7 + $0x68] sm:$0xff]
    %v2629 = vld [vmem:[#allocation7 + $0x70] sm:$0xff]
    %v2630 = vld [vmem:[#allocation7 + $0x78] sm:$0xff]
    %v2631 = vld [vmem:[#allocation7 + $0x80] sm:$0xff]
    %v2632 = vld [vmem:[#allocation7 + $0x88] sm:$0xff]
    %v2633 = vld [vmem:[#allocation7 + $0x90] sm:$0xff]
    %v2634 = vld [vmem:[#allocation7 + $0x98] sm:$0xff]
    %v2635 = vld [vmem:[#allocation7 + $0xa0] sm:$0xff]
    %v2636 = vld [vmem:[#allocation7 + $0xa8] sm:$0xff]
    %v2637 = vld [vmem:[#allocation7 + $0xb0] sm:$0xff]
    %v2638 = vld [vmem:[#allocation7 + $0xb8] sm:$0xff]
    %v2639 = vld [vmem:[#allocation7 + $0xc0] sm:$0xff]
    %v2640 = vld [vmem:[#allocation7 + $0xc8] sm:$0xff]
    %v2641 = vld [vmem:[#allocation7 + $0xd0] sm:$0xff]
    %v2642 = vld [vmem:[#allocation7 + $0xd8] sm:$0xff]
    %v2643 = vld [vmem:[#allocation7 + $0xe0] sm:$0xff]
    %v2644 = vld [vmem:[#allocation7 + $0xe8] sm:$0xff]
    %v2645 = vld [vmem:[#allocation7 + $0xf0] sm:$0xff]
    %v2646 = vld [vmem:[#allocation7 + $0xf8] sm:$0xff]
    %v2647 = vld [vmem:[#allocation7 + $0x100] sm:$0xff]
    %v2648 = vld [vmem:[#allocation7 + $0x108] sm:$0xff]
    %v2649 = vld [vmem:[#allocation7 + $0x110] sm:$0xff]
    %v2650 = vld [vmem:[#allocation7 + $0x118] sm:$0xff]
    %v2651 = vld [vmem:[#allocation7 + $0x120] sm:$0xff]
    %v2652 = vld [vmem:[#allocation7 + $0x128] sm:$0xff]
    %v2653 = vld [vmem:[#allocation7 + $0x130] sm:$0xff]
    %v2654 = vld [vmem:[#allocation7 + $0x138] sm:$0xff]
    %v2655 = vld [vmem:[#allocation7 + $0x140] sm:$0xff]
    %v2656 = vld [vmem:[#allocation7 + $0x148] sm:$0xff]
    %v2657 = vld [vmem:[#allocation7 + $0x150] sm:$0xff]
    %v2658 = vld [vmem:[#allocation7 + $0x158] sm:$0xff]
    %v2659 = vld [vmem:[#allocation7 + $0x160] sm:$0xff]
    %v2660 = vld [vmem:[#allocation7 + $0x168] sm:$0xff]
    %v2661 = vld [vmem:[#allocation7 + $0x170] sm:$0xff]
    %v2662 = vld [vmem:[#allocation7 + $0x178] sm:$0xff]
    %v2663 = vld [vmem:[#allocation7 + $0x180] sm:$0xff]
    %v2664 = vld [vmem:[#allocation7 + $0x188] sm:$0xff]
    %v2665 = vld [vmem:[#allocation7 + $0x190] sm:$0xff]
    %v2666 = vld [vmem:[#allocation7 + $0x198] sm:$0xff]
    %v2667 = vld [vmem:[#allocation7 + $0x1a0] sm:$0xff]
    %v2668 = vld [vmem:[#allocation7 + $0x1a8] sm:$0xff]
    %v2669 = vld [vmem:[#allocation7 + $0x1b0] sm:$0xff]
    %v2670 = vld [vmem:[#allocation7 + $0x1b8] sm:$0xff]
    %v2671 = vld [vmem:[#allocation7 + $0x1c0] sm:$0xff]
    %v2672 = vld [vmem:[#allocation7 + $0x1c8] sm:$0xff]
    %v2673 = vld [vmem:[#allocation7 + $0x1d0] sm:$0xff]
    %v2674 = vld [vmem:[#allocation7 + $0x1d8] sm:$0xff]
    %v2675 = vld [vmem:[#allocation7 + $0x1e0] sm:$0xff]
    %v2676 = vld [vmem:[#allocation7 + $0x1e8] sm:$0xff]
    %v2677 = vld [vmem:[#allocation7 + $0x1f0] sm:$0xff]
    %v2678 = vld [vmem:[#allocation7 + $0x1f8] sm:$0xff]
    %v2679 = vld [vmem:[%s4] sm:$0x3]
    %v2681 = vlaneseq
    %v2682 = vshrl.u32 %v2681, 7
    %v2683 = vsub.s32 0, %v2682
    %v2684 = vrot.slane %v2679, %v2683
    %v2685 = vlaneseq
    %v2686 = vshrl.u32 %v2685, 7
    %v2687 = vsub.s32 1, %v2686
    %v2688 = vrot.slane %v2679, %v2687
    %v2691 = vand.u32 %v2616, 4294901760
    %2692 = vmatprep.subr.mxu0 %v2691
    %v2693 = vand.u32 %v2615, 4294901760
    %2694 = vmatpush1.msra.mxu0 %v2693
    %v2695 = vand.u32 %v2618, 4294901760
    %2696 = vmatprep.subr.mxu0 %v2695
    %v2697 = vand.u32 %v2617, 4294901760
    %2698 = vmatpush1.msra.mxu0 %v2697
    %v2699 = vand.u32 %v2620, 4294901760
    %2700 = vmatprep.subr.mxu0 %v2699
    %v2701 = vand.u32 %v2619, 4294901760
    %2702 = vmatpush1.msra.mxu0 %v2701
    %v2703 = vand.u32 %v2622, 4294901760
    %2704 = vmatprep.subr.mxu0 %v2703
    %v2705 = vand.u32 %v2621, 4294901760
    %2706 = vmatpush1.msra.mxu0 %v2705
    %v2707 = vand.u32 %v2624, 4294901760
    %2708 = vmatprep.subr.mxu0 %v2707
    %v2709 = vand.u32 %v2623, 4294901760
    %2710 = vmatpush1.msra.mxu0 %v2709
    %v2711 = vand.u32 %v2626, 4294901760
    %2712 = vmatprep.subr.mxu0 %v2711
    %v2713 = vand.u32 %v2625, 4294901760
    %2714 = vmatpush1.msra.mxu0 %v2713
    %v2715 = vand.u32 %v2628, 4294901760
    %2716 = vmatprep.subr.mxu0 %v2715
    %v2717 = vand.u32 %v2627, 4294901760
    %2718 = vmatpush1.msra.mxu0 %v2717
    %v2719 = vand.u32 %v2630, 4294901760
    %2720 = vmatprep.subr.mxu0 %v2719
    %v2721 = vand.u32 %v2629, 4294901760
    %2722 = vmatpush1.msra.mxu0 %v2721
    %v2723 = vand.u32 %v2632, 4294901760
    %2724 = vmatprep.subr.mxu0 %v2723
    %v2725 = vand.u32 %v2631, 4294901760
    %2726 = vmatpush1.msra.mxu0 %v2725
    %v2727 = vand.u32 %v2634, 4294901760
    %2728 = vmatprep.subr.mxu0 %v2727
    %v2729 = vand.u32 %v2633, 4294901760
    %2730 = vmatpush1.msra.mxu0 %v2729
    %v2731 = vand.u32 %v2636, 4294901760
    %2732 = vmatprep.subr.mxu0 %v2731
    %v2733 = vand.u32 %v2635, 4294901760
    %2734 = vmatpush1.msra.mxu0 %v2733
    %v2735 = vand.u32 %v2638, 4294901760
    %2736 = vmatprep.subr.mxu0 %v2735
    %v2737 = vand.u32 %v2637, 4294901760
    %2738 = vmatpush1.msra.mxu0 %v2737
    %v2739 = vand.u32 %v2640, 4294901760
    %2740 = vmatprep.subr.mxu0 %v2739
    %v2741 = vand.u32 %v2639, 4294901760
    %2742 = vmatpush1.msra.mxu0 %v2741
    %v2743 = vand.u32 %v2642, 4294901760
    %2744 = vmatprep.subr.mxu0 %v2743
    %v2745 = vand.u32 %v2641, 4294901760
    %2746 = vmatpush1.msra.mxu0 %v2745
    %v2747 = vand.u32 %v2644, 4294901760
    %2748 = vmatprep.subr.mxu0 %v2747
    %v2749 = vand.u32 %v2643, 4294901760
    %2750 = vmatpush1.msra.mxu0 %v2749
    %v2751 = vand.u32 %v2646, 4294901760
    %2752 = vmatprep.subr.mxu0 %v2751
    %v2753 = vand.u32 %v2645, 4294901760
    %2754 = vmatpush1.msra.mxu0 %v2753
    %v2755 = vand.u32 %v2648, 4294901760
    %2756 = vmatprep.subr.mxu0 %v2755
    %v2757 = vand.u32 %v2647, 4294901760
    %2758 = vmatpush1.msra.mxu0 %v2757
    %v2759 = vand.u32 %v2650, 4294901760
    %2760 = vmatprep.subr.mxu0 %v2759
    %v2761 = vand.u32 %v2649, 4294901760
    %2762 = vmatpush1.msra.mxu0 %v2761
    %v2763 = vand.u32 %v2652, 4294901760
    %2764 = vmatprep.subr.mxu0 %v2763
    %v2765 = vand.u32 %v2651, 4294901760
    %2766 = vmatpush1.msra.mxu0 %v2765
    %v2767 = vand.u32 %v2654, 4294901760
    %2768 = vmatprep.subr.mxu0 %v2767
    %v2769 = vand.u32 %v2653, 4294901760
    %2770 = vmatpush1.msra.mxu0 %v2769
    %v2771 = vand.u32 %v2656, 4294901760
    %2772 = vmatprep.subr.mxu0 %v2771
    %v2773 = vand.u32 %v2655, 4294901760
    %2774 = vmatpush1.msra.mxu0 %v2773
    %v2775 = vand.u32 %v2658, 4294901760
    %2776 = vmatprep.subr.mxu0 %v2775
    %v2777 = vand.u32 %v2657, 4294901760
    %2778 = vmatpush1.msra.mxu0 %v2777
    %v2779 = vand.u32 %v2660, 4294901760
    %2780 = vmatprep.subr.mxu0 %v2779
    %v2781 = vand.u32 %v2659, 4294901760
    %2782 = vmatpush1.msra.mxu0 %v2781
    %v2783 = vand.u32 %v2662, 4294901760
    %2784 = vmatprep.subr.mxu0 %v2783
    %v2785 = vand.u32 %v2661, 4294901760
    %2786 = vmatpush1.msra.mxu0 %v2785
    %v2787 = vand.u32 %v2664, 4294901760
    %2788 = vmatprep.subr.mxu0 %v2787
    %v2789 = vand.u32 %v2663, 4294901760
    %2790 = vmatpush1.msra.mxu0 %v2789
    %v2791 = vand.u32 %v2666, 4294901760
    %2792 = vmatprep.subr.mxu0 %v2791
    %v2793 = vand.u32 %v2665, 4294901760
    %2794 = vmatpush1.msra.mxu0 %v2793
    %v2795 = vand.u32 %v2668, 4294901760
    %2796 = vmatprep.subr.mxu0 %v2795
    %v2797 = vand.u32 %v2667, 4294901760
    %2798 = vmatpush1.msra.mxu0 %v2797
    %v2799 = vand.u32 %v2670, 4294901760
    %2800 = vmatprep.subr.mxu0 %v2799
    %v2801 = vand.u32 %v2669, 4294901760
    %2802 = vmatpush1.msra.mxu0 %v2801
    %v2803 = vand.u32 %v2672, 4294901760
    %2804 = vmatprep.subr.mxu0 %v2803
    %v2805 = vand.u32 %v2671, 4294901760
    %2806 = vmatpush1.msra.mxu0 %v2805
    %v2807 = vand.u32 %v2674, 4294901760
    %2808 = vmatprep.subr.mxu0 %v2807
    %v2809 = vand.u32 %v2673, 4294901760
    %2810 = vmatpush1.msra.mxu0 %v2809
    %v2811 = vand.u32 %v2676, 4294901760
    %2812 = vmatprep.subr.mxu0 %v2811
    %v2813 = vand.u32 %v2675, 4294901760
    %2814 = vmatpush1.msra.mxu0 %v2813
    %v2815 = vand.u32 %v2678, 4294901760
    %2816 = vmatprep.subr.mxu0 %v2815
    %v2817 = vand.u32 %v2677, 4294901760
    %2818 = vmatpush1.msra.mxu0 %v2817
    %v2819 = vand.u32 %v2552, 4294901760
    %v2820 = vsub.f32 %v2552, %v2819
    %v2821 = vand.u32 %v2820, 4294901760
    %v2822 = vsub.f32 %v2820, %v2821
    %v2823 = vand.u32 %v2822, 4294901760
    %2824 = vmatprep.mubr.f32.mxu0 %v2823
    %v2825 = vand.u32 %v2551, 4294901760
    %v2826 = vsub.f32 %v2551, %v2825
    %v2827 = vand.u32 %v2826, 4294901760
    %v2828 = vsub.f32 %v2826, %v2827
    %v2829 = vand.u32 %v2828, 4294901760
    %2830 = vmatmul.mubr.f32.gmra.mrb[0].mxu0 %v2829
    %v2831 = vpop.f32.mrb[0].mxu0
    %v2832 = vadd.f32 %v2684, %v2831
    %v2833 = vpop.f32.mrb[0].mxu0
    %v2834 = vadd.f32 %v2688, %v2833
    %v2835 = vand.u32 %v2554, 4294901760
    %v2836 = vsub.f32 %v2554, %v2835
    %v2837 = vand.u32 %v2836, 4294901760
    %v2838 = vsub.f32 %v2836, %v2837
    %v2839 = vand.u32 %v2838, 4294901760
    %2840 = vmatprep.mubr.f32.mxu0 %v2839
    %v2841 = vand.u32 %v2553, 4294901760
    %v2842 = vsub.f32 %v2553, %v2841
    %v2843 = vand.u32 %v2842, 4294901760
    %v2844 = vsub.f32 %v2842, %v2843
    %v2845 = vand.u32 %v2844, 4294901760
    %2846 = vmatmul.mubr.f32.gmra.mrb[0].mxu0 %v2845
    %v2847 = vpop.f32.mrb[0].mxu0
    %v2848 = vadd.f32 %v2684, %v2847
    %v2849 = vpop.f32.mrb[0].mxu0
    %v2850 = vadd.f32 %v2688, %v2849
    %v2851 = vand.u32 %v2556, 4294901760
    %v2852 = vsub.f32 %v2556, %v2851
    %v2853 = vand.u32 %v2852, 4294901760
    %v2854 = vsub.f32 %v2852, %v2853
    %v2855 = vand.u32 %v2854, 4294901760
    %2856 = vmatprep.mubr.f32.mxu0 %v2855
    %v2857 = vand.u32 %v2555, 4294901760
    %v2858 = vsub.f32 %v2555, %v2857
    %v2859 = vand.u32 %v2858, 4294901760
    %v2860 = vsub.f32 %v2858, %v2859
    %v2861 = vand.u32 %v2860, 4294901760
    %2862 = vmatmul.mubr.f32.gmra.mrb[0].mxu0 %v2861
    %v2863 = vpop.f32.mrb[0].mxu0
    %v2864 = vadd.f32 %v2684, %v2863
    %v2865 = vpop.f32.mrb[0].mxu0
    %v2866 = vadd.f32 %v2688, %v2865
    %v2867 = vand.u32 %v2558, 4294901760
    %v2868 = vsub.f32 %v2558, %v2867
    %v2869 = vand.u32 %v2868, 4294901760
    %v2870 = vsub.f32 %v2868, %v2869
    %v2871 = vand.u32 %v2870, 4294901760
    %2872 = vmatprep.mubr.f32.mxu0 %v2871
    %v2873 = vand.u32 %v2557, 4294901760
    %v2874 = vsub.f32 %v2557, %v2873
    %v2875 = vand.u32 %v2874, 4294901760
    %v2876 = vsub.f32 %v2874, %v2875
    %v2877 = vand.u32 %v2876, 4294901760
    %2878 = vmatmul.mubr.f32.gmra.mrb[0].mxu0 %v2877
    %v2879 = vpop.f32.mrb[0].mxu0
    %v2880 = vadd.f32 %v2684, %v2879
    %v2881 = vpop.f32.mrb[0].mxu0
    %v2882 = vadd.f32 %v2688, %v2881
    %v2883 = vand.u32 %v2560, 4294901760
    %v2884 = vsub.f32 %v2560, %v2883
    %v2885 = vand.u32 %v2884, 4294901760
    %v2886 = vsub.f32 %v2884, %v2885
    %v2887 = vand.u32 %v2886, 4294901760
    %2888 = vmatprep.mubr.f32.mxu0 %v2887
    %v2889 = vand.u32 %v2559, 4294901760
    %v2890 = vsub.f32 %v2559, %v2889
    %v2891 = vand.u32 %v2890, 4294901760
    %v2892 = vsub.f32 %v2890, %v2891
    %v2893 = vand.u32 %v2892, 4294901760
    %2894 = vmatmul.mubr.f32.gmra.mrb[0].mxu0 %v2893
    %v2895 = vpop.f32.mrb[0].mxu0
    %v2896 = vadd.f32 %v2684, %v2895
    %v2897 = vpop.f32.mrb[0].mxu0
    %v2898 = vadd.f32 %v2688, %v2897
    %v2899 = vand.u32 %v2562, 4294901760
    %v2900 = vsub.f32 %v2562, %v2899
    %v2901 = vand.u32 %v2900, 4294901760
    %v2902 = vsub.f32 %v2900, %v2901
    %v2903 = vand.u32 %v2902, 4294901760
    %2904 = vmatprep.mubr.f32.mxu0 %v2903
    %v2905 = vand.u32 %v2561, 4294901760
    %v2906 = vsub.f32 %v2561, %v2905
    %v2907 = vand.u32 %v2906, 4294901760
    %v2908 = vsub.f32 %v2906, %v2907
    %v2909 = vand.u32 %v2908, 4294901760
    %2910 = vmatmul.mubr.f32.gmra.mrb[0].mxu0 %v2909
    %v2911 = vpop.f32.mrb[0].mxu0
    %v2912 = vadd.f32 %v2684, %v2911
    %v2913 = vpop.f32.mrb[0].mxu0
    %v2914 = vadd.f32 %v2688, %v2913
    %v2915 = vand.u32 %v2564, 4294901760
    %v2916 = vsub.f32 %v2564, %v2915
    %v2917 = vand.u32 %v2916, 4294901760
    %v2918 = vsub.f32 %v2916, %v2917
    %v2919 = vand.u32 %v2918, 4294901760
    %2920 = vmatprep.mubr.f32.mxu0 %v2919
    %v2921 = vand.u32 %v2563, 4294901760
    %v2922 = vsub.f32 %v2563, %v2921
    %v2923 = vand.u32 %v2922, 4294901760
    %v2924 = vsub.f32 %v2922, %v2923
    %v2925 = vand.u32 %v2924, 4294901760
    %2926 = vmatmul.mubr.f32.gmra.mrb[0].mxu0 %v2925
    %v2927 = vpop.f32.mrb[0].mxu0
    %v2928 = vadd.f32 %v2684, %v2927
    %v2929 = vpop.f32.mrb[0].mxu0
    %v2930 = vadd.f32 %v2688, %v2929
    %v2931 = vand.u32 %v2566, 4294901760
    %v2932 = vsub.f32 %v2566, %v2931
    %v2933 = vand.u32 %v2932, 4294901760
    %v2934 = vsub.f32 %v2932, %v2933
    %v2935 = vand.u32 %v2934, 4294901760
    %2936 = vmatprep.mubr.f32.mxu0 %v2935
    %v2937 = vand.u32 %v2565, 4294901760
    %v2938 = vsub.f32 %v2565, %v2937
    %v2939 = vand.u32 %v2938, 4294901760
    %v2940 = vsub.f32 %v2938, %v2939
    %v2941 = vand.u32 %v2940, 4294901760
    %2942 = vmatmul.mubr.f32.gmra.mrb[0].mxu0 %v2941
    %v2943 = vpop.f32.mrb[0].mxu0
    %v2944 = vadd.f32 %v2684, %v2943
    %v2945 = vpop.f32.mrb[0].mxu0
    %v2946 = vadd.f32 %v2688, %v2945
    %v2947 = vand.u32 %v2568, 4294901760
    %v2948 = vsub.f32 %v2568, %v2947
    %v2949 = vand.u32 %v2948, 4294901760
    %v2950 = vsub.f32 %v2948, %v2949
    %v2951 = vand.u32 %v2950, 4294901760
    %2952 = vmatprep.mubr.f32.mxu0 %v2951
    %v2953 = vand.u32 %v2567, 4294901760
    %v2954 = vsub.f32 %v2567, %v2953
    %v2955 = vand.u32 %v2954, 4294901760
    %v2956 = vsub.f32 %v2954, %v2955
    %v2957 = vand.u32 %v2956, 4294901760
    %2958 = vmatmul.mubr.f32.gmra.mrb[0].mxu0 %v2957
    %v2959 = vpop.f32.mrb[0].mxu0
    %v2960 = vadd.f32 %v2684, %v2959
    %v2961 = vpop.f32.mrb[0].mxu0
    %v2962 = vadd.f32 %v2688, %v2961
    %v2963 = vand.u32 %v2570, 4294901760
    %v2964 = vsub.f32 %v2570, %v2963
    %v2965 = vand.u32 %v2964, 4294901760
    %v2966 = vsub.f32 %v2964, %v2965
    %v2967 = vand.u32 %v2966, 4294901760
    %2968 = vmatprep.mubr.f32.mxu0 %v2967
    %v2969 = vand.u32 %v2569, 4294901760
    %v2970 = vsub.f32 %v2569, %v2969
    %v2971 = vand.u32 %v2970, 4294901760
    %v2972 = vsub.f32 %v2970, %v2971
    %v2973 = vand.u32 %v2972, 4294901760
    %2974 = vmatmul.mubr.f32.gmra.mrb[0].mxu0 %v2973
    %v2975 = vpop.f32.mrb[0].mxu0
    %v2976 = vadd.f32 %v2684, %v2975
    %v2977 = vpop.f32.mrb[0].mxu0
    %v2978 = vadd.f32 %v2688, %v2977
    %v2979 = vand.u32 %v2572, 4294901760
    %v2980 = vsub.f32 %v2572, %v2979
    %v2981 = vand.u32 %v2980, 4294901760
    %v2982 = vsub.f32 %v2980, %v2981
    %v2983 = vand.u32 %v2982, 4294901760
    %2984 = vmatprep.mubr.f32.mxu0 %v2983
    %v2985 = vand.u32 %v2571, 4294901760
    %v2986 = vsub.f32 %v2571, %v2985
    %v2987 = vand.u32 %v2986, 4294901760
    %v2988 = vsub.f32 %v2986, %v2987
    %v2989 = vand.u32 %v2988, 4294901760
    %2990 = vmatmul.mubr.f32.gmra.mrb[0].mxu0 %v2989
    %v2991 = vpop.f32.mrb[0].mxu0
    %v2992 = vadd.f32 %v2684, %v2991
    %v2993 = vpop.f32.mrb[0].mxu0
    %v2994 = vadd.f32 %v2688, %v2993
    %v2995 = vand.u32 %v2574, 4294901760
    %v2996 = vsub.f32 %v2574, %v2995
    %v2997 = vand.u32 %v2996, 4294901760
    %v2998 = vsub.f32 %v2996, %v2997
    %v2999 = vand.u32 %v2998, 4294901760
    %3000 = vmatprep.mubr.f32.mxu0 %v2999
    %v3001 = vand.u32 %v2573, 4294901760
    %v3002 = vsub.f32 %v2573, %v3001
    %v3003 = vand.u32 %v3002, 4294901760
    %v3004 = vsub.f32 %v3002, %v3003
    %v3005 = vand.u32 %v3004, 4294901760
    %3006 = vmatmul.mubr.f32.gmra.mrb[0].mxu0 %v3005
    %v3007 = vpop.f32.mrb[0].mxu0
    %v3008 = vadd.f32 %v2684, %v3007
    %v3009 = vpop.f32.mrb[0].mxu0
    %v3010 = vadd.f32 %v2688, %v3009
    %v3011 = vand.u32 %v2576, 4294901760
    %v3012 = vsub.f32 %v2576, %v3011
    %v3013 = vand.u32 %v3012, 4294901760
    %v3014 = vsub.f32 %v3012, %v3013
    %v3015 = vand.u32 %v3014, 4294901760
    %3016 = vmatprep.mubr.f32.mxu0 %v3015
    %v3017 = vand.u32 %v2575, 4294901760
    %v3018 = vsub.f32 %v2575, %v3017
    %v3019 = vand.u32 %v3018, 4294901760
    %v3020 = vsub.f32 %v3018, %v3019
    %v3021 = vand.u32 %v3020, 4294901760
    %3022 = vmatmul.mubr.f32.gmra.mrb[0].mxu0 %v3021
    %v3023 = vpop.f32.mrb[0].mxu0
    %v3024 = vadd.f32 %v2684, %v3023
    %v3025 = vpop.f32.mrb[0].mxu0
    %v3026 = vadd.f32 %v2688, %v3025
    %v3027 = vand.u32 %v2578, 4294901760
    %v3028 = vsub.f32 %v2578, %v3027
    %v3029 = vand.u32 %v3028, 4294901760
    %v3030 = vsub.f32 %v3028, %v3029
    %v3031 = vand.u32 %v3030, 4294901760
    %3032 = vmatprep.mubr.f32.mxu0 %v3031
    %v3033 = vand.u32 %v2577, 4294901760
    %v3034 = vsub.f32 %v2577, %v3033
    %v3035 = vand.u32 %v3034, 4294901760
    %v3036 = vsub.f32 %v3034, %v3035
    %v3037 = vand.u32 %v3036, 4294901760
    %3038 = vmatmul.mubr.f32.gmra.mrb[0].mxu0 %v3037
    %v3039 = vpop.f32.mrb[0].mxu0
    %v3040 = vadd.f32 %v2684, %v3039
    %v3041 = vpop.f32.mrb[0].mxu0
    %v3042 = vadd.f32 %v2688, %v3041
    %v3043 = vand.u32 %v2580, 4294901760
    %v3044 = vsub.f32 %v2580, %v3043
    %v3045 = vand.u32 %v3044, 4294901760
    %v3046 = vsub.f32 %v3044, %v3045
    %v3047 = vand.u32 %v3046, 4294901760
    %3048 = vmatprep.mubr.f32.mxu0 %v3047
    %v3049 = vand.u32 %v2579, 4294901760
    %v3050 = vsub.f32 %v2579, %v3049
    %v3051 = vand.u32 %v3050, 4294901760
    %v3052 = vsub.f32 %v3050, %v3051
    %v3053 = vand.u32 %v3052, 4294901760
    %3054 = vmatmul.mubr.f32.gmra.mrb[0].mxu0 %v3053
    %v3055 = vpop.f32.mrb[0].mxu0
    %v3056 = vadd.f32 %v2684, %v3055
    %v3057 = vpop.f32.mrb[0].mxu0
    %v3058 = vadd.f32 %v2688, %v3057
    %v3059 = vand.u32 %v2582, 4294901760
    %v3060 = vsub.f32 %v2582, %v3059
    %v3061 = vand.u32 %v3060, 4294901760
    %v3062 = vsub.f32 %v3060, %v3061
    %v3063 = vand.u32 %v3062, 4294901760
    %3064 = vmatprep.mubr.f32.mxu0 %v3063
    %v3065 = vand.u32 %v2581, 4294901760
    %v3066 = vsub.f32 %v2581, %v3065
    %v3067 = vand.u32 %v3066, 4294901760
    %v3068 = vsub.f32 %v3066, %v3067
    %v3069 = vand.u32 %v3068, 4294901760
    %3070 = vmatmul.mubr.f32.gmra.mrb[0].mxu0 %v3069
    %v3071 = vpop.f32.mrb[0].mxu0
    %v3072 = vadd.f32 %v2684, %v3071
    %v3073 = vpop.f32.mrb[0].mxu0
    %v3074 = vadd.f32 %v2688, %v3073
    %v3075 = vand.u32 %v2584, 4294901760
    %v3076 = vsub.f32 %v2584, %v3075
    %v3077 = vand.u32 %v3076, 4294901760
    %v3078 = vsub.f32 %v3076, %v3077
    %v3079 = vand.u32 %v3078, 4294901760
    %3080 = vmatprep.mubr.f32.mxu0 %v3079
    %v3081 = vand.u32 %v2583, 4294901760
    %v3082 = vsub.f32 %v2583, %v3081
    %v3083 = vand.u32 %v3082, 4294901760
    %v3084 = vsub.f32 %v3082, %v3083
    %v3085 = vand.u32 %v3084, 4294901760
    %3086 = vmatmul.mubr.f32.gmra.mrb[0].mxu0 %v3085
    %v3087 = vpop.f32.mrb[0].mxu0
    %v3088 = vadd.f32 %v2684, %v3087
    %v3089 = vpop.f32.mrb[0].mxu0
    %v3090 = vadd.f32 %v2688, %v3089
    %v3091 = vand.u32 %v2586, 4294901760
    %v3092 = vsub.f32 %v2586, %v3091
    %v3093 = vand.u32 %v3092, 4294901760
    %v3094 = vsub.f32 %v3092, %v3093
    %v3095 = vand.u32 %v3094, 4294901760
    %3096 = vmatprep.mubr.f32.mxu0 %v3095
    %v3097 = vand.u32 %v2585, 4294901760
    %v3098 = vsub.f32 %v2585, %v3097
    %v3099 = vand.u32 %v3098, 4294901760
    %v3100 = vsub.f32 %v3098, %v3099
    %v3101 = vand.u32 %v3100, 4294901760
    %3102 = vmatmul.mubr.f32.gmra.mrb[0].mxu0 %v3101
    %v3103 = vpop.f32.mrb[0].mxu0
    %v3104 = vadd.f32 %v2684, %v3103
    %v3105 = vpop.f32.mrb[0].mxu0
    %v3106 = vadd.f32 %v2688, %v3105
    %v3107 = vand.u32 %v2588, 4294901760
    %v3108 = vsub.f32 %v2588, %v3107
    %v3109 = vand.u32 %v3108, 4294901760
    %v3110 = vsub.f32 %v3108, %v3109
    %v3111 = vand.u32 %v3110, 4294901760
    %3112 = vmatprep.mubr.f32.mxu0 %v3111
    %v3113 = vand.u32 %v2587, 4294901760
    %v3114 = vsub.f32 %v2587, %v3113
    %v3115 = vand.u32 %v3114, 4294901760
    %v3116 = vsub.f32 %v3114, %v3115
    %v3117 = vand.u32 %v3116, 4294901760
    %3118 = vmatmul.mubr.f32.gmra.mrb[0].mxu0 %v3117
    %v3119 = vpop.f32.mrb[0].mxu0
    %v3120 = vadd.f32 %v2684, %v3119
    %v3121 = vpop.f32.mrb[0].mxu0
    %v3122 = vadd.f32 %v2688, %v3121
    %v3123 = vand.u32 %v2590, 4294901760
    %v3124 = vsub.f32 %v2590, %v3123
    %v3125 = vand.u32 %v3124, 4294901760
    %v3126 = vsub.f32 %v3124, %v3125
    %v3127 = vand.u32 %v3126, 4294901760
    %3128 = vmatprep.mubr.f32.mxu0 %v3127
    %v3129 = vand.u32 %v2589, 4294901760
    %v3130 = vsub.f32 %v2589, %v3129
    %v3131 = vand.u32 %v3130, 4294901760
    %v3132 = vsub.f32 %v3130, %v3131
    %v3133 = vand.u32 %v3132, 4294901760
    %3134 = vmatmul.mubr.f32.gmra.mrb[0].mxu0 %v3133
    %v3135 = vpop.f32.mrb[0].mxu0
    %v3136 = vadd.f32 %v2684, %v3135
    %v3137 = vpop.f32.mrb[0].mxu0
    %v3138 = vadd.f32 %v2688, %v3137
    %v3139 = vand.u32 %v2592, 4294901760
    %v3140 = vsub.f32 %v2592, %v3139
    %v3141 = vand.u32 %v3140, 4294901760
    %v3142 = vsub.f32 %v3140, %v3141
    %v3143 = vand.u32 %v3142, 4294901760
    %3144 = vmatprep.mubr.f32.mxu0 %v3143
    %v3145 = vand.u32 %v2591, 4294901760
    %v3146 = vsub.f32 %v2591, %v3145
    %v3147 = vand.u32 %v3146, 4294901760
    %v3148 = vsub.f32 %v3146, %v3147
    %v3149 = vand.u32 %v3148, 4294901760
    %3150 = vmatmul.mubr.f32.gmra.mrb[0].mxu0 %v3149
    %v3151 = vpop.f32.mrb[0].mxu0
    %v3152 = vadd.f32 %v2684, %v3151
    %v3153 = vpop.f32.mrb[0].mxu0
    %v3154 = vadd.f32 %v2688, %v3153
    %v3155 = vand.u32 %v2594, 4294901760
    %v3156 = vsub.f32 %v2594, %v3155
    %v3157 = vand.u32 %v3156, 4294901760
    %v3158 = vsub.f32 %v3156, %v3157
    %v3159 = vand.u32 %v3158, 4294901760
    %3160 = vmatprep.mubr.f32.mxu0 %v3159
    %v3161 = vand.u32 %v2593, 4294901760
    %v3162 = vsub.f32 %v2593, %v3161
    %v3163 = vand.u32 %v3162, 4294901760
    %v3164 = vsub.f32 %v3162, %v3163
    %v3165 = vand.u32 %v3164, 4294901760
    %3166 = vmatmul.mubr.f32.gmra.mrb[0].mxu0 %v3165
    %v3167 = vpop.f32.mrb[0].mxu0
    %v3168 = vadd.f32 %v2684, %v3167
    %v3169 = vpop.f32.mrb[0].mxu0
    %v3170 = vadd.f32 %v2688, %v3169
    %v3171 = vand.u32 %v2596, 4294901760
    %v3172 = vsub.f32 %v2596, %v3171
    %v3173 = vand.u32 %v3172, 4294901760
    %v3174 = vsub.f32 %v3172, %v3173
    %v3175 = vand.u32 %v3174, 4294901760
    %3176 = vmatprep.mubr.f32.mxu0 %v3175
    %v3177 = vand.u32 %v2595, 4294901760
    %v3178 = vsub.f32 %v2595, %v3177
    %v3179 = vand.u32 %v3178, 4294901760
    %v3180 = vsub.f32 %v3178, %v3179
    %v3181 = vand.u32 %v3180, 4294901760
    %3182 = vmatmul.mubr.f32.gmra.mrb[0].mxu0 %v3181
    %v3183 = vpop.f32.mrb[0].mxu0
    %v3184 = vadd.f32 %v2684, %v3183
    %v3185 = vpop.f32.mrb[0].mxu0
    %v3186 = vadd.f32 %v2688, %v3185
    %v3187 = vand.u32 %v2598, 4294901760
    %v3188 = vsub.f32 %v2598, %v3187
    %v3189 = vand.u32 %v3188, 4294901760
    %v3190 = vsub.f32 %v3188, %v3189
    %v3191 = vand.u32 %v3190, 4294901760
    %3192 = vmatprep.mubr.f32.mxu0 %v3191
    %v3193 = vand.u32 %v2597, 4294901760
    %v3194 = vsub.f32 %v2597, %v3193
    %v3195 = vand.u32 %v3194, 4294901760
    %v3196 = vsub.f32 %v3194, %v3195
    %v3197 = vand.u32 %v3196, 4294901760
    %3198 = vmatmul.mubr.f32.gmra.mrb[0].mxu0 %v3197
    %v3199 = vpop.f32.mrb[0].mxu0
    %v3200 = vadd.f32 %v2684, %v3199
    %v3201 = vpop.f32.mrb[0].mxu0
    %v3202 = vadd.f32 %v2688, %v3201
    %v3203 = vand.u32 %v2600, 4294901760
    %v3204 = vsub.f32 %v2600, %v3203
    %v3205 = vand.u32 %v3204, 4294901760
    %v3206 = vsub.f32 %v3204, %v3205
    %v3207 = vand.u32 %v3206, 4294901760
    %3208 = vmatprep.mubr.f32.mxu0 %v3207
    %v3209 = vand.u32 %v2599, 4294901760
    %v3210 = vsub.f32 %v2599, %v3209
    %v3211 = vand.u32 %v3210, 4294901760
    %v3212 = vsub.f32 %v3210, %v3211
    %v3213 = vand.u32 %v3212, 4294901760
    %3214 = vmatmul.mubr.f32.gmra.mrb[0].mxu0 %v3213
    %v3215 = vpop.f32.mrb[0].mxu0
    %v3216 = vadd.f32 %v2684, %v3215
    %v3217 = vpop.f32.mrb[0].mxu0
    %v3218 = vadd.f32 %v2688, %v3217
    %v3219 = vand.u32 %v2602, 4294901760
    %v3220 = vsub.f32 %v2602, %v3219
    %v3221 = vand.u32 %v3220, 4294901760
    %v3222 = vsub.f32 %v3220, %v3221
    %v3223 = vand.u32 %v3222, 4294901760
    %3224 = vmatprep.mubr.f32.mxu0 %v3223
    %v3225 = vand.u32 %v2601, 4294901760
    %v3226 = vsub.f32 %v2601, %v3225
    %v3227 = vand.u32 %v3226, 4294901760
    %v3228 = vsub.f32 %v3226, %v3227
    %v3229 = vand.u32 %v3228, 4294901760
    %3230 = vmatmul.mubr.f32.gmra.mrb[0].mxu0 %v3229
    %v3231 = vpop.f32.mrb[0].mxu0
    %v3232 = vadd.f32 %v2684, %v3231
    %v3233 = vpop.f32.mrb[0].mxu0
    %v3234 = vadd.f32 %v2688, %v3233
    %v3235 = vand.u32 %v2604, 4294901760
    %v3236 = vsub.f32 %v2604, %v3235
    %v3237 = vand.u32 %v3236, 4294901760
    %v3238 = vsub.f32 %v3236, %v3237
    %v3239 = vand.u32 %v3238, 4294901760
    %3240 = vmatprep.mubr.f32.mxu0 %v3239
    %v3241 = vand.u32 %v2603, 4294901760
    %v3242 = vsub.f32 %v2603, %v3241
    %v3243 = vand.u32 %v3242, 4294901760
    %v3244 = vsub.f32 %v3242, %v3243
    %v3245 = vand.u32 %v3244, 4294901760
    %3246 = vmatmul.mubr.f32.gmra.mrb[0].mxu0 %v3245
    %v3247 = vpop.f32.mrb[0].mxu0
    %v3248 = vadd.f32 %v2684, %v3247
    %v3249 = vpop.f32.mrb[0].mxu0
    %v3250 = vadd.f32 %v2688, %v3249
    %v3251 = vand.u32 %v2606, 4294901760
    %v3252 = vsub.f32 %v2606, %v3251
    %v3253 = vand.u32 %v3252, 4294901760
    %v3254 = vsub.f32 %v3252, %v3253
    %v3255 = vand.u32 %v3254, 4294901760
    %3256 = vmatprep.mubr.f32.mxu0 %v3255
    %v3257 = vand.u32 %v2605, 4294901760
    %v3258 = vsub.f32 %v2605, %v3257
    %v3259 = vand.u32 %v3258, 4294901760
    %v3260 = vsub.f32 %v3258, %v3259
    %v3261 = vand.u32 %v3260, 4294901760
    %3262 = vmatmul.mubr.f32.gmra.mrb[0].mxu0 %v3261
    %v3263 = vpop.f32.mrb[0].mxu0
    %v3264 = vadd.f32 %v2684, %v3263
    %v3265 = vpop.f32.mrb[0].mxu0
    %v3266 = vadd.f32 %v2688, %v3265
    %v3267 = vand.u32 %v2608, 4294901760
    %v3268 = vsub.f32 %v2608, %v3267
    %v3269 = vand.u32 %v3268, 4294901760
    %v3270 = vsub.f32 %v3268, %v3269
    %v3271 = vand.u32 %v3270, 4294901760
    %3272 = vmatprep.mubr.f32.mxu0 %v3271
    %v3273 = vand.u32 %v2607, 4294901760
    %v3274 = vsub.f32 %v2607, %v3273
    %v3275 = vand.u32 %v3274, 4294901760
    %v3276 = vsub.f32 %v3274, %v3275
    %v3277 = vand.u32 %v3276, 4294901760
    %3278 = vmatmul.mubr.f32.gmra.mrb[0].mxu0 %v3277
    %v3279 = vpop.f32.mrb[0].mxu0
    %v3280 = vadd.f32 %v2684, %v3279
    %v3281 = vpop.f32.mrb[0].mxu0
    %v3282 = vadd.f32 %v2688, %v3281
    %v3283 = vand.u32 %v2610, 4294901760
    %v3284 = vsub.f32 %v2610, %v3283
    %v3285 = vand.u32 %v3284, 4294901760
    %v3286 = vsub.f32 %v3284, %v3285
    %v3287 = vand.u32 %v3286, 4294901760
    %3288 = vmatprep.mubr.f32.mxu0 %v3287
    %v3289 = vand.u32 %v2609, 4294901760
    %v3290 = vsub.f32 %v2609, %v3289
    %v3291 = vand.u32 %v3290, 4294901760
    %v3292 = vsub.f32 %v3290, %v3291
    %v3293 = vand.u32 %v3292, 4294901760
    %3294 = vmatmul.mubr.f32.gmra.mrb[0].mxu0 %v3293
    %v3295 = vpop.f32.mrb[0].mxu0
    %v3296 = vadd.f32 %v2684, %v3295
    %v3297 = vpop.f32.mrb[0].mxu0
    %v3298 = vadd.f32 %v2688, %v3297
    %v3299 = vand.u32 %v2612, 4294901760
    %v3300 = vsub.f32 %v2612, %v3299
    %v3301 = vand.u32 %v3300, 4294901760
    %v3302 = vsub.f32 %v3300, %v3301
    %v3303 = vand.u32 %v3302, 4294901760
    %3304 = vmatprep.mubr.f32.mxu0 %v3303
    %v3305 = vand.u32 %v2611, 4294901760
    %v3306 = vsub.f32 %v2611, %v3305
    %v3307 = vand.u32 %v3306, 4294901760
    %v3308 = vsub.f32 %v3306, %v3307
    %v3309 = vand.u32 %v3308, 4294901760
    %3310 = vmatmul.mubr.f32.gmra.mrb[0].mxu0 %v3309
    %v3311 = vpop.f32.mrb[0].mxu0
    %v3312 = vadd.f32 %v2684, %v3311
    %v3313 = vpop.f32.mrb[0].mxu0
    %v3314 = vadd.f32 %v2688, %v3313
    %v3315 = vand.u32 %v2614, 4294901760
    %v3316 = vsub.f32 %v2614, %v3315
    %v3317 = vand.u32 %v3316, 4294901760
    %v3318 = vsub.f32 %v3316, %v3317
    %v3319 = vand.u32 %v3318, 4294901760
    %3320 = vmatprep.mubr.f32.mxu0 %v3319
    %v3321 = vand.u32 %v2613, 4294901760
    %v3322 = vsub.f32 %v2613, %v3321
    %v3323 = vand.u32 %v3322, 4294901760
    %v3324 = vsub.f32 %v3322, %v3323
    %v3325 = vand.u32 %v3324, 4294901760
    %3326 = vmatmul.mubr.f32.gmra.mrb[0].mxu0 %v3325
    %v3327 = vpop.f32.mrb[0].mxu0
    %v3328 = vadd.f32 %v2684, %v3327
    %v3329 = vpop.f32.mrb[0].mxu0
    %v3330 = vadd.f32 %v2688, %v3329
    %3331 = vdwg.mxu0
    %v3332 = vand.u32 %v2616, 4294901760
    %v3333 = vsub.f32 %v2616, %v3332
    %v3334 = vand.u32 %v3333, 4294901760
    %v3335 = vsub.f32 %v3333, %v3334
    %v3336 = vand.u32 %v3335, 4294901760
    %3337 = vmatprep.subr.mxu0 %v3336
    %v3338 = vand.u32 %v2615, 4294901760
    %v3339 = vsub.f32 %v2615, %v3338
    %v3340 = vand.u32 %v3339, 4294901760
    %v3341 = vsub.f32 %v3339, %v3340
    %v3342 = vand.u32 %v3341, 4294901760
    %3343 = vmatpush1.msra.mxu0 %v3342
    %v3344 = vand.u32 %v2618, 4294901760
    %v3345 = vsub.f32 %v2618, %v3344
    %v3346 = vand.u32 %v3345, 4294901760
    %v3347 = vsub.f32 %v3345, %v3346
    %v3348 = vand.u32 %v3347, 4294901760
    %3349 = vmatprep.subr.mxu0 %v3348
    %v3350 = vand.u32 %v2617, 4294901760
    %v3351 = vsub.f32 %v2617, %v3350
    %v3352 = vand.u32 %v3351, 4294901760
    %v3353 = vsub.f32 %v3351, %v3352
    %v3354 = vand.u32 %v3353, 4294901760
    %3355 = vmatpush1.msra.mxu0 %v3354
    %v3356 = vand.u32 %v2620, 4294901760
    %v3357 = vsub.f32 %v2620, %v3356
    %v3358 = vand.u32 %v3357, 4294901760
    %v3359 = vsub.f32 %v3357, %v3358
    %v3360 = vand.u32 %v3359, 4294901760
    %3361 = vmatprep.subr.mxu0 %v3360
    %v3362 = vand.u32 %v2619, 4294901760
    %v3363 = vsub.f32 %v2619, %v3362
    %v3364 = vand.u32 %v3363, 4294901760
    %v3365 = vsub.f32 %v3363, %v3364
    %v3366 = vand.u32 %v3365, 4294901760
    %3367 = vmatpush1.msra.mxu0 %v3366
    %v3368 = vand.u32 %v2622, 4294901760
    %v3369 = vsub.f32 %v2622, %v3368
    %v3370 = vand.u32 %v3369, 4294901760
    %v3371 = vsub.f32 %v3369, %v3370
    %v3372 = vand.u32 %v3371, 4294901760
    %3373 = vmatprep.subr.mxu0 %v3372
    %v3374 = vand.u32 %v2621, 4294901760
    %v3375 = vsub.f32 %v2621, %v3374
    %v3376 = vand.u32 %v3375, 4294901760
    %v3377 = vsub.f32 %v3375, %v3376
    %v3378 = vand.u32 %v3377, 4294901760
    %3379 = vmatpush1.msra.mxu0 %v3378
    %v3380 = vand.u32 %v2624, 4294901760
    %v3381 = vsub.f32 %v2624, %v3380
    %v3382 = vand.u32 %v3381, 4294901760
    %v3383 = vsub.f32 %v3381, %v3382
    %v3384 = vand.u32 %v3383, 4294901760
    %3385 = vmatprep.subr.mxu0 %v3384
    %v3386 = vand.u32 %v2623, 4294901760
    %v3387 = vsub.f32 %v2623, %v3386
    %v3388 = vand.u32 %v3387, 4294901760
    %v3389 = vsub.f32 %v3387, %v3388
    %v3390 = vand.u32 %v3389, 4294901760
    %3391 = vmatpush1.msra.mxu0 %v3390
    %v3392 = vand.u32 %v2626, 4294901760
    %v3393 = vsub.f32 %v2626, %v3392
    %v3394 = vand.u32 %v3393, 4294901760
    %v3395 = vsub.f32 %v3393, %v3394
    %v3396 = vand.u32 %v3395, 4294901760
    %3397 = vmatprep.subr.mxu0 %v3396
    %v3398 = vand.u32 %v2625, 4294901760
    %v3399 = vsub.f32 %v2625, %v3398
    %v3400 = vand.u32 %v3399, 4294901760
    %v3401 = vsub.f32 %v3399, %v3400
    %v3402 = vand.u32 %v3401, 4294901760
    %3403 = vmatpush1.msra.mxu0 %v3402
    %v3404 = vand.u32 %v2628, 4294901760
    %v3405 = vsub.f32 %v2628, %v3404
    %v3406 = vand.u32 %v3405, 4294901760
    %v3407 = vsub.f32 %v3405, %v3406
    %v3408 = vand.u32 %v3407, 4294901760
    %3409 = vmatprep.subr.mxu0 %v3408
    %v3410 = vand.u32 %v2627, 4294901760
    %v3411 = vsub.f32 %v2627, %v3410
    %v3412 = vand.u32 %v3411, 4294901760
    %v3413 = vsub.f32 %v3411, %v3412
    %v3414 = vand.u32 %v3413, 4294901760
    %3415 = vmatpush1.msra.mxu0 %v3414
    %v3416 = vand.u32 %v2630, 4294901760
    %v3417 = vsub.f32 %v2630, %v3416
    %v3418 = vand.u32 %v3417, 4294901760
    %v3419 = vsub.f32 %v3417, %v3418
    %v3420 = vand.u32 %v3419, 4294901760
    %3421 = vmatprep.subr.mxu0 %v3420
    %v3422 = vand.u32 %v2629, 4294901760
    %v3423 = vsub.f32 %v2629, %v3422
    %v3424 = vand.u32 %v3423, 4294901760
    %v3425 = vsub.f32 %v3423, %v3424
    %v3426 = vand.u32 %v3425, 4294901760
    %3427 = vmatpush1.msra.mxu0 %v3426
    %v3428 = vand.u32 %v2632, 4294901760
    %v3429 = vsub.f32 %v2632, %v3428
    %v3430 = vand.u32 %v3429, 4294901760
    %v3431 = vsub.f32 %v3429, %v3430
    %v3432 = vand.u32 %v3431, 4294901760
    %3433 = vmatprep.subr.mxu0 %v3432
    %v3434 = vand.u32 %v2631, 4294901760
    %v3435 = vsub.f32 %v2631, %v3434
    %v3436 = vand.u32 %v3435, 4294901760
    %v3437 = vsub.f32 %v3435, %v3436
    %v3438 = vand.u32 %v3437, 4294901760
    %3439 = vmatpush1.msra.mxu0 %v3438
    %v3440 = vand.u32 %v2634, 4294901760
    %v3441 = vsub.f32 %v2634, %v3440
    %v3442 = vand.u32 %v3441, 4294901760
    %v3443 = vsub.f32 %v3441, %v3442
    %v3444 = vand.u32 %v3443, 4294901760
    %3445 = vmatprep.subr.mxu0 %v3444
    %v3446 = vand.u32 %v2633, 4294901760
    %v3447 = vsub.f32 %v2633, %v3446
    %v3448 = vand.u32 %v3447, 4294901760
    %v3449 = vsub.f32 %v3447, %v3448
    %v3450 = vand.u32 %v3449, 4294901760
    %3451 = vmatpush1.msra.mxu0 %v3450
    %v3452 = vand.u32 %v2636, 4294901760
    %v3453 = vsub.f32 %v2636, %v3452
    %v3454 = vand.u32 %v3453, 4294901760
    %v3455 = vsub.f32 %v3453, %v3454
    %v3456 = vand.u32 %v3455, 4294901760
    %3457 = vmatprep.subr.mxu0 %v3456
    %v3458 = vand.u32 %v2635, 4294901760
    %v3459 = vsub.f32 %v2635, %v3458
    %v3460 = vand.u32 %v3459, 4294901760
    %v3461 = vsub.f32 %v3459, %v3460
    %v3462 = vand.u32 %v3461, 4294901760
    %3463 = vmatpush1.msra.mxu0 %v3462
    %v3464 = vand.u32 %v2638, 4294901760
    %v3465 = vsub.f32 %v2638, %v3464
    %v3466 = vand.u32 %v3465, 4294901760
    %v3467 = vsub.f32 %v3465, %v3466
    %v3468 = vand.u32 %v3467, 4294901760
    %3469 = vmatprep.subr.mxu0 %v3468
    %v3470 = vand.u32 %v2637, 4294901760
    %v3471 = vsub.f32 %v2637, %v3470
    %v3472 = vand.u32 %v3471, 4294901760
    %v3473 = vsub.f32 %v3471, %v3472
    %v3474 = vand.u32 %v3473, 4294901760
    %3475 = vmatpush1.msra.mxu0 %v3474
    %v3476 = vand.u32 %v2640, 4294901760
    %v3477 = vsub.f32 %v2640, %v3476
    %v3478 = vand.u32 %v3477, 4294901760
    %v3479 = vsub.f32 %v3477, %v3478
    %v3480 = vand.u32 %v3479, 4294901760
    %3481 = vmatprep.subr.mxu0 %v3480
    %v3482 = vand.u32 %v2639, 4294901760
    %v3483 = vsub.f32 %v2639, %v3482
    %v3484 = vand.u32 %v3483, 4294901760
    %v3485 = vsub.f32 %v3483, %v3484
    %v3486 = vand.u32 %v3485, 4294901760
    %3487 = vmatpush1.msra.mxu0 %v3486
    %v3488 = vand.u32 %v2642, 4294901760
    %v3489 = vsub.f32 %v2642, %v3488
    %v3490 = vand.u32 %v3489, 4294901760
    %v3491 = vsub.f32 %v3489, %v3490
    %v3492 = vand.u32 %v3491, 4294901760
    %3493 = vmatprep.subr.mxu0 %v3492
    %v3494 = vand.u32 %v2641, 4294901760
    %v3495 = vsub.f32 %v2641, %v3494
    %v3496 = vand.u32 %v3495, 4294901760
    %v3497 = vsub.f32 %v3495, %v3496
    %v3498 = vand.u32 %v3497, 4294901760
    %3499 = vmatpush1.msra.mxu0 %v3498
    %v3500 = vand.u32 %v2644, 4294901760
    %v3501 = vsub.f32 %v2644, %v3500
    %v3502 = vand.u32 %v3501, 4294901760
    %v3503 = vsub.f32 %v3501, %v3502
    %v3504 = vand.u32 %v3503, 4294901760
    %3505 = vmatprep.subr.mxu0 %v3504
    %v3506 = vand.u32 %v2643, 4294901760
    %v3507 = vsub.f32 %v2643, %v3506
    %v3508 = vand.u32 %v3507, 4294901760
    %v3509 = vsub.f32 %v3507, %v3508
    %v3510 = vand.u32 %v3509, 4294901760
    %3511 = vmatpush1.msra.mxu0 %v3510
    %v3512 = vand.u32 %v2646, 4294901760
    %v3513 = vsub.f32 %v2646, %v3512
    %v3514 = vand.u32 %v3513, 4294901760
    %v3515 = vsub.f32 %v3513, %v3514
    %v3516 = vand.u32 %v3515, 4294901760
    %3517 = vmatprep.subr.mxu0 %v3516
    %v3518 = vand.u32 %v2645, 4294901760
    %v3519 = vsub.f32 %v2645, %v3518
    %v3520 = vand.u32 %v3519, 4294901760
    %v3521 = vsub.f32 %v3519, %v3520
    %v3522 = vand.u32 %v3521, 4294901760
    %3523 = vmatpush1.msra.mxu0 %v3522
    %v3524 = vand.u32 %v2648, 4294901760
    %v3525 = vsub.f32 %v2648, %v3524
    %v3526 = vand.u32 %v3525, 4294901760
    %v3527 = vsub.f32 %v3525, %v3526
    %v3528 = vand.u32 %v3527, 4294901760
    %3529 = vmatprep.subr.mxu0 %v3528
    %v3530 = vand.u32 %v2647, 4294901760
    %v3531 = vsub.f32 %v2647, %v3530
    %v3532 = vand.u32 %v3531, 4294901760
    %v3533 = vsub.f32 %v3531, %v3532
    %v3534 = vand.u32 %v3533, 4294901760
    %3535 = vmatpush1.msra.mxu0 %v3534
    %v3536 = vand.u32 %v2650, 4294901760
    %v3537 = vsub.f32 %v2650, %v3536
    %v3538 = vand.u32 %v3537, 4294901760
    %v3539 = vsub.f32 %v3537, %v3538
    %v3540 = vand.u32 %v3539, 4294901760
    %3541 = vmatprep.subr.mxu0 %v3540
    %v3542 = vand.u32 %v2649, 4294901760
    %v3543 = vsub.f32 %v2649, %v3542
    %v3544 = vand.u32 %v3543, 4294901760
    %v3545 = vsub.f32 %v3543, %v3544
    %v3546 = vand.u32 %v3545, 4294901760
    %3547 = vmatpush1.msra.mxu0 %v3546
    %v3548 = vand.u32 %v2652, 4294901760
    %v3549 = vsub.f32 %v2652, %v3548
    %v3550 = vand.u32 %v3549, 4294901760
    %v3551 = vsub.f32 %v3549, %v3550
    %v3552 = vand.u32 %v3551, 4294901760
    %3553 = vmatprep.subr.mxu0 %v3552
    %v3554 = vand.u32 %v2651, 4294901760
    %v3555 = vsub.f32 %v2651, %v3554
    %v3556 = vand.u32 %v3555, 4294901760
    %v3557 = vsub.f32 %v3555, %v3556
    %v3558 = vand.u32 %v3557, 4294901760
    %3559 = vmatpush1.msra.mxu0 %v3558
    %v3560 = vand.u32 %v2654, 4294901760
    %v3561 = vsub.f32 %v2654, %v3560
    %v3562 = vand.u32 %v3561, 4294901760
    %v3563 = vsub.f32 %v3561, %v3562
    %v3564 = vand.u32 %v3563, 4294901760
    %3565 = vmatprep.subr.mxu0 %v3564
    %v3566 = vand.u32 %v2653, 4294901760
    %v3567 = vsub.f32 %v2653, %v3566
    %v3568 = vand.u32 %v3567, 4294901760
    %v3569 = vsub.f32 %v3567, %v3568
    %v3570 = vand.u32 %v3569, 4294901760
    %3571 = vmatpush1.msra.mxu0 %v3570
    %v3572 = vand.u32 %v2656, 4294901760
    %v3573 = vsub.f32 %v2656, %v3572
    %v3574 = vand.u32 %v3573, 4294901760
    %v3575 = vsub.f32 %v3573, %v3574
    %v3576 = vand.u32 %v3575, 4294901760
    %3577 = vmatprep.subr.mxu0 %v3576
    %v3578 = vand.u32 %v2655, 4294901760
    %v3579 = vsub.f32 %v2655, %v3578
    %v3580 = vand.u32 %v3579, 4294901760
    %v3581 = vsub.f32 %v3579, %v3580
    %v3582 = vand.u32 %v3581, 4294901760
    %3583 = vmatpush1.msra.mxu0 %v3582
    %v3584 = vand.u32 %v2658, 4294901760
    %v3585 = vsub.f32 %v2658, %v3584
    %v3586 = vand.u32 %v3585, 4294901760
    %v3587 = vsub.f32 %v3585, %v3586
    %v3588 = vand.u32 %v3587, 4294901760
    %3589 = vmatprep.subr.mxu0 %v3588
    %v3590 = vand.u32 %v2657, 4294901760
    %v3591 = vsub.f32 %v2657, %v3590
    %v3592 = vand.u32 %v3591, 4294901760
    %v3593 = vsub.f32 %v3591, %v3592
    %v3594 = vand.u32 %v3593, 4294901760
    %3595 = vmatpush1.msra.mxu0 %v3594
    %v3596 = vand.u32 %v2660, 4294901760
    %v3597 = vsub.f32 %v2660, %v3596
    %v3598 = vand.u32 %v3597, 4294901760
    %v3599 = vsub.f32 %v3597, %v3598
    %v3600 = vand.u32 %v3599, 4294901760
    %3601 = vmatprep.subr.mxu0 %v3600
    %v3602 = vand.u32 %v2659, 4294901760
    %v3603 = vsub.f32 %v2659, %v3602
    %v3604 = vand.u32 %v3603, 4294901760
    %v3605 = vsub.f32 %v3603, %v3604
    %v3606 = vand.u32 %v3605, 4294901760
    %3607 = vmatpush1.msra.mxu0 %v3606
    %v3608 = vand.u32 %v2662, 4294901760
    %v3609 = vsub.f32 %v2662, %v3608
    %v3610 = vand.u32 %v3609, 4294901760
    %v3611 = vsub.f32 %v3609, %v3610
    %v3612 = vand.u32 %v3611, 4294901760
    %3613 = vmatprep.subr.mxu0 %v3612
    %v3614 = vand.u32 %v2661, 4294901760
    %v3615 = vsub.f32 %v2661, %v3614
    %v3616 = vand.u32 %v3615, 4294901760
    %v3617 = vsub.f32 %v3615, %v3616
    %v3618 = vand.u32 %v3617, 4294901760
    %3619 = vmatpush1.msra.mxu0 %v3618
    %v3620 = vand.u32 %v2664, 4294901760
    %v3621 = vsub.f32 %v2664, %v3620
    %v3622 = vand.u32 %v3621, 4294901760
    %v3623 = vsub.f32 %v3621, %v3622
    %v3624 = vand.u32 %v3623, 4294901760
    %3625 = vmatprep.subr.mxu0 %v3624
    %v3626 = vand.u32 %v2663, 4294901760
    %v3627 = vsub.f32 %v2663, %v3626
    %v3628 = vand.u32 %v3627, 4294901760
    %v3629 = vsub.f32 %v3627, %v3628
    %v3630 = vand.u32 %v3629, 4294901760
    %3631 = vmatpush1.msra.mxu0 %v3630
    %v3632 = vand.u32 %v2666, 4294901760
    %v3633 = vsub.f32 %v2666, %v3632
    %v3634 = vand.u32 %v3633, 4294901760
    %v3635 = vsub.f32 %v3633, %v3634
    %v3636 = vand.u32 %v3635, 4294901760
    %3637 = vmatprep.subr.mxu0 %v3636
    %v3638 = vand.u32 %v2665, 4294901760
    %v3639 = vsub.f32 %v2665, %v3638
    %v3640 = vand.u32 %v3639, 4294901760
    %v3641 = vsub.f32 %v3639, %v3640
    %v3642 = vand.u32 %v3641, 4294901760
    %3643 = vmatpush1.msra.mxu0 %v3642
    %v3644 = vand.u32 %v2668, 4294901760
    %v3645 = vsub.f32 %v2668, %v3644
    %v3646 = vand.u32 %v3645, 4294901760
    %v3647 = vsub.f32 %v3645, %v3646
    %v3648 = vand.u32 %v3647, 4294901760
    %3649 = vmatprep.subr.mxu0 %v3648
    %v3650 = vand.u32 %v2667, 4294901760
    %v3651 = vsub.f32 %v2667, %v3650
    %v3652 = vand.u32 %v3651, 4294901760
    %v3653 = vsub.f32 %v3651, %v3652
    %v3654 = vand.u32 %v3653, 4294901760
    %3655 = vmatpush1.msra.mxu0 %v3654
    %v3656 = vand.u32 %v2670, 4294901760
    %v3657 = vsub.f32 %v2670, %v3656
    %v3658 = vand.u32 %v3657, 4294901760
    %v3659 = vsub.f32 %v3657, %v3658
    %v3660 = vand.u32 %v3659, 4294901760
    %3661 = vmatprep.subr.mxu0 %v3660
    %v3662 = vand.u32 %v2669, 4294901760
    %v3663 = vsub.f32 %v2669, %v3662
    %v3664 = vand.u32 %v3663, 4294901760
    %v3665 = vsub.f32 %v3663, %v3664
    %v3666 = vand.u32 %v3665, 4294901760
    %3667 = vmatpush1.msra.mxu0 %v3666
    %v3668 = vand.u32 %v2672, 4294901760
    %v3669 = vsub.f32 %v2672, %v3668
    %v3670 = vand.u32 %v3669, 4294901760
    %v3671 = vsub.f32 %v3669, %v3670
    %v3672 = vand.u32 %v3671, 4294901760
    %3673 = vmatprep.subr.mxu0 %v3672
    %v3674 = vand.u32 %v2671, 4294901760
    %v3675 = vsub.f32 %v2671, %v3674
    %v3676 = vand.u32 %v3675, 4294901760
    %v3677 = vsub.f32 %v3675, %v3676
    %v3678 = vand.u32 %v3677, 4294901760
    %3679 = vmatpush1.msra.mxu0 %v3678
    %v3680 = vand.u32 %v2674, 4294901760
    %v3681 = vsub.f32 %v2674, %v3680
    %v3682 = vand.u32 %v3681, 4294901760
    %v3683 = vsub.f32 %v3681, %v3682
    %v3684 = vand.u32 %v3683, 4294901760
    %3685 = vmatprep.subr.mxu0 %v3684
    %v3686 = vand.u32 %v2673, 4294901760
    %v3687 = vsub.f32 %v2673, %v3686
    %v3688 = vand.u32 %v3687, 4294901760
    %v3689 = vsub.f32 %v3687, %v3688
    %v3690 = vand.u32 %v3689, 4294901760
    %3691 = vmatpush1.msra.mxu0 %v3690
    %v3692 = vand.u32 %v2676, 4294901760
    %v3693 = vsub.f32 %v2676, %v3692
    %v3694 = vand.u32 %v3693, 4294901760
    %v3695 = vsub.f32 %v3693, %v3694
    %v3696 = vand.u32 %v3695, 4294901760
    %3697 = vmatprep.subr.mxu0 %v3696
    %v3698 = vand.u32 %v2675, 4294901760
    %v3699 = vsub.f32 %v2675, %v3698
    %v3700 = vand.u32 %v3699, 4294901760
    %v3701 = vsub.f32 %v3699, %v3700
    %v3702 = vand.u32 %v3701, 4294901760
    %3703 = vmatpush1.msra.mxu0 %v3702
    %v3704 = vand.u32 %v2678, 4294901760
    %v3705 = vsub.f32 %v2678, %v3704
    %v3706 = vand.u32 %v3705, 4294901760
    %v3707 = vsub.f32 %v3705, %v3706
    %v3708 = vand.u32 %v3707, 4294901760
    %3709 = vmatprep.subr.mxu0 %v3708
    %v3710 = vand.u32 %v2677, 4294901760
    %v3711 = vsub.f32 %v2677, %v3710
    %v3712 = vand.u32 %v3711, 4294901760
    %v3713 = vsub.f32 %v3711, %v3712
    %v3714 = vand.u32 %v3713, 4294901760
    %3715 = vmatpush1.msra.mxu0 %v3714
    %v3716 = vand.u32 %v2552, 4294901760
    %3717 = vmatprep.mubr.f32.mxu0 %v3716
    %v3718 = vand.u32 %v2551, 4294901760
    %3719 = vmatmul.mubr.f32.gmra.mrb[0].mxu0 %v3718
    %v3720 = vpop.f32.mrb[0].mxu0
    %v3721 = vadd.f32 %v2832, %v3720
    %v3722 = vpop.f32.mrb[0].mxu0
    %v3723 = vadd.f32 %v2834, %v3722
    %v3724 = vand.u32 %v2554, 4294901760
    %3725 = vmatprep.mubr.f32.mxu0 %v3724
    %v3726 = vand.u32 %v2553, 4294901760
    %3727 = vmatmul.mubr.f32.gmra.mrb[0].mxu0 %v3726
    %v3728 = vpop.f32.mrb[0].mxu0
    %v3729 = vadd.f32 %v2848, %v3728
    %v3730 = vpop.f32.mrb[0].mxu0
    %v3731 = vadd.f32 %v2850, %v3730
    %v3732 = vand.u32 %v2556, 4294901760
    %3733 = vmatprep.mubr.f32.mxu0 %v3732
    %v3734 = vand.u32 %v2555, 4294901760
    %3735 = vmatmul.mubr.f32.gmra.mrb[0].mxu0 %v3734
    %v3736 = vpop.f32.mrb[0].mxu0
    %v3737 = vadd.f32 %v2864, %v3736
    %v3738 = vpop.f32.mrb[0].mxu0
    %v3739 = vadd.f32 %v2866, %v3738
    %v3740 = vand.u32 %v2558, 4294901760
    %3741 = vmatprep.mubr.f32.mxu0 %v3740
    %v3742 = vand.u32 %v2557, 4294901760
    %3743 = vmatmul.mubr.f32.gmra.mrb[0].mxu0 %v3742
    %v3744 = vpop.f32.mrb[0].mxu0
    %v3745 = vadd.f32 %v2880, %v3744
    %v3746 = vpop.f32.mrb[0].mxu0
    %v3747 = vadd.f32 %v2882, %v3746
    %v3748 = vand.u32 %v2560, 4294901760
    %3749 = vmatprep.mubr.f32.mxu0 %v3748
    %v3750 = vand.u32 %v2559, 4294901760
    %3751 = vmatmul.mubr.f32.gmra.mrb[0].mxu0 %v3750
    %v3752 = vpop.f32.mrb[0].mxu0
    %v3753 = vadd.f32 %v2896, %v3752
    %v3754 = vpop.f32.mrb[0].mxu0
    %v3755 = vadd.f32 %v2898, %v3754
    %v3756 = vand.u32 %v2562, 4294901760
    %3757 = vmatprep.mubr.f32.mxu0 %v3756
    %v3758 = vand.u32 %v2561, 4294901760
    %3759 = vmatmul.mubr.f32.gmra.mrb[0].mxu0 %v3758
    %v3760 = vpop.f32.mrb[0].mxu0
    %v3761 = vadd.f32 %v2912, %v3760
    %v3762 = vpop.f32.mrb[0].mxu0
    %v3763 = vadd.f32 %v2914, %v3762
    %v3764 = vand.u32 %v2564, 4294901760
    %3765 = vmatprep.mubr.f32.mxu0 %v3764
    %v3766 = vand.u32 %v2563, 4294901760
    %3767 = vmatmul.mubr.f32.gmra.mrb[0].mxu0 %v3766
    %v3768 = vpop.f32.mrb[0].mxu0
    %v3769 = vadd.f32 %v2928, %v3768
    %v3770 = vpop.f32.mrb[0].mxu0
    %v3771 = vadd.f32 %v2930, %v3770
    %v3772 = vand.u32 %v2566, 4294901760
    %3773 = vmatprep.mubr.f32.mxu0 %v3772
    %v3774 = vand.u32 %v2565, 4294901760
    %3775 = vmatmul.mubr.f32.gmra.mrb[0].mxu0 %v3774
    %v3776 = vpop.f32.mrb[0].mxu0
    %v3777 = vadd.f32 %v2944, %v3776
    %v3778 = vpop.f32.mrb[0].mxu0
    %v3779 = vadd.f32 %v2946, %v3778
    %v3780 = vand.u32 %v2568, 4294901760
    %3781 = vmatprep.mubr.f32.mxu0 %v3780
    %v3782 = vand.u32 %v2567, 4294901760
    %3783 = vmatmul.mubr.f32.gmra.mrb[0].mxu0 %v3782
    %v3784 = vpop.f32.mrb[0].mxu0
    %v3785 = vadd.f32 %v2960, %v3784
    %v3786 = vpop.f32.mrb[0].mxu0
    %v3787 = vadd.f32 %v2962, %v3786
    %v3788 = vand.u32 %v2570, 4294901760
    %3789 = vmatprep.mubr.f32.mxu0 %v3788
    %v3790 = vand.u32 %v2569, 4294901760
    %3791 = vmatmul.mubr.f32.gmra.mrb[0].mxu0 %v3790
    %v3792 = vpop.f32.mrb[0].mxu0
    %v3793 = vadd.f32 %v2976, %v3792
    %v3794 = vpop.f32.mrb[0].mxu0
    %v3795 = vadd.f32 %v2978, %v3794
    %v3796 = vand.u32 %v2572, 4294901760
    %3797 = vmatprep.mubr.f32.mxu0 %v3796
    %v3798 = vand.u32 %v2571, 4294901760
    %3799 = vmatmul.mubr.f32.gmra.mrb[0].mxu0 %v3798
    %v3800 = vpop.f32.mrb[0].mxu0
    %v3801 = vadd.f32 %v2992, %v3800
    %v3802 = vpop.f32.mrb[0].mxu0
    %v3803 = vadd.f32 %v2994, %v3802
    %v3804 = vand.u32 %v2574, 4294901760
    %3805 = vmatprep.mubr.f32.mxu0 %v3804
    %v3806 = vand.u32 %v2573, 4294901760
    %3807 = vmatmul.mubr.f32.gmra.mrb[0].mxu0 %v3806
    %v3808 = vpop.f32.mrb[0].mxu0
    %v3809 = vadd.f32 %v3008, %v3808
    %v3810 = vpop.f32.mrb[0].mxu0
    %v3811 = vadd.f32 %v3010, %v3810
    %v3812 = vand.u32 %v2576, 4294901760
    %3813 = vmatprep.mubr.f32.mxu0 %v3812
    %v3814 = vand.u32 %v2575, 4294901760
    %3815 = vmatmul.mubr.f32.gmra.mrb[0].mxu0 %v3814
    %v3816 = vpop.f32.mrb[0].mxu0
    %v3817 = vadd.f32 %v3024, %v3816
    %v3818 = vpop.f32.mrb[0].mxu0
    %v3819 = vadd.f32 %v3026, %v3818
    %v3820 = vand.u32 %v2578, 4294901760
    %3821 = vmatprep.mubr.f32.mxu0 %v3820
    %v3822 = vand.u32 %v2577, 4294901760
    %3823 = vmatmul.mubr.f32.gmra.mrb[0].mxu0 %v3822
    %v3824 = vpop.f32.mrb[0].mxu0
    %v3825 = vadd.f32 %v3040, %v3824
    %v3826 = vpop.f32.mrb[0].mxu0
    %v3827 = vadd.f32 %v3042, %v3826
    %v3828 = vand.u32 %v2580, 4294901760
    %3829 = vmatprep.mubr.f32.mxu0 %v3828
    %v3830 = vand.u32 %v2579, 4294901760
    %3831 = vmatmul.mubr.f32.gmra.mrb[0].mxu0 %v3830
    %v3832 = vpop.f32.mrb[0].mxu0
    %v3833 = vadd.f32 %v3056, %v3832
    %v3834 = vpop.f32.mrb[0].mxu0
    %v3835 = vadd.f32 %v3058, %v3834
    %v3836 = vand.u32 %v2582, 4294901760
    %3837 = vmatprep.mubr.f32.mxu0 %v3836
    %v3838 = vand.u32 %v2581, 4294901760
    %3839 = vmatmul.mubr.f32.gmra.mrb[0].mxu0 %v3838
    %v3840 = vpop.f32.mrb[0].mxu0
    %v3841 = vadd.f32 %v3072, %v3840
    %v3842 = vpop.f32.mrb[0].mxu0
    %v3843 = vadd.f32 %v3074, %v3842
    %v3844 = vand.u32 %v2584, 4294901760
    %3845 = vmatprep.mubr.f32.mxu0 %v3844
    %v3846 = vand.u32 %v2583, 4294901760
    %3847 = vmatmul.mubr.f32.gmra.mrb[0].mxu0 %v3846
    %v3848 = vpop.f32.mrb[0].mxu0
    %v3849 = vadd.f32 %v3088, %v3848
    %v3850 = vpop.f32.mrb[0].mxu0
    %v3851 = vadd.f32 %v3090, %v3850
    %v3852 = vand.u32 %v2586, 4294901760
    %3853 = vmatprep.mubr.f32.mxu0 %v3852
    %v3854 = vand.u32 %v2585, 4294901760
    %3855 = vmatmul.mubr.f32.gmra.mrb[0].mxu0 %v3854
    %v3856 = vpop.f32.mrb[0].mxu0
    %v3857 = vadd.f32 %v3104, %v3856
    %v3858 = vpop.f32.mrb[0].mxu0
    %v3859 = vadd.f32 %v3106, %v3858
    %v3860 = vand.u32 %v2588, 4294901760
    %3861 = vmatprep.mubr.f32.mxu0 %v3860
    %v3862 = vand.u32 %v2587, 4294901760
    %3863 = vmatmul.mubr.f32.gmra.mrb[0].mxu0 %v3862
    %v3864 = vpop.f32.mrb[0].mxu0
    %v3865 = vadd.f32 %v3120, %v3864
    %v3866 = vpop.f32.mrb[0].mxu0
    %v3867 = vadd.f32 %v3122, %v3866
    %v3868 = vand.u32 %v2590, 4294901760
    %3869 = vmatprep.mubr.f32.mxu0 %v3868
    %v3870 = vand.u32 %v2589, 4294901760
    %3871 = vmatmul.mubr.f32.gmra.mrb[0].mxu0 %v3870
    %v3872 = vpop.f32.mrb[0].mxu0
    %v3873 = vadd.f32 %v3136, %v3872
    %v3874 = vpop.f32.mrb[0].mxu0
    %v3875 = vadd.f32 %v3138, %v3874
    %v3876 = vand.u32 %v2592, 4294901760
    %3877 = vmatprep.mubr.f32.mxu0 %v3876
    %v3878 = vand.u32 %v2591, 4294901760
    %3879 = vmatmul.mubr.f32.gmra.mrb[0].mxu0 %v3878
    %v3880 = vpop.f32.mrb[0].mxu0
    %v3881 = vadd.f32 %v3152, %v3880
    %v3882 = vpop.f32.mrb[0].mxu0
    %v3883 = vadd.f32 %v3154, %v3882
    %v3884 = vand.u32 %v2594, 4294901760
    %3885 = vmatprep.mubr.f32.mxu0 %v3884
    %v3886 = vand.u32 %v2593, 4294901760
    %3887 = vmatmul.mubr.f32.gmra.mrb[0].mxu0 %v3886
    %v3888 = vpop.f32.mrb[0].mxu0
    %v3889 = vadd.f32 %v3168, %v3888
    %v3890 = vpop.f32.mrb[0].mxu0
    %v3891 = vadd.f32 %v3170, %v3890
    %v3892 = vand.u32 %v2596, 4294901760
    %3893 = vmatprep.mubr.f32.mxu0 %v3892
    %v3894 = vand.u32 %v2595, 4294901760
    %3895 = vmatmul.mubr.f32.gmra.mrb[0].mxu0 %v3894
    %v3896 = vpop.f32.mrb[0].mxu0
    %v3897 = vadd.f32 %v3184, %v3896
    %v3898 = vpop.f32.mrb[0].mxu0
    %v3899 = vadd.f32 %v3186, %v3898
    %v3900 = vand.u32 %v2598, 4294901760
    %3901 = vmatprep.mubr.f32.mxu0 %v3900
    %v3902 = vand.u32 %v2597, 4294901760
    %3903 = vmatmul.mubr.f32.gmra.mrb[0].mxu0 %v3902
    %v3904 = vpop.f32.mrb[0].mxu0
    %v3905 = vadd.f32 %v3200, %v3904
    %v3906 = vpop.f32.mrb[0].mxu0
    %v3907 = vadd.f32 %v3202, %v3906
    %v3908 = vand.u32 %v2600, 4294901760
    %3909 = vmatprep.mubr.f32.mxu0 %v3908
    %v3910 = vand.u32 %v2599, 4294901760
    %3911 = vmatmul.mubr.f32.gmra.mrb[0].mxu0 %v3910
    %v3912 = vpop.f32.mrb[0].mxu0
    %v3913 = vadd.f32 %v3216, %v3912
    %v3914 = vpop.f32.mrb[0].mxu0
    %v3915 = vadd.f32 %v3218, %v3914
    %v3916 = vand.u32 %v2602, 4294901760
    %3917 = vmatprep.mubr.f32.mxu0 %v3916
    %v3918 = vand.u32 %v2601, 4294901760
    %3919 = vmatmul.mubr.f32.gmra.mrb[0].mxu0 %v3918
    %v3920 = vpop.f32.mrb[0].mxu0
    %v3921 = vadd.f32 %v3232, %v3920
    %v3922 = vpop.f32.mrb[0].mxu0
    %v3923 = vadd.f32 %v3234, %v3922
    %v3924 = vand.u32 %v2604, 4294901760
    %3925 = vmatprep.mubr.f32.mxu0 %v3924
    %v3926 = vand.u32 %v2603, 4294901760
    %3927 = vmatmul.mubr.f32.gmra.mrb[0].mxu0 %v3926
    %v3928 = vpop.f32.mrb[0].mxu0
    %v3929 = vadd.f32 %v3248, %v3928
    %v3930 = vpop.f32.mrb[0].mxu0
    %v3931 = vadd.f32 %v3250, %v3930
    %v3932 = vand.u32 %v2606, 4294901760
    %3933 = vmatprep.mubr.f32.mxu0 %v3932
    %v3934 = vand.u32 %v2605, 4294901760
    %3935 = vmatmul.mubr.f32.gmra.mrb[0].mxu0 %v3934
    %v3936 = vpop.f32.mrb[0].mxu0
    %v3937 = vadd.f32 %v3264, %v3936
    %v3938 = vpop.f32.mrb[0].mxu0
    %v3939 = vadd.f32 %v3266, %v3938
    %v3940 = vand.u32 %v2608, 4294901760
    %3941 = vmatprep.mubr.f32.mxu0 %v3940
    %v3942 = vand.u32 %v2607, 4294901760
    %3943 = vmatmul.mubr.f32.gmra.mrb[0].mxu0 %v3942
    %v3944 = vpop.f32.mrb[0].mxu0
    %v3945 = vadd.f32 %v3280, %v3944
    %v3946 = vpop.f32.mrb[0].mxu0
    %v3947 = vadd.f32 %v3282, %v3946
    %v3948 = vand.u32 %v2610, 4294901760
    %3949 = vmatprep.mubr.f32.mxu0 %v3948
    %v3950 = vand.u32 %v2609, 4294901760
    %3951 = vmatmul.mubr.f32.gmra.mrb[0].mxu0 %v3950
    %v3952 = vpop.f32.mrb[0].mxu0
    %v3953 = vadd.f32 %v3296, %v3952
    %v3954 = vpop.f32.mrb[0].mxu0
    %v3955 = vadd.f32 %v3298, %v3954
    %v3956 = vand.u32 %v2612, 4294901760
    %3957 = vmatprep.mubr.f32.mxu0 %v3956
    %v3958 = vand.u32 %v2611, 4294901760
    %3959 = vmatmul.mubr.f32.gmra.mrb[0].mxu0 %v3958
    %v3960 = vpop.f32.mrb[0].mxu0
    %v3961 = vadd.f32 %v3312, %v3960
    %v3962 = vpop.f32.mrb[0].mxu0
    %v3963 = vadd.f32 %v3314, %v3962
    %v3964 = vand.u32 %v2614, 4294901760
    %3965 = vmatprep.mubr.f32.mxu0 %v3964
    %v3966 = vand.u32 %v2613, 4294901760
    %3967 = vmatmul.mubr.f32.gmra.mrb[0].mxu0 %v3966
    %v3968 = vpop.f32.mrb[0].mxu0
    %v3969 = vadd.f32 %v3328, %v3968
    %v3970 = vpop.f32.mrb[0].mxu0
    %v3971 = vadd.f32 %v3330, %v3970
    %3972 = vdwg.mxu0
    %v3973 = vand.u32 %v2616, 4294901760
    %v3974 = vsub.f32 %v2616, %v3973
    %3975 = vmatprep.subr.mxu0 %v3974
    %v3976 = vand.u32 %v2615, 4294901760
    %v3977 = vsub.f32 %v2615, %v3976
    %3978 = vmatpush1.msra.mxu0 %v3977
    %v3979 = vand.u32 %v2618, 4294901760
    %v3980 = vsub.f32 %v2618, %v3979
    %3981 = vmatprep.subr.mxu0 %v3980
    %v3982 = vand.u32 %v2617, 4294901760
    %v3983 = vsub.f32 %v2617, %v3982
    %3984 = vmatpush1.msra.mxu0 %v3983
    %v3985 = vand.u32 %v2620, 4294901760
    %v3986 = vsub.f32 %v2620, %v3985
    %3987 = vmatprep.subr.mxu0 %v3986
    %v3988 = vand.u32 %v2619, 4294901760
    %v3989 = vsub.f32 %v2619, %v3988
    %3990 = vmatpush1.msra.mxu0 %v3989
    %v3991 = vand.u32 %v2622, 4294901760
    %v3992 = vsub.f32 %v2622, %v3991
    %3993 = vmatprep.subr.mxu0 %v3992
    %v3994 = vand.u32 %v2621, 4294901760
    %v3995 = vsub.f32 %v2621, %v3994
    %3996 = vmatpush1.msra.mxu0 %v3995
    %v3997 = vand.u32 %v2624, 4294901760
    %v3998 = vsub.f32 %v2624, %v3997
    %3999 = vmatprep.subr.mxu0 %v3998
    %v4000 = vand.u32 %v2623, 4294901760
    %v4001 = vsub.f32 %v2623, %v4000
    %4002 = vmatpush1.msra.mxu0 %v4001
    %v4003 = vand.u32 %v2626, 4294901760
    %v4004 = vsub.f32 %v2626, %v4003
    %4005 = vmatprep.subr.mxu0 %v4004
    %v4006 = vand.u32 %v2625, 4294901760
    %v4007 = vsub.f32 %v2625, %v4006
    %4008 = vmatpush1.msra.mxu0 %v4007
    %v4009 = vand.u32 %v2628, 4294901760
    %v4010 = vsub.f32 %v2628, %v4009
    %4011 = vmatprep.subr.mxu0 %v4010
    %v4012 = vand.u32 %v2627, 4294901760
    %v4013 = vsub.f32 %v2627, %v4012
    %4014 = vmatpush1.msra.mxu0 %v4013
    %v4015 = vand.u32 %v2630, 4294901760
    %v4016 = vsub.f32 %v2630, %v4015
    %4017 = vmatprep.subr.mxu0 %v4016
    %v4018 = vand.u32 %v2629, 4294901760
    %v4019 = vsub.f32 %v2629, %v4018
    %4020 = vmatpush1.msra.mxu0 %v4019
    %v4021 = vand.u32 %v2632, 4294901760
    %v4022 = vsub.f32 %v2632, %v4021
    %4023 = vmatprep.subr.mxu0 %v4022
    %v4024 = vand.u32 %v2631, 4294901760
    %v4025 = vsub.f32 %v2631, %v4024
    %4026 = vmatpush1.msra.mxu0 %v4025
    %v4027 = vand.u32 %v2634, 4294901760
    %v4028 = vsub.f32 %v2634, %v4027
    %4029 = vmatprep.subr.mxu0 %v4028
    %v4030 = vand.u32 %v2633, 4294901760
    %v4031 = vsub.f32 %v2633, %v4030
    %4032 = vmatpush1.msra.mxu0 %v4031
    %v4033 = vand.u32 %v2636, 4294901760
    %v4034 = vsub.f32 %v2636, %v4033
    %4035 = vmatprep.subr.mxu0 %v4034
    %v4036 = vand.u32 %v2635, 4294901760
    %v4037 = vsub.f32 %v2635, %v4036
    %4038 = vmatpush1.msra.mxu0 %v4037
    %v4039 = vand.u32 %v2638, 4294901760
    %v4040 = vsub.f32 %v2638, %v4039
    %4041 = vmatprep.subr.mxu0 %v4040
    %v4042 = vand.u32 %v2637, 4294901760
    %v4043 = vsub.f32 %v2637, %v4042
    %4044 = vmatpush1.msra.mxu0 %v4043
    %v4045 = vand.u32 %v2640, 4294901760
    %v4046 = vsub.f32 %v2640, %v4045
    %4047 = vmatprep.subr.mxu0 %v4046
    %v4048 = vand.u32 %v2639, 4294901760
    %v4049 = vsub.f32 %v2639, %v4048
    %4050 = vmatpush1.msra.mxu0 %v4049
    %v4051 = vand.u32 %v2642, 4294901760
    %v4052 = vsub.f32 %v2642, %v4051
    %4053 = vmatprep.subr.mxu0 %v4052
    %v4054 = vand.u32 %v2641, 4294901760
    %v4055 = vsub.f32 %v2641, %v4054
    %4056 = vmatpush1.msra.mxu0 %v4055
    %v4057 = vand.u32 %v2644, 4294901760
    %v4058 = vsub.f32 %v2644, %v4057
    %4059 = vmatprep.subr.mxu0 %v4058
    %v4060 = vand.u32 %v2643, 4294901760
    %v4061 = vsub.f32 %v2643, %v4060
    %4062 = vmatpush1.msra.mxu0 %v4061
    %v4063 = vand.u32 %v2646, 4294901760
    %v4064 = vsub.f32 %v2646, %v4063
    %4065 = vmatprep.subr.mxu0 %v4064
    %v4066 = vand.u32 %v2645, 4294901760
    %v4067 = vsub.f32 %v2645, %v4066
    %4068 = vmatpush1.msra.mxu0 %v4067
    %v4069 = vand.u32 %v2648, 4294901760
    %v4070 = vsub.f32 %v2648, %v4069
    %4071 = vmatprep.subr.mxu0 %v4070
    %v4072 = vand.u32 %v2647, 4294901760
    %v4073 = vsub.f32 %v2647, %v4072
    %4074 = vmatpush1.msra.mxu0 %v4073
    %v4075 = vand.u32 %v2650, 4294901760
    %v4076 = vsub.f32 %v2650, %v4075
    %4077 = vmatprep.subr.mxu0 %v4076
    %v4078 = vand.u32 %v2649, 4294901760
    %v4079 = vsub.f32 %v2649, %v4078
    %4080 = vmatpush1.msra.mxu0 %v4079
    %v4081 = vand.u32 %v2652, 4294901760
    %v4082 = vsub.f32 %v2652, %v4081
    %4083 = vmatprep.subr.mxu0 %v4082
    %v4084 = vand.u32 %v2651, 4294901760
    %v4085 = vsub.f32 %v2651, %v4084
    %4086 = vmatpush1.msra.mxu0 %v4085
    %v4087 = vand.u32 %v2654, 4294901760
    %v4088 = vsub.f32 %v2654, %v4087
    %4089 = vmatprep.subr.mxu0 %v4088
    %v4090 = vand.u32 %v2653, 4294901760
    %v4091 = vsub.f32 %v2653, %v4090
    %4092 = vmatpush1.msra.mxu0 %v4091
    %v4093 = vand.u32 %v2656, 4294901760
    %v4094 = vsub.f32 %v2656, %v4093
    %4095 = vmatprep.subr.mxu0 %v4094
    %v4096 = vand.u32 %v2655, 4294901760
    %v4097 = vsub.f32 %v2655, %v4096
    %4098 = vmatpush1.msra.mxu0 %v4097
    %v4099 = vand.u32 %v2658, 4294901760
    %v4100 = vsub.f32 %v2658, %v4099
    %4101 = vmatprep.subr.mxu0 %v4100
    %v4102 = vand.u32 %v2657, 4294901760
    %v4103 = vsub.f32 %v2657, %v4102
    %4104 = vmatpush1.msra.mxu0 %v4103
    %v4105 = vand.u32 %v2660, 4294901760
    %v4106 = vsub.f32 %v2660, %v4105
    %4107 = vmatprep.subr.mxu0 %v4106
    %v4108 = vand.u32 %v2659, 4294901760
    %v4109 = vsub.f32 %v2659, %v4108
    %4110 = vmatpush1.msra.mxu0 %v4109
    %v4111 = vand.u32 %v2662, 4294901760
    %v4112 = vsub.f32 %v2662, %v4111
    %4113 = vmatprep.subr.mxu0 %v4112
    %v4114 = vand.u32 %v2661, 4294901760
    %v4115 = vsub.f32 %v2661, %v4114
    %4116 = vmatpush1.msra.mxu0 %v4115
    %v4117 = vand.u32 %v2664, 4294901760
    %v4118 = vsub.f32 %v2664, %v4117
    %4119 = vmatprep.subr.mxu0 %v4118
    %v4120 = vand.u32 %v2663, 4294901760
    %v4121 = vsub.f32 %v2663, %v4120
    %4122 = vmatpush1.msra.mxu0 %v4121
    %v4123 = vand.u32 %v2666, 4294901760
    %v4124 = vsub.f32 %v2666, %v4123
    %4125 = vmatprep.subr.mxu0 %v4124
    %v4126 = vand.u32 %v2665, 4294901760
    %v4127 = vsub.f32 %v2665, %v4126
    %4128 = vmatpush1.msra.mxu0 %v4127
    %v4129 = vand.u32 %v2668, 4294901760
    %v4130 = vsub.f32 %v2668, %v4129
    %4131 = vmatprep.subr.mxu0 %v4130
    %v4132 = vand.u32 %v2667, 4294901760
    %v4133 = vsub.f32 %v2667, %v4132
    %4134 = vmatpush1.msra.mxu0 %v4133
    %v4135 = vand.u32 %v2670, 4294901760
    %v4136 = vsub.f32 %v2670, %v4135
    %4137 = vmatprep.subr.mxu0 %v4136
    %v4138 = vand.u32 %v2669, 4294901760
    %v4139 = vsub.f32 %v2669, %v4138
    %4140 = vmatpush1.msra.mxu0 %v4139
    %v4141 = vand.u32 %v2672, 4294901760
    %v4142 = vsub.f32 %v2672, %v4141
    %4143 = vmatprep.subr.mxu0 %v4142
    %v4144 = vand.u32 %v2671, 4294901760
    %v4145 = vsub.f32 %v2671, %v4144
    %4146 = vmatpush1.msra.mxu0 %v4145
    %v4147 = vand.u32 %v2674, 4294901760
    %v4148 = vsub.f32 %v2674, %v4147
    %4149 = vmatprep.subr.mxu0 %v4148
    %v4150 = vand.u32 %v2673, 4294901760
    %v4151 = vsub.f32 %v2673, %v4150
    %4152 = vmatpush1.msra.mxu0 %v4151
    %v4153 = vand.u32 %v2676, 4294901760
    %v4154 = vsub.f32 %v2676, %v4153
    %4155 = vmatprep.subr.mxu0 %v4154
    %v4156 = vand.u32 %v2675, 4294901760
    %v4157 = vsub.f32 %v2675, %v4156
    %4158 = vmatpush1.msra.mxu0 %v4157
    %v4159 = vand.u32 %v2678, 4294901760
    %v4160 = vsub.f32 %v2678, %v4159
    %4161 = vmatprep.subr.mxu0 %v4160
    %v4162 = vand.u32 %v2677, 4294901760
    %v4163 = vsub.f32 %v2677, %v4162
    %4164 = vmatpush1.msra.mxu0 %v4163
    %v4165 = vand.u32 %v2552, 4294901760
    %v4166 = vsub.f32 %v2552, %v4165
    %4167 = vmatprep.mubr.f32.mxu0 %v4166
    %v4168 = vand.u32 %v2551, 4294901760
    %v4169 = vsub.f32 %v2551, %v4168
    %4170 = vmatmul.mubr.f32.gmra.mrb[0].mxu0 %v4169
    %v4171 = vpop.f32.mrb[0].mxu0
    %v4172 = vadd.f32 %v3721, %v4171
    %v4173 = vpop.f32.mrb[0].mxu0
    %v4174 = vadd.f32 %v3723, %v4173
    %v4175 = vand.u32 %v2554, 4294901760
    %v4176 = vsub.f32 %v2554, %v4175
    %4177 = vmatprep.mubr.f32.mxu0 %v4176
    %v4178 = vand.u32 %v2553, 4294901760
    %v4179 = vsub.f32 %v2553, %v4178
    %4180 = vmatmul.mubr.f32.gmra.mrb[0].mxu0 %v4179
    %v4181 = vpop.f32.mrb[0].mxu0
    %v4182 = vadd.f32 %v3729, %v4181
    %v4183 = vpop.f32.mrb[0].mxu0
    %v4184 = vadd.f32 %v3731, %v4183
    %v4185 = vand.u32 %v2556, 4294901760
    %v4186 = vsub.f32 %v2556, %v4185
    %4187 = vmatprep.mubr.f32.mxu0 %v4186
    %v4188 = vand.u32 %v2555, 4294901760
    %v4189 = vsub.f32 %v2555, %v4188
    %4190 = vmatmul.mubr.f32.gmra.mrb[0].mxu0 %v4189
    %v4191 = vpop.f32.mrb[0].mxu0
    %v4192 = vadd.f32 %v3737, %v4191
    %v4193 = vpop.f32.mrb[0].mxu0
    %v4194 = vadd.f32 %v3739, %v4193
    %v4195 = vand.u32 %v2558, 4294901760
    %v4196 = vsub.f32 %v2558, %v4195
    %4197 = vmatprep.mubr.f32.mxu0 %v4196
    %v4198 = vand.u32 %v2557, 4294901760
    %v4199 = vsub.f32 %v2557, %v4198
    %4200 = vmatmul.mubr.f32.gmra.mrb[0].mxu0 %v4199
    %v4201 = vpop.f32.mrb[0].mxu0
    %v4202 = vadd.f32 %v3745, %v4201
    %v4203 = vpop.f32.mrb[0].mxu0
    %v4204 = vadd.f32 %v3747, %v4203
    %v4205 = vand.u32 %v2560, 4294901760
    %v4206 = vsub.f32 %v2560, %v4205
    %4207 = vmatprep.mubr.f32.mxu0 %v4206
    %v4208 = vand.u32 %v2559, 4294901760
    %v4209 = vsub.f32 %v2559, %v4208
    %4210 = vmatmul.mubr.f32.gmra.mrb[0].mxu0 %v4209
    %v4211 = vpop.f32.mrb[0].mxu0
    %v4212 = vadd.f32 %v3753, %v4211
    %v4213 = vpop.f32.mrb[0].mxu0
    %v4214 = vadd.f32 %v3755, %v4213
    %v4215 = vand.u32 %v2562, 4294901760
    %v4216 = vsub.f32 %v2562, %v4215
    %4217 = vmatprep.mubr.f32.mxu0 %v4216
    %v4218 = vand.u32 %v2561, 4294901760
    %v4219 = vsub.f32 %v2561, %v4218
    %4220 = vmatmul.mubr.f32.gmra.mrb[0].mxu0 %v4219
    %v4221 = vpop.f32.mrb[0].mxu0
    %v4222 = vadd.f32 %v3761, %v4221
    %v4223 = vpop.f32.mrb[0].mxu0
    %v4224 = vadd.f32 %v3763, %v4223
    %v4225 = vand.u32 %v2564, 4294901760
    %v4226 = vsub.f32 %v2564, %v4225
    %4227 = vmatprep.mubr.f32.mxu0 %v4226
    %v4228 = vand.u32 %v2563, 4294901760
    %v4229 = vsub.f32 %v2563, %v4228
    %4230 = vmatmul.mubr.f32.gmra.mrb[0].mxu0 %v4229
    %v4231 = vpop.f32.mrb[0].mxu0
    %v4232 = vadd.f32 %v3769, %v4231
    %v4233 = vpop.f32.mrb[0].mxu0
    %v4234 = vadd.f32 %v3771, %v4233
    %v4235 = vand.u32 %v2566, 4294901760
    %v4236 = vsub.f32 %v2566, %v4235
    %4237 = vmatprep.mubr.f32.mxu0 %v4236
    %v4238 = vand.u32 %v2565, 4294901760
    %v4239 = vsub.f32 %v2565, %v4238
    %4240 = vmatmul.mubr.f32.gmra.mrb[0].mxu0 %v4239
    %v4241 = vpop.f32.mrb[0].mxu0
    %v4242 = vadd.f32 %v3777, %v4241
    %v4243 = vpop.f32.mrb[0].mxu0
    %v4244 = vadd.f32 %v3779, %v4243
    %v4245 = vand.u32 %v2568, 4294901760
    %v4246 = vsub.f32 %v2568, %v4245
    %4247 = vmatprep.mubr.f32.mxu0 %v4246
    %v4248 = vand.u32 %v2567, 4294901760
    %v4249 = vsub.f32 %v2567, %v4248
    %4250 = vmatmul.mubr.f32.gmra.mrb[0].mxu0 %v4249
    %v4251 = vpop.f32.mrb[0].mxu0
    %v4252 = vadd.f32 %v3785, %v4251
    %v4253 = vpop.f32.mrb[0].mxu0
    %v4254 = vadd.f32 %v3787, %v4253
    %v4255 = vand.u32 %v2570, 4294901760
    %v4256 = vsub.f32 %v2570, %v4255
    %4257 = vmatprep.mubr.f32.mxu0 %v4256
    %v4258 = vand.u32 %v2569, 4294901760
    %v4259 = vsub.f32 %v2569, %v4258
    %4260 = vmatmul.mubr.f32.gmra.mrb[0].mxu0 %v4259
    %v4261 = vpop.f32.mrb[0].mxu0
    %v4262 = vadd.f32 %v3793, %v4261
    %v4263 = vpop.f32.mrb[0].mxu0
    %v4264 = vadd.f32 %v3795, %v4263
    %v4265 = vand.u32 %v2572, 4294901760
    %v4266 = vsub.f32 %v2572, %v4265
    %4267 = vmatprep.mubr.f32.mxu0 %v4266
    %v4268 = vand.u32 %v2571, 4294901760
    %v4269 = vsub.f32 %v2571, %v4268
    %4270 = vmatmul.mubr.f32.gmra.mrb[0].mxu0 %v4269
    %v4271 = vpop.f32.mrb[0].mxu0
    %v4272 = vadd.f32 %v3801, %v4271
    %v4273 = vpop.f32.mrb[0].mxu0
    %v4274 = vadd.f32 %v3803, %v4273
    %v4275 = vand.u32 %v2574, 4294901760
    %v4276 = vsub.f32 %v2574, %v4275
    %4277 = vmatprep.mubr.f32.mxu0 %v4276
    %v4278 = vand.u32 %v2573, 4294901760
    %v4279 = vsub.f32 %v2573, %v4278
    %4280 = vmatmul.mubr.f32.gmra.mrb[0].mxu0 %v4279
    %v4281 = vpop.f32.mrb[0].mxu0
    %v4282 = vadd.f32 %v3809, %v4281
    %v4283 = vpop.f32.mrb[0].mxu0
    %v4284 = vadd.f32 %v3811, %v4283
    %v4285 = vand.u32 %v2576, 4294901760
    %v4286 = vsub.f32 %v2576, %v4285
    %4287 = vmatprep.mubr.f32.mxu0 %v4286
    %v4288 = vand.u32 %v2575, 4294901760
    %v4289 = vsub.f32 %v2575, %v4288
    %4290 = vmatmul.mubr.f32.gmra.mrb[0].mxu0 %v4289
    %v4291 = vpop.f32.mrb[0].mxu0
    %v4292 = vadd.f32 %v3817, %v4291
    %v4293 = vpop.f32.mrb[0].mxu0
    %v4294 = vadd.f32 %v3819, %v4293
    %v4295 = vand.u32 %v2578, 4294901760
    %v4296 = vsub.f32 %v2578, %v4295
    %4297 = vmatprep.mubr.f32.mxu0 %v4296
    %v4298 = vand.u32 %v2577, 4294901760
    %v4299 = vsub.f32 %v2577, %v4298
    %4300 = vmatmul.mubr.f32.gmra.mrb[0].mxu0 %v4299
    %v4301 = vpop.f32.mrb[0].mxu0
    %v4302 = vadd.f32 %v3825, %v4301
    %v4303 = vpop.f32.mrb[0].mxu0
    %v4304 = vadd.f32 %v3827, %v4303
    %v4305 = vand.u32 %v2580, 4294901760
    %v4306 = vsub.f32 %v2580, %v4305
    %4307 = vmatprep.mubr.f32.mxu0 %v4306
    %v4308 = vand.u32 %v2579, 4294901760
    %v4309 = vsub.f32 %v2579, %v4308
    %4310 = vmatmul.mubr.f32.gmra.mrb[0].mxu0 %v4309
    %v4311 = vpop.f32.mrb[0].mxu0
    %v4312 = vadd.f32 %v3833, %v4311
    %v4313 = vpop.f32.mrb[0].mxu0
    %v4314 = vadd.f32 %v3835, %v4313
    %v4315 = vand.u32 %v2582, 4294901760
    %v4316 = vsub.f32 %v2582, %v4315
    %4317 = vmatprep.mubr.f32.mxu0 %v4316
    %v4318 = vand.u32 %v2581, 4294901760
    %v4319 = vsub.f32 %v2581, %v4318
    %4320 = vmatmul.mubr.f32.gmra.mrb[0].mxu0 %v4319
    %v4321 = vpop.f32.mrb[0].mxu0
    %v4322 = vadd.f32 %v3841, %v4321
    %v4323 = vpop.f32.mrb[0].mxu0
    %v4324 = vadd.f32 %v3843, %v4323
    %v4325 = vand.u32 %v2584, 4294901760
    %v4326 = vsub.f32 %v2584, %v4325
    %4327 = vmatprep.mubr.f32.mxu0 %v4326
    %v4328 = vand.u32 %v2583, 4294901760
    %v4329 = vsub.f32 %v2583, %v4328
    %4330 = vmatmul.mubr.f32.gmra.mrb[0].mxu0 %v4329
    %v4331 = vpop.f32.mrb[0].mxu0
    %v4332 = vadd.f32 %v3849, %v4331
    %v4333 = vpop.f32.mrb[0].mxu0
    %v4334 = vadd.f32 %v3851, %v4333
    %v4335 = vand.u32 %v2586, 4294901760
    %v4336 = vsub.f32 %v2586, %v4335
    %4337 = vmatprep.mubr.f32.mxu0 %v4336
    %v4338 = vand.u32 %v2585, 4294901760
    %v4339 = vsub.f32 %v2585, %v4338
    %4340 = vmatmul.mubr.f32.gmra.mrb[0].mxu0 %v4339
    %v4341 = vpop.f32.mrb[0].mxu0
    %v4342 = vadd.f32 %v3857, %v4341
    %v4343 = vpop.f32.mrb[0].mxu0
    %v4344 = vadd.f32 %v3859, %v4343
    %v4345 = vand.u32 %v2588, 4294901760
    %v4346 = vsub.f32 %v2588, %v4345
    %4347 = vmatprep.mubr.f32.mxu0 %v4346
    %v4348 = vand.u32 %v2587, 4294901760
    %v4349 = vsub.f32 %v2587, %v4348
    %4350 = vmatmul.mubr.f32.gmra.mrb[0].mxu0 %v4349
    %v4351 = vpop.f32.mrb[0].mxu0
    %v4352 = vadd.f32 %v3865, %v4351
    %v4353 = vpop.f32.mrb[0].mxu0
    %v4354 = vadd.f32 %v3867, %v4353
    %v4355 = vand.u32 %v2590, 4294901760
    %v4356 = vsub.f32 %v2590, %v4355
    %4357 = vmatprep.mubr.f32.mxu0 %v4356
    %v4358 = vand.u32 %v2589, 4294901760
    %v4359 = vsub.f32 %v2589, %v4358
    %4360 = vmatmul.mubr.f32.gmra.mrb[0].mxu0 %v4359
    %v4361 = vpop.f32.mrb[0].mxu0
    %v4362 = vadd.f32 %v3873, %v4361
    %v4363 = vpop.f32.mrb[0].mxu0
    %v4364 = vadd.f32 %v3875, %v4363
    %v4365 = vand.u32 %v2592, 4294901760
    %v4366 = vsub.f32 %v2592, %v4365
    %4367 = vmatprep.mubr.f32.mxu0 %v4366
    %v4368 = vand.u32 %v2591, 4294901760
    %v4369 = vsub.f32 %v2591, %v4368
    %4370 = vmatmul.mubr.f32.gmra.mrb[0].mxu0 %v4369
    %v4371 = vpop.f32.mrb[0].mxu0
    %v4372 = vadd.f32 %v3881, %v4371
    %v4373 = vpop.f32.mrb[0].mxu0
    %v4374 = vadd.f32 %v3883, %v4373
    %v4375 = vand.u32 %v2594, 4294901760
    %v4376 = vsub.f32 %v2594, %v4375
    %4377 = vmatprep.mubr.f32.mxu0 %v4376
    %v4378 = vand.u32 %v2593, 4294901760
    %v4379 = vsub.f32 %v2593, %v4378
    %4380 = vmatmul.mubr.f32.gmra.mrb[0].mxu0 %v4379
    %v4381 = vpop.f32.mrb[0].mxu0
    %v4382 = vadd.f32 %v3889, %v4381
    %v4383 = vpop.f32.mrb[0].mxu0
    %v4384 = vadd.f32 %v3891, %v4383
    %v4385 = vand.u32 %v2596, 4294901760
    %v4386 = vsub.f32 %v2596, %v4385
    %4387 = vmatprep.mubr.f32.mxu0 %v4386
    %v4388 = vand.u32 %v2595, 4294901760
    %v4389 = vsub.f32 %v2595, %v4388
    %4390 = vmatmul.mubr.f32.gmra.mrb[0].mxu0 %v4389
    %v4391 = vpop.f32.mrb[0].mxu0
    %v4392 = vadd.f32 %v3897, %v4391
    %v4393 = vpop.f32.mrb[0].mxu0
    %v4394 = vadd.f32 %v3899, %v4393
    %v4395 = vand.u32 %v2598, 4294901760
    %v4396 = vsub.f32 %v2598, %v4395
    %4397 = vmatprep.mubr.f32.mxu0 %v4396
    %v4398 = vand.u32 %v2597, 4294901760
    %v4399 = vsub.f32 %v2597, %v4398
    %4400 = vmatmul.mubr.f32.gmra.mrb[0].mxu0 %v4399
    %v4401 = vpop.f32.mrb[0].mxu0
    %v4402 = vadd.f32 %v3905, %v4401
    %v4403 = vpop.f32.mrb[0].mxu0
    %v4404 = vadd.f32 %v3907, %v4403
    %v4405 = vand.u32 %v2600, 4294901760
    %v4406 = vsub.f32 %v2600, %v4405
    %4407 = vmatprep.mubr.f32.mxu0 %v4406
    %v4408 = vand.u32 %v2599, 4294901760
    %v4409 = vsub.f32 %v2599, %v4408
    %4410 = vmatmul.mubr.f32.gmra.mrb[0].mxu0 %v4409
    %v4411 = vpop.f32.mrb[0].mxu0
    %v4412 = vadd.f32 %v3913, %v4411
    %v4413 = vpop.f32.mrb[0].mxu0
    %v4414 = vadd.f32 %v3915, %v4413
    %v4415 = vand.u32 %v2602, 4294901760
    %v4416 = vsub.f32 %v2602, %v4415
    %4417 = vmatprep.mubr.f32.mxu0 %v4416
    %v4418 = vand.u32 %v2601, 4294901760
    %v4419 = vsub.f32 %v2601, %v4418
    %4420 = vmatmul.mubr.f32.gmra.mrb[0].mxu0 %v4419
    %v4421 = vpop.f32.mrb[0].mxu0
    %v4422 = vadd.f32 %v3921, %v4421
    %v4423 = vpop.f32.mrb[0].mxu0
    %v4424 = vadd.f32 %v3923, %v4423
    %v4425 = vand.u32 %v2604, 4294901760
    %v4426 = vsub.f32 %v2604, %v4425
    %4427 = vmatprep.mubr.f32.mxu0 %v4426
    %v4428 = vand.u32 %v2603, 4294901760
    %v4429 = vsub.f32 %v2603, %v4428
    %4430 = vmatmul.mubr.f32.gmra.mrb[0].mxu0 %v4429
    %v4431 = vpop.f32.mrb[0].mxu0
    %v4432 = vadd.f32 %v3929, %v4431
    %v4433 = vpop.f32.mrb[0].mxu0
    %v4434 = vadd.f32 %v3931, %v4433
    %v4435 = vand.u32 %v2606, 4294901760
    %v4436 = vsub.f32 %v2606, %v4435
    %4437 = vmatprep.mubr.f32.mxu0 %v4436
    %v4438 = vand.u32 %v2605, 4294901760
    %v4439 = vsub.f32 %v2605, %v4438
    %4440 = vmatmul.mubr.f32.gmra.mrb[0].mxu0 %v4439
    %v4441 = vpop.f32.mrb[0].mxu0
    %v4442 = vadd.f32 %v3937, %v4441
    %v4443 = vpop.f32.mrb[0].mxu0
    %v4444 = vadd.f32 %v3939, %v4443
    %v4445 = vand.u32 %v2608, 4294901760
    %v4446 = vsub.f32 %v2608, %v4445
    %4447 = vmatprep.mubr.f32.mxu0 %v4446
    %v4448 = vand.u32 %v2607, 4294901760
    %v4449 = vsub.f32 %v2607, %v4448
    %4450 = vmatmul.mubr.f32.gmra.mrb[0].mxu0 %v4449
    %v4451 = vpop.f32.mrb[0].mxu0
    %v4452 = vadd.f32 %v3945, %v4451
    %v4453 = vpop.f32.mrb[0].mxu0
    %v4454 = vadd.f32 %v3947, %v4453
    %v4455 = vand.u32 %v2610, 4294901760
    %v4456 = vsub.f32 %v2610, %v4455
    %4457 = vmatprep.mubr.f32.mxu0 %v4456
    %v4458 = vand.u32 %v2609, 4294901760
    %v4459 = vsub.f32 %v2609, %v4458
    %4460 = vmatmul.mubr.f32.gmra.mrb[0].mxu0 %v4459
    %v4461 = vpop.f32.mrb[0].mxu0
    %v4462 = vadd.f32 %v3953, %v4461
    %v4463 = vpop.f32.mrb[0].mxu0
    %v4464 = vadd.f32 %v3955, %v4463
    %v4465 = vand.u32 %v2612, 4294901760
    %v4466 = vsub.f32 %v2612, %v4465
    %4467 = vmatprep.mubr.f32.mxu0 %v4466
    %v4468 = vand.u32 %v2611, 4294901760
    %v4469 = vsub.f32 %v2611, %v4468
    %4470 = vmatmul.mubr.f32.gmra.mrb[0].mxu0 %v4469
    %v4471 = vpop.f32.mrb[0].mxu0
    %v4472 = vadd.f32 %v3961, %v4471
    %v4473 = vpop.f32.mrb[0].mxu0
    %v4474 = vadd.f32 %v3963, %v4473
    %v4475 = vand.u32 %v2614, 4294901760
    %v4476 = vsub.f32 %v2614, %v4475
    %4477 = vmatprep.mubr.f32.mxu0 %v4476
    %v4478 = vand.u32 %v2613, 4294901760
    %v4479 = vsub.f32 %v2613, %v4478
    %4480 = vmatmul.mubr.f32.gmra.mrb[0].mxu0 %v4479
    %v4481 = vpop.f32.mrb[0].mxu0
    %v4482 = vadd.f32 %v3969, %v4481
    %v4483 = vpop.f32.mrb[0].mxu0
    %v4484 = vadd.f32 %v3971, %v4483
    %4485 = vdwg.mxu0
    %v4486 = vand.u32 %v2616, 4294901760
    %4487 = vmatprep.subr.mxu0 %v4486
    %v4488 = vand.u32 %v2615, 4294901760
    %4489 = vmatpush1.msra.mxu0 %v4488
    %v4490 = vand.u32 %v2618, 4294901760
    %4491 = vmatprep.subr.mxu0 %v4490
    %v4492 = vand.u32 %v2617, 4294901760
    %4493 = vmatpush1.msra.mxu0 %v4492
    %v4494 = vand.u32 %v2620, 4294901760
    %4495 = vmatprep.subr.mxu0 %v4494
    %v4496 = vand.u32 %v2619, 4294901760
    %4497 = vmatpush1.msra.mxu0 %v4496
    %v4498 = vand.u32 %v2622, 4294901760
    %4499 = vmatprep.subr.mxu0 %v4498
    %v4500 = vand.u32 %v2621, 4294901760
    %4501 = vmatpush1.msra.mxu0 %v4500
    %v4502 = vand.u32 %v2624, 4294901760
    %4503 = vmatprep.subr.mxu0 %v4502
    %v4504 = vand.u32 %v2623, 4294901760
    %4505 = vmatpush1.msra.mxu0 %v4504
    %v4506 = vand.u32 %v2626, 4294901760
    %4507 = vmatprep.subr.mxu0 %v4506
    %v4508 = vand.u32 %v2625, 4294901760
    %4509 = vmatpush1.msra.mxu0 %v4508
    %v4510 = vand.u32 %v2628, 4294901760
    %4511 = vmatprep.subr.mxu0 %v4510
    %v4512 = vand.u32 %v2627, 4294901760
    %4513 = vmatpush1.msra.mxu0 %v4512
    %v4514 = vand.u32 %v2630, 4294901760
    %4515 = vmatprep.subr.mxu0 %v4514
    %v4516 = vand.u32 %v2629, 4294901760
    %4517 = vmatpush1.msra.mxu0 %v4516
    %v4518 = vand.u32 %v2632, 4294901760
    %4519 = vmatprep.subr.mxu0 %v4518
    %v4520 = vand.u32 %v2631, 4294901760
    %4521 = vmatpush1.msra.mxu0 %v4520
    %v4522 = vand.u32 %v2634, 4294901760
    %4523 = vmatprep.subr.mxu0 %v4522
    %v4524 = vand.u32 %v2633, 4294901760
    %4525 = vmatpush1.msra.mxu0 %v4524
    %v4526 = vand.u32 %v2636, 4294901760
    %4527 = vmatprep.subr.mxu0 %v4526
    %v4528 = vand.u32 %v2635, 4294901760
    %4529 = vmatpush1.msra.mxu0 %v4528
    %v4530 = vand.u32 %v2638, 4294901760
    %4531 = vmatprep.subr.mxu0 %v4530
    %v4532 = vand.u32 %v2637, 4294901760
    %4533 = vmatpush1.msra.mxu0 %v4532
    %v4534 = vand.u32 %v2640, 4294901760
    %4535 = vmatprep.subr.mxu0 %v4534
    %v4536 = vand.u32 %v2639, 4294901760
    %4537 = vmatpush1.msra.mxu0 %v4536
    %v4538 = vand.u32 %v2642, 4294901760
    %4539 = vmatprep.subr.mxu0 %v4538
    %v4540 = vand.u32 %v2641, 4294901760
    %4541 = vmatpush1.msra.mxu0 %v4540
    %v4542 = vand.u32 %v2644, 4294901760
    %4543 = vmatprep.subr.mxu0 %v4542
    %v4544 = vand.u32 %v2643, 4294901760
    %4545 = vmatpush1.msra.mxu0 %v4544
    %v4546 = vand.u32 %v2646, 4294901760
    %4547 = vmatprep.subr.mxu0 %v4546
    %v4548 = vand.u32 %v2645, 4294901760
    %4549 = vmatpush1.msra.mxu0 %v4548
    %v4550 = vand.u32 %v2648, 4294901760
    %4551 = vmatprep.subr.mxu0 %v4550
    %v4552 = vand.u32 %v2647, 4294901760
    %4553 = vmatpush1.msra.mxu0 %v4552
    %v4554 = vand.u32 %v2650, 4294901760
    %4555 = vmatprep.subr.mxu0 %v4554
    %v4556 = vand.u32 %v2649, 4294901760
    %4557 = vmatpush1.msra.mxu0 %v4556
    %v4558 = vand.u32 %v2652, 4294901760
    %4559 = vmatprep.subr.mxu0 %v4558
    %v4560 = vand.u32 %v2651, 4294901760
    %4561 = vmatpush1.msra.mxu0 %v4560
    %v4562 = vand.u32 %v2654, 4294901760
    %4563 = vmatprep.subr.mxu0 %v4562
    %v4564 = vand.u32 %v2653, 4294901760
    %4565 = vmatpush1.msra.mxu0 %v4564
    %v4566 = vand.u32 %v2656, 4294901760
    %4567 = vmatprep.subr.mxu0 %v4566
    %v4568 = vand.u32 %v2655, 4294901760
    %4569 = vmatpush1.msra.mxu0 %v4568
    %v4570 = vand.u32 %v2658, 4294901760
    %4571 = vmatprep.subr.mxu0 %v4570
    %v4572 = vand.u32 %v2657, 4294901760
    %4573 = vmatpush1.msra.mxu0 %v4572
    %v4574 = vand.u32 %v2660, 4294901760
    %4575 = vmatprep.subr.mxu0 %v4574
    %v4576 = vand.u32 %v2659, 4294901760
    %4577 = vmatpush1.msra.mxu0 %v4576
    %v4578 = vand.u32 %v2662, 4294901760
    %4579 = vmatprep.subr.mxu0 %v4578
    %v4580 = vand.u32 %v2661, 4294901760
    %4581 = vmatpush1.msra.mxu0 %v4580
    %v4582 = vand.u32 %v2664, 4294901760
    %4583 = vmatprep.subr.mxu0 %v4582
    %v4584 = vand.u32 %v2663, 4294901760
    %4585 = vmatpush1.msra.mxu0 %v4584
    %v4586 = vand.u32 %v2666, 4294901760
    %4587 = vmatprep.subr.mxu0 %v4586
    %v4588 = vand.u32 %v2665, 4294901760
    %4589 = vmatpush1.msra.mxu0 %v4588
    %v4590 = vand.u32 %v2668, 4294901760
    %4591 = vmatprep.subr.mxu0 %v4590
    %v4592 = vand.u32 %v2667, 4294901760
    %4593 = vmatpush1.msra.mxu0 %v4592
    %v4594 = vand.u32 %v2670, 4294901760
    %4595 = vmatprep.subr.mxu0 %v4594
    %v4596 = vand.u32 %v2669, 4294901760
    %4597 = vmatpush1.msra.mxu0 %v4596
    %v4598 = vand.u32 %v2672, 4294901760
    %4599 = vmatprep.subr.mxu0 %v4598
    %v4600 = vand.u32 %v2671, 4294901760
    %4601 = vmatpush1.msra.mxu0 %v4600
    %v4602 = vand.u32 %v2674, 4294901760
    %4603 = vmatprep.subr.mxu0 %v4602
    %v4604 = vand.u32 %v2673, 4294901760
    %4605 = vmatpush1.msra.mxu0 %v4604
    %v4606 = vand.u32 %v2676, 4294901760
    %4607 = vmatprep.subr.mxu0 %v4606
    %v4608 = vand.u32 %v2675, 4294901760
    %4609 = vmatpush1.msra.mxu0 %v4608
    %v4610 = vand.u32 %v2678, 4294901760
    %4611 = vmatprep.subr.mxu0 %v4610
    %v4612 = vand.u32 %v2677, 4294901760
    %4613 = vmatpush1.msra.mxu0 %v4612
    %v4614 = vand.u32 %v2552, 4294901760
    %v4615 = vsub.f32 %v2552, %v4614
    %v4616 = vand.u32 %v4615, 4294901760
    %4617 = vmatprep.mubr.f32.mxu0 %v4616
    %v4618 = vand.u32 %v2551, 4294901760
    %v4619 = vsub.f32 %v2551, %v4618
    %v4620 = vand.u32 %v4619, 4294901760
    %4621 = vmatmul.mubr.f32.gmra.mrb[0].mxu0 %v4620
    %v4622 = vpop.f32.mrb[0].mxu0
    %v4623 = vadd.f32 %v4172, %v4622
    %v4624 = vpop.f32.mrb[0].mxu0
    %v4625 = vadd.f32 %v4174, %v4624
    %v4626 = vand.u32 %v2554, 4294901760
    %v4627 = vsub.f32 %v2554, %v4626
    %v4628 = vand.u32 %v4627, 4294901760
    %4629 = vmatprep.mubr.f32.mxu0 %v4628
    %v4630 = vand.u32 %v2553, 4294901760
    %v4631 = vsub.f32 %v2553, %v4630
    %v4632 = vand.u32 %v4631, 4294901760
    %4633 = vmatmul.mubr.f32.gmra.mrb[0].mxu0 %v4632
    %v4634 = vpop.f32.mrb[0].mxu0
    %v4635 = vadd.f32 %v4182, %v4634
    %v4636 = vpop.f32.mrb[0].mxu0
    %v4637 = vadd.f32 %v4184, %v4636
    %v4638 = vand.u32 %v2556, 4294901760
    %v4639 = vsub.f32 %v2556, %v4638
    %v4640 = vand.u32 %v4639, 4294901760
    %4641 = vmatprep.mubr.f32.mxu0 %v4640
    %v4642 = vand.u32 %v2555, 4294901760
    %v4643 = vsub.f32 %v2555, %v4642
    %v4644 = vand.u32 %v4643, 4294901760
    %4645 = vmatmul.mubr.f32.gmra.mrb[0].mxu0 %v4644
    %v4646 = vpop.f32.mrb[0].mxu0
    %v4647 = vadd.f32 %v4192, %v4646
    %v4648 = vpop.f32.mrb[0].mxu0
    %v4649 = vadd.f32 %v4194, %v4648
    %v4650 = vand.u32 %v2558, 4294901760
    %v4651 = vsub.f32 %v2558, %v4650
    %v4652 = vand.u32 %v4651, 4294901760
    %4653 = vmatprep.mubr.f32.mxu0 %v4652
    %v4654 = vand.u32 %v2557, 4294901760
    %v4655 = vsub.f32 %v2557, %v4654
    %v4656 = vand.u32 %v4655, 4294901760
    %4657 = vmatmul.mubr.f32.gmra.mrb[0].mxu0 %v4656
    %v4658 = vpop.f32.mrb[0].mxu0
    %v4659 = vadd.f32 %v4202, %v4658
    %v4660 = vpop.f32.mrb[0].mxu0
    %v4661 = vadd.f32 %v4204, %v4660
    %v4662 = vand.u32 %v2560, 4294901760
    %v4663 = vsub.f32 %v2560, %v4662
    %v4664 = vand.u32 %v4663, 4294901760
    %4665 = vmatprep.mubr.f32.mxu0 %v4664
    %v4666 = vand.u32 %v2559, 4294901760
    %v4667 = vsub.f32 %v2559, %v4666
    %v4668 = vand.u32 %v4667, 4294901760
    %4669 = vmatmul.mubr.f32.gmra.mrb[0].mxu0 %v4668
    %v4670 = vpop.f32.mrb[0].mxu0
    %v4671 = vadd.f32 %v4212, %v4670
    %v4672 = vpop.f32.mrb[0].mxu0
    %v4673 = vadd.f32 %v4214, %v4672
    %v4674 = vand.u32 %v2562, 4294901760
    %v4675 = vsub.f32 %v2562, %v4674
    %v4676 = vand.u32 %v4675, 4294901760
    %4677 = vmatprep.mubr.f32.mxu0 %v4676
    %v4678 = vand.u32 %v2561, 4294901760
    %v4679 = vsub.f32 %v2561, %v4678
    %v4680 = vand.u32 %v4679, 4294901760
    %4681 = vmatmul.mubr.f32.gmra.mrb[0].mxu0 %v4680
    %v4682 = vpop.f32.mrb[0].mxu0
    %v4683 = vadd.f32 %v4222, %v4682
    %v4684 = vpop.f32.mrb[0].mxu0
    %v4685 = vadd.f32 %v4224, %v4684
    %v4686 = vand.u32 %v2564, 4294901760
    %v4687 = vsub.f32 %v2564, %v4686
    %v4688 = vand.u32 %v4687, 4294901760
    %4689 = vmatprep.mubr.f32.mxu0 %v4688
    %v4690 = vand.u32 %v2563, 4294901760
    %v4691 = vsub.f32 %v2563, %v4690
    %v4692 = vand.u32 %v4691, 4294901760
    %4693 = vmatmul.mubr.f32.gmra.mrb[0].mxu0 %v4692
    %v4694 = vpop.f32.mrb[0].mxu0
    %v4695 = vadd.f32 %v4232, %v4694
    %v4696 = vpop.f32.mrb[0].mxu0
    %v4697 = vadd.f32 %v4234, %v4696
    %v4698 = vand.u32 %v2566, 4294901760
    %v4699 = vsub.f32 %v2566, %v4698
    %v4700 = vand.u32 %v4699, 4294901760
    %4701 = vmatprep.mubr.f32.mxu0 %v4700
    %v4702 = vand.u32 %v2565, 4294901760
    %v4703 = vsub.f32 %v2565, %v4702
    %v4704 = vand.u32 %v4703, 4294901760
    %4705 = vmatmul.mubr.f32.gmra.mrb[0].mxu0 %v4704
    %v4706 = vpop.f32.mrb[0].mxu0
    %v4707 = vadd.f32 %v4242, %v4706
    %v4708 = vpop.f32.mrb[0].mxu0
    %v4709 = vadd.f32 %v4244, %v4708
    %v4710 = vand.u32 %v2568, 4294901760
    %v4711 = vsub.f32 %v2568, %v4710
    %v4712 = vand.u32 %v4711, 4294901760
    %4713 = vmatprep.mubr.f32.mxu0 %v4712
    %v4714 = vand.u32 %v2567, 4294901760
    %v4715 = vsub.f32 %v2567, %v4714
    %v4716 = vand.u32 %v4715, 4294901760
    %4717 = vmatmul.mubr.f32.gmra.mrb[0].mxu0 %v4716
    %v4718 = vpop.f32.mrb[0].mxu0
    %v4719 = vadd.f32 %v4252, %v4718
    %v4720 = vpop.f32.mrb[0].mxu0
    %v4721 = vadd.f32 %v4254, %v4720
    %v4722 = vand.u32 %v2570, 4294901760
    %v4723 = vsub.f32 %v2570, %v4722
    %v4724 = vand.u32 %v4723, 4294901760
    %4725 = vmatprep.mubr.f32.mxu0 %v4724
    %v4726 = vand.u32 %v2569, 4294901760
    %v4727 = vsub.f32 %v2569, %v4726
    %v4728 = vand.u32 %v4727, 4294901760
    %4729 = vmatmul.mubr.f32.gmra.mrb[0].mxu0 %v4728
    %v4730 = vpop.f32.mrb[0].mxu0
    %v4731 = vadd.f32 %v4262, %v4730
    %v4732 = vpop.f32.mrb[0].mxu0
    %v4733 = vadd.f32 %v4264, %v4732
    %v4734 = vand.u32 %v2572, 4294901760
    %v4735 = vsub.f32 %v2572, %v4734
    %v4736 = vand.u32 %v4735, 4294901760
    %4737 = vmatprep.mubr.f32.mxu0 %v4736
    %v4738 = vand.u32 %v2571, 4294901760
    %v4739 = vsub.f32 %v2571, %v4738
    %v4740 = vand.u32 %v4739, 4294901760
    %4741 = vmatmul.mubr.f32.gmra.mrb[0].mxu0 %v4740
    %v4742 = vpop.f32.mrb[0].mxu0
    %v4743 = vadd.f32 %v4272, %v4742
    %v4744 = vpop.f32.mrb[0].mxu0
    %v4745 = vadd.f32 %v4274, %v4744
    %v4746 = vand.u32 %v2574, 4294901760
    %v4747 = vsub.f32 %v2574, %v4746
    %v4748 = vand.u32 %v4747, 4294901760
    %4749 = vmatprep.mubr.f32.mxu0 %v4748
    %v4750 = vand.u32 %v2573, 4294901760
    %v4751 = vsub.f32 %v2573, %v4750
    %v4752 = vand.u32 %v4751, 4294901760
    %4753 = vmatmul.mubr.f32.gmra.mrb[0].mxu0 %v4752
    %v4754 = vpop.f32.mrb[0].mxu0
    %v4755 = vadd.f32 %v4282, %v4754
    %v4756 = vpop.f32.mrb[0].mxu0
    %v4757 = vadd.f32 %v4284, %v4756
    %v4758 = vand.u32 %v2576, 4294901760
    %v4759 = vsub.f32 %v2576, %v4758
    %v4760 = vand.u32 %v4759, 4294901760
    %4761 = vmatprep.mubr.f32.mxu0 %v4760
    %v4762 = vand.u32 %v2575, 4294901760
    %v4763 = vsub.f32 %v2575, %v4762
    %v4764 = vand.u32 %v4763, 4294901760
    %4765 = vmatmul.mubr.f32.gmra.mrb[0].mxu0 %v4764
    %v4766 = vpop.f32.mrb[0].mxu0
    %v4767 = vadd.f32 %v4292, %v4766
    %v4768 = vpop.f32.mrb[0].mxu0
    %v4769 = vadd.f32 %v4294, %v4768
    %v4770 = vand.u32 %v2578, 4294901760
    %v4771 = vsub.f32 %v2578, %v4770
    %v4772 = vand.u32 %v4771, 4294901760
    %4773 = vmatprep.mubr.f32.mxu0 %v4772
    %v4774 = vand.u32 %v2577, 4294901760
    %v4775 = vsub.f32 %v2577, %v4774
    %v4776 = vand.u32 %v4775, 4294901760
    %4777 = vmatmul.mubr.f32.gmra.mrb[0].mxu0 %v4776
    %v4778 = vpop.f32.mrb[0].mxu0
    %v4779 = vadd.f32 %v4302, %v4778
    %v4780 = vpop.f32.mrb[0].mxu0
    %v4781 = vadd.f32 %v4304, %v4780
    %v4782 = vand.u32 %v2580, 4294901760
    %v4783 = vsub.f32 %v2580, %v4782
    %v4784 = vand.u32 %v4783, 4294901760
    %4785 = vmatprep.mubr.f32.mxu0 %v4784
    %v4786 = vand.u32 %v2579, 4294901760
    %v4787 = vsub.f32 %v2579, %v4786
    %v4788 = vand.u32 %v4787, 4294901760
    %4789 = vmatmul.mubr.f32.gmra.mrb[0].mxu0 %v4788
    %v4790 = vpop.f32.mrb[0].mxu0
    %v4791 = vadd.f32 %v4312, %v4790
    %v4792 = vpop.f32.mrb[0].mxu0
    %v4793 = vadd.f32 %v4314, %v4792
    %v4794 = vand.u32 %v2582, 4294901760
    %v4795 = vsub.f32 %v2582, %v4794
    %v4796 = vand.u32 %v4795, 4294901760
    %4797 = vmatprep.mubr.f32.mxu0 %v4796
    %v4798 = vand.u32 %v2581, 4294901760
    %v4799 = vsub.f32 %v2581, %v4798
    %v4800 = vand.u32 %v4799, 4294901760
    %4801 = vmatmul.mubr.f32.gmra.mrb[0].mxu0 %v4800
    %v4802 = vpop.f32.mrb[0].mxu0
    %v4803 = vadd.f32 %v4322, %v4802
    %v4804 = vpop.f32.mrb[0].mxu0
    %v4805 = vadd.f32 %v4324, %v4804
    %v4806 = vand.u32 %v2584, 4294901760
    %v4807 = vsub.f32 %v2584, %v4806
    %v4808 = vand.u32 %v4807, 4294901760
    %4809 = vmatprep.mubr.f32.mxu0 %v4808
    %v4810 = vand.u32 %v2583, 4294901760
    %v4811 = vsub.f32 %v2583, %v4810
    %v4812 = vand.u32 %v4811, 4294901760
    %4813 = vmatmul.mubr.f32.gmra.mrb[0].mxu0 %v4812
    %v4814 = vpop.f32.mrb[0].mxu0
    %v4815 = vadd.f32 %v4332, %v4814
    %v4816 = vpop.f32.mrb[0].mxu0
    %v4817 = vadd.f32 %v4334, %v4816
    %v4818 = vand.u32 %v2586, 4294901760
    %v4819 = vsub.f32 %v2586, %v4818
    %v4820 = vand.u32 %v4819, 4294901760
    %4821 = vmatprep.mubr.f32.mxu0 %v4820
    %v4822 = vand.u32 %v2585, 4294901760
    %v4823 = vsub.f32 %v2585, %v4822
    %v4824 = vand.u32 %v4823, 4294901760
    %4825 = vmatmul.mubr.f32.gmra.mrb[0].mxu0 %v4824
    %v4826 = vpop.f32.mrb[0].mxu0
    %v4827 = vadd.f32 %v4342, %v4826
    %v4828 = vpop.f32.mrb[0].mxu0
    %v4829 = vadd.f32 %v4344, %v4828
    %v4830 = vand.u32 %v2588, 4294901760
    %v4831 = vsub.f32 %v2588, %v4830
    %v4832 = vand.u32 %v4831, 4294901760
    %4833 = vmatprep.mubr.f32.mxu0 %v4832
    %v4834 = vand.u32 %v2587, 4294901760
    %v4835 = vsub.f32 %v2587, %v4834
    %v4836 = vand.u32 %v4835, 4294901760
    %4837 = vmatmul.mubr.f32.gmra.mrb[0].mxu0 %v4836
    %v4838 = vpop.f32.mrb[0].mxu0
    %v4839 = vadd.f32 %v4352, %v4838
    %v4840 = vpop.f32.mrb[0].mxu0
    %v4841 = vadd.f32 %v4354, %v4840
    %v4842 = vand.u32 %v2590, 4294901760
    %v4843 = vsub.f32 %v2590, %v4842
    %v4844 = vand.u32 %v4843, 4294901760
    %4845 = vmatprep.mubr.f32.mxu0 %v4844
    %v4846 = vand.u32 %v2589, 4294901760
    %v4847 = vsub.f32 %v2589, %v4846
    %v4848 = vand.u32 %v4847, 4294901760
    %4849 = vmatmul.mubr.f32.gmra.mrb[0].mxu0 %v4848
    %v4850 = vpop.f32.mrb[0].mxu0
    %v4851 = vadd.f32 %v4362, %v4850
    %v4852 = vpop.f32.mrb[0].mxu0
    %v4853 = vadd.f32 %v4364, %v4852
    %v4854 = vand.u32 %v2592, 4294901760
    %v4855 = vsub.f32 %v2592, %v4854
    %v4856 = vand.u32 %v4855, 4294901760
    %4857 = vmatprep.mubr.f32.mxu0 %v4856
    %v4858 = vand.u32 %v2591, 4294901760
    %v4859 = vsub.f32 %v2591, %v4858
    %v4860 = vand.u32 %v4859, 4294901760
    %4861 = vmatmul.mubr.f32.gmra.mrb[0].mxu0 %v4860
    %v4862 = vpop.f32.mrb[0].mxu0
    %v4863 = vadd.f32 %v4372, %v4862
    %v4864 = vpop.f32.mrb[0].mxu0
    %v4865 = vadd.f32 %v4374, %v4864
    %v4866 = vand.u32 %v2594, 4294901760
    %v4867 = vsub.f32 %v2594, %v4866
    %v4868 = vand.u32 %v4867, 4294901760
    %4869 = vmatprep.mubr.f32.mxu0 %v4868
    %v4870 = vand.u32 %v2593, 4294901760
    %v4871 = vsub.f32 %v2593, %v4870
    %v4872 = vand.u32 %v4871, 4294901760
    %4873 = vmatmul.mubr.f32.gmra.mrb[0].mxu0 %v4872
    %v4874 = vpop.f32.mrb[0].mxu0
    %v4875 = vadd.f32 %v4382, %v4874
    %v4876 = vpop.f32.mrb[0].mxu0
    %v4877 = vadd.f32 %v4384, %v4876
    %v4878 = vand.u32 %v2596, 4294901760
    %v4879 = vsub.f32 %v2596, %v4878
    %v4880 = vand.u32 %v4879, 4294901760
    %4881 = vmatprep.mubr.f32.mxu0 %v4880
    %v4882 = vand.u32 %v2595, 4294901760
    %v4883 = vsub.f32 %v2595, %v4882
    %v4884 = vand.u32 %v4883, 4294901760
    %4885 = vmatmul.mubr.f32.gmra.mrb[0].mxu0 %v4884
    %v4886 = vpop.f32.mrb[0].mxu0
    %v4887 = vadd.f32 %v4392, %v4886
    %v4888 = vpop.f32.mrb[0].mxu0
    %v4889 = vadd.f32 %v4394, %v4888
    %v4890 = vand.u32 %v2598, 4294901760
    %v4891 = vsub.f32 %v2598, %v4890
    %v4892 = vand.u32 %v4891, 4294901760
    %4893 = vmatprep.mubr.f32.mxu0 %v4892
    %v4894 = vand.u32 %v2597, 4294901760
    %v4895 = vsub.f32 %v2597, %v4894
    %v4896 = vand.u32 %v4895, 4294901760
    %4897 = vmatmul.mubr.f32.gmra.mrb[0].mxu0 %v4896
    %v4898 = vpop.f32.mrb[0].mxu0
    %v4899 = vadd.f32 %v4402, %v4898
    %v4900 = vpop.f32.mrb[0].mxu0
    %v4901 = vadd.f32 %v4404, %v4900
    %v4902 = vand.u32 %v2600, 4294901760
    %v4903 = vsub.f32 %v2600, %v4902
    %v4904 = vand.u32 %v4903, 4294901760
    %4905 = vmatprep.mubr.f32.mxu0 %v4904
    %v4906 = vand.u32 %v2599, 4294901760
    %v4907 = vsub.f32 %v2599, %v4906
    %v4908 = vand.u32 %v4907, 4294901760
    %4909 = vmatmul.mubr.f32.gmra.mrb[0].mxu0 %v4908
    %v4910 = vpop.f32.mrb[0].mxu0
    %v4911 = vadd.f32 %v4412, %v4910
    %v4912 = vpop.f32.mrb[0].mxu0
    %v4913 = vadd.f32 %v4414, %v4912
    %v4914 = vand.u32 %v2602, 4294901760
    %v4915 = vsub.f32 %v2602, %v4914
    %v4916 = vand.u32 %v4915, 4294901760
    %4917 = vmatprep.mubr.f32.mxu0 %v4916
    %v4918 = vand.u32 %v2601, 4294901760
    %v4919 = vsub.f32 %v2601, %v4918
    %v4920 = vand.u32 %v4919, 4294901760
    %4921 = vmatmul.mubr.f32.gmra.mrb[0].mxu0 %v4920
    %v4922 = vpop.f32.mrb[0].mxu0
    %v4923 = vadd.f32 %v4422, %v4922
    %v4924 = vpop.f32.mrb[0].mxu0
    %v4925 = vadd.f32 %v4424, %v4924
    %v4926 = vand.u32 %v2604, 4294901760
    %v4927 = vsub.f32 %v2604, %v4926
    %v4928 = vand.u32 %v4927, 4294901760
    %4929 = vmatprep.mubr.f32.mxu0 %v4928
    %v4930 = vand.u32 %v2603, 4294901760
    %v4931 = vsub.f32 %v2603, %v4930
    %v4932 = vand.u32 %v4931, 4294901760
    %4933 = vmatmul.mubr.f32.gmra.mrb[0].mxu0 %v4932
    %v4934 = vpop.f32.mrb[0].mxu0
    %v4935 = vadd.f32 %v4432, %v4934
    %v4936 = vpop.f32.mrb[0].mxu0
    %v4937 = vadd.f32 %v4434, %v4936
    %v4938 = vand.u32 %v2606, 4294901760
    %v4939 = vsub.f32 %v2606, %v4938
    %v4940 = vand.u32 %v4939, 4294901760
    %4941 = vmatprep.mubr.f32.mxu0 %v4940
    %v4942 = vand.u32 %v2605, 4294901760
    %v4943 = vsub.f32 %v2605, %v4942
    %v4944 = vand.u32 %v4943, 4294901760
    %4945 = vmatmul.mubr.f32.gmra.mrb[0].mxu0 %v4944
    %v4946 = vpop.f32.mrb[0].mxu0
    %v4947 = vadd.f32 %v4442, %v4946
    %v4948 = vpop.f32.mrb[0].mxu0
    %v4949 = vadd.f32 %v4444, %v4948
    %v4950 = vand.u32 %v2608, 4294901760
    %v4951 = vsub.f32 %v2608, %v4950
    %v4952 = vand.u32 %v4951, 4294901760
    %4953 = vmatprep.mubr.f32.mxu0 %v4952
    %v4954 = vand.u32 %v2607, 4294901760
    %v4955 = vsub.f32 %v2607, %v4954
    %v4956 = vand.u32 %v4955, 4294901760
    %4957 = vmatmul.mubr.f32.gmra.mrb[0].mxu0 %v4956
    %v4958 = vpop.f32.mrb[0].mxu0
    %v4959 = vadd.f32 %v4452, %v4958
    %v4960 = vpop.f32.mrb[0].mxu0
    %v4961 = vadd.f32 %v4454, %v4960
    %v4962 = vand.u32 %v2610, 4294901760
    %v4963 = vsub.f32 %v2610, %v4962
    %v4964 = vand.u32 %v4963, 4294901760
    %4965 = vmatprep.mubr.f32.mxu0 %v4964
    %v4966 = vand.u32 %v2609, 4294901760
    %v4967 = vsub.f32 %v2609, %v4966
    %v4968 = vand.u32 %v4967, 4294901760
    %4969 = vmatmul.mubr.f32.gmra.mrb[0].mxu0 %v4968
    %v4970 = vpop.f32.mrb[0].mxu0
    %v4971 = vadd.f32 %v4462, %v4970
    %v4972 = vpop.f32.mrb[0].mxu0
    %v4973 = vadd.f32 %v4464, %v4972
    %v4974 = vand.u32 %v2612, 4294901760
    %v4975 = vsub.f32 %v2612, %v4974
    %v4976 = vand.u32 %v4975, 4294901760
    %4977 = vmatprep.mubr.f32.mxu0 %v4976
    %v4978 = vand.u32 %v2611, 4294901760
    %v4979 = vsub.f32 %v2611, %v4978
    %v4980 = vand.u32 %v4979, 4294901760
    %4981 = vmatmul.mubr.f32.gmra.mrb[0].mxu0 %v4980
    %v4982 = vpop.f32.mrb[0].mxu0
    %v4983 = vadd.f32 %v4472, %v4982
    %v4984 = vpop.f32.mrb[0].mxu0
    %v4985 = vadd.f32 %v4474, %v4984
    %v4986 = vand.u32 %v2614, 4294901760
    %v4987 = vsub.f32 %v2614, %v4986
    %v4988 = vand.u32 %v4987, 4294901760
    %4989 = vmatprep.mubr.f32.mxu0 %v4988
    %v4990 = vand.u32 %v2613, 4294901760
    %v4991 = vsub.f32 %v2613, %v4990
    %v4992 = vand.u32 %v4991, 4294901760
    %4993 = vmatmul.mubr.f32.gmra.mrb[0].mxu0 %v4992
    %v4994 = vpop.f32.mrb[0].mxu0
    %v4995 = vadd.f32 %v4482, %v4994
    %v4996 = vpop.f32.mrb[0].mxu0
    %v4997 = vadd.f32 %v4484, %v4996
    %4998 = vdwg.mxu0
    %v4999 = vand.u32 %v2616, 4294901760
    %v5000 = vsub.f32 %v2616, %v4999
    %v5001 = vand.u32 %v5000, 4294901760
    %5002 = vmatprep.subr.mxu0 %v5001
    %v5003 = vand.u32 %v2615, 4294901760
    %v5004 = vsub.f32 %v2615, %v5003
    %v5005 = vand.u32 %v5004, 4294901760
    %5006 = vmatpush1.msra.mxu0 %v5005
    %v5007 = vand.u32 %v2618, 4294901760
    %v5008 = vsub.f32 %v2618, %v5007
    %v5009 = vand.u32 %v5008, 4294901760
    %5010 = vmatprep.subr.mxu0 %v5009
    %v5011 = vand.u32 %v2617, 4294901760
    %v5012 = vsub.f32 %v2617, %v5011
    %v5013 = vand.u32 %v5012, 4294901760
    %5014 = vmatpush1.msra.mxu0 %v5013
    %v5015 = vand.u32 %v2620, 4294901760
    %v5016 = vsub.f32 %v2620, %v5015
    %v5017 = vand.u32 %v5016, 4294901760
    %5018 = vmatprep.subr.mxu0 %v5017
    %v5019 = vand.u32 %v2619, 4294901760
    %v5020 = vsub.f32 %v2619, %v5019
    %v5021 = vand.u32 %v5020, 4294901760
    %5022 = vmatpush1.msra.mxu0 %v5021
    %v5023 = vand.u32 %v2622, 4294901760
    %v5024 = vsub.f32 %v2622, %v5023
    %v5025 = vand.u32 %v5024, 4294901760
    %5026 = vmatprep.subr.mxu0 %v5025
    %v5027 = vand.u32 %v2621, 4294901760
    %v5028 = vsub.f32 %v2621, %v5027
    %v5029 = vand.u32 %v5028, 4294901760
    %5030 = vmatpush1.msra.mxu0 %v5029
    %v5031 = vand.u32 %v2624, 4294901760
    %v5032 = vsub.f32 %v2624, %v5031
    %v5033 = vand.u32 %v5032, 4294901760
    %5034 = vmatprep.subr.mxu0 %v5033
    %v5035 = vand.u32 %v2623, 4294901760
    %v5036 = vsub.f32 %v2623, %v5035
    %v5037 = vand.u32 %v5036, 4294901760
    %5038 = vmatpush1.msra.mxu0 %v5037
    %v5039 = vand.u32 %v2626, 4294901760
    %v5040 = vsub.f32 %v2626, %v5039
    %v5041 = vand.u32 %v5040, 4294901760
    %5042 = vmatprep.subr.mxu0 %v5041
    %v5043 = vand.u32 %v2625, 4294901760
    %v5044 = vsub.f32 %v2625, %v5043
    %v5045 = vand.u32 %v5044, 4294901760
    %5046 = vmatpush1.msra.mxu0 %v5045
    %v5047 = vand.u32 %v2628, 4294901760
    %v5048 = vsub.f32 %v2628, %v5047
    %v5049 = vand.u32 %v5048, 4294901760
    %5050 = vmatprep.subr.mxu0 %v5049
    %v5051 = vand.u32 %v2627, 4294901760
    %v5052 = vsub.f32 %v2627, %v5051
    %v5053 = vand.u32 %v5052, 4294901760
    %5054 = vmatpush1.msra.mxu0 %v5053
    %v5055 = vand.u32 %v2630, 4294901760
    %v5056 = vsub.f32 %v2630, %v5055
    %v5057 = vand.u32 %v5056, 4294901760
    %5058 = vmatprep.subr.mxu0 %v5057
    %v5059 = vand.u32 %v2629, 4294901760
    %v5060 = vsub.f32 %v2629, %v5059
    %v5061 = vand.u32 %v5060, 4294901760
    %5062 = vmatpush1.msra.mxu0 %v5061
    %v5063 = vand.u32 %v2632, 4294901760
    %v5064 = vsub.f32 %v2632, %v5063
    %v5065 = vand.u32 %v5064, 4294901760
    %5066 = vmatprep.subr.mxu0 %v5065
    %v5067 = vand.u32 %v2631, 4294901760
    %v5068 = vsub.f32 %v2631, %v5067
    %v5069 = vand.u32 %v5068, 4294901760
    %5070 = vmatpush1.msra.mxu0 %v5069
    %v5071 = vand.u32 %v2634, 4294901760
    %v5072 = vsub.f32 %v2634, %v5071
    %v5073 = vand.u32 %v5072, 4294901760
    %5074 = vmatprep.subr.mxu0 %v5073
    %v5075 = vand.u32 %v2633, 4294901760
    %v5076 = vsub.f32 %v2633, %v5075
    %v5077 = vand.u32 %v5076, 4294901760
    %5078 = vmatpush1.msra.mxu0 %v5077
    %v5079 = vand.u32 %v2636, 4294901760
    %v5080 = vsub.f32 %v2636, %v5079
    %v5081 = vand.u32 %v5080, 4294901760
    %5082 = vmatprep.subr.mxu0 %v5081
    %v5083 = vand.u32 %v2635, 4294901760
    %v5084 = vsub.f32 %v2635, %v5083
    %v5085 = vand.u32 %v5084, 4294901760
    %5086 = vmatpush1.msra.mxu0 %v5085
    %v5087 = vand.u32 %v2638, 4294901760
    %v5088 = vsub.f32 %v2638, %v5087
    %v5089 = vand.u32 %v5088, 4294901760
    %5090 = vmatprep.subr.mxu0 %v5089
    %v5091 = vand.u32 %v2637, 4294901760
    %v5092 = vsub.f32 %v2637, %v5091
    %v5093 = vand.u32 %v5092, 4294901760
    %5094 = vmatpush1.msra.mxu0 %v5093
    %v5095 = vand.u32 %v2640, 4294901760
    %v5096 = vsub.f32 %v2640, %v5095
    %v5097 = vand.u32 %v5096, 4294901760
    %5098 = vmatprep.subr.mxu0 %v5097
    %v5099 = vand.u32 %v2639, 4294901760
    %v5100 = vsub.f32 %v2639, %v5099
    %v5101 = vand.u32 %v5100, 4294901760
    %5102 = vmatpush1.msra.mxu0 %v5101
    %v5103 = vand.u32 %v2642, 4294901760
    %v5104 = vsub.f32 %v2642, %v5103
    %v5105 = vand.u32 %v5104, 4294901760
    %5106 = vmatprep.subr.mxu0 %v5105
    %v5107 = vand.u32 %v2641, 4294901760
    %v5108 = vsub.f32 %v2641, %v5107
    %v5109 = vand.u32 %v5108, 4294901760
    %5110 = vmatpush1.msra.mxu0 %v5109
    %v5111 = vand.u32 %v2644, 4294901760
    %v5112 = vsub.f32 %v2644, %v5111
    %v5113 = vand.u32 %v5112, 4294901760
    %5114 = vmatprep.subr.mxu0 %v5113
    %v5115 = vand.u32 %v2643, 4294901760
    %v5116 = vsub.f32 %v2643, %v5115
    %v5117 = vand.u32 %v5116, 4294901760
    %5118 = vmatpush1.msra.mxu0 %v5117
    %v5119 = vand.u32 %v2646, 4294901760
    %v5120 = vsub.f32 %v2646, %v5119
    %v5121 = vand.u32 %v5120, 4294901760
    %5122 = vmatprep.subr.mxu0 %v5121
    %v5123 = vand.u32 %v2645, 4294901760
    %v5124 = vsub.f32 %v2645, %v5123
    %v5125 = vand.u32 %v5124, 4294901760
    %5126 = vmatpush1.msra.mxu0 %v5125
    %v5127 = vand.u32 %v2648, 4294901760
    %v5128 = vsub.f32 %v2648, %v5127
    %v5129 = vand.u32 %v5128, 4294901760
    %5130 = vmatprep.subr.mxu0 %v5129
    %v5131 = vand.u32 %v2647, 4294901760
    %v5132 = vsub.f32 %v2647, %v5131
    %v5133 = vand.u32 %v5132, 4294901760
    %5134 = vmatpush1.msra.mxu0 %v5133
    %v5135 = vand.u32 %v2650, 4294901760
    %v5136 = vsub.f32 %v2650, %v5135
    %v5137 = vand.u32 %v5136, 4294901760
    %5138 = vmatprep.subr.mxu0 %v5137
    %v5139 = vand.u32 %v2649, 4294901760
    %v5140 = vsub.f32 %v2649, %v5139
    %v5141 = vand.u32 %v5140, 4294901760
    %5142 = vmatpush1.msra.mxu0 %v5141
    %v5143 = vand.u32 %v2652, 4294901760
    %v5144 = vsub.f32 %v2652, %v5143
    %v5145 = vand.u32 %v5144, 4294901760
    %5146 = vmatprep.subr.mxu0 %v5145
    %v5147 = vand.u32 %v2651, 4294901760
    %v5148 = vsub.f32 %v2651, %v5147
    %v5149 = vand.u32 %v5148, 4294901760
    %5150 = vmatpush1.msra.mxu0 %v5149
    %v5151 = vand.u32 %v2654, 4294901760
    %v5152 = vsub.f32 %v2654, %v5151
    %v5153 = vand.u32 %v5152, 4294901760
    %5154 = vmatprep.subr.mxu0 %v5153
    %v5155 = vand.u32 %v2653, 4294901760
    %v5156 = vsub.f32 %v2653, %v5155
    %v5157 = vand.u32 %v5156, 4294901760
    %5158 = vmatpush1.msra.mxu0 %v5157
    %v5159 = vand.u32 %v2656, 4294901760
    %v5160 = vsub.f32 %v2656, %v5159
    %v5161 = vand.u32 %v5160, 4294901760
    %5162 = vmatprep.subr.mxu0 %v5161
    %v5163 = vand.u32 %v2655, 4294901760
    %v5164 = vsub.f32 %v2655, %v5163
    %v5165 = vand.u32 %v5164, 4294901760
    %5166 = vmatpush1.msra.mxu0 %v5165
    %v5167 = vand.u32 %v2658, 4294901760
    %v5168 = vsub.f32 %v2658, %v5167
    %v5169 = vand.u32 %v5168, 4294901760
    %5170 = vmatprep.subr.mxu0 %v5169
    %v5171 = vand.u32 %v2657, 4294901760
    %v5172 = vsub.f32 %v2657, %v5171
    %v5173 = vand.u32 %v5172, 4294901760
    %5174 = vmatpush1.msra.mxu0 %v5173
    %v5175 = vand.u32 %v2660, 4294901760
    %v5176 = vsub.f32 %v2660, %v5175
    %v5177 = vand.u32 %v5176, 4294901760
    %5178 = vmatprep.subr.mxu0 %v5177
    %v5179 = vand.u32 %v2659, 4294901760
    %v5180 = vsub.f32 %v2659, %v5179
    %v5181 = vand.u32 %v5180, 4294901760
    %5182 = vmatpush1.msra.mxu0 %v5181
    %v5183 = vand.u32 %v2662, 4294901760
    %v5184 = vsub.f32 %v2662, %v5183
    %v5185 = vand.u32 %v5184, 4294901760
    %5186 = vmatprep.subr.mxu0 %v5185
    %v5187 = vand.u32 %v2661, 4294901760
    %v5188 = vsub.f32 %v2661, %v5187
    %v5189 = vand.u32 %v5188, 4294901760
    %5190 = vmatpush1.msra.mxu0 %v5189
    %v5191 = vand.u32 %v2664, 4294901760
    %v5192 = vsub.f32 %v2664, %v5191
    %v5193 = vand.u32 %v5192, 4294901760
    %5194 = vmatprep.subr.mxu0 %v5193
    %v5195 = vand.u32 %v2663, 4294901760
    %v5196 = vsub.f32 %v2663, %v5195
    %v5197 = vand.u32 %v5196, 4294901760
    %5198 = vmatpush1.msra.mxu0 %v5197
    %v5199 = vand.u32 %v2666, 4294901760
    %v5200 = vsub.f32 %v2666, %v5199
    %v5201 = vand.u32 %v5200, 4294901760
    %5202 = vmatprep.subr.mxu0 %v5201
    %v5203 = vand.u32 %v2665, 4294901760
    %v5204 = vsub.f32 %v2665, %v5203
    %v5205 = vand.u32 %v5204, 4294901760
    %5206 = vmatpush1.msra.mxu0 %v5205
    %v5207 = vand.u32 %v2668, 4294901760
    %v5208 = vsub.f32 %v2668, %v5207
    %v5209 = vand.u32 %v5208, 4294901760
    %5210 = vmatprep.subr.mxu0 %v5209
    %v5211 = vand.u32 %v2667, 4294901760
    %v5212 = vsub.f32 %v2667, %v5211
    %v5213 = vand.u32 %v5212, 4294901760
    %5214 = vmatpush1.msra.mxu0 %v5213
    %v5215 = vand.u32 %v2670, 4294901760
    %v5216 = vsub.f32 %v2670, %v5215
    %v5217 = vand.u32 %v5216, 4294901760
    %5218 = vmatprep.subr.mxu0 %v5217
    %v5219 = vand.u32 %v2669, 4294901760
    %v5220 = vsub.f32 %v2669, %v5219
    %v5221 = vand.u32 %v5220, 4294901760
    %5222 = vmatpush1.msra.mxu0 %v5221
    %v5223 = vand.u32 %v2672, 4294901760
    %v5224 = vsub.f32 %v2672, %v5223
    %v5225 = vand.u32 %v5224, 4294901760
    %5226 = vmatprep.subr.mxu0 %v5225
    %v5227 = vand.u32 %v2671, 4294901760
    %v5228 = vsub.f32 %v2671, %v5227
    %v5229 = vand.u32 %v5228, 4294901760
    %5230 = vmatpush1.msra.mxu0 %v5229
    %v5231 = vand.u32 %v2674, 4294901760
    %v5232 = vsub.f32 %v2674, %v5231
    %v5233 = vand.u32 %v5232, 4294901760
    %5234 = vmatprep.subr.mxu0 %v5233
    %v5235 = vand.u32 %v2673, 4294901760
    %v5236 = vsub.f32 %v2673, %v5235
    %v5237 = vand.u32 %v5236, 4294901760
    %5238 = vmatpush1.msra.mxu0 %v5237
    %v5239 = vand.u32 %v2676, 4294901760
    %v5240 = vsub.f32 %v2676, %v5239
    %v5241 = vand.u32 %v5240, 4294901760
    %5242 = vmatprep.subr.mxu0 %v5241
    %v5243 = vand.u32 %v2675, 4294901760
    %v5244 = vsub.f32 %v2675, %v5243
    %v5245 = vand.u32 %v5244, 4294901760
    %5246 = vmatpush1.msra.mxu0 %v5245
    %v5247 = vand.u32 %v2678, 4294901760
    %v5248 = vsub.f32 %v2678, %v5247
    %v5249 = vand.u32 %v5248, 4294901760
    %5250 = vmatprep.subr.mxu0 %v5249
    %v5251 = vand.u32 %v2677, 4294901760
    %v5252 = vsub.f32 %v2677, %v5251
    %v5253 = vand.u32 %v5252, 4294901760
    %5254 = vmatpush1.msra.mxu0 %v5253
    %v5255 = vand.u32 %v2552, 4294901760
    %5256 = vmatprep.mubr.f32.mxu0 %v5255
    %v5257 = vand.u32 %v2551, 4294901760
    %5258 = vmatmul.mubr.f32.gmra.mrb[0].mxu0 %v5257
    %v5259 = vpop.f32.mrb[0].mxu0
    %v5260 = vadd.f32 %v4623, %v5259
    %v5261 = vpop.f32.mrb[0].mxu0
    %v5262 = vadd.f32 %v4625, %v5261
    %v5263 = vand.u32 %v2554, 4294901760
    %5264 = vmatprep.mubr.f32.mxu0 %v5263
    %v5265 = vand.u32 %v2553, 4294901760
    %5266 = vmatmul.mubr.f32.gmra.mrb[0].mxu0 %v5265
    %v5267 = vpop.f32.mrb[0].mxu0
    %v5268 = vadd.f32 %v4635, %v5267
    %v5269 = vpop.f32.mrb[0].mxu0
    %v5270 = vadd.f32 %v4637, %v5269
    %v5271 = vand.u32 %v2556, 4294901760
    %5272 = vmatprep.mubr.f32.mxu0 %v5271
    %v5273 = vand.u32 %v2555, 4294901760
    %5274 = vmatmul.mubr.f32.gmra.mrb[0].mxu0 %v5273
    %v5275 = vpop.f32.mrb[0].mxu0
    %v5276 = vadd.f32 %v4647, %v5275
    %v5277 = vpop.f32.mrb[0].mxu0
    %v5278 = vadd.f32 %v4649, %v5277
    %v5279 = vand.u32 %v2558, 4294901760
    %5280 = vmatprep.mubr.f32.mxu0 %v5279
    %v5281 = vand.u32 %v2557, 4294901760
    %5282 = vmatmul.mubr.f32.gmra.mrb[0].mxu0 %v5281
    %v5283 = vpop.f32.mrb[0].mxu0
    %v5284 = vadd.f32 %v4659, %v5283
    %v5285 = vpop.f32.mrb[0].mxu0
    %v5286 = vadd.f32 %v4661, %v5285
    %v5287 = vand.u32 %v2560, 4294901760
    %5288 = vmatprep.mubr.f32.mxu0 %v5287
    %v5289 = vand.u32 %v2559, 4294901760
    %5290 = vmatmul.mubr.f32.gmra.mrb[0].mxu0 %v5289
    %v5291 = vpop.f32.mrb[0].mxu0
    %v5292 = vadd.f32 %v4671, %v5291
    %v5293 = vpop.f32.mrb[0].mxu0
    %v5294 = vadd.f32 %v4673, %v5293
    %v5295 = vand.u32 %v2562, 4294901760
    %5296 = vmatprep.mubr.f32.mxu0 %v5295
    %v5297 = vand.u32 %v2561, 4294901760
    %5298 = vmatmul.mubr.f32.gmra.mrb[0].mxu0 %v5297
    %v5299 = vpop.f32.mrb[0].mxu0
    %v5300 = vadd.f32 %v4683, %v5299
    %v5301 = vpop.f32.mrb[0].mxu0
    %v5302 = vadd.f32 %v4685, %v5301
    %v5303 = vand.u32 %v2564, 4294901760
    %5304 = vmatprep.mubr.f32.mxu0 %v5303
    %v5305 = vand.u32 %v2563, 4294901760
    %5306 = vmatmul.mubr.f32.gmra.mrb[0].mxu0 %v5305
    %v5307 = vpop.f32.mrb[0].mxu0
    %v5308 = vadd.f32 %v4695, %v5307
    %v5309 = vpop.f32.mrb[0].mxu0
    %v5310 = vadd.f32 %v4697, %v5309
    %v5311 = vand.u32 %v2566, 4294901760
    %5312 = vmatprep.mubr.f32.mxu0 %v5311
    %v5313 = vand.u32 %v2565, 4294901760
    %5314 = vmatmul.mubr.f32.gmra.mrb[0].mxu0 %v5313
    %v5315 = vpop.f32.mrb[0].mxu0
    %v5316 = vadd.f32 %v4707, %v5315
    %v5317 = vpop.f32.mrb[0].mxu0
    %v5318 = vadd.f32 %v4709, %v5317
    %v5319 = vand.u32 %v2568, 4294901760
    %5320 = vmatprep.mubr.f32.mxu0 %v5319
    %v5321 = vand.u32 %v2567, 4294901760
    %5322 = vmatmul.mubr.f32.gmra.mrb[0].mxu0 %v5321
    %v5323 = vpop.f32.mrb[0].mxu0
    %v5324 = vadd.f32 %v4719, %v5323
    %v5325 = vpop.f32.mrb[0].mxu0
    %v5326 = vadd.f32 %v4721, %v5325
    %v5327 = vand.u32 %v2570, 4294901760
    %5328 = vmatprep.mubr.f32.mxu0 %v5327
    %v5329 = vand.u32 %v2569, 4294901760
    %5330 = vmatmul.mubr.f32.gmra.mrb[0].mxu0 %v5329
    %v5331 = vpop.f32.mrb[0].mxu0
    %v5332 = vadd.f32 %v4731, %v5331
    %v5333 = vpop.f32.mrb[0].mxu0
    %v5334 = vadd.f32 %v4733, %v5333
    %v5335 = vand.u32 %v2572, 4294901760
    %5336 = vmatprep.mubr.f32.mxu0 %v5335
    %v5337 = vand.u32 %v2571, 4294901760
    %5338 = vmatmul.mubr.f32.gmra.mrb[0].mxu0 %v5337
    %v5339 = vpop.f32.mrb[0].mxu0
    %v5340 = vadd.f32 %v4743, %v5339
    %v5341 = vpop.f32.mrb[0].mxu0
    %v5342 = vadd.f32 %v4745, %v5341
    %v5343 = vand.u32 %v2574, 4294901760
    %5344 = vmatprep.mubr.f32.mxu0 %v5343
    %v5345 = vand.u32 %v2573, 4294901760
    %5346 = vmatmul.mubr.f32.gmra.mrb[0].mxu0 %v5345
    %v5347 = vpop.f32.mrb[0].mxu0
    %v5348 = vadd.f32 %v4755, %v5347
    %v5349 = vpop.f32.mrb[0].mxu0
    %v5350 = vadd.f32 %v4757, %v5349
    %v5351 = vand.u32 %v2576, 4294901760
    %5352 = vmatprep.mubr.f32.mxu0 %v5351
    %v5353 = vand.u32 %v2575, 4294901760
    %5354 = vmatmul.mubr.f32.gmra.mrb[0].mxu0 %v5353
    %v5355 = vpop.f32.mrb[0].mxu0
    %v5356 = vadd.f32 %v4767, %v5355
    %v5357 = vpop.f32.mrb[0].mxu0
    %v5358 = vadd.f32 %v4769, %v5357
    %v5359 = vand.u32 %v2578, 4294901760
    %5360 = vmatprep.mubr.f32.mxu0 %v5359
    %v5361 = vand.u32 %v2577, 4294901760
    %5362 = vmatmul.mubr.f32.gmra.mrb[0].mxu0 %v5361
    %v5363 = vpop.f32.mrb[0].mxu0
    %v5364 = vadd.f32 %v4779, %v5363
    %v5365 = vpop.f32.mrb[0].mxu0
    %v5366 = vadd.f32 %v4781, %v5365
    %v5367 = vand.u32 %v2580, 4294901760
    %5368 = vmatprep.mubr.f32.mxu0 %v5367
    %v5369 = vand.u32 %v2579, 4294901760
    %5370 = vmatmul.mubr.f32.gmra.mrb[0].mxu0 %v5369
    %v5371 = vpop.f32.mrb[0].mxu0
    %v5372 = vadd.f32 %v4791, %v5371
    %v5373 = vpop.f32.mrb[0].mxu0
    %v5374 = vadd.f32 %v4793, %v5373
    %v5375 = vand.u32 %v2582, 4294901760
    %5376 = vmatprep.mubr.f32.mxu0 %v5375
    %v5377 = vand.u32 %v2581, 4294901760
    %5378 = vmatmul.mubr.f32.gmra.mrb[0].mxu0 %v5377
    %v5379 = vpop.f32.mrb[0].mxu0
    %v5380 = vadd.f32 %v4803, %v5379
    %v5381 = vpop.f32.mrb[0].mxu0
    %v5382 = vadd.f32 %v4805, %v5381
    %v5383 = vand.u32 %v2584, 4294901760
    %5384 = vmatprep.mubr.f32.mxu0 %v5383
    %v5385 = vand.u32 %v2583, 4294901760
    %5386 = vmatmul.mubr.f32.gmra.mrb[0].mxu0 %v5385
    %v5387 = vpop.f32.mrb[0].mxu0
    %v5388 = vadd.f32 %v4815, %v5387
    %v5389 = vpop.f32.mrb[0].mxu0
    %v5390 = vadd.f32 %v4817, %v5389
    %v5391 = vand.u32 %v2586, 4294901760
    %5392 = vmatprep.mubr.f32.mxu0 %v5391
    %v5393 = vand.u32 %v2585, 4294901760
    %5394 = vmatmul.mubr.f32.gmra.mrb[0].mxu0 %v5393
    %v5395 = vpop.f32.mrb[0].mxu0
    %v5396 = vadd.f32 %v4827, %v5395
    %v5397 = vpop.f32.mrb[0].mxu0
    %v5398 = vadd.f32 %v4829, %v5397
    %v5399 = vand.u32 %v2588, 4294901760
    %5400 = vmatprep.mubr.f32.mxu0 %v5399
    %v5401 = vand.u32 %v2587, 4294901760
    %5402 = vmatmul.mubr.f32.gmra.mrb[0].mxu0 %v5401
    %v5403 = vpop.f32.mrb[0].mxu0
    %v5404 = vadd.f32 %v4839, %v5403
    %v5405 = vpop.f32.mrb[0].mxu0
    %v5406 = vadd.f32 %v4841, %v5405
    %v5407 = vand.u32 %v2590, 4294901760
    %5408 = vmatprep.mubr.f32.mxu0 %v5407
    %v5409 = vand.u32 %v2589, 4294901760
    %5410 = vmatmul.mubr.f32.gmra.mrb[0].mxu0 %v5409
    %v5411 = vpop.f32.mrb[0].mxu0
    %v5412 = vadd.f32 %v4851, %v5411
    %v5413 = vpop.f32.mrb[0].mxu0
    %v5414 = vadd.f32 %v4853, %v5413
    %v5415 = vand.u32 %v2592, 4294901760
    %5416 = vmatprep.mubr.f32.mxu0 %v5415
    %v5417 = vand.u32 %v2591, 4294901760
    %5418 = vmatmul.mubr.f32.gmra.mrb[0].mxu0 %v5417
    %v5419 = vpop.f32.mrb[0].mxu0
    %v5420 = vadd.f32 %v4863, %v5419
    %v5421 = vpop.f32.mrb[0].mxu0
    %v5422 = vadd.f32 %v4865, %v5421
    %v5423 = vand.u32 %v2594, 4294901760
    %5424 = vmatprep.mubr.f32.mxu0 %v5423
    %v5425 = vand.u32 %v2593, 4294901760
    %5426 = vmatmul.mubr.f32.gmra.mrb[0].mxu0 %v5425
    %v5427 = vpop.f32.mrb[0].mxu0
    %v5428 = vadd.f32 %v4875, %v5427
    %v5429 = vpop.f32.mrb[0].mxu0
    %v5430 = vadd.f32 %v4877, %v5429
    %v5431 = vand.u32 %v2596, 4294901760
    %5432 = vmatprep.mubr.f32.mxu0 %v5431
    %v5433 = vand.u32 %v2595, 4294901760
    %5434 = vmatmul.mubr.f32.gmra.mrb[0].mxu0 %v5433
    %v5435 = vpop.f32.mrb[0].mxu0
    %v5436 = vadd.f32 %v4887, %v5435
    %v5437 = vpop.f32.mrb[0].mxu0
    %v5438 = vadd.f32 %v4889, %v5437
    %v5439 = vand.u32 %v2598, 4294901760
    %5440 = vmatprep.mubr.f32.mxu0 %v5439
    %v5441 = vand.u32 %v2597, 4294901760
    %5442 = vmatmul.mubr.f32.gmra.mrb[0].mxu0 %v5441
    %v5443 = vpop.f32.mrb[0].mxu0
    %v5444 = vadd.f32 %v4899, %v5443
    %v5445 = vpop.f32.mrb[0].mxu0
    %v5446 = vadd.f32 %v4901, %v5445
    %v5447 = vand.u32 %v2600, 4294901760
    %5448 = vmatprep.mubr.f32.mxu0 %v5447
    %v5449 = vand.u32 %v2599, 4294901760
    %5450 = vmatmul.mubr.f32.gmra.mrb[0].mxu0 %v5449
    %v5451 = vpop.f32.mrb[0].mxu0
    %v5452 = vadd.f32 %v4911, %v5451
    %v5453 = vpop.f32.mrb[0].mxu0
    %v5454 = vadd.f32 %v4913, %v5453
    %v5455 = vand.u32 %v2602, 4294901760
    %5456 = vmatprep.mubr.f32.mxu0 %v5455
    %v5457 = vand.u32 %v2601, 4294901760
    %5458 = vmatmul.mubr.f32.gmra.mrb[0].mxu0 %v5457
    %v5459 = vpop.f32.mrb[0].mxu0
    %v5460 = vadd.f32 %v4923, %v5459
    %v5461 = vpop.f32.mrb[0].mxu0
    %v5462 = vadd.f32 %v4925, %v5461
    %v5463 = vand.u32 %v2604, 4294901760
    %5464 = vmatprep.mubr.f32.mxu0 %v5463
    %v5465 = vand.u32 %v2603, 4294901760
    %5466 = vmatmul.mubr.f32.gmra.mrb[0].mxu0 %v5465
    %v5467 = vpop.f32.mrb[0].mxu0
    %v5468 = vadd.f32 %v4935, %v5467
    %v5469 = vpop.f32.mrb[0].mxu0
    %v5470 = vadd.f32 %v4937, %v5469
    %v5471 = vand.u32 %v2606, 4294901760
    %5472 = vmatprep.mubr.f32.mxu0 %v5471
    %v5473 = vand.u32 %v2605, 4294901760
    %5474 = vmatmul.mubr.f32.gmra.mrb[0].mxu0 %v5473
    %v5475 = vpop.f32.mrb[0].mxu0
    %v5476 = vadd.f32 %v4947, %v5475
    %v5477 = vpop.f32.mrb[0].mxu0
    %v5478 = vadd.f32 %v4949, %v5477
    %v5479 = vand.u32 %v2608, 4294901760
    %5480 = vmatprep.mubr.f32.mxu0 %v5479
    %v5481 = vand.u32 %v2607, 4294901760
    %5482 = vmatmul.mubr.f32.gmra.mrb[0].mxu0 %v5481
    %v5483 = vpop.f32.mrb[0].mxu0
    %v5484 = vadd.f32 %v4959, %v5483
    %v5485 = vpop.f32.mrb[0].mxu0
    %v5486 = vadd.f32 %v4961, %v5485
    %v5487 = vand.u32 %v2610, 4294901760
    %5488 = vmatprep.mubr.f32.mxu0 %v5487
    %v5489 = vand.u32 %v2609, 4294901760
    %5490 = vmatmul.mubr.f32.gmra.mrb[0].mxu0 %v5489
    %v5491 = vpop.f32.mrb[0].mxu0
    %v5492 = vadd.f32 %v4971, %v5491
    %v5493 = vpop.f32.mrb[0].mxu0
    %v5494 = vadd.f32 %v4973, %v5493
    %v5495 = vand.u32 %v2612, 4294901760
    %5496 = vmatprep.mubr.f32.mxu0 %v5495
    %v5497 = vand.u32 %v2611, 4294901760
    %5498 = vmatmul.mubr.f32.gmra.mrb[0].mxu0 %v5497
    %v5499 = vpop.f32.mrb[0].mxu0
    %v5500 = vadd.f32 %v4983, %v5499
    %v5501 = vpop.f32.mrb[0].mxu0
    %v5502 = vadd.f32 %v4985, %v5501
    %v5503 = vand.u32 %v2614, 4294901760
    %5504 = vmatprep.mubr.f32.mxu0 %v5503
    %v5505 = vand.u32 %v2613, 4294901760
    %5506 = vmatmul.mubr.f32.gmra.mrb[0].mxu0 %v5505
    %v5507 = vpop.f32.mrb[0].mxu0
    %v5508 = vadd.f32 %v4995, %v5507
    %v5509 = vpop.f32.mrb[0].mxu0
    %v5510 = vadd.f32 %v4997, %v5509
    %5511 = vdwg.mxu0
    %v5512 = vand.u32 %v2616, 4294901760
    %5513 = vmatprep.subr.mxu0 %v5512
    %v5514 = vand.u32 %v2615, 4294901760
    %5515 = vmatpush1.msra.mxu0 %v5514
    %v5516 = vand.u32 %v2618, 4294901760
    %5517 = vmatprep.subr.mxu0 %v5516
    %v5518 = vand.u32 %v2617, 4294901760
    %5519 = vmatpush1.msra.mxu0 %v5518
    %v5520 = vand.u32 %v2620, 4294901760
    %5521 = vmatprep.subr.mxu0 %v5520
    %v5522 = vand.u32 %v2619, 4294901760
    %5523 = vmatpush1.msra.mxu0 %v5522
    %v5524 = vand.u32 %v2622, 4294901760
    %5525 = vmatprep.subr.mxu0 %v5524
    %v5526 = vand.u32 %v2621, 4294901760
    %5527 = vmatpush1.msra.mxu0 %v5526
    %v5528 = vand.u32 %v2624, 4294901760
    %5529 = vmatprep.subr.mxu0 %v5528
    %v5530 = vand.u32 %v2623, 4294901760
    %5531 = vmatpush1.msra.mxu0 %v5530
    %v5532 = vand.u32 %v2626, 4294901760
    %5533 = vmatprep.subr.mxu0 %v5532
    %v5534 = vand.u32 %v2625, 4294901760
    %5535 = vmatpush1.msra.mxu0 %v5534
    %v5536 = vand.u32 %v2628, 4294901760
    %5537 = vmatprep.subr.mxu0 %v5536
    %v5538 = vand.u32 %v2627, 4294901760
    %5539 = vmatpush1.msra.mxu0 %v5538
    %v5540 = vand.u32 %v2630, 4294901760
    %5541 = vmatprep.subr.mxu0 %v5540
    %v5542 = vand.u32 %v2629, 4294901760
    %5543 = vmatpush1.msra.mxu0 %v5542
    %v5544 = vand.u32 %v2632, 4294901760
    %5545 = vmatprep.subr.mxu0 %v5544
    %v5546 = vand.u32 %v2631, 4294901760
    %5547 = vmatpush1.msra.mxu0 %v5546
    %v5548 = vand.u32 %v2634, 4294901760
    %5549 = vmatprep.subr.mxu0 %v5548
    %v5550 = vand.u32 %v2633, 4294901760
    %5551 = vmatpush1.msra.mxu0 %v5550
    %v5552 = vand.u32 %v2636, 4294901760
    %5553 = vmatprep.subr.mxu0 %v5552
    %v5554 = vand.u32 %v2635, 4294901760
    %5555 = vmatpush1.msra.mxu0 %v5554
    %v5556 = vand.u32 %v2638, 4294901760
    %5557 = vmatprep.subr.mxu0 %v5556
    %v5558 = vand.u32 %v2637, 4294901760
    %5559 = vmatpush1.msra.mxu0 %v5558
    %v5560 = vand.u32 %v2640, 4294901760
    %5561 = vmatprep.subr.mxu0 %v5560
    %v5562 = vand.u32 %v2639, 4294901760
    %5563 = vmatpush1.msra.mxu0 %v5562
    %v5564 = vand.u32 %v2642, 4294901760
    %5565 = vmatprep.subr.mxu0 %v5564
    %v5566 = vand.u32 %v2641, 4294901760
    %5567 = vmatpush1.msra.mxu0 %v5566
    %v5568 = vand.u32 %v2644, 4294901760
    %5569 = vmatprep.subr.mxu0 %v5568
    %v5570 = vand.u32 %v2643, 4294901760
    %5571 = vmatpush1.msra.mxu0 %v5570
    %v5572 = vand.u32 %v2646, 4294901760
    %5573 = vmatprep.subr.mxu0 %v5572
    %v5574 = vand.u32 %v2645, 4294901760
    %5575 = vmatpush1.msra.mxu0 %v5574
    %v5576 = vand.u32 %v2648, 4294901760
    %5577 = vmatprep.subr.mxu0 %v5576
    %v5578 = vand.u32 %v2647, 4294901760
    %5579 = vmatpush1.msra.mxu0 %v5578
    %v5580 = vand.u32 %v2650, 4294901760
    %5581 = vmatprep.subr.mxu0 %v5580
    %v5582 = vand.u32 %v2649, 4294901760
    %5583 = vmatpush1.msra.mxu0 %v5582
    %v5584 = vand.u32 %v2652, 4294901760
    %5585 = vmatprep.subr.mxu0 %v5584
    %v5586 = vand.u32 %v2651, 4294901760
    %5587 = vmatpush1.msra.mxu0 %v5586
    %v5588 = vand.u32 %v2654, 4294901760
    %5589 = vmatprep.subr.mxu0 %v5588
    %v5590 = vand.u32 %v2653, 4294901760
    %5591 = vmatpush1.msra.mxu0 %v5590
    %v5592 = vand.u32 %v2656, 4294901760
    %5593 = vmatprep.subr.mxu0 %v5592
    %v5594 = vand.u32 %v2655, 4294901760
    %5595 = vmatpush1.msra.mxu0 %v5594
    %v5596 = vand.u32 %v2658, 4294901760
    %5597 = vmatprep.subr.mxu0 %v5596
    %v5598 = vand.u32 %v2657, 4294901760
    %5599 = vmatpush1.msra.mxu0 %v5598
    %v5600 = vand.u32 %v2660, 4294901760
    %5601 = vmatprep.subr.mxu0 %v5600
    %v5602 = vand.u32 %v2659, 4294901760
    %5603 = vmatpush1.msra.mxu0 %v5602
    %v5604 = vand.u32 %v2662, 4294901760
    %5605 = vmatprep.subr.mxu0 %v5604
    %v5606 = vand.u32 %v2661, 4294901760
    %5607 = vmatpush1.msra.mxu0 %v5606
    %v5608 = vand.u32 %v2664, 4294901760
    %5609 = vmatprep.subr.mxu0 %v5608
    %v5610 = vand.u32 %v2663, 4294901760
    %5611 = vmatpush1.msra.mxu0 %v5610
    %v5612 = vand.u32 %v2666, 4294901760
    %5613 = vmatprep.subr.mxu0 %v5612
    %v5614 = vand.u32 %v2665, 4294901760
    %5615 = vmatpush1.msra.mxu0 %v5614
    %v5616 = vand.u32 %v2668, 4294901760
    %5617 = vmatprep.subr.mxu0 %v5616
    %v5618 = vand.u32 %v2667, 4294901760
    %5619 = vmatpush1.msra.mxu0 %v5618
    %v5620 = vand.u32 %v2670, 4294901760
    %5621 = vmatprep.subr.mxu0 %v5620
    %v5622 = vand.u32 %v2669, 4294901760
    %5623 = vmatpush1.msra.mxu0 %v5622
    %v5624 = vand.u32 %v2672, 4294901760
    %5625 = vmatprep.subr.mxu0 %v5624
    %v5626 = vand.u32 %v2671, 4294901760
    %5627 = vmatpush1.msra.mxu0 %v5626
    %v5628 = vand.u32 %v2674, 4294901760
    %5629 = vmatprep.subr.mxu0 %v5628
    %v5630 = vand.u32 %v2673, 4294901760
    %5631 = vmatpush1.msra.mxu0 %v5630
    %v5632 = vand.u32 %v2676, 4294901760
    %5633 = vmatprep.subr.mxu0 %v5632
    %v5634 = vand.u32 %v2675, 4294901760
    %5635 = vmatpush1.msra.mxu0 %v5634
    %v5636 = vand.u32 %v2678, 4294901760
    %5637 = vmatprep.subr.mxu0 %v5636
    %v5638 = vand.u32 %v2677, 4294901760
    %5639 = vmatpush1.msra.mxu0 %v5638
    %v5640 = vand.u32 %v2552, 4294901760
    %5641 = vmatprep.mubr.f32.mxu0 %v5640
    %v5642 = vand.u32 %v2551, 4294901760
    %5643 = vmatmul.mubr.f32.gmra.mrb[0].mxu0 %v5642
    %v5644 = vpop.f32.mrb[0].mxu0
    %v5645 = vadd.f32 %v5260, %v5644
    %v5646 = vpop.f32.mrb[0].mxu0
    %v5647 = vadd.f32 %v5262, %v5646
    %v5648 = vand.u32 %v2554, 4294901760
    %5649 = vmatprep.mubr.f32.mxu0 %v5648
    %v5650 = vand.u32 %v2553, 4294901760
    %5651 = vmatmul.mubr.f32.gmra.mrb[0].mxu0 %v5650
    %v5652 = vpop.f32.mrb[0].mxu0
    %v5653 = vadd.f32 %v5268, %v5652
    %v5654 = vpop.f32.mrb[0].mxu0
    %v5655 = vadd.f32 %v5270, %v5654
    %v5656 = vand.u32 %v2556, 4294901760
    %5657 = vmatprep.mubr.f32.mxu0 %v5656
    %v5658 = vand.u32 %v2555, 4294901760
    %5659 = vmatmul.mubr.f32.gmra.mrb[0].mxu0 %v5658
    %v5660 = vpop.f32.mrb[0].mxu0
    %v5661 = vadd.f32 %v5276, %v5660
    %v5662 = vpop.f32.mrb[0].mxu0
    %v5663 = vadd.f32 %v5278, %v5662
    %v5664 = vand.u32 %v2558, 4294901760
    %5665 = vmatprep.mubr.f32.mxu0 %v5664
    %v5666 = vand.u32 %v2557, 4294901760
    %5667 = vmatmul.mubr.f32.gmra.mrb[0].mxu0 %v5666
    %v5668 = vpop.f32.mrb[0].mxu0
    %v5669 = vadd.f32 %v5284, %v5668
    %v5670 = vpop.f32.mrb[0].mxu0
    %v5671 = vadd.f32 %v5286, %v5670
    %v5672 = vand.u32 %v2560, 4294901760
    %5673 = vmatprep.mubr.f32.mxu0 %v5672
    %v5674 = vand.u32 %v2559, 4294901760
    %5675 = vmatmul.mubr.f32.gmra.mrb[0].mxu0 %v5674
    %v5676 = vpop.f32.mrb[0].mxu0
    %v5677 = vadd.f32 %v5292, %v5676
    %v5678 = vpop.f32.mrb[0].mxu0
    %v5679 = vadd.f32 %v5294, %v5678
    %v5680 = vand.u32 %v2562, 4294901760
    %5681 = vmatprep.mubr.f32.mxu0 %v5680
    %v5682 = vand.u32 %v2561, 4294901760
    %5683 = vmatmul.mubr.f32.gmra.mrb[0].mxu0 %v5682
    %v5684 = vpop.f32.mrb[0].mxu0
    %v5685 = vadd.f32 %v5300, %v5684
    %v5686 = vpop.f32.mrb[0].mxu0
    %v5687 = vadd.f32 %v5302, %v5686
    %v5688 = vand.u32 %v2564, 4294901760
    %5689 = vmatprep.mubr.f32.mxu0 %v5688
    %v5690 = vand.u32 %v2563, 4294901760
    %5691 = vmatmul.mubr.f32.gmra.mrb[0].mxu0 %v5690
    %v5692 = vpop.f32.mrb[0].mxu0
    %v5693 = vadd.f32 %v5308, %v5692
    %v5694 = vpop.f32.mrb[0].mxu0
    %v5695 = vadd.f32 %v5310, %v5694
    %v5696 = vand.u32 %v2566, 4294901760
    %5697 = vmatprep.mubr.f32.mxu0 %v5696
    %v5698 = vand.u32 %v2565, 4294901760
    %5699 = vmatmul.mubr.f32.gmra.mrb[0].mxu0 %v5698
    %v5700 = vpop.f32.mrb[0].mxu0
    %v5701 = vadd.f32 %v5316, %v5700
    %v5702 = vpop.f32.mrb[0].mxu0
    %v5703 = vadd.f32 %v5318, %v5702
    %v5704 = vand.u32 %v2568, 4294901760
    %5705 = vmatprep.mubr.f32.mxu0 %v5704
    %v5706 = vand.u32 %v2567, 4294901760
    %5707 = vmatmul.mubr.f32.gmra.mrb[0].mxu0 %v5706
    %v5708 = vpop.f32.mrb[0].mxu0
    %v5709 = vadd.f32 %v5324, %v5708
    %v5710 = vpop.f32.mrb[0].mxu0
    %v5711 = vadd.f32 %v5326, %v5710
    %v5712 = vand.u32 %v2570, 4294901760
    %5713 = vmatprep.mubr.f32.mxu0 %v5712
    %v5714 = vand.u32 %v2569, 4294901760
    %5715 = vmatmul.mubr.f32.gmra.mrb[0].mxu0 %v5714
    %v5716 = vpop.f32.mrb[0].mxu0
    %v5717 = vadd.f32 %v5332, %v5716
    %v5718 = vpop.f32.mrb[0].mxu0
    %v5719 = vadd.f32 %v5334, %v5718
    %v5720 = vand.u32 %v2572, 4294901760
    %5721 = vmatprep.mubr.f32.mxu0 %v5720
    %v5722 = vand.u32 %v2571, 4294901760
    %5723 = vmatmul.mubr.f32.gmra.mrb[0].mxu0 %v5722
    %v5724 = vpop.f32.mrb[0].mxu0
    %v5725 = vadd.f32 %v5340, %v5724
    %v5726 = vpop.f32.mrb[0].mxu0
    %v5727 = vadd.f32 %v5342, %v5726
    %v5728 = vand.u32 %v2574, 4294901760
    %5729 = vmatprep.mubr.f32.mxu0 %v5728
    %v5730 = vand.u32 %v2573, 4294901760
    %5731 = vmatmul.mubr.f32.gmra.mrb[0].mxu0 %v5730
    %v5732 = vpop.f32.mrb[0].mxu0
    %v5733 = vadd.f32 %v5348, %v5732
    %v5734 = vpop.f32.mrb[0].mxu0
    %v5735 = vadd.f32 %v5350, %v5734
    %v5736 = vand.u32 %v2576, 4294901760
    %5737 = vmatprep.mubr.f32.mxu0 %v5736
    %v5738 = vand.u32 %v2575, 4294901760
    %5739 = vmatmul.mubr.f32.gmra.mrb[0].mxu0 %v5738
    %v5740 = vpop.f32.mrb[0].mxu0
    %v5741 = vadd.f32 %v5356, %v5740
    %v5742 = vpop.f32.mrb[0].mxu0
    %v5743 = vadd.f32 %v5358, %v5742
    %v5744 = vand.u32 %v2578, 4294901760
    %5745 = vmatprep.mubr.f32.mxu0 %v5744
    %v5746 = vand.u32 %v2577, 4294901760
    %5747 = vmatmul.mubr.f32.gmra.mrb[0].mxu0 %v5746
    %v5748 = vpop.f32.mrb[0].mxu0
    %v5749 = vadd.f32 %v5364, %v5748
    %v5750 = vpop.f32.mrb[0].mxu0
    %v5751 = vadd.f32 %v5366, %v5750
    %v5752 = vand.u32 %v2580, 4294901760
    %5753 = vmatprep.mubr.f32.mxu0 %v5752
    %v5754 = vand.u32 %v2579, 4294901760
    %5755 = vmatmul.mubr.f32.gmra.mrb[0].mxu0 %v5754
    %v5756 = vpop.f32.mrb[0].mxu0
    %v5757 = vadd.f32 %v5372, %v5756
    %v5758 = vpop.f32.mrb[0].mxu0
    %v5759 = vadd.f32 %v5374, %v5758
    %v5760 = vand.u32 %v2582, 4294901760
    %5761 = vmatprep.mubr.f32.mxu0 %v5760
    %v5762 = vand.u32 %v2581, 4294901760
    %5763 = vmatmul.mubr.f32.gmra.mrb[0].mxu0 %v5762
    %v5764 = vpop.f32.mrb[0].mxu0
    %v5765 = vadd.f32 %v5380, %v5764
    %v5766 = vpop.f32.mrb[0].mxu0
    %v5767 = vadd.f32 %v5382, %v5766
    %v5768 = vand.u32 %v2584, 4294901760
    %5769 = vmatprep.mubr.f32.mxu0 %v5768
    %v5770 = vand.u32 %v2583, 4294901760
    %5771 = vmatmul.mubr.f32.gmra.mrb[0].mxu0 %v5770
    %v5772 = vpop.f32.mrb[0].mxu0
    %v5773 = vadd.f32 %v5388, %v5772
    %v5774 = vpop.f32.mrb[0].mxu0
    %v5775 = vadd.f32 %v5390, %v5774
    %v5776 = vand.u32 %v2586, 4294901760
    %5777 = vmatprep.mubr.f32.mxu0 %v5776
    %v5778 = vand.u32 %v2585, 4294901760
    %5779 = vmatmul.mubr.f32.gmra.mrb[0].mxu0 %v5778
    %v5780 = vpop.f32.mrb[0].mxu0
    %v5781 = vadd.f32 %v5396, %v5780
    %v5782 = vpop.f32.mrb[0].mxu0
    %v5783 = vadd.f32 %v5398, %v5782
    %v5784 = vand.u32 %v2588, 4294901760
    %5785 = vmatprep.mubr.f32.mxu0 %v5784
    %v5786 = vand.u32 %v2587, 4294901760
    %5787 = vmatmul.mubr.f32.gmra.mrb[0].mxu0 %v5786
    %v5788 = vpop.f32.mrb[0].mxu0
    %v5789 = vadd.f32 %v5404, %v5788
    %v5790 = vpop.f32.mrb[0].mxu0
    %v5791 = vadd.f32 %v5406, %v5790
    %v5792 = vand.u32 %v2590, 4294901760
    %5793 = vmatprep.mubr.f32.mxu0 %v5792
    %v5794 = vand.u32 %v2589, 4294901760
    %5795 = vmatmul.mubr.f32.gmra.mrb[0].mxu0 %v5794
    %v5796 = vpop.f32.mrb[0].mxu0
    %v5797 = vadd.f32 %v5412, %v5796
    %v5798 = vpop.f32.mrb[0].mxu0
    %v5799 = vadd.f32 %v5414, %v5798
    %v5800 = vand.u32 %v2592, 4294901760
    %5801 = vmatprep.mubr.f32.mxu0 %v5800
    %v5802 = vand.u32 %v2591, 4294901760
    %5803 = vmatmul.mubr.f32.gmra.mrb[0].mxu0 %v5802
    %v5804 = vpop.f32.mrb[0].mxu0
    %v5805 = vadd.f32 %v5420, %v5804
    %v5806 = vpop.f32.mrb[0].mxu0
    %v5807 = vadd.f32 %v5422, %v5806
    %v5808 = vand.u32 %v2594, 4294901760
    %5809 = vmatprep.mubr.f32.mxu0 %v5808
    %v5810 = vand.u32 %v2593, 4294901760
    %5811 = vmatmul.mubr.f32.gmra.mrb[0].mxu0 %v5810
    %v5812 = vpop.f32.mrb[0].mxu0
    %v5813 = vadd.f32 %v5428, %v5812
    %v5814 = vpop.f32.mrb[0].mxu0
    %v5815 = vadd.f32 %v5430, %v5814
    %v5816 = vand.u32 %v2596, 4294901760
    %5817 = vmatprep.mubr.f32.mxu0 %v5816
    %v5818 = vand.u32 %v2595, 4294901760
    %5819 = vmatmul.mubr.f32.gmra.mrb[0].mxu0 %v5818
    %v5820 = vpop.f32.mrb[0].mxu0
    %v5821 = vadd.f32 %v5436, %v5820
    %v5822 = vpop.f32.mrb[0].mxu0
    %v5823 = vadd.f32 %v5438, %v5822
    %v5824 = vand.u32 %v2598, 4294901760
    %5825 = vmatprep.mubr.f32.mxu0 %v5824
    %v5826 = vand.u32 %v2597, 4294901760
    %5827 = vmatmul.mubr.f32.gmra.mrb[0].mxu0 %v5826
    %v5828 = vpop.f32.mrb[0].mxu0
    %v5829 = vadd.f32 %v5444, %v5828
    %v5830 = vpop.f32.mrb[0].mxu0
    %v5831 = vadd.f32 %v5446, %v5830
    %v5832 = vand.u32 %v2600, 4294901760
    %5833 = vmatprep.mubr.f32.mxu0 %v5832
    %v5834 = vand.u32 %v2599, 4294901760
    %5835 = vmatmul.mubr.f32.gmra.mrb[0].mxu0 %v5834
    %v5836 = vpop.f32.mrb[0].mxu0
    %v5837 = vadd.f32 %v5452, %v5836
    %v5838 = vpop.f32.mrb[0].mxu0
    %v5839 = vadd.f32 %v5454, %v5838
    %v5840 = vand.u32 %v2602, 4294901760
    %5841 = vmatprep.mubr.f32.mxu0 %v5840
    %v5842 = vand.u32 %v2601, 4294901760
    %5843 = vmatmul.mubr.f32.gmra.mrb[0].mxu0 %v5842
    %v5844 = vpop.f32.mrb[0].mxu0
    %v5845 = vadd.f32 %v5460, %v5844
    %v5846 = vpop.f32.mrb[0].mxu0
    %v5847 = vadd.f32 %v5462, %v5846
    %v5848 = vand.u32 %v2604, 4294901760
    %5849 = vmatprep.mubr.f32.mxu0 %v5848
    %v5850 = vand.u32 %v2603, 4294901760
    %5851 = vmatmul.mubr.f32.gmra.mrb[0].mxu0 %v5850
    %v5852 = vpop.f32.mrb[0].mxu0
    %v5853 = vadd.f32 %v5468, %v5852
    %v5854 = vpop.f32.mrb[0].mxu0
    %v5855 = vadd.f32 %v5470, %v5854
    %v5856 = vand.u32 %v2606, 4294901760
    %5857 = vmatprep.mubr.f32.mxu0 %v5856
    %v5858 = vand.u32 %v2605, 4294901760
    %5859 = vmatmul.mubr.f32.gmra.mrb[0].mxu0 %v5858
    %v5860 = vpop.f32.mrb[0].mxu0
    %v5861 = vadd.f32 %v5476, %v5860
    %v5862 = vpop.f32.mrb[0].mxu0
    %v5863 = vadd.f32 %v5478, %v5862
    %v5864 = vand.u32 %v2608, 4294901760
    %5865 = vmatprep.mubr.f32.mxu0 %v5864
    %v5866 = vand.u32 %v2607, 4294901760
    %5867 = vmatmul.mubr.f32.gmra.mrb[0].mxu0 %v5866
    %v5868 = vpop.f32.mrb[0].mxu0
    %v5869 = vadd.f32 %v5484, %v5868
    %v5870 = vpop.f32.mrb[0].mxu0
    %v5871 = vadd.f32 %v5486, %v5870
    %v5872 = vand.u32 %v2610, 4294901760
    %5873 = vmatprep.mubr.f32.mxu0 %v5872
    %v5874 = vand.u32 %v2609, 4294901760
    %5875 = vmatmul.mubr.f32.gmra.mrb[0].mxu0 %v5874
    %v5876 = vpop.f32.mrb[0].mxu0
    %v5877 = vadd.f32 %v5492, %v5876
    %v5878 = vpop.f32.mrb[0].mxu0
    %v5879 = vadd.f32 %v5494, %v5878
    %v5880 = vand.u32 %v2612, 4294901760
    %5881 = vmatprep.mubr.f32.mxu0 %v5880
    %v5882 = vand.u32 %v2611, 4294901760
    %5883 = vmatmul.mubr.f32.gmra.mrb[0].mxu0 %v5882
    %v5884 = vpop.f32.mrb[0].mxu0
    %v5885 = vadd.f32 %v5500, %v5884
    %v5886 = vpop.f32.mrb[0].mxu0
    %v5887 = vadd.f32 %v5502, %v5886
    %v5888 = vand.u32 %v2614, 4294901760
    %5889 = vmatprep.mubr.f32.mxu0 %v5888
    %v5890 = vand.u32 %v2613, 4294901760
    %5891 = vmatmul.mubr.f32.gmra.mrb[0].mxu0 %v5890
    %v5892 = vpop.f32.mrb[0].mxu0
    %v5893 = vadd.f32 %v5508, %v5892
    %v5894 = vpop.f32.mrb[0].mxu0
    %v5895 = vadd.f32 %v5510, %v5894
    %5896 = vdwg.mxu0
    %v5897 = vmax.f32 %v5645, 0.0
    %v5898 = vmax.f32 %v5647, 0.0
    %v5899 = vmax.f32 %v5653, 0.0
    %v5900 = vmax.f32 %v5655, 0.0
    %v5901 = vmax.f32 %v5661, 0.0
    %v5902 = vmax.f32 %v5663, 0.0
    %v5903 = vmax.f32 %v5669, 0.0
    %v5904 = vmax.f32 %v5671, 0.0
    %v5905 = vmax.f32 %v5677, 0.0
    %v5906 = vmax.f32 %v5679, 0.0
    %v5907 = vmax.f32 %v5685, 0.0
    %v5908 = vmax.f32 %v5687, 0.0
    %v5909 = vmax.f32 %v5693, 0.0
    %v5910 = vmax.f32 %v5695, 0.0
    %v5911 = vmax.f32 %v5701, 0.0
    %v5912 = vmax.f32 %v5703, 0.0
    %v5913 = vmax.f32 %v5709, 0.0
    %v5914 = vmax.f32 %v5711, 0.0
    %v5915 = vmax.f32 %v5717, 0.0
    %v5916 = vmax.f32 %v5719, 0.0
    %v5917 = vmax.f32 %v5725, 0.0
    %v5918 = vmax.f32 %v5727, 0.0
    %v5919 = vmax.f32 %v5733, 0.0
    %v5920 = vmax.f32 %v5735, 0.0
    %v5921 = vmax.f32 %v5741, 0.0
    %v5922 = vmax.f32 %v5743, 0.0
    %v5923 = vmax.f32 %v5749, 0.0
    %v5924 = vmax.f32 %v5751, 0.0
    %v5925 = vmax.f32 %v5757, 0.0
    %v5926 = vmax.f32 %v5759, 0.0
    %v5927 = vmax.f32 %v5765, 0.0
    %v5928 = vmax.f32 %v5767, 0.0
    %v5929 = vmax.f32 %v5773, 0.0
    %v5930 = vmax.f32 %v5775, 0.0
    %v5931 = vmax.f32 %v5781, 0.0
    %v5932 = vmax.f32 %v5783, 0.0
    %v5933 = vmax.f32 %v5789, 0.0
    %v5934 = vmax.f32 %v5791, 0.0
    %v5935 = vmax.f32 %v5797, 0.0
    %v5936 = vmax.f32 %v5799, 0.0
    %v5937 = vmax.f32 %v5805, 0.0
    %v5938 = vmax.f32 %v5807, 0.0
    %v5939 = vmax.f32 %v5813, 0.0
    %v5940 = vmax.f32 %v5815, 0.0
    %v5941 = vmax.f32 %v5821, 0.0
    %v5942 = vmax.f32 %v5823, 0.0
    %v5943 = vmax.f32 %v5829, 0.0
    %v5944 = vmax.f32 %v5831, 0.0
    %v5945 = vmax.f32 %v5837, 0.0
    %v5946 = vmax.f32 %v5839, 0.0
    %v5947 = vmax.f32 %v5845, 0.0
    %v5948 = vmax.f32 %v5847, 0.0
    %v5949 = vmax.f32 %v5853, 0.0
    %v5950 = vmax.f32 %v5855, 0.0
    %v5951 = vmax.f32 %v5861, 0.0
    %v5952 = vmax.f32 %v5863, 0.0
    %v5953 = vmax.f32 %v5869, 0.0
    %v5954 = vmax.f32 %v5871, 0.0
    %v5955 = vmax.f32 %v5877, 0.0
    %v5956 = vmax.f32 %v5879, 0.0
    %v5957 = vmax.f32 %v5885, 0.0
    %v5958 = vmax.f32 %v5887, 0.0
    %v5959 = vmax.f32 %v5893, 0.0
    %v5960 = vmax.f32 %v5895, 0.0
    %v5961 = vld [vmem:[#allocation8] sm:$0xff]
    %v5962 = vld [vmem:[#allocation8 + $0x8] sm:$0xff]
    %v5963 = vld [vmem:[#allocation8 + $0x10] sm:$0xff]
    %v5964 = vld [vmem:[#allocation8 + $0x18] sm:$0xff]
    %v5965 = vld [vmem:[#allocation8 + $0x20] sm:$0xff]
    %v5966 = vld [vmem:[#allocation8 + $0x28] sm:$0xff]
    %v5967 = vld [vmem:[#allocation8 + $0x30] sm:$0xff]
    %v5968 = vld [vmem:[#allocation8 + $0x38] sm:$0xff]
    %v5969 = vld [vmem:[#allocation8 + $0x40] sm:$0xff]
    %v5970 = vld [vmem:[#allocation8 + $0x48] sm:$0xff]
    %v5971 = vld [vmem:[#allocation8 + $0x50] sm:$0xff]
    %v5972 = vld [vmem:[#allocation8 + $0x58] sm:$0xff]
    %v5973 = vld [vmem:[#allocation8 + $0x60] sm:$0xff]
    %v5974 = vld [vmem:[#allocation8 + $0x68] sm:$0xff]
    %v5975 = vld [vmem:[#allocation8 + $0x70] sm:$0xff]
    %v5976 = vld [vmem:[#allocation8 + $0x78] sm:$0xff]
    %v5977 = vld [vmem:[#allocation8 + $0x80] sm:$0xff]
    %v5978 = vld [vmem:[#allocation8 + $0x88] sm:$0xff]
    %v5979 = vld [vmem:[#allocation8 + $0x90] sm:$0xff]
    %v5980 = vld [vmem:[#allocation8 + $0x98] sm:$0xff]
    %v5981 = vld [vmem:[#allocation8 + $0xa0] sm:$0xff]
    %v5982 = vld [vmem:[#allocation8 + $0xa8] sm:$0xff]
    %v5983 = vld [vmem:[#allocation8 + $0xb0] sm:$0xff]
    %v5984 = vld [vmem:[#allocation8 + $0xb8] sm:$0xff]
    %v5985 = vld [vmem:[#allocation8 + $0xc0] sm:$0xff]
    %v5986 = vld [vmem:[#allocation8 + $0xc8] sm:$0xff]
    %v5987 = vld [vmem:[#allocation8 + $0xd0] sm:$0xff]
    %v5988 = vld [vmem:[#allocation8 + $0xd8] sm:$0xff]
    %v5989 = vld [vmem:[#allocation8 + $0xe0] sm:$0xff]
    %v5990 = vld [vmem:[#allocation8 + $0xe8] sm:$0xff]
    %v5991 = vld [vmem:[#allocation8 + $0xf0] sm:$0xff]
    %v5992 = vld [vmem:[#allocation8 + $0xf8] sm:$0xff]
    %v5993 = vld [vmem:[%s6] sm:$0x1]
    %v5995 = vlaneseq
    %v5996 = vshrl.u32 %v5995, 7
    %v5997 = vsub.s32 0, %v5996
    %v5998 = vrot.slane %v5993, %v5997
    %6000 = vmatprep.subr.mxu0 0.0
    %v6001 = vand.u32 %v5961, 4294901760
    %6002 = vmatpush1.msra.mxu0 %v6001
    %6003 = vmatprep.subr.mxu0 0.0
    %v6004 = vand.u32 %v5962, 4294901760
    %6005 = vmatpush1.msra.mxu0 %v6004
    %6006 = vmatprep.subr.mxu0 0.0
    %v6007 = vand.u32 %v5963, 4294901760
    %6008 = vmatpush1.msra.mxu0 %v6007
    %6009 = vmatprep.subr.mxu0 0.0
    %v6010 = vand.u32 %v5964, 4294901760
    %6011 = vmatpush1.msra.mxu0 %v6010
    %6012 = vmatprep.subr.mxu0 0.0
    %v6013 = vand.u32 %v5965, 4294901760
    %6014 = vmatpush1.msra.mxu0 %v6013
    %6015 = vmatprep.subr.mxu0 0.0
    %v6016 = vand.u32 %v5966, 4294901760
    %6017 = vmatpush1.msra.mxu0 %v6016
    %6018 = vmatprep.subr.mxu0 0.0
    %v6019 = vand.u32 %v5967, 4294901760
    %6020 = vmatpush1.msra.mxu0 %v6019
    %6021 = vmatprep.subr.mxu0 0.0
    %v6022 = vand.u32 %v5968, 4294901760
    %6023 = vmatpush1.msra.mxu0 %v6022
    %6024 = vmatprep.subr.mxu0 0.0
    %v6025 = vand.u32 %v5969, 4294901760
    %6026 = vmatpush1.msra.mxu0 %v6025
    %6027 = vmatprep.subr.mxu0 0.0
    %v6028 = vand.u32 %v5970, 4294901760
    %6029 = vmatpush1.msra.mxu0 %v6028
    %6030 = vmatprep.subr.mxu0 0.0
    %v6031 = vand.u32 %v5971, 4294901760
    %6032 = vmatpush1.msra.mxu0 %v6031
    %6033 = vmatprep.subr.mxu0 0.0
    %v6034 = vand.u32 %v5972, 4294901760
    %6035 = vmatpush1.msra.mxu0 %v6034
    %6036 = vmatprep.subr.mxu0 0.0
    %v6037 = vand.u32 %v5973, 4294901760
    %6038 = vmatpush1.msra.mxu0 %v6037
    %6039 = vmatprep.subr.mxu0 0.0
    %v6040 = vand.u32 %v5974, 4294901760
    %6041 = vmatpush1.msra.mxu0 %v6040
    %6042 = vmatprep.subr.mxu0 0.0
    %v6043 = vand.u32 %v5975, 4294901760
    %6044 = vmatpush1.msra.mxu0 %v6043
    %6045 = vmatprep.subr.mxu0 0.0
    %v6046 = vand.u32 %v5976, 4294901760
    %6047 = vmatpush1.msra.mxu0 %v6046
    %6048 = vmatprep.subr.mxu0 0.0
    %v6049 = vand.u32 %v5977, 4294901760
    %6050 = vmatpush1.msra.mxu0 %v6049
    %6051 = vmatprep.subr.mxu0 0.0
    %v6052 = vand.u32 %v5978, 4294901760
    %6053 = vmatpush1.msra.mxu0 %v6052
    %6054 = vmatprep.subr.mxu0 0.0
    %v6055 = vand.u32 %v5979, 4294901760
    %6056 = vmatpush1.msra.mxu0 %v6055
    %6057 = vmatprep.subr.mxu0 0.0
    %v6058 = vand.u32 %v5980, 4294901760
    %6059 = vmatpush1.msra.mxu0 %v6058
    %6060 = vmatprep.subr.mxu0 0.0
    %v6061 = vand.u32 %v5981, 4294901760
    %6062 = vmatpush1.msra.mxu0 %v6061
    %6063 = vmatprep.subr.mxu0 0.0
    %v6064 = vand.u32 %v5982, 4294901760
    %6065 = vmatpush1.msra.mxu0 %v6064
    %6066 = vmatprep.subr.mxu0 0.0
    %v6067 = vand.u32 %v5983, 4294901760
    %6068 = vmatpush1.msra.mxu0 %v6067
    %6069 = vmatprep.subr.mxu0 0.0
    %v6070 = vand.u32 %v5984, 4294901760
    %6071 = vmatpush1.msra.mxu0 %v6070
    %6072 = vmatprep.subr.mxu0 0.0
    %v6073 = vand.u32 %v5985, 4294901760
    %6074 = vmatpush1.msra.mxu0 %v6073
    %6075 = vmatprep.subr.mxu0 0.0
    %v6076 = vand.u32 %v5986, 4294901760
    %6077 = vmatpush1.msra.mxu0 %v6076
    %6078 = vmatprep.subr.mxu0 0.0
    %v6079 = vand.u32 %v5987, 4294901760
    %6080 = vmatpush1.msra.mxu0 %v6079
    %6081 = vmatprep.subr.mxu0 0.0
    %v6082 = vand.u32 %v5988, 4294901760
    %6083 = vmatpush1.msra.mxu0 %v6082
    %6084 = vmatprep.subr.mxu0 0.0
    %v6085 = vand.u32 %v5989, 4294901760
    %6086 = vmatpush1.msra.mxu0 %v6085
    %6087 = vmatprep.subr.mxu0 0.0
    %v6088 = vand.u32 %v5990, 4294901760
    %6089 = vmatpush1.msra.mxu0 %v6088
    %6090 = vmatprep.subr.mxu0 0.0
    %v6091 = vand.u32 %v5991, 4294901760
    %6092 = vmatpush1.msra.mxu0 %v6091
    %6093 = vmatprep.subr.mxu0 0.0
    %v6094 = vand.u32 %v5992, 4294901760
    %6095 = vmatpush1.msra.mxu0 %v6094
    %v6096 = vand.u32 %v5898, 4294901760
    %v6097 = vsub.f32 %v5898, %v6096
    %v6098 = vand.u32 %v6097, 4294901760
    %v6099 = vsub.f32 %v6097, %v6098
    %v6100 = vand.u32 %v6099, 4294901760
    %6101 = vmatprep.mubr.f32.mxu0 %v6100
    %v6102 = vand.u32 %v5897, 4294901760
    %v6103 = vsub.f32 %v5897, %v6102
    %v6104 = vand.u32 %v6103, 4294901760
    %v6105 = vsub.f32 %v6103, %v6104
    %v6106 = vand.u32 %v6105, 4294901760
    %6107 = vmatmul.mubr.f32.gmra.mrb[0].mxu0 %v6106
    %v6108 = vpop.f32.mrb[0].mxu0
    %v6109 = vadd.f32 %v5998, %v6108
    %v6110 = vpop.f32.mrb[0].mxu0
    %v6111 = vand.u32 %v5900, 4294901760
    %v6112 = vsub.f32 %v5900, %v6111
    %v6113 = vand.u32 %v6112, 4294901760
    %v6114 = vsub.f32 %v6112, %v6113
    %v6115 = vand.u32 %v6114, 4294901760
    %6116 = vmatprep.mubr.f32.mxu0 %v6115
    %v6117 = vand.u32 %v5899, 4294901760
    %v6118 = vsub.f32 %v5899, %v6117
    %v6119 = vand.u32 %v6118, 4294901760
    %v6120 = vsub.f32 %v6118, %v6119
    %v6121 = vand.u32 %v6120, 4294901760
    %6122 = vmatmul.mubr.f32.gmra.mrb[0].mxu0 %v6121
    %v6123 = vpop.f32.mrb[0].mxu0
    %v6124 = vadd.f32 %v5998, %v6123
    %v6125 = vpop.f32.mrb[0].mxu0
    %v6126 = vand.u32 %v5902, 4294901760
    %v6127 = vsub.f32 %v5902, %v6126
    %v6128 = vand.u32 %v6127, 4294901760
    %v6129 = vsub.f32 %v6127, %v6128
    %v6130 = vand.u32 %v6129, 4294901760
    %6131 = vmatprep.mubr.f32.mxu0 %v6130
    %v6132 = vand.u32 %v5901, 4294901760
    %v6133 = vsub.f32 %v5901, %v6132
    %v6134 = vand.u32 %v6133, 4294901760
    %v6135 = vsub.f32 %v6133, %v6134
    %v6136 = vand.u32 %v6135, 4294901760
    %6137 = vmatmul.mubr.f32.gmra.mrb[0].mxu0 %v6136
    %v6138 = vpop.f32.mrb[0].mxu0
    %v6139 = vadd.f32 %v5998, %v6138
    %v6140 = vpop.f32.mrb[0].mxu0
    %v6141 = vand.u32 %v5904, 4294901760
    %v6142 = vsub.f32 %v5904, %v6141
    %v6143 = vand.u32 %v6142, 4294901760
    %v6144 = vsub.f32 %v6142, %v6143
    %v6145 = vand.u32 %v6144, 4294901760
    %6146 = vmatprep.mubr.f32.mxu0 %v6145
    %v6147 = vand.u32 %v5903, 4294901760
    %v6148 = vsub.f32 %v5903, %v6147
    %v6149 = vand.u32 %v6148, 4294901760
    %v6150 = vsub.f32 %v6148, %v6149
    %v6151 = vand.u32 %v6150, 4294901760
    %6152 = vmatmul.mubr.f32.gmra.mrb[0].mxu0 %v6151
    %v6153 = vpop.f32.mrb[0].mxu0
    %v6154 = vadd.f32 %v5998, %v6153
    %v6155 = vpop.f32.mrb[0].mxu0
    %v6156 = vand.u32 %v5906, 4294901760
    %v6157 = vsub.f32 %v5906, %v6156
    %v6158 = vand.u32 %v6157, 4294901760
    %v6159 = vsub.f32 %v6157, %v6158
    %v6160 = vand.u32 %v6159, 4294901760
    %6161 = vmatprep.mubr.f32.mxu0 %v6160
    %v6162 = vand.u32 %v5905, 4294901760
    %v6163 = vsub.f32 %v5905, %v6162
    %v6164 = vand.u32 %v6163, 4294901760
    %v6165 = vsub.f32 %v6163, %v6164
    %v6166 = vand.u32 %v6165, 4294901760
    %6167 = vmatmul.mubr.f32.gmra.mrb[0].mxu0 %v6166
    %v6168 = vpop.f32.mrb[0].mxu0
    %v6169 = vadd.f32 %v5998, %v6168
    %v6170 = vpop.f32.mrb[0].mxu0
    %v6171 = vand.u32 %v5908, 4294901760
    %v6172 = vsub.f32 %v5908, %v6171
    %v6173 = vand.u32 %v6172, 4294901760
    %v6174 = vsub.f32 %v6172, %v6173
    %v6175 = vand.u32 %v6174, 4294901760
    %6176 = vmatprep.mubr.f32.mxu0 %v6175
    %v6177 = vand.u32 %v5907, 4294901760
    %v6178 = vsub.f32 %v5907, %v6177
    %v6179 = vand.u32 %v6178, 4294901760
    %v6180 = vsub.f32 %v6178, %v6179
    %v6181 = vand.u32 %v6180, 4294901760
    %6182 = vmatmul.mubr.f32.gmra.mrb[0].mxu0 %v6181
    %v6183 = vpop.f32.mrb[0].mxu0
    %v6184 = vadd.f32 %v5998, %v6183
    %v6185 = vpop.f32.mrb[0].mxu0
    %v6186 = vand.u32 %v5910, 4294901760
    %v6187 = vsub.f32 %v5910, %v6186
    %v6188 = vand.u32 %v6187, 4294901760
    %v6189 = vsub.f32 %v6187, %v6188
    %v6190 = vand.u32 %v6189, 4294901760
    %6191 = vmatprep.mubr.f32.mxu0 %v6190
    %v6192 = vand.u32 %v5909, 4294901760
    %v6193 = vsub.f32 %v5909, %v6192
    %v6194 = vand.u32 %v6193, 4294901760
    %v6195 = vsub.f32 %v6193, %v6194
    %v6196 = vand.u32 %v6195, 4294901760
    %6197 = vmatmul.mubr.f32.gmra.mrb[0].mxu0 %v6196
    %v6198 = vpop.f32.mrb[0].mxu0
    %v6199 = vadd.f32 %v5998, %v6198
    %v6200 = vpop.f32.mrb[0].mxu0
    %v6201 = vand.u32 %v5912, 4294901760
    %v6202 = vsub.f32 %v5912, %v6201
    %v6203 = vand.u32 %v6202, 4294901760
    %v6204 = vsub.f32 %v6202, %v6203
    %v6205 = vand.u32 %v6204, 4294901760
    %6206 = vmatprep.mubr.f32.mxu0 %v6205
    %v6207 = vand.u32 %v5911, 4294901760
    %v6208 = vsub.f32 %v5911, %v6207
    %v6209 = vand.u32 %v6208, 4294901760
    %v6210 = vsub.f32 %v6208, %v6209
    %v6211 = vand.u32 %v6210, 4294901760
    %6212 = vmatmul.mubr.f32.gmra.mrb[0].mxu0 %v6211
    %v6213 = vpop.f32.mrb[0].mxu0
    %v6214 = vadd.f32 %v5998, %v6213
    %v6215 = vpop.f32.mrb[0].mxu0
    %v6216 = vand.u32 %v5914, 4294901760
    %v6217 = vsub.f32 %v5914, %v6216
    %v6218 = vand.u32 %v6217, 4294901760
    %v6219 = vsub.f32 %v6217, %v6218
    %v6220 = vand.u32 %v6219, 4294901760
    %6221 = vmatprep.mubr.f32.mxu0 %v6220
    %v6222 = vand.u32 %v5913, 4294901760
    %v6223 = vsub.f32 %v5913, %v6222
    %v6224 = vand.u32 %v6223, 4294901760
    %v6225 = vsub.f32 %v6223, %v6224
    %v6226 = vand.u32 %v6225, 4294901760
    %6227 = vmatmul.mubr.f32.gmra.mrb[0].mxu0 %v6226
    %v6228 = vpop.f32.mrb[0].mxu0
    %v6229 = vadd.f32 %v5998, %v6228
    %v6230 = vpop.f32.mrb[0].mxu0
    %v6231 = vand.u32 %v5916, 4294901760
    %v6232 = vsub.f32 %v5916, %v6231
    %v6233 = vand.u32 %v6232, 4294901760
    %v6234 = vsub.f32 %v6232, %v6233
    %v6235 = vand.u32 %v6234, 4294901760
    %6236 = vmatprep.mubr.f32.mxu0 %v6235
    %v6237 = vand.u32 %v5915, 4294901760
    %v6238 = vsub.f32 %v5915, %v6237
    %v6239 = vand.u32 %v6238, 4294901760
    %v6240 = vsub.f32 %v6238, %v6239
    %v6241 = vand.u32 %v6240, 4294901760
    %6242 = vmatmul.mubr.f32.gmra.mrb[0].mxu0 %v6241
    %v6243 = vpop.f32.mrb[0].mxu0
    %v6244 = vadd.f32 %v5998, %v6243
    %v6245 = vpop.f32.mrb[0].mxu0
    %v6246 = vand.u32 %v5918, 4294901760
    %v6247 = vsub.f32 %v5918, %v6246
    %v6248 = vand.u32 %v6247, 4294901760
    %v6249 = vsub.f32 %v6247, %v6248
    %v6250 = vand.u32 %v6249, 4294901760
    %6251 = vmatprep.mubr.f32.mxu0 %v6250
    %v6252 = vand.u32 %v5917, 4294901760
    %v6253 = vsub.f32 %v5917, %v6252
    %v6254 = vand.u32 %v6253, 4294901760
    %v6255 = vsub.f32 %v6253, %v6254
    %v6256 = vand.u32 %v6255, 4294901760
    %6257 = vmatmul.mubr.f32.gmra.mrb[0].mxu0 %v6256
    %v6258 = vpop.f32.mrb[0].mxu0
    %v6259 = vadd.f32 %v5998, %v6258
    %v6260 = vpop.f32.mrb[0].mxu0
    %v6261 = vand.u32 %v5920, 4294901760
    %v6262 = vsub.f32 %v5920, %v6261
    %v6263 = vand.u32 %v6262, 4294901760
    %v6264 = vsub.f32 %v6262, %v6263
    %v6265 = vand.u32 %v6264, 4294901760
    %6266 = vmatprep.mubr.f32.mxu0 %v6265
    %v6267 = vand.u32 %v5919, 4294901760
    %v6268 = vsub.f32 %v5919, %v6267
    %v6269 = vand.u32 %v6268, 4294901760
    %v6270 = vsub.f32 %v6268, %v6269
    %v6271 = vand.u32 %v6270, 4294901760
    %6272 = vmatmul.mubr.f32.gmra.mrb[0].mxu0 %v6271
    %v6273 = vpop.f32.mrb[0].mxu0
    %v6274 = vadd.f32 %v5998, %v6273
    %v6275 = vpop.f32.mrb[0].mxu0
    %v6276 = vand.u32 %v5922, 4294901760
    %v6277 = vsub.f32 %v5922, %v6276
    %v6278 = vand.u32 %v6277, 4294901760
    %v6279 = vsub.f32 %v6277, %v6278
    %v6280 = vand.u32 %v6279, 4294901760
    %6281 = vmatprep.mubr.f32.mxu0 %v6280
    %v6282 = vand.u32 %v5921, 4294901760
    %v6283 = vsub.f32 %v5921, %v6282
    %v6284 = vand.u32 %v6283, 4294901760
    %v6285 = vsub.f32 %v6283, %v6284
    %v6286 = vand.u32 %v6285, 4294901760
    %6287 = vmatmul.mubr.f32.gmra.mrb[0].mxu0 %v6286
    %v6288 = vpop.f32.mrb[0].mxu0
    %v6289 = vadd.f32 %v5998, %v6288
    %v6290 = vpop.f32.mrb[0].mxu0
    %v6291 = vand.u32 %v5924, 4294901760
    %v6292 = vsub.f32 %v5924, %v6291
    %v6293 = vand.u32 %v6292, 4294901760
    %v6294 = vsub.f32 %v6292, %v6293
    %v6295 = vand.u32 %v6294, 4294901760
    %6296 = vmatprep.mubr.f32.mxu0 %v6295
    %v6297 = vand.u32 %v5923, 4294901760
    %v6298 = vsub.f32 %v5923, %v6297
    %v6299 = vand.u32 %v6298, 4294901760
    %v6300 = vsub.f32 %v6298, %v6299
    %v6301 = vand.u32 %v6300, 4294901760
    %6302 = vmatmul.mubr.f32.gmra.mrb[0].mxu0 %v6301
    %v6303 = vpop.f32.mrb[0].mxu0
    %v6304 = vadd.f32 %v5998, %v6303
    %v6305 = vpop.f32.mrb[0].mxu0
    %v6306 = vand.u32 %v5926, 4294901760
    %v6307 = vsub.f32 %v5926, %v6306
    %v6308 = vand.u32 %v6307, 4294901760
    %v6309 = vsub.f32 %v6307, %v6308
    %v6310 = vand.u32 %v6309, 4294901760
    %6311 = vmatprep.mubr.f32.mxu0 %v6310
    %v6312 = vand.u32 %v5925, 4294901760
    %v6313 = vsub.f32 %v5925, %v6312
    %v6314 = vand.u32 %v6313, 4294901760
    %v6315 = vsub.f32 %v6313, %v6314
    %v6316 = vand.u32 %v6315, 4294901760
    %6317 = vmatmul.mubr.f32.gmra.mrb[0].mxu0 %v6316
    %v6318 = vpop.f32.mrb[0].mxu0
    %v6319 = vadd.f32 %v5998, %v6318
    %v6320 = vpop.f32.mrb[0].mxu0
    %v6321 = vand.u32 %v5928, 4294901760
    %v6322 = vsub.f32 %v5928, %v6321
    %v6323 = vand.u32 %v6322, 4294901760
    %v6324 = vsub.f32 %v6322, %v6323
    %v6325 = vand.u32 %v6324, 4294901760
    %6326 = vmatprep.mubr.f32.mxu0 %v6325
    %v6327 = vand.u32 %v5927, 4294901760
    %v6328 = vsub.f32 %v5927, %v6327
    %v6329 = vand.u32 %v6328, 4294901760
    %v6330 = vsub.f32 %v6328, %v6329
    %v6331 = vand.u32 %v6330, 4294901760
    %6332 = vmatmul.mubr.f32.gmra.mrb[0].mxu0 %v6331
    %v6333 = vpop.f32.mrb[0].mxu0
    %v6334 = vadd.f32 %v5998, %v6333
    %v6335 = vpop.f32.mrb[0].mxu0
    %v6336 = vand.u32 %v5930, 4294901760
    %v6337 = vsub.f32 %v5930, %v6336
    %v6338 = vand.u32 %v6337, 4294901760
    %v6339 = vsub.f32 %v6337, %v6338
    %v6340 = vand.u32 %v6339, 4294901760
    %6341 = vmatprep.mubr.f32.mxu0 %v6340
    %v6342 = vand.u32 %v5929, 4294901760
    %v6343 = vsub.f32 %v5929, %v6342
    %v6344 = vand.u32 %v6343, 4294901760
    %v6345 = vsub.f32 %v6343, %v6344
    %v6346 = vand.u32 %v6345, 4294901760
    %6347 = vmatmul.mubr.f32.gmra.mrb[0].mxu0 %v6346
    %v6348 = vpop.f32.mrb[0].mxu0
    %v6349 = vadd.f32 %v5998, %v6348
    %v6350 = vpop.f32.mrb[0].mxu0
    %v6351 = vand.u32 %v5932, 4294901760
    %v6352 = vsub.f32 %v5932, %v6351
    %v6353 = vand.u32 %v6352, 4294901760
    %v6354 = vsub.f32 %v6352, %v6353
    %v6355 = vand.u32 %v6354, 4294901760
    %6356 = vmatprep.mubr.f32.mxu0 %v6355
    %v6357 = vand.u32 %v5931, 4294901760
    %v6358 = vsub.f32 %v5931, %v6357
    %v6359 = vand.u32 %v6358, 4294901760
    %v6360 = vsub.f32 %v6358, %v6359
    %v6361 = vand.u32 %v6360, 4294901760
    %6362 = vmatmul.mubr.f32.gmra.mrb[0].mxu0 %v6361
    %v6363 = vpop.f32.mrb[0].mxu0
    %v6364 = vadd.f32 %v5998, %v6363
    %v6365 = vpop.f32.mrb[0].mxu0
    %v6366 = vand.u32 %v5934, 4294901760
    %v6367 = vsub.f32 %v5934, %v6366
    %v6368 = vand.u32 %v6367, 4294901760
    %v6369 = vsub.f32 %v6367, %v6368
    %v6370 = vand.u32 %v6369, 4294901760
    %6371 = vmatprep.mubr.f32.mxu0 %v6370
    %v6372 = vand.u32 %v5933, 4294901760
    %v6373 = vsub.f32 %v5933, %v6372
    %v6374 = vand.u32 %v6373, 4294901760
    %v6375 = vsub.f32 %v6373, %v6374
    %v6376 = vand.u32 %v6375, 4294901760
    %6377 = vmatmul.mubr.f32.gmra.mrb[0].mxu0 %v6376
    %v6378 = vpop.f32.mrb[0].mxu0
    %v6379 = vadd.f32 %v5998, %v6378
    %v6380 = vpop.f32.mrb[0].mxu0
    %v6381 = vand.u32 %v5936, 4294901760
    %v6382 = vsub.f32 %v5936, %v6381
    %v6383 = vand.u32 %v6382, 4294901760
    %v6384 = vsub.f32 %v6382, %v6383
    %v6385 = vand.u32 %v6384, 4294901760
    %6386 = vmatprep.mubr.f32.mxu0 %v6385
    %v6387 = vand.u32 %v5935, 4294901760
    %v6388 = vsub.f32 %v5935, %v6387
    %v6389 = vand.u32 %v6388, 4294901760
    %v6390 = vsub.f32 %v6388, %v6389
    %v6391 = vand.u32 %v6390, 4294901760
    %6392 = vmatmul.mubr.f32.gmra.mrb[0].mxu0 %v6391
    %v6393 = vpop.f32.mrb[0].mxu0
    %v6394 = vadd.f32 %v5998, %v6393
    %v6395 = vpop.f32.mrb[0].mxu0
    %v6396 = vand.u32 %v5938, 4294901760
    %v6397 = vsub.f32 %v5938, %v6396
    %v6398 = vand.u32 %v6397, 4294901760
    %v6399 = vsub.f32 %v6397, %v6398
    %v6400 = vand.u32 %v6399, 4294901760
    %6401 = vmatprep.mubr.f32.mxu0 %v6400
    %v6402 = vand.u32 %v5937, 4294901760
    %v6403 = vsub.f32 %v5937, %v6402
    %v6404 = vand.u32 %v6403, 4294901760
    %v6405 = vsub.f32 %v6403, %v6404
    %v6406 = vand.u32 %v6405, 4294901760
    %6407 = vmatmul.mubr.f32.gmra.mrb[0].mxu0 %v6406
    %v6408 = vpop.f32.mrb[0].mxu0
    %v6409 = vadd.f32 %v5998, %v6408
    %v6410 = vpop.f32.mrb[0].mxu0
    %v6411 = vand.u32 %v5940, 4294901760
    %v6412 = vsub.f32 %v5940, %v6411
    %v6413 = vand.u32 %v6412, 4294901760
    %v6414 = vsub.f32 %v6412, %v6413
    %v6415 = vand.u32 %v6414, 4294901760
    %6416 = vmatprep.mubr.f32.mxu0 %v6415
    %v6417 = vand.u32 %v5939, 4294901760
    %v6418 = vsub.f32 %v5939, %v6417
    %v6419 = vand.u32 %v6418, 4294901760
    %v6420 = vsub.f32 %v6418, %v6419
    %v6421 = vand.u32 %v6420, 4294901760
    %6422 = vmatmul.mubr.f32.gmra.mrb[0].mxu0 %v6421
    %v6423 = vpop.f32.mrb[0].mxu0
    %v6424 = vadd.f32 %v5998, %v6423
    %v6425 = vpop.f32.mrb[0].mxu0
    %v6426 = vand.u32 %v5942, 4294901760
    %v6427 = vsub.f32 %v5942, %v6426
    %v6428 = vand.u32 %v6427, 4294901760
    %v6429 = vsub.f32 %v6427, %v6428
    %v6430 = vand.u32 %v6429, 4294901760
    %6431 = vmatprep.mubr.f32.mxu0 %v6430
    %v6432 = vand.u32 %v5941, 4294901760
    %v6433 = vsub.f32 %v5941, %v6432
    %v6434 = vand.u32 %v6433, 4294901760
    %v6435 = vsub.f32 %v6433, %v6434
    %v6436 = vand.u32 %v6435, 4294901760
    %6437 = vmatmul.mubr.f32.gmra.mrb[0].mxu0 %v6436
    %v6438 = vpop.f32.mrb[0].mxu0
    %v6439 = vadd.f32 %v5998, %v6438
    %v6440 = vpop.f32.mrb[0].mxu0
    %v6441 = vand.u32 %v5944, 4294901760
    %v6442 = vsub.f32 %v5944, %v6441
    %v6443 = vand.u32 %v6442, 4294901760
    %v6444 = vsub.f32 %v6442, %v6443
    %v6445 = vand.u32 %v6444, 4294901760
    %6446 = vmatprep.mubr.f32.mxu0 %v6445
    %v6447 = vand.u32 %v5943, 4294901760
    %v6448 = vsub.f32 %v5943, %v6447
    %v6449 = vand.u32 %v6448, 4294901760
    %v6450 = vsub.f32 %v6448, %v6449
    %v6451 = vand.u32 %v6450, 4294901760
    %6452 = vmatmul.mubr.f32.gmra.mrb[0].mxu0 %v6451
    %v6453 = vpop.f32.mrb[0].mxu0
    %v6454 = vadd.f32 %v5998, %v6453
    %v6455 = vpop.f32.mrb[0].mxu0
    %v6456 = vand.u32 %v5946, 4294901760
    %v6457 = vsub.f32 %v5946, %v6456
    %v6458 = vand.u32 %v6457, 4294901760
    %v6459 = vsub.f32 %v6457, %v6458
    %v6460 = vand.u32 %v6459, 4294901760
    %6461 = vmatprep.mubr.f32.mxu0 %v6460
    %v6462 = vand.u32 %v5945, 4294901760
    %v6463 = vsub.f32 %v5945, %v6462
    %v6464 = vand.u32 %v6463, 4294901760
    %v6465 = vsub.f32 %v6463, %v6464
    %v6466 = vand.u32 %v6465, 4294901760
    %6467 = vmatmul.mubr.f32.gmra.mrb[0].mxu0 %v6466
    %v6468 = vpop.f32.mrb[0].mxu0
    %v6469 = vadd.f32 %v5998, %v6468
    %v6470 = vpop.f32.mrb[0].mxu0
    %v6471 = vand.u32 %v5948, 4294901760
    %v6472 = vsub.f32 %v5948, %v6471
    %v6473 = vand.u32 %v6472, 4294901760
    %v6474 = vsub.f32 %v6472, %v6473
    %v6475 = vand.u32 %v6474, 4294901760
    %6476 = vmatprep.mubr.f32.mxu0 %v6475
    %v6477 = vand.u32 %v5947, 4294901760
    %v6478 = vsub.f32 %v5947, %v6477
    %v6479 = vand.u32 %v6478, 4294901760
    %v6480 = vsub.f32 %v6478, %v6479
    %v6481 = vand.u32 %v6480, 4294901760
    %6482 = vmatmul.mubr.f32.gmra.mrb[0].mxu0 %v6481
    %v6483 = vpop.f32.mrb[0].mxu0
    %v6484 = vadd.f32 %v5998, %v6483
    %v6485 = vpop.f32.mrb[0].mxu0
    %v6486 = vand.u32 %v5950, 4294901760
    %v6487 = vsub.f32 %v5950, %v6486
    %v6488 = vand.u32 %v6487, 4294901760
    %v6489 = vsub.f32 %v6487, %v6488
    %v6490 = vand.u32 %v6489, 4294901760
    %6491 = vmatprep.mubr.f32.mxu0 %v6490
    %v6492 = vand.u32 %v5949, 4294901760
    %v6493 = vsub.f32 %v5949, %v6492
    %v6494 = vand.u32 %v6493, 4294901760
    %v6495 = vsub.f32 %v6493, %v6494
    %v6496 = vand.u32 %v6495, 4294901760
    %6497 = vmatmul.mubr.f32.gmra.mrb[0].mxu0 %v6496
    %v6498 = vpop.f32.mrb[0].mxu0
    %v6499 = vadd.f32 %v5998, %v6498
    %v6500 = vpop.f32.mrb[0].mxu0
    %v6501 = vand.u32 %v5952, 4294901760
    %v6502 = vsub.f32 %v5952, %v6501
    %v6503 = vand.u32 %v6502, 4294901760
    %v6504 = vsub.f32 %v6502, %v6503
    %v6505 = vand.u32 %v6504, 4294901760
    %6506 = vmatprep.mubr.f32.mxu0 %v6505
    %v6507 = vand.u32 %v5951, 4294901760
    %v6508 = vsub.f32 %v5951, %v6507
    %v6509 = vand.u32 %v6508, 4294901760
    %v6510 = vsub.f32 %v6508, %v6509
    %v6511 = vand.u32 %v6510, 4294901760
    %6512 = vmatmul.mubr.f32.gmra.mrb[0].mxu0 %v6511
    %v6513 = vpop.f32.mrb[0].mxu0
    %v6514 = vadd.f32 %v5998, %v6513
    %v6515 = vpop.f32.mrb[0].mxu0
    %v6516 = vand.u32 %v5954, 4294901760
    %v6517 = vsub.f32 %v5954, %v6516
    %v6518 = vand.u32 %v6517, 4294901760
    %v6519 = vsub.f32 %v6517, %v6518
    %v6520 = vand.u32 %v6519, 4294901760
    %6521 = vmatprep.mubr.f32.mxu0 %v6520
    %v6522 = vand.u32 %v5953, 4294901760
    %v6523 = vsub.f32 %v5953, %v6522
    %v6524 = vand.u32 %v6523, 4294901760
    %v6525 = vsub.f32 %v6523, %v6524
    %v6526 = vand.u32 %v6525, 4294901760
    %6527 = vmatmul.mubr.f32.gmra.mrb[0].mxu0 %v6526
    %v6528 = vpop.f32.mrb[0].mxu0
    %v6529 = vadd.f32 %v5998, %v6528
    %v6530 = vpop.f32.mrb[0].mxu0
    %v6531 = vand.u32 %v5956, 4294901760
    %v6532 = vsub.f32 %v5956, %v6531
    %v6533 = vand.u32 %v6532, 4294901760
    %v6534 = vsub.f32 %v6532, %v6533
    %v6535 = vand.u32 %v6534, 4294901760
    %6536 = vmatprep.mubr.f32.mxu0 %v6535
    %v6537 = vand.u32 %v5955, 4294901760
    %v6538 = vsub.f32 %v5955, %v6537
    %v6539 = vand.u32 %v6538, 4294901760
    %v6540 = vsub.f32 %v6538, %v6539
    %v6541 = vand.u32 %v6540, 4294901760
    %6542 = vmatmul.mubr.f32.gmra.mrb[0].mxu0 %v6541
    %v6543 = vpop.f32.mrb[0].mxu0
    %v6544 = vadd.f32 %v5998, %v6543
    %v6545 = vpop.f32.mrb[0].mxu0
    %v6546 = vand.u32 %v5958, 4294901760
    %v6547 = vsub.f32 %v5958, %v6546
    %v6548 = vand.u32 %v6547, 4294901760
    %v6549 = vsub.f32 %v6547, %v6548
    %v6550 = vand.u32 %v6549, 4294901760
    %6551 = vmatprep.mubr.f32.mxu0 %v6550
    %v6552 = vand.u32 %v5957, 4294901760
    %v6553 = vsub.f32 %v5957, %v6552
    %v6554 = vand.u32 %v6553, 4294901760
    %v6555 = vsub.f32 %v6553, %v6554
    %v6556 = vand.u32 %v6555, 4294901760
    %6557 = vmatmul.mubr.f32.gmra.mrb[0].mxu0 %v6556
    %v6558 = vpop.f32.mrb[0].mxu0
    %v6559 = vadd.f32 %v5998, %v6558
    %v6560 = vpop.f32.mrb[0].mxu0
    %v6561 = vand.u32 %v5960, 4294901760
    %v6562 = vsub.f32 %v5960, %v6561
    %v6563 = vand.u32 %v6562, 4294901760
    %v6564 = vsub.f32 %v6562, %v6563
    %v6565 = vand.u32 %v6564, 4294901760
    %6566 = vmatprep.mubr.f32.mxu0 %v6565
    %v6567 = vand.u32 %v5959, 4294901760
    %v6568 = vsub.f32 %v5959, %v6567
    %v6569 = vand.u32 %v6568, 4294901760
    %v6570 = vsub.f32 %v6568, %v6569
    %v6571 = vand.u32 %v6570, 4294901760
    %6572 = vmatmul.mubr.f32.gmra.mrb[0].mxu0 %v6571
    %v6573 = vpop.f32.mrb[0].mxu0
    %v6574 = vadd.f32 %v5998, %v6573
    %v6575 = vpop.f32.mrb[0].mxu0
    %6576 = vdwg.mxu0
    %6577 = vmatprep.subr.mxu0 0.0
    %v6578 = vand.u32 %v5961, 4294901760
    %v6579 = vsub.f32 %v5961, %v6578
    %v6580 = vand.u32 %v6579, 4294901760
    %v6581 = vsub.f32 %v6579, %v6580
    %v6582 = vand.u32 %v6581, 4294901760
    %6583 = vmatpush1.msra.mxu0 %v6582
    %6584 = vmatprep.subr.mxu0 0.0
    %v6585 = vand.u32 %v5962, 4294901760
    %v6586 = vsub.f32 %v5962, %v6585
    %v6587 = vand.u32 %v6586, 4294901760
    %v6588 = vsub.f32 %v6586, %v6587
    %v6589 = vand.u32 %v6588, 4294901760
    %6590 = vmatpush1.msra.mxu0 %v6589
    %6591 = vmatprep.subr.mxu0 0.0
    %v6592 = vand.u32 %v5963, 4294901760
    %v6593 = vsub.f32 %v5963, %v6592
    %v6594 = vand.u32 %v6593, 4294901760
    %v6595 = vsub.f32 %v6593, %v6594
    %v6596 = vand.u32 %v6595, 4294901760
    %6597 = vmatpush1.msra.mxu0 %v6596
    %6598 = vmatprep.subr.mxu0 0.0
    %v6599 = vand.u32 %v5964, 4294901760
    %v6600 = vsub.f32 %v5964, %v6599
    %v6601 = vand.u32 %v6600, 4294901760
    %v6602 = vsub.f32 %v6600, %v6601
    %v6603 = vand.u32 %v6602, 4294901760
    %6604 = vmatpush1.msra.mxu0 %v6603
    %6605 = vmatprep.subr.mxu0 0.0
    %v6606 = vand.u32 %v5965, 4294901760
    %v6607 = vsub.f32 %v5965, %v6606
    %v6608 = vand.u32 %v6607, 4294901760
    %v6609 = vsub.f32 %v6607, %v6608
    %v6610 = vand.u32 %v6609, 4294901760
    %6611 = vmatpush1.msra.mxu0 %v6610
    %6612 = vmatprep.subr.mxu0 0.0
    %v6613 = vand.u32 %v5966, 4294901760
    %v6614 = vsub.f32 %v5966, %v6613
    %v6615 = vand.u32 %v6614, 4294901760
    %v6616 = vsub.f32 %v6614, %v6615
    %v6617 = vand.u32 %v6616, 4294901760
    %6618 = vmatpush1.msra.mxu0 %v6617
    %6619 = vmatprep.subr.mxu0 0.0
    %v6620 = vand.u32 %v5967, 4294901760
    %v6621 = vsub.f32 %v5967, %v6620
    %v6622 = vand.u32 %v6621, 4294901760
    %v6623 = vsub.f32 %v6621, %v6622
    %v6624 = vand.u32 %v6623, 4294901760
    %6625 = vmatpush1.msra.mxu0 %v6624
    %6626 = vmatprep.subr.mxu0 0.0
    %v6627 = vand.u32 %v5968, 4294901760
    %v6628 = vsub.f32 %v5968, %v6627
    %v6629 = vand.u32 %v6628, 4294901760
    %v6630 = vsub.f32 %v6628, %v6629
    %v6631 = vand.u32 %v6630, 4294901760
    %6632 = vmatpush1.msra.mxu0 %v6631
    %6633 = vmatprep.subr.mxu0 0.0
    %v6634 = vand.u32 %v5969, 4294901760
    %v6635 = vsub.f32 %v5969, %v6634
    %v6636 = vand.u32 %v6635, 4294901760
    %v6637 = vsub.f32 %v6635, %v6636
    %v6638 = vand.u32 %v6637, 4294901760
    %6639 = vmatpush1.msra.mxu0 %v6638
    %6640 = vmatprep.subr.mxu0 0.0
    %v6641 = vand.u32 %v5970, 4294901760
    %v6642 = vsub.f32 %v5970, %v6641
    %v6643 = vand.u32 %v6642, 4294901760
    %v6644 = vsub.f32 %v6642, %v6643
    %v6645 = vand.u32 %v6644, 4294901760
    %6646 = vmatpush1.msra.mxu0 %v6645
    %6647 = vmatprep.subr.mxu0 0.0
    %v6648 = vand.u32 %v5971, 4294901760
    %v6649 = vsub.f32 %v5971, %v6648
    %v6650 = vand.u32 %v6649, 4294901760
    %v6651 = vsub.f32 %v6649, %v6650
    %v6652 = vand.u32 %v6651, 4294901760
    %6653 = vmatpush1.msra.mxu0 %v6652
    %6654 = vmatprep.subr.mxu0 0.0
    %v6655 = vand.u32 %v5972, 4294901760
    %v6656 = vsub.f32 %v5972, %v6655
    %v6657 = vand.u32 %v6656, 4294901760
    %v6658 = vsub.f32 %v6656, %v6657
    %v6659 = vand.u32 %v6658, 4294901760
    %6660 = vmatpush1.msra.mxu0 %v6659
    %6661 = vmatprep.subr.mxu0 0.0
    %v6662 = vand.u32 %v5973, 4294901760
    %v6663 = vsub.f32 %v5973, %v6662
    %v6664 = vand.u32 %v6663, 4294901760
    %v6665 = vsub.f32 %v6663, %v6664
    %v6666 = vand.u32 %v6665, 4294901760
    %6667 = vmatpush1.msra.mxu0 %v6666
    %6668 = vmatprep.subr.mxu0 0.0
    %v6669 = vand.u32 %v5974, 4294901760
    %v6670 = vsub.f32 %v5974, %v6669
    %v6671 = vand.u32 %v6670, 4294901760
    %v6672 = vsub.f32 %v6670, %v6671
    %v6673 = vand.u32 %v6672, 4294901760
    %6674 = vmatpush1.msra.mxu0 %v6673
    %6675 = vmatprep.subr.mxu0 0.0
    %v6676 = vand.u32 %v5975, 4294901760
    %v6677 = vsub.f32 %v5975, %v6676
    %v6678 = vand.u32 %v6677, 4294901760
    %v6679 = vsub.f32 %v6677, %v6678
    %v6680 = vand.u32 %v6679, 4294901760
    %6681 = vmatpush1.msra.mxu0 %v6680
    %6682 = vmatprep.subr.mxu0 0.0
    %v6683 = vand.u32 %v5976, 4294901760
    %v6684 = vsub.f32 %v5976, %v6683
    %v6685 = vand.u32 %v6684, 4294901760
    %v6686 = vsub.f32 %v6684, %v6685
    %v6687 = vand.u32 %v6686, 4294901760
    %6688 = vmatpush1.msra.mxu0 %v6687
    %6689 = vmatprep.subr.mxu0 0.0
    %v6690 = vand.u32 %v5977, 4294901760
    %v6691 = vsub.f32 %v5977, %v6690
    %v6692 = vand.u32 %v6691, 4294901760
    %v6693 = vsub.f32 %v6691, %v6692
    %v6694 = vand.u32 %v6693, 4294901760
    %6695 = vmatpush1.msra.mxu0 %v6694
    %6696 = vmatprep.subr.mxu0 0.0
    %v6697 = vand.u32 %v5978, 4294901760
    %v6698 = vsub.f32 %v5978, %v6697
    %v6699 = vand.u32 %v6698, 4294901760
    %v6700 = vsub.f32 %v6698, %v6699
    %v6701 = vand.u32 %v6700, 4294901760
    %6702 = vmatpush1.msra.mxu0 %v6701
    %6703 = vmatprep.subr.mxu0 0.0
    %v6704 = vand.u32 %v5979, 4294901760
    %v6705 = vsub.f32 %v5979, %v6704
    %v6706 = vand.u32 %v6705, 4294901760
    %v6707 = vsub.f32 %v6705, %v6706
    %v6708 = vand.u32 %v6707, 4294901760
    %6709 = vmatpush1.msra.mxu0 %v6708
    %6710 = vmatprep.subr.mxu0 0.0
    %v6711 = vand.u32 %v5980, 4294901760
    %v6712 = vsub.f32 %v5980, %v6711
    %v6713 = vand.u32 %v6712, 4294901760
    %v6714 = vsub.f32 %v6712, %v6713
    %v6715 = vand.u32 %v6714, 4294901760
    %6716 = vmatpush1.msra.mxu0 %v6715
    %6717 = vmatprep.subr.mxu0 0.0
    %v6718 = vand.u32 %v5981, 4294901760
    %v6719 = vsub.f32 %v5981, %v6718
    %v6720 = vand.u32 %v6719, 4294901760
    %v6721 = vsub.f32 %v6719, %v6720
    %v6722 = vand.u32 %v6721, 4294901760
    %6723 = vmatpush1.msra.mxu0 %v6722
    %6724 = vmatprep.subr.mxu0 0.0
    %v6725 = vand.u32 %v5982, 4294901760
    %v6726 = vsub.f32 %v5982, %v6725
    %v6727 = vand.u32 %v6726, 4294901760
    %v6728 = vsub.f32 %v6726, %v6727
    %v6729 = vand.u32 %v6728, 4294901760
    %6730 = vmatpush1.msra.mxu0 %v6729
    %6731 = vmatprep.subr.mxu0 0.0
    %v6732 = vand.u32 %v5983, 4294901760
    %v6733 = vsub.f32 %v5983, %v6732
    %v6734 = vand.u32 %v6733, 4294901760
    %v6735 = vsub.f32 %v6733, %v6734
    %v6736 = vand.u32 %v6735, 4294901760
    %6737 = vmatpush1.msra.mxu0 %v6736
    %6738 = vmatprep.subr.mxu0 0.0
    %v6739 = vand.u32 %v5984, 4294901760
    %v6740 = vsub.f32 %v5984, %v6739
    %v6741 = vand.u32 %v6740, 4294901760
    %v6742 = vsub.f32 %v6740, %v6741
    %v6743 = vand.u32 %v6742, 4294901760
    %6744 = vmatpush1.msra.mxu0 %v6743
    %6745 = vmatprep.subr.mxu0 0.0
    %v6746 = vand.u32 %v5985, 4294901760
    %v6747 = vsub.f32 %v5985, %v6746
    %v6748 = vand.u32 %v6747, 4294901760
    %v6749 = vsub.f32 %v6747, %v6748
    %v6750 = vand.u32 %v6749, 4294901760
    %6751 = vmatpush1.msra.mxu0 %v6750
    %6752 = vmatprep.subr.mxu0 0.0
    %v6753 = vand.u32 %v5986, 4294901760
    %v6754 = vsub.f32 %v5986, %v6753
    %v6755 = vand.u32 %v6754, 4294901760
    %v6756 = vsub.f32 %v6754, %v6755
    %v6757 = vand.u32 %v6756, 4294901760
    %6758 = vmatpush1.msra.mxu0 %v6757
    %6759 = vmatprep.subr.mxu0 0.0
    %v6760 = vand.u32 %v5987, 4294901760
    %v6761 = vsub.f32 %v5987, %v6760
    %v6762 = vand.u32 %v6761, 4294901760
    %v6763 = vsub.f32 %v6761, %v6762
    %v6764 = vand.u32 %v6763, 4294901760
    %6765 = vmatpush1.msra.mxu0 %v6764
    %6766 = vmatprep.subr.mxu0 0.0
    %v6767 = vand.u32 %v5988, 4294901760
    %v6768 = vsub.f32 %v5988, %v6767
    %v6769 = vand.u32 %v6768, 4294901760
    %v6770 = vsub.f32 %v6768, %v6769
    %v6771 = vand.u32 %v6770, 4294901760
    %6772 = vmatpush1.msra.mxu0 %v6771
    %6773 = vmatprep.subr.mxu0 0.0
    %v6774 = vand.u32 %v5989, 4294901760
    %v6775 = vsub.f32 %v5989, %v6774
    %v6776 = vand.u32 %v6775, 4294901760
    %v6777 = vsub.f32 %v6775, %v6776
    %v6778 = vand.u32 %v6777, 4294901760
    %6779 = vmatpush1.msra.mxu0 %v6778
    %6780 = vmatprep.subr.mxu0 0.0
    %v6781 = vand.u32 %v5990, 4294901760
    %v6782 = vsub.f32 %v5990, %v6781
    %v6783 = vand.u32 %v6782, 4294901760
    %v6784 = vsub.f32 %v6782, %v6783
    %v6785 = vand.u32 %v6784, 4294901760
    %6786 = vmatpush1.msra.mxu0 %v6785
    %6787 = vmatprep.subr.mxu0 0.0
    %v6788 = vand.u32 %v5991, 4294901760
    %v6789 = vsub.f32 %v5991, %v6788
    %v6790 = vand.u32 %v6789, 4294901760
    %v6791 = vsub.f32 %v6789, %v6790
    %v6792 = vand.u32 %v6791, 4294901760
    %6793 = vmatpush1.msra.mxu0 %v6792
    %6794 = vmatprep.subr.mxu0 0.0
    %v6795 = vand.u32 %v5992, 4294901760
    %v6796 = vsub.f32 %v5992, %v6795
    %v6797 = vand.u32 %v6796, 4294901760
    %v6798 = vsub.f32 %v6796, %v6797
    %v6799 = vand.u32 %v6798, 4294901760
    %6800 = vmatpush1.msra.mxu0 %v6799
    %v6801 = vand.u32 %v5898, 4294901760
    %6802 = vmatprep.mubr.f32.mxu0 %v6801
    %v6803 = vand.u32 %v5897, 4294901760
    %6804 = vmatmul.mubr.f32.gmra.mrb[0].mxu0 %v6803
    %v6805 = vpop.f32.mrb[0].mxu0
    %v6806 = vadd.f32 %v6109, %v6805
    %v6807 = vpop.f32.mrb[0].mxu0
    %v6808 = vand.u32 %v5900, 4294901760
    %6809 = vmatprep.mubr.f32.mxu0 %v6808
    %v6810 = vand.u32 %v5899, 4294901760
    %6811 = vmatmul.mubr.f32.gmra.mrb[0].mxu0 %v6810
    %v6812 = vpop.f32.mrb[0].mxu0
    %v6813 = vadd.f32 %v6124, %v6812
    %v6814 = vpop.f32.mrb[0].mxu0
    %v6815 = vand.u32 %v5902, 4294901760
    %6816 = vmatprep.mubr.f32.mxu0 %v6815
    %v6817 = vand.u32 %v5901, 4294901760
    %6818 = vmatmul.mubr.f32.gmra.mrb[0].mxu0 %v6817
    %v6819 = vpop.f32.mrb[0].mxu0
    %v6820 = vadd.f32 %v6139, %v6819
    %v6821 = vpop.f32.mrb[0].mxu0
    %v6822 = vand.u32 %v5904, 4294901760
    %6823 = vmatprep.mubr.f32.mxu0 %v6822
    %v6824 = vand.u32 %v5903, 4294901760
    %6825 = vmatmul.mubr.f32.gmra.mrb[0].mxu0 %v6824
    %v6826 = vpop.f32.mrb[0].mxu0
    %v6827 = vadd.f32 %v6154, %v6826
    %v6828 = vpop.f32.mrb[0].mxu0
    %v6829 = vand.u32 %v5906, 4294901760
    %6830 = vmatprep.mubr.f32.mxu0 %v6829
    %v6831 = vand.u32 %v5905, 4294901760
    %6832 = vmatmul.mubr.f32.gmra.mrb[0].mxu0 %v6831
    %v6833 = vpop.f32.mrb[0].mxu0
    %v6834 = vadd.f32 %v6169, %v6833
    %v6835 = vpop.f32.mrb[0].mxu0
    %v6836 = vand.u32 %v5908, 4294901760
    %6837 = vmatprep.mubr.f32.mxu0 %v6836
    %v6838 = vand.u32 %v5907, 4294901760
    %6839 = vmatmul.mubr.f32.gmra.mrb[0].mxu0 %v6838
    %v6840 = vpop.f32.mrb[0].mxu0
    %v6841 = vadd.f32 %v6184, %v6840
    %v6842 = vpop.f32.mrb[0].mxu0
    %v6843 = vand.u32 %v5910, 4294901760
    %6844 = vmatprep.mubr.f32.mxu0 %v6843
    %v6845 = vand.u32 %v5909, 4294901760
    %6846 = vmatmul.mubr.f32.gmra.mrb[0].mxu0 %v6845
    %v6847 = vpop.f32.mrb[0].mxu0
    %v6848 = vadd.f32 %v6199, %v6847
    %v6849 = vpop.f32.mrb[0].mxu0
    %v6850 = vand.u32 %v5912, 4294901760
    %6851 = vmatprep.mubr.f32.mxu0 %v6850
    %v6852 = vand.u32 %v5911, 4294901760
    %6853 = vmatmul.mubr.f32.gmra.mrb[0].mxu0 %v6852
    %v6854 = vpop.f32.mrb[0].mxu0
    %v6855 = vadd.f32 %v6214, %v6854
    %v6856 = vpop.f32.mrb[0].mxu0
    %v6857 = vand.u32 %v5914, 4294901760
    %6858 = vmatprep.mubr.f32.mxu0 %v6857
    %v6859 = vand.u32 %v5913, 4294901760
    %6860 = vmatmul.mubr.f32.gmra.mrb[0].mxu0 %v6859
    %v6861 = vpop.f32.mrb[0].mxu0
    %v6862 = vadd.f32 %v6229, %v6861
    %v6863 = vpop.f32.mrb[0].mxu0
    %v6864 = vand.u32 %v5916, 4294901760
    %6865 = vmatprep.mubr.f32.mxu0 %v6864
    %v6866 = vand.u32 %v5915, 4294901760
    %6867 = vmatmul.mubr.f32.gmra.mrb[0].mxu0 %v6866
    %v6868 = vpop.f32.mrb[0].mxu0
    %v6869 = vadd.f32 %v6244, %v6868
    %v6870 = vpop.f32.mrb[0].mxu0
    %v6871 = vand.u32 %v5918, 4294901760
    %6872 = vmatprep.mubr.f32.mxu0 %v6871
    %v6873 = vand.u32 %v5917, 4294901760
    %6874 = vmatmul.mubr.f32.gmra.mrb[0].mxu0 %v6873
    %v6875 = vpop.f32.mrb[0].mxu0
    %v6876 = vadd.f32 %v6259, %v6875
    %v6877 = vpop.f32.mrb[0].mxu0
    %v6878 = vand.u32 %v5920, 4294901760
    %6879 = vmatprep.mubr.f32.mxu0 %v6878
    %v6880 = vand.u32 %v5919, 4294901760
    %6881 = vmatmul.mubr.f32.gmra.mrb[0].mxu0 %v6880
    %v6882 = vpop.f32.mrb[0].mxu0
    %v6883 = vadd.f32 %v6274, %v6882
    %v6884 = vpop.f32.mrb[0].mxu0
    %v6885 = vand.u32 %v5922, 4294901760
    %6886 = vmatprep.mubr.f32.mxu0 %v6885
    %v6887 = vand.u32 %v5921, 4294901760
    %6888 = vmatmul.mubr.f32.gmra.mrb[0].mxu0 %v6887
    %v6889 = vpop.f32.mrb[0].mxu0
    %v6890 = vadd.f32 %v6289, %v6889
    %v6891 = vpop.f32.mrb[0].mxu0
    %v6892 = vand.u32 %v5924, 4294901760
    %6893 = vmatprep.mubr.f32.mxu0 %v6892
    %v6894 = vand.u32 %v5923, 4294901760
    %6895 = vmatmul.mubr.f32.gmra.mrb[0].mxu0 %v6894
    %v6896 = vpop.f32.mrb[0].mxu0
    %v6897 = vadd.f32 %v6304, %v6896
    %v6898 = vpop.f32.mrb[0].mxu0
    %v6899 = vand.u32 %v5926, 4294901760
    %6900 = vmatprep.mubr.f32.mxu0 %v6899
    %v6901 = vand.u32 %v5925, 4294901760
    %6902 = vmatmul.mubr.f32.gmra.mrb[0].mxu0 %v6901
    %v6903 = vpop.f32.mrb[0].mxu0
    %v6904 = vadd.f32 %v6319, %v6903
    %v6905 = vpop.f32.mrb[0].mxu0
    %v6906 = vand.u32 %v5928, 4294901760
    %6907 = vmatprep.mubr.f32.mxu0 %v6906
    %v6908 = vand.u32 %v5927, 4294901760
    %6909 = vmatmul.mubr.f32.gmra.mrb[0].mxu0 %v6908
    %v6910 = vpop.f32.mrb[0].mxu0
    %v6911 = vadd.f32 %v6334, %v6910
    %v6912 = vpop.f32.mrb[0].mxu0
    %v6913 = vand.u32 %v5930, 4294901760
    %6914 = vmatprep.mubr.f32.mxu0 %v6913
    %v6915 = vand.u32 %v5929, 4294901760
    %6916 = vmatmul.mubr.f32.gmra.mrb[0].mxu0 %v6915
    %v6917 = vpop.f32.mrb[0].mxu0
    %v6918 = vadd.f32 %v6349, %v6917
    %v6919 = vpop.f32.mrb[0].mxu0
    %v6920 = vand.u32 %v5932, 4294901760
    %6921 = vmatprep.mubr.f32.mxu0 %v6920
    %v6922 = vand.u32 %v5931, 4294901760
    %6923 = vmatmul.mubr.f32.gmra.mrb[0].mxu0 %v6922
    %v6924 = vpop.f32.mrb[0].mxu0
    %v6925 = vadd.f32 %v6364, %v6924
    %v6926 = vpop.f32.mrb[0].mxu0
    %v6927 = vand.u32 %v5934, 4294901760
    %6928 = vmatprep.mubr.f32.mxu0 %v6927
    %v6929 = vand.u32 %v5933, 4294901760
    %6930 = vmatmul.mubr.f32.gmra.mrb[0].mxu0 %v6929
    %v6931 = vpop.f32.mrb[0].mxu0
    %v6932 = vadd.f32 %v6379, %v6931
    %v6933 = vpop.f32.mrb[0].mxu0
    %v6934 = vand.u32 %v5936, 4294901760
    %6935 = vmatprep.mubr.f32.mxu0 %v6934
    %v6936 = vand.u32 %v5935, 4294901760
    %6937 = vmatmul.mubr.f32.gmra.mrb[0].mxu0 %v6936
    %v6938 = vpop.f32.mrb[0].mxu0
    %v6939 = vadd.f32 %v6394, %v6938
    %v6940 = vpop.f32.mrb[0].mxu0
    %v6941 = vand.u32 %v5938, 4294901760
    %6942 = vmatprep.mubr.f32.mxu0 %v6941
    %v6943 = vand.u32 %v5937, 4294901760
    %6944 = vmatmul.mubr.f32.gmra.mrb[0].mxu0 %v6943
    %v6945 = vpop.f32.mrb[0].mxu0
    %v6946 = vadd.f32 %v6409, %v6945
    %v6947 = vpop.f32.mrb[0].mxu0
    %v6948 = vand.u32 %v5940, 4294901760
    %6949 = vmatprep.mubr.f32.mxu0 %v6948
    %v6950 = vand.u32 %v5939, 4294901760
    %6951 = vmatmul.mubr.f32.gmra.mrb[0].mxu0 %v6950
    %v6952 = vpop.f32.mrb[0].mxu0
    %v6953 = vadd.f32 %v6424, %v6952
    %v6954 = vpop.f32.mrb[0].mxu0
    %v6955 = vand.u32 %v5942, 4294901760
    %6956 = vmatprep.mubr.f32.mxu0 %v6955
    %v6957 = vand.u32 %v5941, 4294901760
    %6958 = vmatmul.mubr.f32.gmra.mrb[0].mxu0 %v6957
    %v6959 = vpop.f32.mrb[0].mxu0
    %v6960 = vadd.f32 %v6439, %v6959
    %v6961 = vpop.f32.mrb[0].mxu0
    %v6962 = vand.u32 %v5944, 4294901760
    %6963 = vmatprep.mubr.f32.mxu0 %v6962
    %v6964 = vand.u32 %v5943, 4294901760
    %6965 = vmatmul.mubr.f32.gmra.mrb[0].mxu0 %v6964
    %v6966 = vpop.f32.mrb[0].mxu0
    %v6967 = vadd.f32 %v6454, %v6966
    %v6968 = vpop.f32.mrb[0].mxu0
    %v6969 = vand.u32 %v5946, 4294901760
    %6970 = vmatprep.mubr.f32.mxu0 %v6969
    %v6971 = vand.u32 %v5945, 4294901760
    %6972 = vmatmul.mubr.f32.gmra.mrb[0].mxu0 %v6971
    %v6973 = vpop.f32.mrb[0].mxu0
    %v6974 = vadd.f32 %v6469, %v6973
    %v6975 = vpop.f32.mrb[0].mxu0
    %v6976 = vand.u32 %v5948, 4294901760
    %6977 = vmatprep.mubr.f32.mxu0 %v6976
    %v6978 = vand.u32 %v5947, 4294901760
    %6979 = vmatmul.mubr.f32.gmra.mrb[0].mxu0 %v6978
    %v6980 = vpop.f32.mrb[0].mxu0
    %v6981 = vadd.f32 %v6484, %v6980
    %v6982 = vpop.f32.mrb[0].mxu0
    %v6983 = vand.u32 %v5950, 4294901760
    %6984 = vmatprep.mubr.f32.mxu0 %v6983
    %v6985 = vand.u32 %v5949, 4294901760
    %6986 = vmatmul.mubr.f32.gmra.mrb[0].mxu0 %v6985
    %v6987 = vpop.f32.mrb[0].mxu0
    %v6988 = vadd.f32 %v6499, %v6987
    %v6989 = vpop.f32.mrb[0].mxu0
    %v6990 = vand.u32 %v5952, 4294901760
    %6991 = vmatprep.mubr.f32.mxu0 %v6990
    %v6992 = vand.u32 %v5951, 4294901760
    %6993 = vmatmul.mubr.f32.gmra.mrb[0].mxu0 %v6992
    %v6994 = vpop.f32.mrb[0].mxu0
    %v6995 = vadd.f32 %v6514, %v6994
    %v6996 = vpop.f32.mrb[0].mxu0
    %v6997 = vand.u32 %v5954, 4294901760
    %6998 = vmatprep.mubr.f32.mxu0 %v6997
    %v6999 = vand.u32 %v5953, 4294901760
    %7000 = vmatmul.mubr.f32.gmra.mrb[0].mxu0 %v6999
    %v7001 = vpop.f32.mrb[0].mxu0
    %v7002 = vadd.f32 %v6529, %v7001
    %v7003 = vpop.f32.mrb[0].mxu0
    %v7004 = vand.u32 %v5956, 4294901760
    %7005 = vmatprep.mubr.f32.mxu0 %v7004
    %v7006 = vand.u32 %v5955, 4294901760
    %7007 = vmatmul.mubr.f32.gmra.mrb[0].mxu0 %v7006
    %v7008 = vpop.f32.mrb[0].mxu0
    %v7009 = vadd.f32 %v6544, %v7008
    %v7010 = vpop.f32.mrb[0].mxu0
    %v7011 = vand.u32 %v5958, 4294901760
    %7012 = vmatprep.mubr.f32.mxu0 %v7011
    %v7013 = vand.u32 %v5957, 4294901760
    %7014 = vmatmul.mubr.f32.gmra.mrb[0].mxu0 %v7013
    %v7015 = vpop.f32.mrb[0].mxu0
    %v7016 = vadd.f32 %v6559, %v7015
    %v7017 = vpop.f32.mrb[0].mxu0
    %v7018 = vand.u32 %v5960, 4294901760
    %7019 = vmatprep.mubr.f32.mxu0 %v7018
    %v7020 = vand.u32 %v5959, 4294901760
    %7021 = vmatmul.mubr.f32.gmra.mrb[0].mxu0 %v7020
    %v7022 = vpop.f32.mrb[0].mxu0
    %v7023 = vadd.f32 %v6574, %v7022
    %v7024 = vpop.f32.mrb[0].mxu0
    %7025 = vdwg.mxu0
    %7026 = vmatprep.subr.mxu0 0.0
    %v7027 = vand.u32 %v5961, 4294901760
    %v7028 = vsub.f32 %v5961, %v7027
    %7029 = vmatpush1.msra.mxu0 %v7028
    %7030 = vmatprep.subr.mxu0 0.0
    %v7031 = vand.u32 %v5962, 4294901760
    %v7032 = vsub.f32 %v5962, %v7031
    %7033 = vmatpush1.msra.mxu0 %v7032
    %7034 = vmatprep.subr.mxu0 0.0
    %v7035 = vand.u32 %v5963, 4294901760
    %v7036 = vsub.f32 %v5963, %v7035
    %7037 = vmatpush1.msra.mxu0 %v7036
    %7038 = vmatprep.subr.mxu0 0.0
    %v7039 = vand.u32 %v5964, 4294901760
    %v7040 = vsub.f32 %v5964, %v7039
    %7041 = vmatpush1.msra.mxu0 %v7040
    %7042 = vmatprep.subr.mxu0 0.0
    %v7043 = vand.u32 %v5965, 4294901760
    %v7044 = vsub.f32 %v5965, %v7043
    %7045 = vmatpush1.msra.mxu0 %v7044
    %7046 = vmatprep.subr.mxu0 0.0
    %v7047 = vand.u32 %v5966, 4294901760
    %v7048 = vsub.f32 %v5966, %v7047
    %7049 = vmatpush1.msra.mxu0 %v7048
    %7050 = vmatprep.subr.mxu0 0.0
    %v7051 = vand.u32 %v5967, 4294901760
    %v7052 = vsub.f32 %v5967, %v7051
    %7053 = vmatpush1.msra.mxu0 %v7052
    %7054 = vmatprep.subr.mxu0 0.0
    %v7055 = vand.u32 %v5968, 4294901760
    %v7056 = vsub.f32 %v5968, %v7055
    %7057 = vmatpush1.msra.mxu0 %v7056
    %7058 = vmatprep.subr.mxu0 0.0
    %v7059 = vand.u32 %v5969, 4294901760
    %v7060 = vsub.f32 %v5969, %v7059
    %7061 = vmatpush1.msra.mxu0 %v7060
    %7062 = vmatprep.subr.mxu0 0.0
    %v7063 = vand.u32 %v5970, 4294901760
    %v7064 = vsub.f32 %v5970, %v7063
    %7065 = vmatpush1.msra.mxu0 %v7064
    %7066 = vmatprep.subr.mxu0 0.0
    %v7067 = vand.u32 %v5971, 4294901760
    %v7068 = vsub.f32 %v5971, %v7067
    %7069 = vmatpush1.msra.mxu0 %v7068
    %7070 = vmatprep.subr.mxu0 0.0
    %v7071 = vand.u32 %v5972, 4294901760
    %v7072 = vsub.f32 %v5972, %v7071
    %7073 = vmatpush1.msra.mxu0 %v7072
    %7074 = vmatprep.subr.mxu0 0.0
    %v7075 = vand.u32 %v5973, 4294901760
    %v7076 = vsub.f32 %v5973, %v7075
    %7077 = vmatpush1.msra.mxu0 %v7076
    %7078 = vmatprep.subr.mxu0 0.0
    %v7079 = vand.u32 %v5974, 4294901760
    %v7080 = vsub.f32 %v5974, %v7079
    %7081 = vmatpush1.msra.mxu0 %v7080
    %7082 = vmatprep.subr.mxu0 0.0
    %v7083 = vand.u32 %v5975, 4294901760
    %v7084 = vsub.f32 %v5975, %v7083
    %7085 = vmatpush1.msra.mxu0 %v7084
    %7086 = vmatprep.subr.mxu0 0.0
    %v7087 = vand.u32 %v5976, 4294901760
    %v7088 = vsub.f32 %v5976, %v7087
    %7089 = vmatpush1.msra.mxu0 %v7088
    %7090 = vmatprep.subr.mxu0 0.0
    %v7091 = vand.u32 %v5977, 4294901760
    %v7092 = vsub.f32 %v5977, %v7091
    %7093 = vmatpush1.msra.mxu0 %v7092
    %7094 = vmatprep.subr.mxu0 0.0
    %v7095 = vand.u32 %v5978, 4294901760
    %v7096 = vsub.f32 %v5978, %v7095
    %7097 = vmatpush1.msra.mxu0 %v7096
    %7098 = vmatprep.subr.mxu0 0.0
    %v7099 = vand.u32 %v5979, 4294901760
    %v7100 = vsub.f32 %v5979, %v7099
    %7101 = vmatpush1.msra.mxu0 %v7100
    %7102 = vmatprep.subr.mxu0 0.0
    %v7103 = vand.u32 %v5980, 4294901760
    %v7104 = vsub.f32 %v5980, %v7103
    %7105 = vmatpush1.msra.mxu0 %v7104
    %7106 = vmatprep.subr.mxu0 0.0
    %v7107 = vand.u32 %v5981, 4294901760
    %v7108 = vsub.f32 %v5981, %v7107
    %7109 = vmatpush1.msra.mxu0 %v7108
    %7110 = vmatprep.subr.mxu0 0.0
    %v7111 = vand.u32 %v5982, 4294901760
    %v7112 = vsub.f32 %v5982, %v7111
    %7113 = vmatpush1.msra.mxu0 %v7112
    %7114 = vmatprep.subr.mxu0 0.0
    %v7115 = vand.u32 %v5983, 4294901760
    %v7116 = vsub.f32 %v5983, %v7115
    %7117 = vmatpush1.msra.mxu0 %v7116
    %7118 = vmatprep.subr.mxu0 0.0
    %v7119 = vand.u32 %v5984, 4294901760
    %v7120 = vsub.f32 %v5984, %v7119
    %7121 = vmatpush1.msra.mxu0 %v7120
    %7122 = vmatprep.subr.mxu0 0.0
    %v7123 = vand.u32 %v5985, 4294901760
    %v7124 = vsub.f32 %v5985, %v7123
    %7125 = vmatpush1.msra.mxu0 %v7124
    %7126 = vmatprep.subr.mxu0 0.0
    %v7127 = vand.u32 %v5986, 4294901760
    %v7128 = vsub.f32 %v5986, %v7127
    %7129 = vmatpush1.msra.mxu0 %v7128
    %7130 = vmatprep.subr.mxu0 0.0
    %v7131 = vand.u32 %v5987, 4294901760
    %v7132 = vsub.f32 %v5987, %v7131
    %7133 = vmatpush1.msra.mxu0 %v7132
    %7134 = vmatprep.subr.mxu0 0.0
    %v7135 = vand.u32 %v5988, 4294901760
    %v7136 = vsub.f32 %v5988, %v7135
    %7137 = vmatpush1.msra.mxu0 %v7136
    %7138 = vmatprep.subr.mxu0 0.0
    %v7139 = vand.u32 %v5989, 4294901760
    %v7140 = vsub.f32 %v5989, %v7139
    %7141 = vmatpush1.msra.mxu0 %v7140
    %7142 = vmatprep.subr.mxu0 0.0
    %v7143 = vand.u32 %v5990, 4294901760
    %v7144 = vsub.f32 %v5990, %v7143
    %7145 = vmatpush1.msra.mxu0 %v7144
    %7146 = vmatprep.subr.mxu0 0.0
    %v7147 = vand.u32 %v5991, 4294901760
    %v7148 = vsub.f32 %v5991, %v7147
    %7149 = vmatpush1.msra.mxu0 %v7148
    %7150 = vmatprep.subr.mxu0 0.0
    %v7151 = vand.u32 %v5992, 4294901760
    %v7152 = vsub.f32 %v5992, %v7151
    %7153 = vmatpush1.msra.mxu0 %v7152
    %v7154 = vand.u32 %v5898, 4294901760
    %v7155 = vsub.f32 %v5898, %v7154
    %7156 = vmatprep.mubr.f32.mxu0 %v7155
    %v7157 = vand.u32 %v5897, 4294901760
    %v7158 = vsub.f32 %v5897, %v7157
    %7159 = vmatmul.mubr.f32.gmra.mrb[0].mxu0 %v7158
    %v7160 = vpop.f32.mrb[0].mxu0
    %v7161 = vadd.f32 %v6806, %v7160
    %v7162 = vpop.f32.mrb[0].mxu0
    %v7163 = vand.u32 %v5900, 4294901760
    %v7164 = vsub.f32 %v5900, %v7163
    %7165 = vmatprep.mubr.f32.mxu0 %v7164
    %v7166 = vand.u32 %v5899, 4294901760
    %v7167 = vsub.f32 %v5899, %v7166
    %7168 = vmatmul.mubr.f32.gmra.mrb[0].mxu0 %v7167
    %v7169 = vpop.f32.mrb[0].mxu0
    %v7170 = vadd.f32 %v6813, %v7169
    %v7171 = vpop.f32.mrb[0].mxu0
    %v7172 = vand.u32 %v5902, 4294901760
    %v7173 = vsub.f32 %v5902, %v7172
    %7174 = vmatprep.mubr.f32.mxu0 %v7173
    %v7175 = vand.u32 %v5901, 4294901760
    %v7176 = vsub.f32 %v5901, %v7175
    %7177 = vmatmul.mubr.f32.gmra.mrb[0].mxu0 %v7176
    %v7178 = vpop.f32.mrb[0].mxu0
    %v7179 = vadd.f32 %v6820, %v7178
    %v7180 = vpop.f32.mrb[0].mxu0
    %v7181 = vand.u32 %v5904, 4294901760
    %v7182 = vsub.f32 %v5904, %v7181
    %7183 = vmatprep.mubr.f32.mxu0 %v7182
    %v7184 = vand.u32 %v5903, 4294901760
    %v7185 = vsub.f32 %v5903, %v7184
    %7186 = vmatmul.mubr.f32.gmra.mrb[0].mxu0 %v7185
    %v7187 = vpop.f32.mrb[0].mxu0
    %v7188 = vadd.f32 %v6827, %v7187
    %v7189 = vpop.f32.mrb[0].mxu0
    %v7190 = vand.u32 %v5906, 4294901760
    %v7191 = vsub.f32 %v5906, %v7190
    %7192 = vmatprep.mubr.f32.mxu0 %v7191
    %v7193 = vand.u32 %v5905, 4294901760
    %v7194 = vsub.f32 %v5905, %v7193
    %7195 = vmatmul.mubr.f32.gmra.mrb[0].mxu0 %v7194
    %v7196 = vpop.f32.mrb[0].mxu0
    %v7197 = vadd.f32 %v6834, %v7196
    %v7198 = vpop.f32.mrb[0].mxu0
    %v7199 = vand.u32 %v5908, 4294901760
    %v7200 = vsub.f32 %v5908, %v7199
    %7201 = vmatprep.mubr.f32.mxu0 %v7200
    %v7202 = vand.u32 %v5907, 4294901760
    %v7203 = vsub.f32 %v5907, %v7202
    %7204 = vmatmul.mubr.f32.gmra.mrb[0].mxu0 %v7203
    %v7205 = vpop.f32.mrb[0].mxu0
    %v7206 = vadd.f32 %v6841, %v7205
    %v7207 = vpop.f32.mrb[0].mxu0
    %v7208 = vand.u32 %v5910, 4294901760
    %v7209 = vsub.f32 %v5910, %v7208
    %7210 = vmatprep.mubr.f32.mxu0 %v7209
    %v7211 = vand.u32 %v5909, 4294901760
    %v7212 = vsub.f32 %v5909, %v7211
    %7213 = vmatmul.mubr.f32.gmra.mrb[0].mxu0 %v7212
    %v7214 = vpop.f32.mrb[0].mxu0
    %v7215 = vadd.f32 %v6848, %v7214
    %v7216 = vpop.f32.mrb[0].mxu0
    %v7217 = vand.u32 %v5912, 4294901760
    %v7218 = vsub.f32 %v5912, %v7217
    %7219 = vmatprep.mubr.f32.mxu0 %v7218
    %v7220 = vand.u32 %v5911, 4294901760
    %v7221 = vsub.f32 %v5911, %v7220
    %7222 = vmatmul.mubr.f32.gmra.mrb[0].mxu0 %v7221
    %v7223 = vpop.f32.mrb[0].mxu0
    %v7224 = vadd.f32 %v6855, %v7223
    %v7225 = vpop.f32.mrb[0].mxu0
    %v7226 = vand.u32 %v5914, 4294901760
    %v7227 = vsub.f32 %v5914, %v7226
    %7228 = vmatprep.mubr.f32.mxu0 %v7227
    %v7229 = vand.u32 %v5913, 4294901760
    %v7230 = vsub.f32 %v5913, %v7229
    %7231 = vmatmul.mubr.f32.gmra.mrb[0].mxu0 %v7230
    %v7232 = vpop.f32.mrb[0].mxu0
    %v7233 = vadd.f32 %v6862, %v7232
    %v7234 = vpop.f32.mrb[0].mxu0
    %v7235 = vand.u32 %v5916, 4294901760
    %v7236 = vsub.f32 %v5916, %v7235
    %7237 = vmatprep.mubr.f32.mxu0 %v7236
    %v7238 = vand.u32 %v5915, 4294901760
    %v7239 = vsub.f32 %v5915, %v7238
    %7240 = vmatmul.mubr.f32.gmra.mrb[0].mxu0 %v7239
    %v7241 = vpop.f32.mrb[0].mxu0
    %v7242 = vadd.f32 %v6869, %v7241
    %v7243 = vpop.f32.mrb[0].mxu0
    %v7244 = vand.u32 %v5918, 4294901760
    %v7245 = vsub.f32 %v5918, %v7244
    %7246 = vmatprep.mubr.f32.mxu0 %v7245
    %v7247 = vand.u32 %v5917, 4294901760
    %v7248 = vsub.f32 %v5917, %v7247
    %7249 = vmatmul.mubr.f32.gmra.mrb[0].mxu0 %v7248
    %v7250 = vpop.f32.mrb[0].mxu0
    %v7251 = vadd.f32 %v6876, %v7250
    %v7252 = vpop.f32.mrb[0].mxu0
    %v7253 = vand.u32 %v5920, 4294901760
    %v7254 = vsub.f32 %v5920, %v7253
    %7255 = vmatprep.mubr.f32.mxu0 %v7254
    %v7256 = vand.u32 %v5919, 4294901760
    %v7257 = vsub.f32 %v5919, %v7256
    %7258 = vmatmul.mubr.f32.gmra.mrb[0].mxu0 %v7257
    %v7259 = vpop.f32.mrb[0].mxu0
    %v7260 = vadd.f32 %v6883, %v7259
    %v7261 = vpop.f32.mrb[0].mxu0
    %v7262 = vand.u32 %v5922, 4294901760
    %v7263 = vsub.f32 %v5922, %v7262
    %7264 = vmatprep.mubr.f32.mxu0 %v7263
    %v7265 = vand.u32 %v5921, 4294901760
    %v7266 = vsub.f32 %v5921, %v7265
    %7267 = vmatmul.mubr.f32.gmra.mrb[0].mxu0 %v7266
    %v7268 = vpop.f32.mrb[0].mxu0
    %v7269 = vadd.f32 %v6890, %v7268
    %v7270 = vpop.f32.mrb[0].mxu0
    %v7271 = vand.u32 %v5924, 4294901760
    %v7272 = vsub.f32 %v5924, %v7271
    %7273 = vmatprep.mubr.f32.mxu0 %v7272
    %v7274 = vand.u32 %v5923, 4294901760
    %v7275 = vsub.f32 %v5923, %v7274
    %7276 = vmatmul.mubr.f32.gmra.mrb[0].mxu0 %v7275
    %v7277 = vpop.f32.mrb[0].mxu0
    %v7278 = vadd.f32 %v6897, %v7277
    %v7279 = vpop.f32.mrb[0].mxu0
    %v7280 = vand.u32 %v5926, 4294901760
    %v7281 = vsub.f32 %v5926, %v7280
    %7282 = vmatprep.mubr.f32.mxu0 %v7281
    %v7283 = vand.u32 %v5925, 4294901760
    %v7284 = vsub.f32 %v5925, %v7283
    %7285 = vmatmul.mubr.f32.gmra.mrb[0].mxu0 %v7284
    %v7286 = vpop.f32.mrb[0].mxu0
    %v7287 = vadd.f32 %v6904, %v7286
    %v7288 = vpop.f32.mrb[0].mxu0
    %v7289 = vand.u32 %v5928, 4294901760
    %v7290 = vsub.f32 %v5928, %v7289
    %7291 = vmatprep.mubr.f32.mxu0 %v7290
    %v7292 = vand.u32 %v5927, 4294901760
    %v7293 = vsub.f32 %v5927, %v7292
    %7294 = vmatmul.mubr.f32.gmra.mrb[0].mxu0 %v7293
    %v7295 = vpop.f32.mrb[0].mxu0
    %v7296 = vadd.f32 %v6911, %v7295
    %v7297 = vpop.f32.mrb[0].mxu0
    %v7298 = vand.u32 %v5930, 4294901760
    %v7299 = vsub.f32 %v5930, %v7298
    %7300 = vmatprep.mubr.f32.mxu0 %v7299
    %v7301 = vand.u32 %v5929, 4294901760
    %v7302 = vsub.f32 %v5929, %v7301
    %7303 = vmatmul.mubr.f32.gmra.mrb[0].mxu0 %v7302
    %v7304 = vpop.f32.mrb[0].mxu0
    %v7305 = vadd.f32 %v6918, %v7304
    %v7306 = vpop.f32.mrb[0].mxu0
    %v7307 = vand.u32 %v5932, 4294901760
    %v7308 = vsub.f32 %v5932, %v7307
    %7309 = vmatprep.mubr.f32.mxu0 %v7308
    %v7310 = vand.u32 %v5931, 4294901760
    %v7311 = vsub.f32 %v5931, %v7310
    %7312 = vmatmul.mubr.f32.gmra.mrb[0].mxu0 %v7311
    %v7313 = vpop.f32.mrb[0].mxu0
    %v7314 = vadd.f32 %v6925, %v7313
    %v7315 = vpop.f32.mrb[0].mxu0
    %v7316 = vand.u32 %v5934, 4294901760
    %v7317 = vsub.f32 %v5934, %v7316
    %7318 = vmatprep.mubr.f32.mxu0 %v7317
    %v7319 = vand.u32 %v5933, 4294901760
    %v7320 = vsub.f32 %v5933, %v7319
    %7321 = vmatmul.mubr.f32.gmra.mrb[0].mxu0 %v7320
    %v7322 = vpop.f32.mrb[0].mxu0
    %v7323 = vadd.f32 %v6932, %v7322
    %v7324 = vpop.f32.mrb[0].mxu0
    %v7325 = vand.u32 %v5936, 4294901760
    %v7326 = vsub.f32 %v5936, %v7325
    %7327 = vmatprep.mubr.f32.mxu0 %v7326
    %v7328 = vand.u32 %v5935, 4294901760
    %v7329 = vsub.f32 %v5935, %v7328
    %7330 = vmatmul.mubr.f32.gmra.mrb[0].mxu0 %v7329
    %v7331 = vpop.f32.mrb[0].mxu0
    %v7332 = vadd.f32 %v6939, %v7331
    %v7333 = vpop.f32.mrb[0].mxu0
    %v7334 = vand.u32 %v5938, 4294901760
    %v7335 = vsub.f32 %v5938, %v7334
    %7336 = vmatprep.mubr.f32.mxu0 %v7335
    %v7337 = vand.u32 %v5937, 4294901760
    %v7338 = vsub.f32 %v5937, %v7337
    %7339 = vmatmul.mubr.f32.gmra.mrb[0].mxu0 %v7338
    %v7340 = vpop.f32.mrb[0].mxu0
    %v7341 = vadd.f32 %v6946, %v7340
    %v7342 = vpop.f32.mrb[0].mxu0
    %v7343 = vand.u32 %v5940, 4294901760
    %v7344 = vsub.f32 %v5940, %v7343
    %7345 = vmatprep.mubr.f32.mxu0 %v7344
    %v7346 = vand.u32 %v5939, 4294901760
    %v7347 = vsub.f32 %v5939, %v7346
    %7348 = vmatmul.mubr.f32.gmra.mrb[0].mxu0 %v7347
    %v7349 = vpop.f32.mrb[0].mxu0
    %v7350 = vadd.f32 %v6953, %v7349
    %v7351 = vpop.f32.mrb[0].mxu0
    %v7352 = vand.u32 %v5942, 4294901760
    %v7353 = vsub.f32 %v5942, %v7352
    %7354 = vmatprep.mubr.f32.mxu0 %v7353
    %v7355 = vand.u32 %v5941, 4294901760
    %v7356 = vsub.f32 %v5941, %v7355
    %7357 = vmatmul.mubr.f32.gmra.mrb[0].mxu0 %v7356
    %v7358 = vpop.f32.mrb[0].mxu0
    %v7359 = vadd.f32 %v6960, %v7358
    %v7360 = vpop.f32.mrb[0].mxu0
    %v7361 = vand.u32 %v5944, 4294901760
    %v7362 = vsub.f32 %v5944, %v7361
    %7363 = vmatprep.mubr.f32.mxu0 %v7362
    %v7364 = vand.u32 %v5943, 4294901760
    %v7365 = vsub.f32 %v5943, %v7364
    %7366 = vmatmul.mubr.f32.gmra.mrb[0].mxu0 %v7365
    %v7367 = vpop.f32.mrb[0].mxu0
    %v7368 = vadd.f32 %v6967, %v7367
    %v7369 = vpop.f32.mrb[0].mxu0
    %v7370 = vand.u32 %v5946, 4294901760
    %v7371 = vsub.f32 %v5946, %v7370
    %7372 = vmatprep.mubr.f32.mxu0 %v7371
    %v7373 = vand.u32 %v5945, 4294901760
    %v7374 = vsub.f32 %v5945, %v7373
    %7375 = vmatmul.mubr.f32.gmra.mrb[0].mxu0 %v7374
    %v7376 = vpop.f32.mrb[0].mxu0
    %v7377 = vadd.f32 %v6974, %v7376
    %v7378 = vpop.f32.mrb[0].mxu0
    %v7379 = vand.u32 %v5948, 4294901760
    %v7380 = vsub.f32 %v5948, %v7379
    %7381 = vmatprep.mubr.f32.mxu0 %v7380
    %v7382 = vand.u32 %v5947, 4294901760
    %v7383 = vsub.f32 %v5947, %v7382
    %7384 = vmatmul.mubr.f32.gmra.mrb[0].mxu0 %v7383
    %v7385 = vpop.f32.mrb[0].mxu0
    %v7386 = vadd.f32 %v6981, %v7385
    %v7387 = vpop.f32.mrb[0].mxu0
    %v7388 = vand.u32 %v5950, 4294901760
    %v7389 = vsub.f32 %v5950, %v7388
    %7390 = vmatprep.mubr.f32.mxu0 %v7389
    %v7391 = vand.u32 %v5949, 4294901760
    %v7392 = vsub.f32 %v5949, %v7391
    %7393 = vmatmul.mubr.f32.gmra.mrb[0].mxu0 %v7392
    %v7394 = vpop.f32.mrb[0].mxu0
    %v7395 = vadd.f32 %v6988, %v7394
    %v7396 = vpop.f32.mrb[0].mxu0
    %v7397 = vand.u32 %v5952, 4294901760
    %v7398 = vsub.f32 %v5952, %v7397
    %7399 = vmatprep.mubr.f32.mxu0 %v7398
    %v7400 = vand.u32 %v5951, 4294901760
    %v7401 = vsub.f32 %v5951, %v7400
    %7402 = vmatmul.mubr.f32.gmra.mrb[0].mxu0 %v7401
    %v7403 = vpop.f32.mrb[0].mxu0
    %v7404 = vadd.f32 %v6995, %v7403
    %v7405 = vpop.f32.mrb[0].mxu0
    %v7406 = vand.u32 %v5954, 4294901760
    %v7407 = vsub.f32 %v5954, %v7406
    %7408 = vmatprep.mubr.f32.mxu0 %v7407
    %v7409 = vand.u32 %v5953, 4294901760
    %v7410 = vsub.f32 %v5953, %v7409
    %7411 = vmatmul.mubr.f32.gmra.mrb[0].mxu0 %v7410
    %v7412 = vpop.f32.mrb[0].mxu0
    %v7413 = vadd.f32 %v7002, %v7412
    %v7414 = vpop.f32.mrb[0].mxu0
    %v7415 = vand.u32 %v5956, 4294901760
    %v7416 = vsub.f32 %v5956, %v7415
    %7417 = vmatprep.mubr.f32.mxu0 %v7416
    %v7418 = vand.u32 %v5955, 4294901760
    %v7419 = vsub.f32 %v5955, %v7418
    %7420 = vmatmul.mubr.f32.gmra.mrb[0].mxu0 %v7419
    %v7421 = vpop.f32.mrb[0].mxu0
    %v7422 = vadd.f32 %v7009, %v7421
    %v7423 = vpop.f32.mrb[0].mxu0
    %v7424 = vand.u32 %v5958, 4294901760
    %v7425 = vsub.f32 %v5958, %v7424
    %7426 = vmatprep.mubr.f32.mxu0 %v7425
    %v7427 = vand.u32 %v5957, 4294901760
    %v7428 = vsub.f32 %v5957, %v7427
    %7429 = vmatmul.mubr.f32.gmra.mrb[0].mxu0 %v7428
    %v7430 = vpop.f32.mrb[0].mxu0
    %v7431 = vadd.f32 %v7016, %v7430
    %v7432 = vpop.f32.mrb[0].mxu0
    %v7433 = vand.u32 %v5960, 4294901760
    %v7434 = vsub.f32 %v5960, %v7433
    %7435 = vmatprep.mubr.f32.mxu0 %v7434
    %v7436 = vand.u32 %v5959, 4294901760
    %v7437 = vsub.f32 %v5959, %v7436
    %7438 = vmatmul.mubr.f32.gmra.mrb[0].mxu0 %v7437
    %v7439 = vpop.f32.mrb[0].mxu0
    %v7440 = vadd.f32 %v7023, %v7439
    %v7441 = vpop.f32.mrb[0].mxu0
    %7442 = vdwg.mxu0
    %7443 = vmatprep.subr.mxu0 0.0
    %v7444 = vand.u32 %v5961, 4294901760
    %7445 = vmatpush1.msra.mxu0 %v7444
    %7446 = vmatprep.subr.mxu0 0.0
    %v7447 = vand.u32 %v5962, 4294901760
    %7448 = vmatpush1.msra.mxu0 %v7447
    %7449 = vmatprep.subr.mxu0 0.0
    %v7450 = vand.u32 %v5963, 4294901760
    %7451 = vmatpush1.msra.mxu0 %v7450
    %7452 = vmatprep.subr.mxu0 0.0
    %v7453 = vand.u32 %v5964, 4294901760
    %7454 = vmatpush1.msra.mxu0 %v7453
    %7455 = vmatprep.subr.mxu0 0.0
    %v7456 = vand.u32 %v5965, 4294901760
    %7457 = vmatpush1.msra.mxu0 %v7456
    %7458 = vmatprep.subr.mxu0 0.0
    %v7459 = vand.u32 %v5966, 4294901760
    %7460 = vmatpush1.msra.mxu0 %v7459
    %7461 = vmatprep.subr.mxu0 0.0
    %v7462 = vand.u32 %v5967, 4294901760
    %7463 = vmatpush1.msra.mxu0 %v7462
    %7464 = vmatprep.subr.mxu0 0.0
    %v7465 = vand.u32 %v5968, 4294901760
    %7466 = vmatpush1.msra.mxu0 %v7465
    %7467 = vmatprep.subr.mxu0 0.0
    %v7468 = vand.u32 %v5969, 4294901760
    %7469 = vmatpush1.msra.mxu0 %v7468
    %7470 = vmatprep.subr.mxu0 0.0
    %v7471 = vand.u32 %v5970, 4294901760
    %7472 = vmatpush1.msra.mxu0 %v7471
    %7473 = vmatprep.subr.mxu0 0.0
    %v7474 = vand.u32 %v5971, 4294901760
    %7475 = vmatpush1.msra.mxu0 %v7474
    %7476 = vmatprep.subr.mxu0 0.0
    %v7477 = vand.u32 %v5972, 4294901760
    %7478 = vmatpush1.msra.mxu0 %v7477
    %7479 = vmatprep.subr.mxu0 0.0
    %v7480 = vand.u32 %v5973, 4294901760
    %7481 = vmatpush1.msra.mxu0 %v7480
    %7482 = vmatprep.subr.mxu0 0.0
    %v7483 = vand.u32 %v5974, 4294901760
    %7484 = vmatpush1.msra.mxu0 %v7483
    %7485 = vmatprep.subr.mxu0 0.0
    %v7486 = vand.u32 %v5975, 4294901760
    %7487 = vmatpush1.msra.mxu0 %v7486
    %7488 = vmatprep.subr.mxu0 0.0
    %v7489 = vand.u32 %v5976, 4294901760
    %7490 = vmatpush1.msra.mxu0 %v7489
    %7491 = vmatprep.subr.mxu0 0.0
    %v7492 = vand.u32 %v5977, 4294901760
    %7493 = vmatpush1.msra.mxu0 %v7492
    %7494 = vmatprep.subr.mxu0 0.0
    %v7495 = vand.u32 %v5978, 4294901760
    %7496 = vmatpush1.msra.mxu0 %v7495
    %7497 = vmatprep.subr.mxu0 0.0
    %v7498 = vand.u32 %v5979, 4294901760
    %7499 = vmatpush1.msra.mxu0 %v7498
    %7500 = vmatprep.subr.mxu0 0.0
    %v7501 = vand.u32 %v5980, 4294901760
    %7502 = vmatpush1.msra.mxu0 %v7501
    %7503 = vmatprep.subr.mxu0 0.0
    %v7504 = vand.u32 %v5981, 4294901760
    %7505 = vmatpush1.msra.mxu0 %v7504
    %7506 = vmatprep.subr.mxu0 0.0
    %v7507 = vand.u32 %v5982, 4294901760
    %7508 = vmatpush1.msra.mxu0 %v7507
    %7509 = vmatprep.subr.mxu0 0.0
    %v7510 = vand.u32 %v5983, 4294901760
    %7511 = vmatpush1.msra.mxu0 %v7510
    %7512 = vmatprep.subr.mxu0 0.0
    %v7513 = vand.u32 %v5984, 4294901760
    %7514 = vmatpush1.msra.mxu0 %v7513
    %7515 = vmatprep.subr.mxu0 0.0
    %v7516 = vand.u32 %v5985, 4294901760
    %7517 = vmatpush1.msra.mxu0 %v7516
    %7518 = vmatprep.subr.mxu0 0.0
    %v7519 = vand.u32 %v5986, 4294901760
    %7520 = vmatpush1.msra.mxu0 %v7519
    %7521 = vmatprep.subr.mxu0 0.0
    %v7522 = vand.u32 %v5987, 4294901760
    %7523 = vmatpush1.msra.mxu0 %v7522
    %7524 = vmatprep.subr.mxu0 0.0
    %v7525 = vand.u32 %v5988, 4294901760
    %7526 = vmatpush1.msra.mxu0 %v7525
    %7527 = vmatprep.subr.mxu0 0.0
    %v7528 = vand.u32 %v5989, 4294901760
    %7529 = vmatpush1.msra.mxu0 %v7528
    %7530 = vmatprep.subr.mxu0 0.0
    %v7531 = vand.u32 %v5990, 4294901760
    %7532 = vmatpush1.msra.mxu0 %v7531
    %7533 = vmatprep.subr.mxu0 0.0
    %v7534 = vand.u32 %v5991, 4294901760
    %7535 = vmatpush1.msra.mxu0 %v7534
    %7536 = vmatprep.subr.mxu0 0.0
    %v7537 = vand.u32 %v5992, 4294901760
    %7538 = vmatpush1.msra.mxu0 %v7537
    %v7539 = vand.u32 %v5898, 4294901760
    %v7540 = vsub.f32 %v5898, %v7539
    %v7541 = vand.u32 %v7540, 4294901760
    %7542 = vmatprep.mubr.f32.mxu0 %v7541
    %v7543 = vand.u32 %v5897, 4294901760
    %v7544 = vsub.f32 %v5897, %v7543
    %v7545 = vand.u32 %v7544, 4294901760
    %7546 = vmatmul.mubr.f32.gmra.mrb[0].mxu0 %v7545
    %v7547 = vpop.f32.mrb[0].mxu0
    %v7548 = vadd.f32 %v7161, %v7547
    %v7549 = vpop.f32.mrb[0].mxu0
    %v7550 = vand.u32 %v5900, 4294901760
    %v7551 = vsub.f32 %v5900, %v7550
    %v7552 = vand.u32 %v7551, 4294901760
    %7553 = vmatprep.mubr.f32.mxu0 %v7552
    %v7554 = vand.u32 %v5899, 4294901760
    %v7555 = vsub.f32 %v5899, %v7554
    %v7556 = vand.u32 %v7555, 4294901760
    %7557 = vmatmul.mubr.f32.gmra.mrb[0].mxu0 %v7556
    %v7558 = vpop.f32.mrb[0].mxu0
    %v7559 = vadd.f32 %v7170, %v7558
    %v7560 = vpop.f32.mrb[0].mxu0
    %v7561 = vand.u32 %v5902, 4294901760
    %v7562 = vsub.f32 %v5902, %v7561
    %v7563 = vand.u32 %v7562, 4294901760
    %7564 = vmatprep.mubr.f32.mxu0 %v7563
    %v7565 = vand.u32 %v5901, 4294901760
    %v7566 = vsub.f32 %v5901, %v7565
    %v7567 = vand.u32 %v7566, 4294901760
    %7568 = vmatmul.mubr.f32.gmra.mrb[0].mxu0 %v7567
    %v7569 = vpop.f32.mrb[0].mxu0
    %v7570 = vadd.f32 %v7179, %v7569
    %v7571 = vpop.f32.mrb[0].mxu0
    %v7572 = vand.u32 %v5904, 4294901760
    %v7573 = vsub.f32 %v5904, %v7572
    %v7574 = vand.u32 %v7573, 4294901760
    %7575 = vmatprep.mubr.f32.mxu0 %v7574
    %v7576 = vand.u32 %v5903, 4294901760
    %v7577 = vsub.f32 %v5903, %v7576
    %v7578 = vand.u32 %v7577, 4294901760
    %7579 = vmatmul.mubr.f32.gmra.mrb[0].mxu0 %v7578
    %v7580 = vpop.f32.mrb[0].mxu0
    %v7581 = vadd.f32 %v7188, %v7580
    %v7582 = vpop.f32.mrb[0].mxu0
    %v7583 = vand.u32 %v5906, 4294901760
    %v7584 = vsub.f32 %v5906, %v7583
    %v7585 = vand.u32 %v7584, 4294901760
    %7586 = vmatprep.mubr.f32.mxu0 %v7585
    %v7587 = vand.u32 %v5905, 4294901760
    %v7588 = vsub.f32 %v5905, %v7587
    %v7589 = vand.u32 %v7588, 4294901760
    %7590 = vmatmul.mubr.f32.gmra.mrb[0].mxu0 %v7589
    %v7591 = vpop.f32.mrb[0].mxu0
    %v7592 = vadd.f32 %v7197, %v7591
    %v7593 = vpop.f32.mrb[0].mxu0
    %v7594 = vand.u32 %v5908, 4294901760
    %v7595 = vsub.f32 %v5908, %v7594
    %v7596 = vand.u32 %v7595, 4294901760
    %7597 = vmatprep.mubr.f32.mxu0 %v7596
    %v7598 = vand.u32 %v5907, 4294901760
    %v7599 = vsub.f32 %v5907, %v7598
    %v7600 = vand.u32 %v7599, 4294901760
    %7601 = vmatmul.mubr.f32.gmra.mrb[0].mxu0 %v7600
    %v7602 = vpop.f32.mrb[0].mxu0
    %v7603 = vadd.f32 %v7206, %v7602
    %v7604 = vpop.f32.mrb[0].mxu0
    %v7605 = vand.u32 %v5910, 4294901760
    %v7606 = vsub.f32 %v5910, %v7605
    %v7607 = vand.u32 %v7606, 4294901760
    %7608 = vmatprep.mubr.f32.mxu0 %v7607
    %v7609 = vand.u32 %v5909, 4294901760
    %v7610 = vsub.f32 %v5909, %v7609
    %v7611 = vand.u32 %v7610, 4294901760
    %7612 = vmatmul.mubr.f32.gmra.mrb[0].mxu0 %v7611
    %v7613 = vpop.f32.mrb[0].mxu0
    %v7614 = vadd.f32 %v7215, %v7613
    %v7615 = vpop.f32.mrb[0].mxu0
    %v7616 = vand.u32 %v5912, 4294901760
    %v7617 = vsub.f32 %v5912, %v7616
    %v7618 = vand.u32 %v7617, 4294901760
    %7619 = vmatprep.mubr.f32.mxu0 %v7618
    %v7620 = vand.u32 %v5911, 4294901760
    %v7621 = vsub.f32 %v5911, %v7620
    %v7622 = vand.u32 %v7621, 4294901760
    %7623 = vmatmul.mubr.f32.gmra.mrb[0].mxu0 %v7622
    %v7624 = vpop.f32.mrb[0].mxu0
    %v7625 = vadd.f32 %v7224, %v7624
    %v7626 = vpop.f32.mrb[0].mxu0
    %v7627 = vand.u32 %v5914, 4294901760
    %v7628 = vsub.f32 %v5914, %v7627
    %v7629 = vand.u32 %v7628, 4294901760
    %7630 = vmatprep.mubr.f32.mxu0 %v7629
    %v7631 = vand.u32 %v5913, 4294901760
    %v7632 = vsub.f32 %v5913, %v7631
    %v7633 = vand.u32 %v7632, 4294901760
    %7634 = vmatmul.mubr.f32.gmra.mrb[0].mxu0 %v7633
    %v7635 = vpop.f32.mrb[0].mxu0
    %v7636 = vadd.f32 %v7233, %v7635
    %v7637 = vpop.f32.mrb[0].mxu0
    %v7638 = vand.u32 %v5916, 4294901760
    %v7639 = vsub.f32 %v5916, %v7638
    %v7640 = vand.u32 %v7639, 4294901760
    %7641 = vmatprep.mubr.f32.mxu0 %v7640
    %v7642 = vand.u32 %v5915, 4294901760
    %v7643 = vsub.f32 %v5915, %v7642
    %v7644 = vand.u32 %v7643, 4294901760
    %7645 = vmatmul.mubr.f32.gmra.mrb[0].mxu0 %v7644
    %v7646 = vpop.f32.mrb[0].mxu0
    %v7647 = vadd.f32 %v7242, %v7646
    %v7648 = vpop.f32.mrb[0].mxu0
    %v7649 = vand.u32 %v5918, 4294901760
    %v7650 = vsub.f32 %v5918, %v7649
    %v7651 = vand.u32 %v7650, 4294901760
    %7652 = vmatprep.mubr.f32.mxu0 %v7651
    %v7653 = vand.u32 %v5917, 4294901760
    %v7654 = vsub.f32 %v5917, %v7653
    %v7655 = vand.u32 %v7654, 4294901760
    %7656 = vmatmul.mubr.f32.gmra.mrb[0].mxu0 %v7655
    %v7657 = vpop.f32.mrb[0].mxu0
    %v7658 = vadd.f32 %v7251, %v7657
    %v7659 = vpop.f32.mrb[0].mxu0
    %v7660 = vand.u32 %v5920, 4294901760
    %v7661 = vsub.f32 %v5920, %v7660
    %v7662 = vand.u32 %v7661, 4294901760
    %7663 = vmatprep.mubr.f32.mxu0 %v7662
    %v7664 = vand.u32 %v5919, 4294901760
    %v7665 = vsub.f32 %v5919, %v7664
    %v7666 = vand.u32 %v7665, 4294901760
    %7667 = vmatmul.mubr.f32.gmra.mrb[0].mxu0 %v7666
    %v7668 = vpop.f32.mrb[0].mxu0
    %v7669 = vadd.f32 %v7260, %v7668
    %v7670 = vpop.f32.mrb[0].mxu0
    %v7671 = vand.u32 %v5922, 4294901760
    %v7672 = vsub.f32 %v5922, %v7671
    %v7673 = vand.u32 %v7672, 4294901760
    %7674 = vmatprep.mubr.f32.mxu0 %v7673
    %v7675 = vand.u32 %v5921, 4294901760
    %v7676 = vsub.f32 %v5921, %v7675
    %v7677 = vand.u32 %v7676, 4294901760
    %7678 = vmatmul.mubr.f32.gmra.mrb[0].mxu0 %v7677
    %v7679 = vpop.f32.mrb[0].mxu0
    %v7680 = vadd.f32 %v7269, %v7679
    %v7681 = vpop.f32.mrb[0].mxu0
    %v7682 = vand.u32 %v5924, 4294901760
    %v7683 = vsub.f32 %v5924, %v7682
    %v7684 = vand.u32 %v7683, 4294901760
    %7685 = vmatprep.mubr.f32.mxu0 %v7684
    %v7686 = vand.u32 %v5923, 4294901760
    %v7687 = vsub.f32 %v5923, %v7686
    %v7688 = vand.u32 %v7687, 4294901760
    %7689 = vmatmul.mubr.f32.gmra.mrb[0].mxu0 %v7688
    %v7690 = vpop.f32.mrb[0].mxu0
    %v7691 = vadd.f32 %v7278, %v7690
    %v7692 = vpop.f32.mrb[0].mxu0
    %v7693 = vand.u32 %v5926, 4294901760
    %v7694 = vsub.f32 %v5926, %v7693
    %v7695 = vand.u32 %v7694, 4294901760
    %7696 = vmatprep.mubr.f32.mxu0 %v7695
    %v7697 = vand.u32 %v5925, 4294901760
    %v7698 = vsub.f32 %v5925, %v7697
    %v7699 = vand.u32 %v7698, 4294901760
    %7700 = vmatmul.mubr.f32.gmra.mrb[0].mxu0 %v7699
    %v7701 = vpop.f32.mrb[0].mxu0
    %v7702 = vadd.f32 %v7287, %v7701
    %v7703 = vpop.f32.mrb[0].mxu0
    %v7704 = vand.u32 %v5928, 4294901760
    %v7705 = vsub.f32 %v5928, %v7704
    %v7706 = vand.u32 %v7705, 4294901760
    %7707 = vmatprep.mubr.f32.mxu0 %v7706
    %v7708 = vand.u32 %v5927, 4294901760
    %v7709 = vsub.f32 %v5927, %v7708
    %v7710 = vand.u32 %v7709, 4294901760
    %7711 = vmatmul.mubr.f32.gmra.mrb[0].mxu0 %v7710
    %v7712 = vpop.f32.mrb[0].mxu0
    %v7713 = vadd.f32 %v7296, %v7712
    %v7714 = vpop.f32.mrb[0].mxu0
    %v7715 = vand.u32 %v5930, 4294901760
    %v7716 = vsub.f32 %v5930, %v7715
    %v7717 = vand.u32 %v7716, 4294901760
    %7718 = vmatprep.mubr.f32.mxu0 %v7717
    %v7719 = vand.u32 %v5929, 4294901760
    %v7720 = vsub.f32 %v5929, %v7719
    %v7721 = vand.u32 %v7720, 4294901760
    %7722 = vmatmul.mubr.f32.gmra.mrb[0].mxu0 %v7721
    %v7723 = vpop.f32.mrb[0].mxu0
    %v7724 = vadd.f32 %v7305, %v7723
    %v7725 = vpop.f32.mrb[0].mxu0
    %v7726 = vand.u32 %v5932, 4294901760
    %v7727 = vsub.f32 %v5932, %v7726
    %v7728 = vand.u32 %v7727, 4294901760
    %7729 = vmatprep.mubr.f32.mxu0 %v7728
    %v7730 = vand.u32 %v5931, 4294901760
    %v7731 = vsub.f32 %v5931, %v7730
    %v7732 = vand.u32 %v7731, 4294901760
    %7733 = vmatmul.mubr.f32.gmra.mrb[0].mxu0 %v7732
    %v7734 = vpop.f32.mrb[0].mxu0
    %v7735 = vadd.f32 %v7314, %v7734
    %v7736 = vpop.f32.mrb[0].mxu0
    %v7737 = vand.u32 %v5934, 4294901760
    %v7738 = vsub.f32 %v5934, %v7737
    %v7739 = vand.u32 %v7738, 4294901760
    %7740 = vmatprep.mubr.f32.mxu0 %v7739
    %v7741 = vand.u32 %v5933, 4294901760
    %v7742 = vsub.f32 %v5933, %v7741
    %v7743 = vand.u32 %v7742, 4294901760
    %7744 = vmatmul.mubr.f32.gmra.mrb[0].mxu0 %v7743
    %v7745 = vpop.f32.mrb[0].mxu0
    %v7746 = vadd.f32 %v7323, %v7745
    %v7747 = vpop.f32.mrb[0].mxu0
    %v7748 = vand.u32 %v5936, 4294901760
    %v7749 = vsub.f32 %v5936, %v7748
    %v7750 = vand.u32 %v7749, 4294901760
    %7751 = vmatprep.mubr.f32.mxu0 %v7750
    %v7752 = vand.u32 %v5935, 4294901760
    %v7753 = vsub.f32 %v5935, %v7752
    %v7754 = vand.u32 %v7753, 4294901760
    %7755 = vmatmul.mubr.f32.gmra.mrb[0].mxu0 %v7754
    %v7756 = vpop.f32.mrb[0].mxu0
    %v7757 = vadd.f32 %v7332, %v7756
    %v7758 = vpop.f32.mrb[0].mxu0
    %v7759 = vand.u32 %v5938, 4294901760
    %v7760 = vsub.f32 %v5938, %v7759
    %v7761 = vand.u32 %v7760, 4294901760
    %7762 = vmatprep.mubr.f32.mxu0 %v7761
    %v7763 = vand.u32 %v5937, 4294901760
    %v7764 = vsub.f32 %v5937, %v7763
    %v7765 = vand.u32 %v7764, 4294901760
    %7766 = vmatmul.mubr.f32.gmra.mrb[0].mxu0 %v7765
    %v7767 = vpop.f32.mrb[0].mxu0
    %v7768 = vadd.f32 %v7341, %v7767
    %v7769 = vpop.f32.mrb[0].mxu0
    %v7770 = vand.u32 %v5940, 4294901760
    %v7771 = vsub.f32 %v5940, %v7770
    %v7772 = vand.u32 %v7771, 4294901760
    %7773 = vmatprep.mubr.f32.mxu0 %v7772
    %v7774 = vand.u32 %v5939, 4294901760
    %v7775 = vsub.f32 %v5939, %v7774
    %v7776 = vand.u32 %v7775, 4294901760
    %7777 = vmatmul.mubr.f32.gmra.mrb[0].mxu0 %v7776
    %v7778 = vpop.f32.mrb[0].mxu0
    %v7779 = vadd.f32 %v7350, %v7778
    %v7780 = vpop.f32.mrb[0].mxu0
    %v7781 = vand.u32 %v5942, 4294901760
    %v7782 = vsub.f32 %v5942, %v7781
    %v7783 = vand.u32 %v7782, 4294901760
    %7784 = vmatprep.mubr.f32.mxu0 %v7783
    %v7785 = vand.u32 %v5941, 4294901760
    %v7786 = vsub.f32 %v5941, %v7785
    %v7787 = vand.u32 %v7786, 4294901760
    %7788 = vmatmul.mubr.f32.gmra.mrb[0].mxu0 %v7787
    %v7789 = vpop.f32.mrb[0].mxu0
    %v7790 = vadd.f32 %v7359, %v7789
    %v7791 = vpop.f32.mrb[0].mxu0
    %v7792 = vand.u32 %v5944, 4294901760
    %v7793 = vsub.f32 %v5944, %v7792
    %v7794 = vand.u32 %v7793, 4294901760
    %7795 = vmatprep.mubr.f32.mxu0 %v7794
    %v7796 = vand.u32 %v5943, 4294901760
    %v7797 = vsub.f32 %v5943, %v7796
    %v7798 = vand.u32 %v7797, 4294901760
    %7799 = vmatmul.mubr.f32.gmra.mrb[0].mxu0 %v7798
    %v7800 = vpop.f32.mrb[0].mxu0
    %v7801 = vadd.f32 %v7368, %v7800
    %v7802 = vpop.f32.mrb[0].mxu0
    %v7803 = vand.u32 %v5946, 4294901760
    %v7804 = vsub.f32 %v5946, %v7803
    %v7805 = vand.u32 %v7804, 4294901760
    %7806 = vmatprep.mubr.f32.mxu0 %v7805
    %v7807 = vand.u32 %v5945, 4294901760
    %v7808 = vsub.f32 %v5945, %v7807
    %v7809 = vand.u32 %v7808, 4294901760
    %7810 = vmatmul.mubr.f32.gmra.mrb[0].mxu0 %v7809
    %v7811 = vpop.f32.mrb[0].mxu0
    %v7812 = vadd.f32 %v7377, %v7811
    %v7813 = vpop.f32.mrb[0].mxu0
    %v7814 = vand.u32 %v5948, 4294901760
    %v7815 = vsub.f32 %v5948, %v7814
    %v7816 = vand.u32 %v7815, 4294901760
    %7817 = vmatprep.mubr.f32.mxu0 %v7816
    %v7818 = vand.u32 %v5947, 4294901760
    %v7819 = vsub.f32 %v5947, %v7818
    %v7820 = vand.u32 %v7819, 4294901760
    %7821 = vmatmul.mubr.f32.gmra.mrb[0].mxu0 %v7820
    %v7822 = vpop.f32.mrb[0].mxu0
    %v7823 = vadd.f32 %v7386, %v7822
    %v7824 = vpop.f32.mrb[0].mxu0
    %v7825 = vand.u32 %v5950, 4294901760
    %v7826 = vsub.f32 %v5950, %v7825
    %v7827 = vand.u32 %v7826, 4294901760
    %7828 = vmatprep.mubr.f32.mxu0 %v7827
    %v7829 = vand.u32 %v5949, 4294901760
    %v7830 = vsub.f32 %v5949, %v7829
    %v7831 = vand.u32 %v7830, 4294901760
    %7832 = vmatmul.mubr.f32.gmra.mrb[0].mxu0 %v7831
    %v7833 = vpop.f32.mrb[0].mxu0
    %v7834 = vadd.f32 %v7395, %v7833
    %v7835 = vpop.f32.mrb[0].mxu0
    %v7836 = vand.u32 %v5952, 4294901760
    %v7837 = vsub.f32 %v5952, %v7836
    %v7838 = vand.u32 %v7837, 4294901760
    %7839 = vmatprep.mubr.f32.mxu0 %v7838
    %v7840 = vand.u32 %v5951, 4294901760
    %v7841 = vsub.f32 %v5951, %v7840
    %v7842 = vand.u32 %v7841, 4294901760
    %7843 = vmatmul.mubr.f32.gmra.mrb[0].mxu0 %v7842
    %v7844 = vpop.f32.mrb[0].mxu0
    %v7845 = vadd.f32 %v7404, %v7844
    %v7846 = vpop.f32.mrb[0].mxu0
    %v7847 = vand.u32 %v5954, 4294901760
    %v7848 = vsub.f32 %v5954, %v7847
    %v7849 = vand.u32 %v7848, 4294901760
    %7850 = vmatprep.mubr.f32.mxu0 %v7849
    %v7851 = vand.u32 %v5953, 4294901760
    %v7852 = vsub.f32 %v5953, %v7851
    %v7853 = vand.u32 %v7852, 4294901760
    %7854 = vmatmul.mubr.f32.gmra.mrb[0].mxu0 %v7853
    %v7855 = vpop.f32.mrb[0].mxu0
    %v7856 = vadd.f32 %v7413, %v7855
    %v7857 = vpop.f32.mrb[0].mxu0
    %v7858 = vand.u32 %v5956, 4294901760
    %v7859 = vsub.f32 %v5956, %v7858
    %v7860 = vand.u32 %v7859, 4294901760
    %7861 = vmatprep.mubr.f32.mxu0 %v7860
    %v7862 = vand.u32 %v5955, 4294901760
    %v7863 = vsub.f32 %v5955, %v7862
    %v7864 = vand.u32 %v7863, 4294901760
    %7865 = vmatmul.mubr.f32.gmra.mrb[0].mxu0 %v7864
    %v7866 = vpop.f32.mrb[0].mxu0
    %v7867 = vadd.f32 %v7422, %v7866
    %v7868 = vpop.f32.mrb[0].mxu0
    %v7869 = vand.u32 %v5958, 4294901760
    %v7870 = vsub.f32 %v5958, %v7869
    %v7871 = vand.u32 %v7870, 4294901760
    %7872 = vmatprep.mubr.f32.mxu0 %v7871
    %v7873 = vand.u32 %v5957, 4294901760
    %v7874 = vsub.f32 %v5957, %v7873
    %v7875 = vand.u32 %v7874, 4294901760
    %7876 = vmatmul.mubr.f32.gmra.mrb[0].mxu0 %v7875
    %v7877 = vpop.f32.mrb[0].mxu0
    %v7878 = vadd.f32 %v7431, %v7877
    %v7879 = vpop.f32.mrb[0].mxu0
    %v7880 = vand.u32 %v5960, 4294901760
    %v7881 = vsub.f32 %v5960, %v7880
    %v7882 = vand.u32 %v7881, 4294901760
    %7883 = vmatprep.mubr.f32.mxu0 %v7882
    %v7884 = vand.u32 %v5959, 4294901760
    %v7885 = vsub.f32 %v5959, %v7884
    %v7886 = vand.u32 %v7885, 4294901760
    %7887 = vmatmul.mubr.f32.gmra.mrb[0].mxu0 %v7886
    %v7888 = vpop.f32.mrb[0].mxu0
    %v7889 = vadd.f32 %v7440, %v7888
    %v7890 = vpop.f32.mrb[0].mxu0
    %7891 = vdwg.mxu0
    %7892 = vmatprep.subr.mxu0 0.0
    %v7893 = vand.u32 %v5961, 4294901760
    %v7894 = vsub.f32 %v5961, %v7893
    %v7895 = vand.u32 %v7894, 4294901760
    %7896 = vmatpush1.msra.mxu0 %v7895
    %7897 = vmatprep.subr.mxu0 0.0
    %v7898 = vand.u32 %v5962, 4294901760
    %v7899 = vsub.f32 %v5962, %v7898
    %v7900 = vand.u32 %v7899, 4294901760
    %7901 = vmatpush1.msra.mxu0 %v7900
    %7902 = vmatprep.subr.mxu0 0.0
    %v7903 = vand.u32 %v5963, 4294901760
    %v7904 = vsub.f32 %v5963, %v7903
    %v7905 = vand.u32 %v7904, 4294901760
    %7906 = vmatpush1.msra.mxu0 %v7905
    %7907 = vmatprep.subr.mxu0 0.0
    %v7908 = vand.u32 %v5964, 4294901760
    %v7909 = vsub.f32 %v5964, %v7908
    %v7910 = vand.u32 %v7909, 4294901760
    %7911 = vmatpush1.msra.mxu0 %v7910
    %7912 = vmatprep.subr.mxu0 0.0
    %v7913 = vand.u32 %v5965, 4294901760
    %v7914 = vsub.f32 %v5965, %v7913
    %v7915 = vand.u32 %v7914, 4294901760
    %7916 = vmatpush1.msra.mxu0 %v7915
    %7917 = vmatprep.subr.mxu0 0.0
    %v7918 = vand.u32 %v5966, 4294901760
    %v7919 = vsub.f32 %v5966, %v7918
    %v7920 = vand.u32 %v7919, 4294901760
    %7921 = vmatpush1.msra.mxu0 %v7920
    %7922 = vmatprep.subr.mxu0 0.0
    %v7923 = vand.u32 %v5967, 4294901760
    %v7924 = vsub.f32 %v5967, %v7923
    %v7925 = vand.u32 %v7924, 4294901760
    %7926 = vmatpush1.msra.mxu0 %v7925
    %7927 = vmatprep.subr.mxu0 0.0
    %v7928 = vand.u32 %v5968, 4294901760
    %v7929 = vsub.f32 %v5968, %v7928
    %v7930 = vand.u32 %v7929, 4294901760
    %7931 = vmatpush1.msra.mxu0 %v7930
    %7932 = vmatprep.subr.mxu0 0.0
    %v7933 = vand.u32 %v5969, 4294901760
    %v7934 = vsub.f32 %v5969, %v7933
    %v7935 = vand.u32 %v7934, 4294901760
    %7936 = vmatpush1.msra.mxu0 %v7935
    %7937 = vmatprep.subr.mxu0 0.0
    %v7938 = vand.u32 %v5970, 4294901760
    %v7939 = vsub.f32 %v5970, %v7938
    %v7940 = vand.u32 %v7939, 4294901760
    %7941 = vmatpush1.msra.mxu0 %v7940
    %7942 = vmatprep.subr.mxu0 0.0
    %v7943 = vand.u32 %v5971, 4294901760
    %v7944 = vsub.f32 %v5971, %v7943
    %v7945 = vand.u32 %v7944, 4294901760
    %7946 = vmatpush1.msra.mxu0 %v7945
    %7947 = vmatprep.subr.mxu0 0.0
    %v7948 = vand.u32 %v5972, 4294901760
    %v7949 = vsub.f32 %v5972, %v7948
    %v7950 = vand.u32 %v7949, 4294901760
    %7951 = vmatpush1.msra.mxu0 %v7950
    %7952 = vmatprep.subr.mxu0 0.0
    %v7953 = vand.u32 %v5973, 4294901760
    %v7954 = vsub.f32 %v5973, %v7953
    %v7955 = vand.u32 %v7954, 4294901760
    %7956 = vmatpush1.msra.mxu0 %v7955
    %7957 = vmatprep.subr.mxu0 0.0
    %v7958 = vand.u32 %v5974, 4294901760
    %v7959 = vsub.f32 %v5974, %v7958
    %v7960 = vand.u32 %v7959, 4294901760
    %7961 = vmatpush1.msra.mxu0 %v7960
    %7962 = vmatprep.subr.mxu0 0.0
    %v7963 = vand.u32 %v5975, 4294901760
    %v7964 = vsub.f32 %v5975, %v7963
    %v7965 = vand.u32 %v7964, 4294901760
    %7966 = vmatpush1.msra.mxu0 %v7965
    %7967 = vmatprep.subr.mxu0 0.0
    %v7968 = vand.u32 %v5976, 4294901760
    %v7969 = vsub.f32 %v5976, %v7968
    %v7970 = vand.u32 %v7969, 4294901760
    %7971 = vmatpush1.msra.mxu0 %v7970
    %7972 = vmatprep.subr.mxu0 0.0
    %v7973 = vand.u32 %v5977, 4294901760
    %v7974 = vsub.f32 %v5977, %v7973
    %v7975 = vand.u32 %v7974, 4294901760
    %7976 = vmatpush1.msra.mxu0 %v7975
    %7977 = vmatprep.subr.mxu0 0.0
    %v7978 = vand.u32 %v5978, 4294901760
    %v7979 = vsub.f32 %v5978, %v7978
    %v7980 = vand.u32 %v7979, 4294901760
    %7981 = vmatpush1.msra.mxu0 %v7980
    %7982 = vmatprep.subr.mxu0 0.0
    %v7983 = vand.u32 %v5979, 4294901760
    %v7984 = vsub.f32 %v5979, %v7983
    %v7985 = vand.u32 %v7984, 4294901760
    %7986 = vmatpush1.msra.mxu0 %v7985
    %7987 = vmatprep.subr.mxu0 0.0
    %v7988 = vand.u32 %v5980, 4294901760
    %v7989 = vsub.f32 %v5980, %v7988
    %v7990 = vand.u32 %v7989, 4294901760
    %7991 = vmatpush1.msra.mxu0 %v7990
    %7992 = vmatprep.subr.mxu0 0.0
    %v7993 = vand.u32 %v5981, 4294901760
    %v7994 = vsub.f32 %v5981, %v7993
    %v7995 = vand.u32 %v7994, 4294901760
    %7996 = vmatpush1.msra.mxu0 %v7995
    %7997 = vmatprep.subr.mxu0 0.0
    %v7998 = vand.u32 %v5982, 4294901760
    %v7999 = vsub.f32 %v5982, %v7998
    %v8000 = vand.u32 %v7999, 4294901760
    %8001 = vmatpush1.msra.mxu0 %v8000
    %8002 = vmatprep.subr.mxu0 0.0
    %v8003 = vand.u32 %v5983, 4294901760
    %v8004 = vsub.f32 %v5983, %v8003
    %v8005 = vand.u32 %v8004, 4294901760
    %8006 = vmatpush1.msra.mxu0 %v8005
    %8007 = vmatprep.subr.mxu0 0.0
    %v8008 = vand.u32 %v5984, 4294901760
    %v8009 = vsub.f32 %v5984, %v8008
    %v8010 = vand.u32 %v8009, 4294901760
    %8011 = vmatpush1.msra.mxu0 %v8010
    %8012 = vmatprep.subr.mxu0 0.0
    %v8013 = vand.u32 %v5985, 4294901760
    %v8014 = vsub.f32 %v5985, %v8013
    %v8015 = vand.u32 %v8014, 4294901760
    %8016 = vmatpush1.msra.mxu0 %v8015
    %8017 = vmatprep.subr.mxu0 0.0
    %v8018 = vand.u32 %v5986, 4294901760
    %v8019 = vsub.f32 %v5986, %v8018
    %v8020 = vand.u32 %v8019, 4294901760
    %8021 = vmatpush1.msra.mxu0 %v8020
    %8022 = vmatprep.subr.mxu0 0.0
    %v8023 = vand.u32 %v5987, 4294901760
    %v8024 = vsub.f32 %v5987, %v8023
    %v8025 = vand.u32 %v8024, 4294901760
    %8026 = vmatpush1.msra.mxu0 %v8025
    %8027 = vmatprep.subr.mxu0 0.0
    %v8028 = vand.u32 %v5988, 4294901760
    %v8029 = vsub.f32 %v5988, %v8028
    %v8030 = vand.u32 %v8029, 4294901760
    %8031 = vmatpush1.msra.mxu0 %v8030
    %8032 = vmatprep.subr.mxu0 0.0
    %v8033 = vand.u32 %v5989, 4294901760
    %v8034 = vsub.f32 %v5989, %v8033
    %v8035 = vand.u32 %v8034, 4294901760
    %8036 = vmatpush1.msra.mxu0 %v8035
    %8037 = vmatprep.subr.mxu0 0.0
    %v8038 = vand.u32 %v5990, 4294901760
    %v8039 = vsub.f32 %v5990, %v8038
    %v8040 = vand.u32 %v8039, 4294901760
    %8041 = vmatpush1.msra.mxu0 %v8040
    %8042 = vmatprep.subr.mxu0 0.0
    %v8043 = vand.u32 %v5991, 4294901760
    %v8044 = vsub.f32 %v5991, %v8043
    %v8045 = vand.u32 %v8044, 4294901760
    %8046 = vmatpush1.msra.mxu0 %v8045
    %8047 = vmatprep.subr.mxu0 0.0
    %v8048 = vand.u32 %v5992, 4294901760
    %v8049 = vsub.f32 %v5992, %v8048
    %v8050 = vand.u32 %v8049, 4294901760
    %8051 = vmatpush1.msra.mxu0 %v8050
    %v8052 = vand.u32 %v5898, 4294901760
    %8053 = vmatprep.mubr.f32.mxu0 %v8052
    %v8054 = vand.u32 %v5897, 4294901760
    %8055 = vmatmul.mubr.f32.gmra.mrb[0].mxu0 %v8054
    %v8056 = vpop.f32.mrb[0].mxu0
    %v8057 = vadd.f32 %v7548, %v8056
    %v8058 = vpop.f32.mrb[0].mxu0
    %v8059 = vand.u32 %v5900, 4294901760
    %8060 = vmatprep.mubr.f32.mxu0 %v8059
    %v8061 = vand.u32 %v5899, 4294901760
    %8062 = vmatmul.mubr.f32.gmra.mrb[0].mxu0 %v8061
    %v8063 = vpop.f32.mrb[0].mxu0
    %v8064 = vadd.f32 %v7559, %v8063
    %v8065 = vpop.f32.mrb[0].mxu0
    %v8066 = vand.u32 %v5902, 4294901760
    %8067 = vmatprep.mubr.f32.mxu0 %v8066
    %v8068 = vand.u32 %v5901, 4294901760
    %8069 = vmatmul.mubr.f32.gmra.mrb[0].mxu0 %v8068
    %v8070 = vpop.f32.mrb[0].mxu0
    %v8071 = vadd.f32 %v7570, %v8070
    %v8072 = vpop.f32.mrb[0].mxu0
    %v8073 = vand.u32 %v5904, 4294901760
    %8074 = vmatprep.mubr.f32.mxu0 %v8073
    %v8075 = vand.u32 %v5903, 4294901760
    %8076 = vmatmul.mubr.f32.gmra.mrb[0].mxu0 %v8075
    %v8077 = vpop.f32.mrb[0].mxu0
    %v8078 = vadd.f32 %v7581, %v8077
    %v8079 = vpop.f32.mrb[0].mxu0
    %v8080 = vand.u32 %v5906, 4294901760
    %8081 = vmatprep.mubr.f32.mxu0 %v8080
    %v8082 = vand.u32 %v5905, 4294901760
    %8083 = vmatmul.mubr.f32.gmra.mrb[0].mxu0 %v8082
    %v8084 = vpop.f32.mrb[0].mxu0
    %v8085 = vadd.f32 %v7592, %v8084
    %v8086 = vpop.f32.mrb[0].mxu0
    %v8087 = vand.u32 %v5908, 4294901760
    %8088 = vmatprep.mubr.f32.mxu0 %v8087
    %v8089 = vand.u32 %v5907, 4294901760
    %8090 = vmatmul.mubr.f32.gmra.mrb[0].mxu0 %v8089
    %v8091 = vpop.f32.mrb[0].mxu0
    %v8092 = vadd.f32 %v7603, %v8091
    %v8093 = vpop.f32.mrb[0].mxu0
    %v8094 = vand.u32 %v5910, 4294901760
    %8095 = vmatprep.mubr.f32.mxu0 %v8094
    %v8096 = vand.u32 %v5909, 4294901760
    %8097 = vmatmul.mubr.f32.gmra.mrb[0].mxu0 %v8096
    %v8098 = vpop.f32.mrb[0].mxu0
    %v8099 = vadd.f32 %v7614, %v8098
    %v8100 = vpop.f32.mrb[0].mxu0
    %v8101 = vand.u32 %v5912, 4294901760
    %8102 = vmatprep.mubr.f32.mxu0 %v8101
    %v8103 = vand.u32 %v5911, 4294901760
    %8104 = vmatmul.mubr.f32.gmra.mrb[0].mxu0 %v8103
    %v8105 = vpop.f32.mrb[0].mxu0
    %v8106 = vadd.f32 %v7625, %v8105
    %v8107 = vpop.f32.mrb[0].mxu0
    %v8108 = vand.u32 %v5914, 4294901760
    %8109 = vmatprep.mubr.f32.mxu0 %v8108
    %v8110 = vand.u32 %v5913, 4294901760
    %8111 = vmatmul.mubr.f32.gmra.mrb[0].mxu0 %v8110
    %v8112 = vpop.f32.mrb[0].mxu0
    %v8113 = vadd.f32 %v7636, %v8112
    %v8114 = vpop.f32.mrb[0].mxu0
    %v8115 = vand.u32 %v5916, 4294901760
    %8116 = vmatprep.mubr.f32.mxu0 %v8115
    %v8117 = vand.u32 %v5915, 4294901760
    %8118 = vmatmul.mubr.f32.gmra.mrb[0].mxu0 %v8117
    %v8119 = vpop.f32.mrb[0].mxu0
    %v8120 = vadd.f32 %v7647, %v8119
    %v8121 = vpop.f32.mrb[0].mxu0
    %v8122 = vand.u32 %v5918, 4294901760
    %8123 = vmatprep.mubr.f32.mxu0 %v8122
    %v8124 = vand.u32 %v5917, 4294901760
    %8125 = vmatmul.mubr.f32.gmra.mrb[0].mxu0 %v8124
    %v8126 = vpop.f32.mrb[0].mxu0
    %v8127 = vadd.f32 %v7658, %v8126
    %v8128 = vpop.f32.mrb[0].mxu0
    %v8129 = vand.u32 %v5920, 4294901760
    %8130 = vmatprep.mubr.f32.mxu0 %v8129
    %v8131 = vand.u32 %v5919, 4294901760
    %8132 = vmatmul.mubr.f32.gmra.mrb[0].mxu0 %v8131
    %v8133 = vpop.f32.mrb[0].mxu0
    %v8134 = vadd.f32 %v7669, %v8133
    %v8135 = vpop.f32.mrb[0].mxu0
    %v8136 = vand.u32 %v5922, 4294901760
    %8137 = vmatprep.mubr.f32.mxu0 %v8136
    %v8138 = vand.u32 %v5921, 4294901760
    %8139 = vmatmul.mubr.f32.gmra.mrb[0].mxu0 %v8138
    %v8140 = vpop.f32.mrb[0].mxu0
    %v8141 = vadd.f32 %v7680, %v8140
    %v8142 = vpop.f32.mrb[0].mxu0
    %v8143 = vand.u32 %v5924, 4294901760
    %8144 = vmatprep.mubr.f32.mxu0 %v8143
    %v8145 = vand.u32 %v5923, 4294901760
    %8146 = vmatmul.mubr.f32.gmra.mrb[0].mxu0 %v8145
    %v8147 = vpop.f32.mrb[0].mxu0
    %v8148 = vadd.f32 %v7691, %v8147
    %v8149 = vpop.f32.mrb[0].mxu0
    %v8150 = vand.u32 %v5926, 4294901760
    %8151 = vmatprep.mubr.f32.mxu0 %v8150
    %v8152 = vand.u32 %v5925, 4294901760
    %8153 = vmatmul.mubr.f32.gmra.mrb[0].mxu0 %v8152
    %v8154 = vpop.f32.mrb[0].mxu0
    %v8155 = vadd.f32 %v7702, %v8154
    %v8156 = vpop.f32.mrb[0].mxu0
    %v8157 = vand.u32 %v5928, 4294901760
    %8158 = vmatprep.mubr.f32.mxu0 %v8157
    %v8159 = vand.u32 %v5927, 4294901760
    %8160 = vmatmul.mubr.f32.gmra.mrb[0].mxu0 %v8159
    %v8161 = vpop.f32.mrb[0].mxu0
    %v8162 = vadd.f32 %v7713, %v8161
    %v8163 = vpop.f32.mrb[0].mxu0
    %v8164 = vand.u32 %v5930, 4294901760
    %8165 = vmatprep.mubr.f32.mxu0 %v8164
    %v8166 = vand.u32 %v5929, 4294901760
    %8167 = vmatmul.mubr.f32.gmra.mrb[0].mxu0 %v8166
    %v8168 = vpop.f32.mrb[0].mxu0
    %v8169 = vadd.f32 %v7724, %v8168
    %v8170 = vpop.f32.mrb[0].mxu0
    %v8171 = vand.u32 %v5932, 4294901760
    %8172 = vmatprep.mubr.f32.mxu0 %v8171
    %v8173 = vand.u32 %v5931, 4294901760
    %8174 = vmatmul.mubr.f32.gmra.mrb[0].mxu0 %v8173
    %v8175 = vpop.f32.mrb[0].mxu0
    %v8176 = vadd.f32 %v7735, %v8175
    %v8177 = vpop.f32.mrb[0].mxu0
    %v8178 = vand.u32 %v5934, 4294901760
    %8179 = vmatprep.mubr.f32.mxu0 %v8178
    %v8180 = vand.u32 %v5933, 4294901760
    %8181 = vmatmul.mubr.f32.gmra.mrb[0].mxu0 %v8180
    %v8182 = vpop.f32.mrb[0].mxu0
    %v8183 = vadd.f32 %v7746, %v8182
    %v8184 = vpop.f32.mrb[0].mxu0
    %v8185 = vand.u32 %v5936, 4294901760
    %8186 = vmatprep.mubr.f32.mxu0 %v8185
    %v8187 = vand.u32 %v5935, 4294901760
    %8188 = vmatmul.mubr.f32.gmra.mrb[0].mxu0 %v8187
    %v8189 = vpop.f32.mrb[0].mxu0
    %v8190 = vadd.f32 %v7757, %v8189
    %v8191 = vpop.f32.mrb[0].mxu0
    %v8192 = vand.u32 %v5938, 4294901760
    %8193 = vmatprep.mubr.f32.mxu0 %v8192
    %v8194 = vand.u32 %v5937, 4294901760
    %8195 = vmatmul.mubr.f32.gmra.mrb[0].mxu0 %v8194
    %v8196 = vpop.f32.mrb[0].mxu0
    %v8197 = vadd.f32 %v7768, %v8196
    %v8198 = vpop.f32.mrb[0].mxu0
    %v8199 = vand.u32 %v5940, 4294901760
    %8200 = vmatprep.mubr.f32.mxu0 %v8199
    %v8201 = vand.u32 %v5939, 4294901760
    %8202 = vmatmul.mubr.f32.gmra.mrb[0].mxu0 %v8201
    %v8203 = vpop.f32.mrb[0].mxu0
    %v8204 = vadd.f32 %v7779, %v8203
    %v8205 = vpop.f32.mrb[0].mxu0
    %v8206 = vand.u32 %v5942, 4294901760
    %8207 = vmatprep.mubr.f32.mxu0 %v8206
    %v8208 = vand.u32 %v5941, 4294901760
    %8209 = vmatmul.mubr.f32.gmra.mrb[0].mxu0 %v8208
    %v8210 = vpop.f32.mrb[0].mxu0
    %v8211 = vadd.f32 %v7790, %v8210
    %v8212 = vpop.f32.mrb[0].mxu0
    %v8213 = vand.u32 %v5944, 4294901760
    %8214 = vmatprep.mubr.f32.mxu0 %v8213
    %v8215 = vand.u32 %v5943, 4294901760
    %8216 = vmatmul.mubr.f32.gmra.mrb[0].mxu0 %v8215
    %v8217 = vpop.f32.mrb[0].mxu0
    %v8218 = vadd.f32 %v7801, %v8217
    %v8219 = vpop.f32.mrb[0].mxu0
    %v8220 = vand.u32 %v5946, 4294901760
    %8221 = vmatprep.mubr.f32.mxu0 %v8220
    %v8222 = vand.u32 %v5945, 4294901760
    %8223 = vmatmul.mubr.f32.gmra.mrb[0].mxu0 %v8222
    %v8224 = vpop.f32.mrb[0].mxu0
    %v8225 = vadd.f32 %v7812, %v8224
    %v8226 = vpop.f32.mrb[0].mxu0
    %v8227 = vand.u32 %v5948, 4294901760
    %8228 = vmatprep.mubr.f32.mxu0 %v8227
    %v8229 = vand.u32 %v5947, 4294901760
    %8230 = vmatmul.mubr.f32.gmra.mrb[0].mxu0 %v8229
    %v8231 = vpop.f32.mrb[0].mxu0
    %v8232 = vadd.f32 %v7823, %v8231
    %v8233 = vpop.f32.mrb[0].mxu0
    %v8234 = vand.u32 %v5950, 4294901760
    %8235 = vmatprep.mubr.f32.mxu0 %v8234
    %v8236 = vand.u32 %v5949, 4294901760
    %8237 = vmatmul.mubr.f32.gmra.mrb[0].mxu0 %v8236
    %v8238 = vpop.f32.mrb[0].mxu0
    %v8239 = vadd.f32 %v7834, %v8238
    %v8240 = vpop.f32.mrb[0].mxu0
    %v8241 = vand.u32 %v5952, 4294901760
    %8242 = vmatprep.mubr.f32.mxu0 %v8241
    %v8243 = vand.u32 %v5951, 4294901760
    %8244 = vmatmul.mubr.f32.gmra.mrb[0].mxu0 %v8243
    %v8245 = vpop.f32.mrb[0].mxu0
    %v8246 = vadd.f32 %v7845, %v8245
    %v8247 = vpop.f32.mrb[0].mxu0
    %v8248 = vand.u32 %v5954, 4294901760
    %8249 = vmatprep.mubr.f32.mxu0 %v8248
    %v8250 = vand.u32 %v5953, 4294901760
    %8251 = vmatmul.mubr.f32.gmra.mrb[0].mxu0 %v8250
    %v8252 = vpop.f32.mrb[0].mxu0
    %v8253 = vadd.f32 %v7856, %v8252
    %v8254 = vpop.f32.mrb[0].mxu0
    %v8255 = vand.u32 %v5956, 4294901760
    %8256 = vmatprep.mubr.f32.mxu0 %v8255
    %v8257 = vand.u32 %v5955, 4294901760
    %8258 = vmatmul.mubr.f32.gmra.mrb[0].mxu0 %v8257
    %v8259 = vpop.f32.mrb[0].mxu0
    %v8260 = vadd.f32 %v7867, %v8259
    %v8261 = vpop.f32.mrb[0].mxu0
    %v8262 = vand.u32 %v5958, 4294901760
    %8263 = vmatprep.mubr.f32.mxu0 %v8262
    %v8264 = vand.u32 %v5957, 4294901760
    %8265 = vmatmul.mubr.f32.gmra.mrb[0].mxu0 %v8264
    %v8266 = vpop.f32.mrb[0].mxu0
    %v8267 = vadd.f32 %v7878, %v8266
    %v8268 = vpop.f32.mrb[0].mxu0
    %v8269 = vand.u32 %v5960, 4294901760
    %8270 = vmatprep.mubr.f32.mxu0 %v8269
    %v8271 = vand.u32 %v5959, 4294901760
    %8272 = vmatmul.mubr.f32.gmra.mrb[0].mxu0 %v8271
    %v8273 = vpop.f32.mrb[0].mxu0
    %v8274 = vadd.f32 %v7889, %v8273
    %v8275 = vpop.f32.mrb[0].mxu0
    %8276 = vdwg.mxu0
    %8277 = vmatprep.subr.mxu0 0.0
    %v8278 = vand.u32 %v5961, 4294901760
    %8279 = vmatpush1.msra.mxu0 %v8278
    %8280 = vmatprep.subr.mxu0 0.0
    %v8281 = vand.u32 %v5962, 4294901760
    %8282 = vmatpush1.msra.mxu0 %v8281
    %8283 = vmatprep.subr.mxu0 0.0
    %v8284 = vand.u32 %v5963, 4294901760
    %8285 = vmatpush1.msra.mxu0 %v8284
    %8286 = vmatprep.subr.mxu0 0.0
    %v8287 = vand.u32 %v5964, 4294901760
    %8288 = vmatpush1.msra.mxu0 %v8287
    %8289 = vmatprep.subr.mxu0 0.0
    %v8290 = vand.u32 %v5965, 4294901760
    %8291 = vmatpush1.msra.mxu0 %v8290
    %8292 = vmatprep.subr.mxu0 0.0
    %v8293 = vand.u32 %v5966, 4294901760
    %8294 = vmatpush1.msra.mxu0 %v8293
    %8295 = vmatprep.subr.mxu0 0.0
    %v8296 = vand.u32 %v5967, 4294901760
    %8297 = vmatpush1.msra.mxu0 %v8296
    %8298 = vmatprep.subr.mxu0 0.0
    %v8299 = vand.u32 %v5968, 4294901760
    %8300 = vmatpush1.msra.mxu0 %v8299
    %8301 = vmatprep.subr.mxu0 0.0
    %v8302 = vand.u32 %v5969, 4294901760
    %8303 = vmatpush1.msra.mxu0 %v8302
    %8304 = vmatprep.subr.mxu0 0.0
    %v8305 = vand.u32 %v5970, 4294901760
    %8306 = vmatpush1.msra.mxu0 %v8305
    %8307 = vmatprep.subr.mxu0 0.0
    %v8308 = vand.u32 %v5971, 4294901760
    %8309 = vmatpush1.msra.mxu0 %v8308
    %8310 = vmatprep.subr.mxu0 0.0
    %v8311 = vand.u32 %v5972, 4294901760
    %8312 = vmatpush1.msra.mxu0 %v8311
    %8313 = vmatprep.subr.mxu0 0.0
    %v8314 = vand.u32 %v5973, 4294901760
    %8315 = vmatpush1.msra.mxu0 %v8314
    %8316 = vmatprep.subr.mxu0 0.0
    %v8317 = vand.u32 %v5974, 4294901760
    %8318 = vmatpush1.msra.mxu0 %v8317
    %8319 = vmatprep.subr.mxu0 0.0
    %v8320 = vand.u32 %v5975, 4294901760
    %8321 = vmatpush1.msra.mxu0 %v8320
    %8322 = vmatprep.subr.mxu0 0.0
    %v8323 = vand.u32 %v5976, 4294901760
    %8324 = vmatpush1.msra.mxu0 %v8323
    %8325 = vmatprep.subr.mxu0 0.0
    %v8326 = vand.u32 %v5977, 4294901760
    %8327 = vmatpush1.msra.mxu0 %v8326
    %8328 = vmatprep.subr.mxu0 0.0
    %v8329 = vand.u32 %v5978, 4294901760
    %8330 = vmatpush1.msra.mxu0 %v8329
    %8331 = vmatprep.subr.mxu0 0.0
    %v8332 = vand.u32 %v5979, 4294901760
    %8333 = vmatpush1.msra.mxu0 %v8332
    %8334 = vmatprep.subr.mxu0 0.0
    %v8335 = vand.u32 %v5980, 4294901760
    %8336 = vmatpush1.msra.mxu0 %v8335
    %8337 = vmatprep.subr.mxu0 0.0
    %v8338 = vand.u32 %v5981, 4294901760
    %8339 = vmatpush1.msra.mxu0 %v8338
    %8340 = vmatprep.subr.mxu0 0.0
    %v8341 = vand.u32 %v5982, 4294901760
    %8342 = vmatpush1.msra.mxu0 %v8341
    %8343 = vmatprep.subr.mxu0 0.0
    %v8344 = vand.u32 %v5983, 4294901760
    %8345 = vmatpush1.msra.mxu0 %v8344
    %8346 = vmatprep.subr.mxu0 0.0
    %v8347 = vand.u32 %v5984, 4294901760
    %8348 = vmatpush1.msra.mxu0 %v8347
    %8349 = vmatprep.subr.mxu0 0.0
    %v8350 = vand.u32 %v5985, 4294901760
    %8351 = vmatpush1.msra.mxu0 %v8350
    %8352 = vmatprep.subr.mxu0 0.0
    %v8353 = vand.u32 %v5986, 4294901760
    %8354 = vmatpush1.msra.mxu0 %v8353
    %8355 = vmatprep.subr.mxu0 0.0
    %v8356 = vand.u32 %v5987, 4294901760
    %8357 = vmatpush1.msra.mxu0 %v8356
    %8358 = vmatprep.subr.mxu0 0.0
    %v8359 = vand.u32 %v5988, 4294901760
    %8360 = vmatpush1.msra.mxu0 %v8359
    %8361 = vmatprep.subr.mxu0 0.0
    %v8362 = vand.u32 %v5989, 4294901760
    %8363 = vmatpush1.msra.mxu0 %v8362
    %8364 = vmatprep.subr.mxu0 0.0
    %v8365 = vand.u32 %v5990, 4294901760
    %8366 = vmatpush1.msra.mxu0 %v8365
    %8367 = vmatprep.subr.mxu0 0.0
    %v8368 = vand.u32 %v5991, 4294901760
    %8369 = vmatpush1.msra.mxu0 %v8368
    %8370 = vmatprep.subr.mxu0 0.0
    %v8371 = vand.u32 %v5992, 4294901760
    %8372 = vmatpush1.msra.mxu0 %v8371
    %v8373 = vand.u32 %v5898, 4294901760
    %8374 = vmatprep.mubr.f32.mxu0 %v8373
    %v8375 = vand.u32 %v5897, 4294901760
    %8376 = vmatmul.mubr.f32.gmra.mrb[0].mxu0 %v8375
    %v8377 = vpop.f32.mrb[0].mxu0
    %v8378 = vadd.f32 %v8057, %v8377
    %v8379 = vpop.f32.mrb[0].mxu0
    %v8380 = vand.u32 %v5900, 4294901760
    %8381 = vmatprep.mubr.f32.mxu0 %v8380
    %v8382 = vand.u32 %v5899, 4294901760
    %8383 = vmatmul.mubr.f32.gmra.mrb[0].mxu0 %v8382
    %v8384 = vpop.f32.mrb[0].mxu0
    %v8385 = vadd.f32 %v8064, %v8384
    %v8386 = vpop.f32.mrb[0].mxu0
    %v8387 = vand.u32 %v5902, 4294901760
    %8388 = vmatprep.mubr.f32.mxu0 %v8387
    %v8389 = vand.u32 %v5901, 4294901760
    %8390 = vmatmul.mubr.f32.gmra.mrb[0].mxu0 %v8389
    %v8391 = vpop.f32.mrb[0].mxu0
    %v8392 = vadd.f32 %v8071, %v8391
    %v8393 = vpop.f32.mrb[0].mxu0
    %v8394 = vand.u32 %v5904, 4294901760
    %8395 = vmatprep.mubr.f32.mxu0 %v8394
    %v8396 = vand.u32 %v5903, 4294901760
    %8397 = vmatmul.mubr.f32.gmra.mrb[0].mxu0 %v8396
    %v8398 = vpop.f32.mrb[0].mxu0
    %v8399 = vadd.f32 %v8078, %v8398
    %v8400 = vpop.f32.mrb[0].mxu0
    %v8401 = vand.u32 %v5906, 4294901760
    %8402 = vmatprep.mubr.f32.mxu0 %v8401
    %v8403 = vand.u32 %v5905, 4294901760
    %8404 = vmatmul.mubr.f32.gmra.mrb[0].mxu0 %v8403
    %v8405 = vpop.f32.mrb[0].mxu0
    %v8406 = vadd.f32 %v8085, %v8405
    %v8407 = vpop.f32.mrb[0].mxu0
    %v8408 = vand.u32 %v5908, 4294901760
    %8409 = vmatprep.mubr.f32.mxu0 %v8408
    %v8410 = vand.u32 %v5907, 4294901760
    %8411 = vmatmul.mubr.f32.gmra.mrb[0].mxu0 %v8410
    %v8412 = vpop.f32.mrb[0].mxu0
    %v8413 = vadd.f32 %v8092, %v8412
    %v8414 = vpop.f32.mrb[0].mxu0
    %v8415 = vand.u32 %v5910, 4294901760
    %8416 = vmatprep.mubr.f32.mxu0 %v8415
    %v8417 = vand.u32 %v5909, 4294901760
    %8418 = vmatmul.mubr.f32.gmra.mrb[0].mxu0 %v8417
    %v8419 = vpop.f32.mrb[0].mxu0
    %v8420 = vadd.f32 %v8099, %v8419
    %v8421 = vpop.f32.mrb[0].mxu0
    %v8422 = vand.u32 %v5912, 4294901760
    %8423 = vmatprep.mubr.f32.mxu0 %v8422
    %v8424 = vand.u32 %v5911, 4294901760
    %8425 = vmatmul.mubr.f32.gmra.mrb[0].mxu0 %v8424
    %v8426 = vpop.f32.mrb[0].mxu0
    %v8427 = vadd.f32 %v8106, %v8426
    %v8428 = vpop.f32.mrb[0].mxu0
    %v8429 = vand.u32 %v5914, 4294901760
    %8430 = vmatprep.mubr.f32.mxu0 %v8429
    %v8431 = vand.u32 %v5913, 4294901760
    %8432 = vmatmul.mubr.f32.gmra.mrb[0].mxu0 %v8431
    %v8433 = vpop.f32.mrb[0].mxu0
    %v8434 = vadd.f32 %v8113, %v8433
    %v8435 = vpop.f32.mrb[0].mxu0
    %v8436 = vand.u32 %v5916, 4294901760
    %8437 = vmatprep.mubr.f32.mxu0 %v8436
    %v8438 = vand.u32 %v5915, 4294901760
    %8439 = vmatmul.mubr.f32.gmra.mrb[0].mxu0 %v8438
    %v8440 = vpop.f32.mrb[0].mxu0
    %v8441 = vadd.f32 %v8120, %v8440
    %v8442 = vpop.f32.mrb[0].mxu0
    %v8443 = vand.u32 %v5918, 4294901760
    %8444 = vmatprep.mubr.f32.mxu0 %v8443
    %v8445 = vand.u32 %v5917, 4294901760
    %8446 = vmatmul.mubr.f32.gmra.mrb[0].mxu0 %v8445
    %v8447 = vpop.f32.mrb[0].mxu0
    %v8448 = vadd.f32 %v8127, %v8447
    %v8449 = vpop.f32.mrb[0].mxu0
    %v8450 = vand.u32 %v5920, 4294901760
    %8451 = vmatprep.mubr.f32.mxu0 %v8450
    %v8452 = vand.u32 %v5919, 4294901760
    %8453 = vmatmul.mubr.f32.gmra.mrb[0].mxu0 %v8452
    %v8454 = vpop.f32.mrb[0].mxu0
    %v8455 = vadd.f32 %v8134, %v8454
    %v8456 = vpop.f32.mrb[0].mxu0
    %v8457 = vand.u32 %v5922, 4294901760
    %8458 = vmatprep.mubr.f32.mxu0 %v8457
    %v8459 = vand.u32 %v5921, 4294901760
    %8460 = vmatmul.mubr.f32.gmra.mrb[0].mxu0 %v8459
    %v8461 = vpop.f32.mrb[0].mxu0
    %v8462 = vadd.f32 %v8141, %v8461
    %v8463 = vpop.f32.mrb[0].mxu0
    %v8464 = vand.u32 %v5924, 4294901760
    %8465 = vmatprep.mubr.f32.mxu0 %v8464
    %v8466 = vand.u32 %v5923, 4294901760
    %8467 = vmatmul.mubr.f32.gmra.mrb[0].mxu0 %v8466
    %v8468 = vpop.f32.mrb[0].mxu0
    %v8469 = vadd.f32 %v8148, %v8468
    %v8470 = vpop.f32.mrb[0].mxu0
    %v8471 = vand.u32 %v5926, 4294901760
    %8472 = vmatprep.mubr.f32.mxu0 %v8471
    %v8473 = vand.u32 %v5925, 4294901760
    %8474 = vmatmul.mubr.f32.gmra.mrb[0].mxu0 %v8473
    %v8475 = vpop.f32.mrb[0].mxu0
    %v8476 = vadd.f32 %v8155, %v8475
    %v8477 = vpop.f32.mrb[0].mxu0
    %v8478 = vand.u32 %v5928, 4294901760
    %8479 = vmatprep.mubr.f32.mxu0 %v8478
    %v8480 = vand.u32 %v5927, 4294901760
    %8481 = vmatmul.mubr.f32.gmra.mrb[0].mxu0 %v8480
    %v8482 = vpop.f32.mrb[0].mxu0
    %v8483 = vadd.f32 %v8162, %v8482
    %v8484 = vpop.f32.mrb[0].mxu0
    %v8485 = vand.u32 %v5930, 4294901760
    %8486 = vmatprep.mubr.f32.mxu0 %v8485
    %v8487 = vand.u32 %v5929, 4294901760
    %8488 = vmatmul.mubr.f32.gmra.mrb[0].mxu0 %v8487
    %v8489 = vpop.f32.mrb[0].mxu0
    %v8490 = vadd.f32 %v8169, %v8489
    %v8491 = vpop.f32.mrb[0].mxu0
    %v8492 = vand.u32 %v5932, 4294901760
    %8493 = vmatprep.mubr.f32.mxu0 %v8492
    %v8494 = vand.u32 %v5931, 4294901760
    %8495 = vmatmul.mubr.f32.gmra.mrb[0].mxu0 %v8494
    %v8496 = vpop.f32.mrb[0].mxu0
    %v8497 = vadd.f32 %v8176, %v8496
    %v8498 = vpop.f32.mrb[0].mxu0
    %v8499 = vand.u32 %v5934, 4294901760
    %8500 = vmatprep.mubr.f32.mxu0 %v8499
    %v8501 = vand.u32 %v5933, 4294901760
    %8502 = vmatmul.mubr.f32.gmra.mrb[0].mxu0 %v8501
    %v8503 = vpop.f32.mrb[0].mxu0
    %v8504 = vadd.f32 %v8183, %v8503
    %v8505 = vpop.f32.mrb[0].mxu0
    %v8506 = vand.u32 %v5936, 4294901760
    %8507 = vmatprep.mubr.f32.mxu0 %v8506
    %v8508 = vand.u32 %v5935, 4294901760
    %8509 = vmatmul.mubr.f32.gmra.mrb[0].mxu0 %v8508
    %v8510 = vpop.f32.mrb[0].mxu0
    %v8511 = vadd.f32 %v8190, %v8510
    %v8512 = vpop.f32.mrb[0].mxu0
    %v8513 = vand.u32 %v5938, 4294901760
    %8514 = vmatprep.mubr.f32.mxu0 %v8513
    %v8515 = vand.u32 %v5937, 4294901760
    %8516 = vmatmul.mubr.f32.gmra.mrb[0].mxu0 %v8515
    %v8517 = vpop.f32.mrb[0].mxu0
    %v8518 = vadd.f32 %v8197, %v8517
    %v8519 = vpop.f32.mrb[0].mxu0
    %v8520 = vand.u32 %v5940, 4294901760
    %8521 = vmatprep.mubr.f32.mxu0 %v8520
    %v8522 = vand.u32 %v5939, 4294901760
    %8523 = vmatmul.mubr.f32.gmra.mrb[0].mxu0 %v8522
    %v8524 = vpop.f32.mrb[0].mxu0
    %v8525 = vadd.f32 %v8204, %v8524
    %v8526 = vpop.f32.mrb[0].mxu0
    %v8527 = vand.u32 %v5942, 4294901760
    %8528 = vmatprep.mubr.f32.mxu0 %v8527
    %v8529 = vand.u32 %v5941, 4294901760
    %8530 = vmatmul.mubr.f32.gmra.mrb[0].mxu0 %v8529
    %v8531 = vpop.f32.mrb[0].mxu0
    %v8532 = vadd.f32 %v8211, %v8531
    %v8533 = vpop.f32.mrb[0].mxu0
    %v8534 = vand.u32 %v5944, 4294901760
    %8535 = vmatprep.mubr.f32.mxu0 %v8534
    %v8536 = vand.u32 %v5943, 4294901760
    %8537 = vmatmul.mubr.f32.gmra.mrb[0].mxu0 %v8536
    %v8538 = vpop.f32.mrb[0].mxu0
    %v8539 = vadd.f32 %v8218, %v8538
    %v8540 = vpop.f32.mrb[0].mxu0
    %v8541 = vand.u32 %v5946, 4294901760
    %8542 = vmatprep.mubr.f32.mxu0 %v8541
    %v8543 = vand.u32 %v5945, 4294901760
    %8544 = vmatmul.mubr.f32.gmra.mrb[0].mxu0 %v8543
    %v8545 = vpop.f32.mrb[0].mxu0
    %v8546 = vadd.f32 %v8225, %v8545
    %v8547 = vpop.f32.mrb[0].mxu0
    %v8548 = vand.u32 %v5948, 4294901760
    %8549 = vmatprep.mubr.f32.mxu0 %v8548
    %v8550 = vand.u32 %v5947, 4294901760
    %8551 = vmatmul.mubr.f32.gmra.mrb[0].mxu0 %v8550
    %v8552 = vpop.f32.mrb[0].mxu0
    %v8553 = vadd.f32 %v8232, %v8552
    %v8554 = vpop.f32.mrb[0].mxu0
    %v8555 = vand.u32 %v5950, 4294901760
    %8556 = vmatprep.mubr.f32.mxu0 %v8555
    %v8557 = vand.u32 %v5949, 4294901760
    %8558 = vmatmul.mubr.f32.gmra.mrb[0].mxu0 %v8557
    %v8559 = vpop.f32.mrb[0].mxu0
    %v8560 = vadd.f32 %v8239, %v8559
    %v8561 = vpop.f32.mrb[0].mxu0
    %v8562 = vand.u32 %v5952, 4294901760
    %8563 = vmatprep.mubr.f32.mxu0 %v8562
    %v8564 = vand.u32 %v5951, 4294901760
    %8565 = vmatmul.mubr.f32.gmra.mrb[0].mxu0 %v8564
    %v8566 = vpop.f32.mrb[0].mxu0
    %v8567 = vadd.f32 %v8246, %v8566
    %v8568 = vpop.f32.mrb[0].mxu0
    %v8569 = vand.u32 %v5954, 4294901760
    %8570 = vmatprep.mubr.f32.mxu0 %v8569
    %v8571 = vand.u32 %v5953, 4294901760
    %8572 = vmatmul.mubr.f32.gmra.mrb[0].mxu0 %v8571
    %v8573 = vpop.f32.mrb[0].mxu0
    %v8574 = vadd.f32 %v8253, %v8573
    %v8575 = vpop.f32.mrb[0].mxu0
    %v8576 = vand.u32 %v5956, 4294901760
    %8577 = vmatprep.mubr.f32.mxu0 %v8576
    %v8578 = vand.u32 %v5955, 4294901760
    %8579 = vmatmul.mubr.f32.gmra.mrb[0].mxu0 %v8578
    %v8580 = vpop.f32.mrb[0].mxu0
    %v8581 = vadd.f32 %v8260, %v8580
    %v8582 = vpop.f32.mrb[0].mxu0
    %v8583 = vand.u32 %v5958, 4294901760
    %8584 = vmatprep.mubr.f32.mxu0 %v8583
    %v8585 = vand.u32 %v5957, 4294901760
    %8586 = vmatmul.mubr.f32.gmra.mrb[0].mxu0 %v8585
    %v8587 = vpop.f32.mrb[0].mxu0
    %v8588 = vadd.f32 %v8267, %v8587
    %v8589 = vpop.f32.mrb[0].mxu0
    %v8590 = vand.u32 %v5960, 4294901760
    %8591 = vmatprep.mubr.f32.mxu0 %v8590
    %v8592 = vand.u32 %v5959, 4294901760
    %8593 = vmatmul.mubr.f32.gmra.mrb[0].mxu0 %v8592
    %v8594 = vpop.f32.mrb[0].mxu0
    %v8595 = vadd.f32 %v8274, %v8594
    %v8596 = vpop.f32.mrb[0].mxu0
    %8597 = vdwg.mxu0
    %v8598 = vmax.f32 %v8378, 0.0
    %v8599 = vmax.f32 %v8385, 0.0
    %v8600 = vmax.f32 %v8392, 0.0
    %v8601 = vmax.f32 %v8399, 0.0
    %v8602 = vmax.f32 %v8406, 0.0
    %v8603 = vmax.f32 %v8413, 0.0
    %v8604 = vmax.f32 %v8420, 0.0
    %v8605 = vmax.f32 %v8427, 0.0
    %v8606 = vmax.f32 %v8434, 0.0
    %v8607 = vmax.f32 %v8441, 0.0
    %v8608 = vmax.f32 %v8448, 0.0
    %v8609 = vmax.f32 %v8455, 0.0
    %v8610 = vmax.f32 %v8462, 0.0
    %v8611 = vmax.f32 %v8469, 0.0
    %v8612 = vmax.f32 %v8476, 0.0
    %v8613 = vmax.f32 %v8483, 0.0
    %v8614 = vmax.f32 %v8490, 0.0
    %v8615 = vmax.f32 %v8497, 0.0
    %v8616 = vmax.f32 %v8504, 0.0
    %v8617 = vmax.f32 %v8511, 0.0
    %v8618 = vmax.f32 %v8518, 0.0
    %v8619 = vmax.f32 %v8525, 0.0
    %v8620 = vmax.f32 %v8532, 0.0
    %v8621 = vmax.f32 %v8539, 0.0
    %v8622 = vmax.f32 %v8546, 0.0
    %v8623 = vmax.f32 %v8553, 0.0
    %v8624 = vmax.f32 %v8560, 0.0
    %v8625 = vmax.f32 %v8567, 0.0
    %v8626 = vmax.f32 %v8574, 0.0
    %v8627 = vmax.f32 %v8581, 0.0
    %v8628 = vmax.f32 %v8588, 0.0
    %v8629 = vmax.f32 %v8595, 0.0
    %v8630 = vld [vmem:[#allocation10] sm:$0xff]
    %v8631 = vld [vmem:[#allocation10 + $0x8] sm:$0xff]
    %v8632 = vld [vmem:[#allocation10 + $0x10] sm:$0xff]
    %v8633 = vld [vmem:[#allocation10 + $0x18] sm:$0xff]
    %v8634 = vld [vmem:[#allocation10 + $0x20] sm:$0xff]
    %v8635 = vld [vmem:[#allocation10 + $0x28] sm:$0xff]
    %v8636 = vld [vmem:[#allocation10 + $0x30] sm:$0xff]
    %v8637 = vld [vmem:[#allocation10 + $0x38] sm:$0xff]
    %v8638 = vld [vmem:[#allocation10 + $0x40] sm:$0xff]
    %v8639 = vld [vmem:[#allocation10 + $0x48] sm:$0xff]
    %v8640 = vld [vmem:[#allocation10 + $0x50] sm:$0xff]
    %v8641 = vld [vmem:[#allocation10 + $0x58] sm:$0xff]
    %v8642 = vld [vmem:[#allocation10 + $0x60] sm:$0xff]
    %v8643 = vld [vmem:[#allocation10 + $0x68] sm:$0xff]
    %v8644 = vld [vmem:[#allocation10 + $0x70] sm:$0xff]
    %v8645 = vld [vmem:[#allocation10 + $0x78] sm:$0xff]
    %v8646 = vld [vmem:[%s8] sm:$0x1]
    %v8648 = vlaneseq
    %v8649 = vshrl.u32 %v8648, 7
    %v8650 = vsub.s32 0, %v8649
    %v8651 = vrot.slane %v8646, %v8650
    %8653 = vmatprep.subr.mxu0 0.0
    %v8654 = vand.u32 %v8630, 4294901760
    %8655 = vmatpush1.msra.mxu0 %v8654
    %8656 = vmatprep.subr.mxu0 0.0
    %v8657 = vand.u32 %v8631, 4294901760
    %8658 = vmatpush1.msra.mxu0 %v8657
    %8659 = vmatprep.subr.mxu0 0.0
    %v8660 = vand.u32 %v8632, 4294901760
    %8661 = vmatpush1.msra.mxu0 %v8660
    %8662 = vmatprep.subr.mxu0 0.0
    %v8663 = vand.u32 %v8633, 4294901760
    %8664 = vmatpush1.msra.mxu0 %v8663
    %8665 = vmatprep.subr.mxu0 0.0
    %v8666 = vand.u32 %v8634, 4294901760
    %8667 = vmatpush1.msra.mxu0 %v8666
    %8668 = vmatprep.subr.mxu0 0.0
    %v8669 = vand.u32 %v8635, 4294901760
    %8670 = vmatpush1.msra.mxu0 %v8669
    %8671 = vmatprep.subr.mxu0 0.0
    %v8672 = vand.u32 %v8636, 4294901760
    %8673 = vmatpush1.msra.mxu0 %v8672
    %8674 = vmatprep.subr.mxu0 0.0
    %v8675 = vand.u32 %v8637, 4294901760
    %8676 = vmatpush1.msra.mxu0 %v8675
    %8677 = vmatprep.subr.mxu0 0.0
    %v8678 = vand.u32 %v8638, 4294901760
    %8679 = vmatpush1.msra.mxu0 %v8678
    %8680 = vmatprep.subr.mxu0 0.0
    %v8681 = vand.u32 %v8639, 4294901760
    %8682 = vmatpush1.msra.mxu0 %v8681
    %8683 = vmatprep.subr.mxu0 0.0
    %v8684 = vand.u32 %v8640, 4294901760
    %8685 = vmatpush1.msra.mxu0 %v8684
    %8686 = vmatprep.subr.mxu0 0.0
    %v8687 = vand.u32 %v8641, 4294901760
    %8688 = vmatpush1.msra.mxu0 %v8687
    %8689 = vmatprep.subr.mxu0 0.0
    %v8690 = vand.u32 %v8642, 4294901760
    %8691 = vmatpush1.msra.mxu0 %v8690
    %8692 = vmatprep.subr.mxu0 0.0
    %v8693 = vand.u32 %v8643, 4294901760
    %8694 = vmatpush1.msra.mxu0 %v8693
    %8695 = vmatprep.subr.mxu0 0.0
    %v8696 = vand.u32 %v8644, 4294901760
    %8697 = vmatpush1.msra.mxu0 %v8696
    %8698 = vmatprep.subr.mxu0 0.0
    %v8699 = vand.u32 %v8645, 4294901760
    %8700 = vmatpush1.msra.mxu0 %v8699
    %8701 = vmatprep.subr.mxu0 0.0
    %8702 = vmatpush1.msra.mxu0 0.0
    %8703 = vmatprep.subr.mxu0 0.0
    %8704 = vmatpush1.msra.mxu0 0.0
    %8705 = vmatprep.subr.mxu0 0.0
    %8706 = vmatpush1.msra.mxu0 0.0
    %8707 = vmatprep.subr.mxu0 0.0
    %8708 = vmatpush1.msra.mxu0 0.0
    %8709 = vmatprep.subr.mxu0 0.0
    %8710 = vmatpush1.msra.mxu0 0.0
    %8711 = vmatprep.subr.mxu0 0.0
    %8712 = vmatpush1.msra.mxu0 0.0
    %8713 = vmatprep.subr.mxu0 0.0
    %8714 = vmatpush1.msra.mxu0 0.0
    %8715 = vmatprep.subr.mxu0 0.0
    %8716 = vmatpush1.msra.mxu0 0.0
    %8717 = vmatprep.subr.mxu0 0.0
    %8718 = vmatpush1.msra.mxu0 0.0
    %8719 = vmatprep.subr.mxu0 0.0
    %8720 = vmatpush1.msra.mxu0 0.0
    %8721 = vmatprep.subr.mxu0 0.0
    %8722 = vmatpush1.msra.mxu0 0.0
    %8723 = vmatprep.subr.mxu0 0.0
    %8724 = vmatpush1.msra.mxu0 0.0
    %8725 = vmatprep.subr.mxu0 0.0
    %8726 = vmatpush1.msra.mxu0 0.0
    %8727 = vmatprep.subr.mxu0 0.0
    %8728 = vmatpush1.msra.mxu0 0.0
    %8729 = vmatprep.subr.mxu0 0.0
    %8730 = vmatpush1.msra.mxu0 0.0
    %8731 = vmatprep.subr.mxu0 0.0
    %8732 = vmatpush1.msra.mxu0 0.0
    %8733 = vmatprep.mubr.f32.mxu0 0.0
    %v8734 = vand.u32 %v8598, 4294901760
    %v8735 = vsub.f32 %v8598, %v8734
    %v8736 = vand.u32 %v8735, 4294901760
    %v8737 = vsub.f32 %v8735, %v8736
    %v8738 = vand.u32 %v8737, 4294901760
    %8739 = vmatmul.mubr.f32.gmra.mrb[0].mxu0 %v8738
    %v8740 = vpop.f32.mrb[0].mxu0
    %v8741 = vadd.f32 %v8651, %v8740
    %v8742 = vpop.f32.mrb[0].mxu0
    %8743 = vmatprep.mubr.f32.mxu0 0.0
    %v8744 = vand.u32 %v8599, 4294901760
    %v8745 = vsub.f32 %v8599, %v8744
    %v8746 = vand.u32 %v8745, 4294901760
    %v8747 = vsub.f32 %v8745, %v8746
    %v8748 = vand.u32 %v8747, 4294901760
    %8749 = vmatmul.mubr.f32.gmra.mrb[0].mxu0 %v8748
    %v8750 = vpop.f32.mrb[0].mxu0
    %v8751 = vadd.f32 %v8651, %v8750
    %v8752 = vpop.f32.mrb[0].mxu0
    %8753 = vmatprep.mubr.f32.mxu0 0.0
    %v8754 = vand.u32 %v8600, 4294901760
    %v8755 = vsub.f32 %v8600, %v8754
    %v8756 = vand.u32 %v8755, 4294901760
    %v8757 = vsub.f32 %v8755, %v8756
    %v8758 = vand.u32 %v8757, 4294901760
    %8759 = vmatmul.mubr.f32.gmra.mrb[0].mxu0 %v8758
    %v8760 = vpop.f32.mrb[0].mxu0
    %v8761 = vadd.f32 %v8651, %v8760
    %v8762 = vpop.f32.mrb[0].mxu0
    %8763 = vmatprep.mubr.f32.mxu0 0.0
    %v8764 = vand.u32 %v8601, 4294901760
    %v8765 = vsub.f32 %v8601, %v8764
    %v8766 = vand.u32 %v8765, 4294901760
    %v8767 = vsub.f32 %v8765, %v8766
    %v8768 = vand.u32 %v8767, 4294901760
    %8769 = vmatmul.mubr.f32.gmra.mrb[0].mxu0 %v8768
    %v8770 = vpop.f32.mrb[0].mxu0
    %v8771 = vadd.f32 %v8651, %v8770
    %v8772 = vpop.f32.mrb[0].mxu0
    %8773 = vmatprep.mubr.f32.mxu0 0.0
    %v8774 = vand.u32 %v8602, 4294901760
    %v8775 = vsub.f32 %v8602, %v8774
    %v8776 = vand.u32 %v8775, 4294901760
    %v8777 = vsub.f32 %v8775, %v8776
    %v8778 = vand.u32 %v8777, 4294901760
    %8779 = vmatmul.mubr.f32.gmra.mrb[0].mxu0 %v8778
    %v8780 = vpop.f32.mrb[0].mxu0
    %v8781 = vadd.f32 %v8651, %v8780
    %v8782 = vpop.f32.mrb[0].mxu0
    %8783 = vmatprep.mubr.f32.mxu0 0.0
    %v8784 = vand.u32 %v8603, 4294901760
    %v8785 = vsub.f32 %v8603, %v8784
    %v8786 = vand.u32 %v8785, 4294901760
    %v8787 = vsub.f32 %v8785, %v8786
    %v8788 = vand.u32 %v8787, 4294901760
    %8789 = vmatmul.mubr.f32.gmra.mrb[0].mxu0 %v8788
    %v8790 = vpop.f32.mrb[0].mxu0
    %v8791 = vadd.f32 %v8651, %v8790
    %v8792 = vpop.f32.mrb[0].mxu0
    %8793 = vmatprep.mubr.f32.mxu0 0.0
    %v8794 = vand.u32 %v8604, 4294901760
    %v8795 = vsub.f32 %v8604, %v8794
    %v8796 = vand.u32 %v8795, 4294901760
    %v8797 = vsub.f32 %v8795, %v8796
    %v8798 = vand.u32 %v8797, 4294901760
    %8799 = vmatmul.mubr.f32.gmra.mrb[0].mxu0 %v8798
    %v8800 = vpop.f32.mrb[0].mxu0
    %v8801 = vadd.f32 %v8651, %v8800
    %v8802 = vpop.f32.mrb[0].mxu0
    %8803 = vmatprep.mubr.f32.mxu0 0.0
    %v8804 = vand.u32 %v8605, 4294901760
    %v8805 = vsub.f32 %v8605, %v8804
    %v8806 = vand.u32 %v8805, 4294901760
    %v8807 = vsub.f32 %v8805, %v8806
    %v8808 = vand.u32 %v8807, 4294901760
    %8809 = vmatmul.mubr.f32.gmra.mrb[0].mxu0 %v8808
    %v8810 = vpop.f32.mrb[0].mxu0
    %v8811 = vadd.f32 %v8651, %v8810
    %v8812 = vpop.f32.mrb[0].mxu0
    %8813 = vmatprep.mubr.f32.mxu0 0.0
    %v8814 = vand.u32 %v8606, 4294901760
    %v8815 = vsub.f32 %v8606, %v8814
    %v8816 = vand.u32 %v8815, 4294901760
    %v8817 = vsub.f32 %v8815, %v8816
    %v8818 = vand.u32 %v8817, 4294901760
    %8819 = vmatmul.mubr.f32.gmra.mrb[0].mxu0 %v8818
    %v8820 = vpop.f32.mrb[0].mxu0
    %v8821 = vadd.f32 %v8651, %v8820
    %v8822 = vpop.f32.mrb[0].mxu0
    %8823 = vmatprep.mubr.f32.mxu0 0.0
    %v8824 = vand.u32 %v8607, 4294901760
    %v8825 = vsub.f32 %v8607, %v8824
    %v8826 = vand.u32 %v8825, 4294901760
    %v8827 = vsub.f32 %v8825, %v8826
    %v8828 = vand.u32 %v8827, 4294901760
    %8829 = vmatmul.mubr.f32.gmra.mrb[0].mxu0 %v8828
    %v8830 = vpop.f32.mrb[0].mxu0
    %v8831 = vadd.f32 %v8651, %v8830
    %v8832 = vpop.f32.mrb[0].mxu0
    %8833 = vmatprep.mubr.f32.mxu0 0.0
    %v8834 = vand.u32 %v8608, 4294901760
    %v8835 = vsub.f32 %v8608, %v8834
    %v8836 = vand.u32 %v8835, 4294901760
    %v8837 = vsub.f32 %v8835, %v8836
    %v8838 = vand.u32 %v8837, 4294901760
    %8839 = vmatmul.mubr.f32.gmra.mrb[0].mxu0 %v8838
    %v8840 = vpop.f32.mrb[0].mxu0
    %v8841 = vadd.f32 %v8651, %v8840
    %v8842 = vpop.f32.mrb[0].mxu0
    %8843 = vmatprep.mubr.f32.mxu0 0.0
    %v8844 = vand.u32 %v8609, 4294901760
    %v8845 = vsub.f32 %v8609, %v8844
    %v8846 = vand.u32 %v8845, 4294901760
    %v8847 = vsub.f32 %v8845, %v8846
    %v8848 = vand.u32 %v8847, 4294901760
    %8849 = vmatmul.mubr.f32.gmra.mrb[0].mxu0 %v8848
    %v8850 = vpop.f32.mrb[0].mxu0
    %v8851 = vadd.f32 %v8651, %v8850
    %v8852 = vpop.f32.mrb[0].mxu0
    %8853 = vmatprep.mubr.f32.mxu0 0.0
    %v8854 = vand.u32 %v8610, 4294901760
    %v8855 = vsub.f32 %v8610, %v8854
    %v8856 = vand.u32 %v8855, 4294901760
    %v8857 = vsub.f32 %v8855, %v8856
    %v8858 = vand.u32 %v8857, 4294901760
    %8859 = vmatmul.mubr.f32.gmra.mrb[0].mxu0 %v8858
    %v8860 = vpop.f32.mrb[0].mxu0
    %v8861 = vadd.f32 %v8651, %v8860
    %v8862 = vpop.f32.mrb[0].mxu0
    %8863 = vmatprep.mubr.f32.mxu0 0.0
    %v8864 = vand.u32 %v8611, 4294901760
    %v8865 = vsub.f32 %v8611, %v8864
    %v8866 = vand.u32 %v8865, 4294901760
    %v8867 = vsub.f32 %v8865, %v8866
    %v8868 = vand.u32 %v8867, 4294901760
    %8869 = vmatmul.mubr.f32.gmra.mrb[0].mxu0 %v8868
    %v8870 = vpop.f32.mrb[0].mxu0
    %v8871 = vadd.f32 %v8651, %v8870
    %v8872 = vpop.f32.mrb[0].mxu0
    %8873 = vmatprep.mubr.f32.mxu0 0.0
    %v8874 = vand.u32 %v8612, 4294901760
    %v8875 = vsub.f32 %v8612, %v8874
    %v8876 = vand.u32 %v8875, 4294901760
    %v8877 = vsub.f32 %v8875, %v8876
    %v8878 = vand.u32 %v8877, 4294901760
    %8879 = vmatmul.mubr.f32.gmra.mrb[0].mxu0 %v8878
    %v8880 = vpop.f32.mrb[0].mxu0
    %v8881 = vadd.f32 %v8651, %v8880
    %v8882 = vpop.f32.mrb[0].mxu0
    %8883 = vmatprep.mubr.f32.mxu0 0.0
    %v8884 = vand.u32 %v8613, 4294901760
    %v8885 = vsub.f32 %v8613, %v8884
    %v8886 = vand.u32 %v8885, 4294901760
    %v8887 = vsub.f32 %v8885, %v8886
    %v8888 = vand.u32 %v8887, 4294901760
    %8889 = vmatmul.mubr.f32.gmra.mrb[0].mxu0 %v8888
    %v8890 = vpop.f32.mrb[0].mxu0
    %v8891 = vadd.f32 %v8651, %v8890
    %v8892 = vpop.f32.mrb[0].mxu0
    %8893 = vmatprep.mubr.f32.mxu0 0.0
    %v8894 = vand.u32 %v8614, 4294901760
    %v8895 = vsub.f32 %v8614, %v8894
    %v8896 = vand.u32 %v8895, 4294901760
    %v8897 = vsub.f32 %v8895, %v8896
    %v8898 = vand.u32 %v8897, 4294901760
    %8899 = vmatmul.mubr.f32.gmra.mrb[0].mxu0 %v8898
    %v8900 = vpop.f32.mrb[0].mxu0
    %v8901 = vadd.f32 %v8651, %v8900
    %v8902 = vpop.f32.mrb[0].mxu0
    %8903 = vmatprep.mubr.f32.mxu0 0.0
    %v8904 = vand.u32 %v8615, 4294901760
    %v8905 = vsub.f32 %v8615, %v8904
    %v8906 = vand.u32 %v8905, 4294901760
    %v8907 = vsub.f32 %v8905, %v8906
    %v8908 = vand.u32 %v8907, 4294901760
    %8909 = vmatmul.mubr.f32.gmra.mrb[0].mxu0 %v8908
    %v8910 = vpop.f32.mrb[0].mxu0
    %v8911 = vadd.f32 %v8651, %v8910
    %v8912 = vpop.f32.mrb[0].mxu0
    %8913 = vmatprep.mubr.f32.mxu0 0.0
    %v8914 = vand.u32 %v8616, 4294901760
    %v8915 = vsub.f32 %v8616, %v8914
    %v8916 = vand.u32 %v8915, 4294901760
    %v8917 = vsub.f32 %v8915, %v8916
    %v8918 = vand.u32 %v8917, 4294901760
    %8919 = vmatmul.mubr.f32.gmra.mrb[0].mxu0 %v8918
    %v8920 = vpop.f32.mrb[0].mxu0
    %v8921 = vadd.f32 %v8651, %v8920
    %v8922 = vpop.f32.mrb[0].mxu0
    %8923 = vmatprep.mubr.f32.mxu0 0.0
    %v8924 = vand.u32 %v8617, 4294901760
    %v8925 = vsub.f32 %v8617, %v8924
    %v8926 = vand.u32 %v8925, 4294901760
    %v8927 = vsub.f32 %v8925, %v8926
    %v8928 = vand.u32 %v8927, 4294901760
    %8929 = vmatmul.mubr.f32.gmra.mrb[0].mxu0 %v8928
    %v8930 = vpop.f32.mrb[0].mxu0
    %v8931 = vadd.f32 %v8651, %v8930
    %v8932 = vpop.f32.mrb[0].mxu0
    %8933 = vmatprep.mubr.f32.mxu0 0.0
    %v8934 = vand.u32 %v8618, 4294901760
    %v8935 = vsub.f32 %v8618, %v8934
    %v8936 = vand.u32 %v8935, 4294901760
    %v8937 = vsub.f32 %v8935, %v8936
    %v8938 = vand.u32 %v8937, 4294901760
    %8939 = vmatmul.mubr.f32.gmra.mrb[0].mxu0 %v8938
    %v8940 = vpop.f32.mrb[0].mxu0
    %v8941 = vadd.f32 %v8651, %v8940
    %v8942 = vpop.f32.mrb[0].mxu0
    %8943 = vmatprep.mubr.f32.mxu0 0.0
    %v8944 = vand.u32 %v8619, 4294901760
    %v8945 = vsub.f32 %v8619, %v8944
    %v8946 = vand.u32 %v8945, 4294901760
    %v8947 = vsub.f32 %v8945, %v8946
    %v8948 = vand.u32 %v8947, 4294901760
    %8949 = vmatmul.mubr.f32.gmra.mrb[0].mxu0 %v8948
    %v8950 = vpop.f32.mrb[0].mxu0
    %v8951 = vadd.f32 %v8651, %v8950
    %v8952 = vpop.f32.mrb[0].mxu0
    %8953 = vmatprep.mubr.f32.mxu0 0.0
    %v8954 = vand.u32 %v8620, 4294901760
    %v8955 = vsub.f32 %v8620, %v8954
    %v8956 = vand.u32 %v8955, 4294901760
    %v8957 = vsub.f32 %v8955, %v8956
    %v8958 = vand.u32 %v8957, 4294901760
    %8959 = vmatmul.mubr.f32.gmra.mrb[0].mxu0 %v8958
    %v8960 = vpop.f32.mrb[0].mxu0
    %v8961 = vadd.f32 %v8651, %v8960
    %v8962 = vpop.f32.mrb[0].mxu0
    %8963 = vmatprep.mubr.f32.mxu0 0.0
    %v8964 = vand.u32 %v8621, 4294901760
    %v8965 = vsub.f32 %v8621, %v8964
    %v8966 = vand.u32 %v8965, 4294901760
    %v8967 = vsub.f32 %v8965, %v8966
    %v8968 = vand.u32 %v8967, 4294901760
    %8969 = vmatmul.mubr.f32.gmra.mrb[0].mxu0 %v8968
    %v8970 = vpop.f32.mrb[0].mxu0
    %v8971 = vadd.f32 %v8651, %v8970
    %v8972 = vpop.f32.mrb[0].mxu0
    %8973 = vmatprep.mubr.f32.mxu0 0.0
    %v8974 = vand.u32 %v8622, 4294901760
    %v8975 = vsub.f32 %v8622, %v8974
    %v8976 = vand.u32 %v8975, 4294901760
    %v8977 = vsub.f32 %v8975, %v8976
    %v8978 = vand.u32 %v8977, 4294901760
    %8979 = vmatmul.mubr.f32.gmra.mrb[0].mxu0 %v8978
    %v8980 = vpop.f32.mrb[0].mxu0
    %v8981 = vadd.f32 %v8651, %v8980
    %v8982 = vpop.f32.mrb[0].mxu0
    %8983 = vmatprep.mubr.f32.mxu0 0.0
    %v8984 = vand.u32 %v8623, 4294901760
    %v8985 = vsub.f32 %v8623, %v8984
    %v8986 = vand.u32 %v8985, 4294901760
    %v8987 = vsub.f32 %v8985, %v8986
    %v8988 = vand.u32 %v8987, 4294901760
    %8989 = vmatmul.mubr.f32.gmra.mrb[0].mxu0 %v8988
    %v8990 = vpop.f32.mrb[0].mxu0
    %v8991 = vadd.f32 %v8651, %v8990
    %v8992 = vpop.f32.mrb[0].mxu0
    %8993 = vmatprep.mubr.f32.mxu0 0.0
    %v8994 = vand.u32 %v8624, 4294901760
    %v8995 = vsub.f32 %v8624, %v8994
    %v8996 = vand.u32 %v8995, 4294901760
    %v8997 = vsub.f32 %v8995, %v8996
    %v8998 = vand.u32 %v8997, 4294901760
    %8999 = vmatmul.mubr.f32.gmra.mrb[0].mxu0 %v8998
    %v9000 = vpop.f32.mrb[0].mxu0
    %v9001 = vadd.f32 %v8651, %v9000
    %v9002 = vpop.f32.mrb[0].mxu0
    %9003 = vmatprep.mubr.f32.mxu0 0.0
    %v9004 = vand.u32 %v8625, 4294901760
    %v9005 = vsub.f32 %v8625, %v9004
    %v9006 = vand.u32 %v9005, 4294901760
    %v9007 = vsub.f32 %v9005, %v9006
    %v9008 = vand.u32 %v9007, 4294901760
    %9009 = vmatmul.mubr.f32.gmra.mrb[0].mxu0 %v9008
    %v9010 = vpop.f32.mrb[0].mxu0
    %v9011 = vadd.f32 %v8651, %v9010
    %v9012 = vpop.f32.mrb[0].mxu0
    %9013 = vmatprep.mubr.f32.mxu0 0.0
    %v9014 = vand.u32 %v8626, 4294901760
    %v9015 = vsub.f32 %v8626, %v9014
    %v9016 = vand.u32 %v9015, 4294901760
    %v9017 = vsub.f32 %v9015, %v9016
    %v9018 = vand.u32 %v9017, 4294901760
    %9019 = vmatmul.mubr.f32.gmra.mrb[0].mxu0 %v9018
    %v9020 = vpop.f32.mrb[0].mxu0
    %v9021 = vadd.f32 %v8651, %v9020
    %v9022 = vpop.f32.mrb[0].mxu0
    %9023 = vmatprep.mubr.f32.mxu0 0.0
    %v9024 = vand.u32 %v8627, 4294901760
    %v9025 = vsub.f32 %v8627, %v9024
    %v9026 = vand.u32 %v9025, 4294901760
    %v9027 = vsub.f32 %v9025, %v9026
    %v9028 = vand.u32 %v9027, 4294901760
    %9029 = vmatmul.mubr.f32.gmra.mrb[0].mxu0 %v9028
    %v9030 = vpop.f32.mrb[0].mxu0
    %v9031 = vadd.f32 %v8651, %v9030
    %v9032 = vpop.f32.mrb[0].mxu0
    %9033 = vmatprep.mubr.f32.mxu0 0.0
    %v9034 = vand.u32 %v8628, 4294901760
    %v9035 = vsub.f32 %v8628, %v9034
    %v9036 = vand.u32 %v9035, 4294901760
    %v9037 = vsub.f32 %v9035, %v9036
    %v9038 = vand.u32 %v9037, 4294901760
    %9039 = vmatmul.mubr.f32.gmra.mrb[0].mxu0 %v9038
    %v9040 = vpop.f32.mrb[0].mxu0
    %v9041 = vadd.f32 %v8651, %v9040
    %v9042 = vpop.f32.mrb[0].mxu0
    %9043 = vmatprep.mubr.f32.mxu0 0.0
    %v9044 = vand.u32 %v8629, 4294901760
    %v9045 = vsub.f32 %v8629, %v9044
    %v9046 = vand.u32 %v9045, 4294901760
    %v9047 = vsub.f32 %v9045, %v9046
    %v9048 = vand.u32 %v9047, 4294901760
    %9049 = vmatmul.mubr.f32.gmra.mrb[0].mxu0 %v9048
    %v9050 = vpop.f32.mrb[0].mxu0
    %v9051 = vadd.f32 %v8651, %v9050
    %v9052 = vpop.f32.mrb[0].mxu0
    %9053 = vdwg.mxu0
    %9054 = vmatprep.subr.mxu0 0.0
    %v9055 = vand.u32 %v8630, 4294901760
    %v9056 = vsub.f32 %v8630, %v9055
    %v9057 = vand.u32 %v9056, 4294901760
    %v9058 = vsub.f32 %v9056, %v9057
    %v9059 = vand.u32 %v9058, 4294901760
    %9060 = vmatpush1.msra.mxu0 %v9059
    %9061 = vmatprep.subr.mxu0 0.0
    %v9062 = vand.u32 %v8631, 4294901760
    %v9063 = vsub.f32 %v8631, %v9062
    %v9064 = vand.u32 %v9063, 4294901760
    %v9065 = vsub.f32 %v9063, %v9064
    %v9066 = vand.u32 %v9065, 4294901760
    %9067 = vmatpush1.msra.mxu0 %v9066
    %9068 = vmatprep.subr.mxu0 0.0
    %v9069 = vand.u32 %v8632, 4294901760
    %v9070 = vsub.f32 %v8632, %v9069
    %v9071 = vand.u32 %v9070, 4294901760
    %v9072 = vsub.f32 %v9070, %v9071
    %v9073 = vand.u32 %v9072, 4294901760
    %9074 = vmatpush1.msra.mxu0 %v9073
    %9075 = vmatprep.subr.mxu0 0.0
    %v9076 = vand.u32 %v8633, 4294901760
    %v9077 = vsub.f32 %v8633, %v9076
    %v9078 = vand.u32 %v9077, 4294901760
    %v9079 = vsub.f32 %v9077, %v9078
    %v9080 = vand.u32 %v9079, 4294901760
    %9081 = vmatpush1.msra.mxu0 %v9080
    %9082 = vmatprep.subr.mxu0 0.0
    %v9083 = vand.u32 %v8634, 4294901760
    %v9084 = vsub.f32 %v8634, %v9083
    %v9085 = vand.u32 %v9084, 4294901760
    %v9086 = vsub.f32 %v9084, %v9085
    %v9087 = vand.u32 %v9086, 4294901760
    %9088 = vmatpush1.msra.mxu0 %v9087
    %9089 = vmatprep.subr.mxu0 0.0
    %v9090 = vand.u32 %v8635, 4294901760
    %v9091 = vsub.f32 %v8635, %v9090
    %v9092 = vand.u32 %v9091, 4294901760
    %v9093 = vsub.f32 %v9091, %v9092
    %v9094 = vand.u32 %v9093, 4294901760
    %9095 = vmatpush1.msra.mxu0 %v9094
    %9096 = vmatprep.subr.mxu0 0.0
    %v9097 = vand.u32 %v8636, 4294901760
    %v9098 = vsub.f32 %v8636, %v9097
    %v9099 = vand.u32 %v9098, 4294901760
    %v9100 = vsub.f32 %v9098, %v9099
    %v9101 = vand.u32 %v9100, 4294901760
    %9102 = vmatpush1.msra.mxu0 %v9101
    %9103 = vmatprep.subr.mxu0 0.0
    %v9104 = vand.u32 %v8637, 4294901760
    %v9105 = vsub.f32 %v8637, %v9104
    %v9106 = vand.u32 %v9105, 4294901760
    %v9107 = vsub.f32 %v9105, %v9106
    %v9108 = vand.u32 %v9107, 4294901760
    %9109 = vmatpush1.msra.mxu0 %v9108
    %9110 = vmatprep.subr.mxu0 0.0
    %v9111 = vand.u32 %v8638, 4294901760
    %v9112 = vsub.f32 %v8638, %v9111
    %v9113 = vand.u32 %v9112, 4294901760
    %v9114 = vsub.f32 %v9112, %v9113
    %v9115 = vand.u32 %v9114, 4294901760
    %9116 = vmatpush1.msra.mxu0 %v9115
    %9117 = vmatprep.subr.mxu0 0.0
    %v9118 = vand.u32 %v8639, 4294901760
    %v9119 = vsub.f32 %v8639, %v9118
    %v9120 = vand.u32 %v9119, 4294901760
    %v9121 = vsub.f32 %v9119, %v9120
    %v9122 = vand.u32 %v9121, 4294901760
    %9123 = vmatpush1.msra.mxu0 %v9122
    %9124 = vmatprep.subr.mxu0 0.0
    %v9125 = vand.u32 %v8640, 4294901760
    %v9126 = vsub.f32 %v8640, %v9125
    %v9127 = vand.u32 %v9126, 4294901760
    %v9128 = vsub.f32 %v9126, %v9127
    %v9129 = vand.u32 %v9128, 4294901760
    %9130 = vmatpush1.msra.mxu0 %v9129
    %9131 = vmatprep.subr.mxu0 0.0
    %v9132 = vand.u32 %v8641, 4294901760
    %v9133 = vsub.f32 %v8641, %v9132
    %v9134 = vand.u32 %v9133, 4294901760
    %v9135 = vsub.f32 %v9133, %v9134
    %v9136 = vand.u32 %v9135, 4294901760
    %9137 = vmatpush1.msra.mxu0 %v9136
    %9138 = vmatprep.subr.mxu0 0.0
    %v9139 = vand.u32 %v8642, 4294901760
    %v9140 = vsub.f32 %v8642, %v9139
    %v9141 = vand.u32 %v9140, 4294901760
    %v9142 = vsub.f32 %v9140, %v9141
    %v9143 = vand.u32 %v9142, 4294901760
    %9144 = vmatpush1.msra.mxu0 %v9143
    %9145 = vmatprep.subr.mxu0 0.0
    %v9146 = vand.u32 %v8643, 4294901760
    %v9147 = vsub.f32 %v8643, %v9146
    %v9148 = vand.u32 %v9147, 4294901760
    %v9149 = vsub.f32 %v9147, %v9148
    %v9150 = vand.u32 %v9149, 4294901760
    %9151 = vmatpush1.msra.mxu0 %v9150
    %9152 = vmatprep.subr.mxu0 0.0
    %v9153 = vand.u32 %v8644, 4294901760
    %v9154 = vsub.f32 %v8644, %v9153
    %v9155 = vand.u32 %v9154, 4294901760
    %v9156 = vsub.f32 %v9154, %v9155
    %v9157 = vand.u32 %v9156, 4294901760
    %9158 = vmatpush1.msra.mxu0 %v9157
    %9159 = vmatprep.subr.mxu0 0.0
    %v9160 = vand.u32 %v8645, 4294901760
    %v9161 = vsub.f32 %v8645, %v9160
    %v9162 = vand.u32 %v9161, 4294901760
    %v9163 = vsub.f32 %v9161, %v9162
    %v9164 = vand.u32 %v9163, 4294901760
    %9165 = vmatpush1.msra.mxu0 %v9164
    %9166 = vmatprep.subr.mxu0 0.0
    %9167 = vmatpush1.msra.mxu0 0.0
    %9168 = vmatprep.subr.mxu0 0.0
    %9169 = vmatpush1.msra.mxu0 0.0
    %9170 = vmatprep.subr.mxu0 0.0
    %9171 = vmatpush1.msra.mxu0 0.0
    %9172 = vmatprep.subr.mxu0 0.0
    %9173 = vmatpush1.msra.mxu0 0.0
    %9174 = vmatprep.subr.mxu0 0.0
    %9175 = vmatpush1.msra.mxu0 0.0
    %9176 = vmatprep.subr.mxu0 0.0
    %9177 = vmatpush1.msra.mxu0 0.0
    %9178 = vmatprep.subr.mxu0 0.0
    %9179 = vmatpush1.msra.mxu0 0.0
    %9180 = vmatprep.subr.mxu0 0.0
    %9181 = vmatpush1.msra.mxu0 0.0
    %9182 = vmatprep.subr.mxu0 0.0
    %9183 = vmatpush1.msra.mxu0 0.0
    %9184 = vmatprep.subr.mxu0 0.0
    %9185 = vmatpush1.msra.mxu0 0.0
    %9186 = vmatprep.subr.mxu0 0.0
    %9187 = vmatpush1.msra.mxu0 0.0
    %9188 = vmatprep.subr.mxu0 0.0
    %9189 = vmatpush1.msra.mxu0 0.0
    %9190 = vmatprep.subr.mxu0 0.0
    %9191 = vmatpush1.msra.mxu0 0.0
    %9192 = vmatprep.subr.mxu0 0.0
    %9193 = vmatpush1.msra.mxu0 0.0
    %9194 = vmatprep.subr.mxu0 0.0
    %9195 = vmatpush1.msra.mxu0 0.0
    %9196 = vmatprep.subr.mxu0 0.0
    %9197 = vmatpush1.msra.mxu0 0.0
    %9198 = vmatprep.mubr.f32.mxu0 0.0
    %v9199 = vand.u32 %v8598, 4294901760
    %9200 = vmatmul.mubr.f32.gmra.mrb[0].mxu0 %v9199
    %v9201 = vpop.f32.mrb[0].mxu0
    %v9202 = vadd.f32 %v8741, %v9201
    %v9203 = vpop.f32.mrb[0].mxu0
    %9204 = vmatprep.mubr.f32.mxu0 0.0
    %v9205 = vand.u32 %v8599, 4294901760
    %9206 = vmatmul.mubr.f32.gmra.mrb[0].mxu0 %v9205
    %v9207 = vpop.f32.mrb[0].mxu0
    %v9208 = vadd.f32 %v8751, %v9207
    %v9209 = vpop.f32.mrb[0].mxu0
    %9210 = vmatprep.mubr.f32.mxu0 0.0
    %v9211 = vand.u32 %v8600, 4294901760
    %9212 = vmatmul.mubr.f32.gmra.mrb[0].mxu0 %v9211
    %v9213 = vpop.f32.mrb[0].mxu0
    %v9214 = vadd.f32 %v8761, %v9213
    %v9215 = vpop.f32.mrb[0].mxu0
    %9216 = vmatprep.mubr.f32.mxu0 0.0
    %v9217 = vand.u32 %v8601, 4294901760
    %9218 = vmatmul.mubr.f32.gmra.mrb[0].mxu0 %v9217
    %v9219 = vpop.f32.mrb[0].mxu0
    %v9220 = vadd.f32 %v8771, %v9219
    %v9221 = vpop.f32.mrb[0].mxu0
    %9222 = vmatprep.mubr.f32.mxu0 0.0
    %v9223 = vand.u32 %v8602, 4294901760
    %9224 = vmatmul.mubr.f32.gmra.mrb[0].mxu0 %v9223
    %v9225 = vpop.f32.mrb[0].mxu0
    %v9226 = vadd.f32 %v8781, %v9225
    %v9227 = vpop.f32.mrb[0].mxu0
    %9228 = vmatprep.mubr.f32.mxu0 0.0
    %v9229 = vand.u32 %v8603, 4294901760
    %9230 = vmatmul.mubr.f32.gmra.mrb[0].mxu0 %v9229
    %v9231 = vpop.f32.mrb[0].mxu0
    %v9232 = vadd.f32 %v8791, %v9231
    %v9233 = vpop.f32.mrb[0].mxu0
    %9234 = vmatprep.mubr.f32.mxu0 0.0
    %v9235 = vand.u32 %v8604, 4294901760
    %9236 = vmatmul.mubr.f32.gmra.mrb[0].mxu0 %v9235
    %v9237 = vpop.f32.mrb[0].mxu0
    %v9238 = vadd.f32 %v8801, %v9237
    %v9239 = vpop.f32.mrb[0].mxu0
    %9240 = vmatprep.mubr.f32.mxu0 0.0
    %v9241 = vand.u32 %v8605, 4294901760
    %9242 = vmatmul.mubr.f32.gmra.mrb[0].mxu0 %v9241
    %v9243 = vpop.f32.mrb[0].mxu0
    %v9244 = vadd.f32 %v8811, %v9243
    %v9245 = vpop.f32.mrb[0].mxu0
    %9246 = vmatprep.mubr.f32.mxu0 0.0
    %v9247 = vand.u32 %v8606, 4294901760
    %9248 = vmatmul.mubr.f32.gmra.mrb[0].mxu0 %v9247
    %v9249 = vpop.f32.mrb[0].mxu0
    %v9250 = vadd.f32 %v8821, %v9249
    %v9251 = vpop.f32.mrb[0].mxu0
    %9252 = vmatprep.mubr.f32.mxu0 0.0
    %v9253 = vand.u32 %v8607, 4294901760
    %9254 = vmatmul.mubr.f32.gmra.mrb[0].mxu0 %v9253
    %v9255 = vpop.f32.mrb[0].mxu0
    %v9256 = vadd.f32 %v8831, %v9255
    %v9257 = vpop.f32.mrb[0].mxu0
    %9258 = vmatprep.mubr.f32.mxu0 0.0
    %v9259 = vand.u32 %v8608, 4294901760
    %9260 = vmatmul.mubr.f32.gmra.mrb[0].mxu0 %v9259
    %v9261 = vpop.f32.mrb[0].mxu0
    %v9262 = vadd.f32 %v8841, %v9261
    %v9263 = vpop.f32.mrb[0].mxu0
    %9264 = vmatprep.mubr.f32.mxu0 0.0
    %v9265 = vand.u32 %v8609, 4294901760
    %9266 = vmatmul.mubr.f32.gmra.mrb[0].mxu0 %v9265
    %v9267 = vpop.f32.mrb[0].mxu0
    %v9268 = vadd.f32 %v8851, %v9267
    %v9269 = vpop.f32.mrb[0].mxu0
    %9270 = vmatprep.mubr.f32.mxu0 0.0
    %v9271 = vand.u32 %v8610, 4294901760
    %9272 = vmatmul.mubr.f32.gmra.mrb[0].mxu0 %v9271
    %v9273 = vpop.f32.mrb[0].mxu0
    %v9274 = vadd.f32 %v8861, %v9273
    %v9275 = vpop.f32.mrb[0].mxu0
    %9276 = vmatprep.mubr.f32.mxu0 0.0
    %v9277 = vand.u32 %v8611, 4294901760
    %9278 = vmatmul.mubr.f32.gmra.mrb[0].mxu0 %v9277
    %v9279 = vpop.f32.mrb[0].mxu0
    %v9280 = vadd.f32 %v8871, %v9279
    %v9281 = vpop.f32.mrb[0].mxu0
    %9282 = vmatprep.mubr.f32.mxu0 0.0
    %v9283 = vand.u32 %v8612, 4294901760
    %9284 = vmatmul.mubr.f32.gmra.mrb[0].mxu0 %v9283
    %v9285 = vpop.f32.mrb[0].mxu0
    %v9286 = vadd.f32 %v8881, %v9285
    %v9287 = vpop.f32.mrb[0].mxu0
    %9288 = vmatprep.mubr.f32.mxu0 0.0
    %v9289 = vand.u32 %v8613, 4294901760
    %9290 = vmatmul.mubr.f32.gmra.mrb[0].mxu0 %v9289
    %v9291 = vpop.f32.mrb[0].mxu0
    %v9292 = vadd.f32 %v8891, %v9291
    %v9293 = vpop.f32.mrb[0].mxu0
    %9294 = vmatprep.mubr.f32.mxu0 0.0
    %v9295 = vand.u32 %v8614, 4294901760
    %9296 = vmatmul.mubr.f32.gmra.mrb[0].mxu0 %v9295
    %v9297 = vpop.f32.mrb[0].mxu0
    %v9298 = vadd.f32 %v8901, %v9297
    %v9299 = vpop.f32.mrb[0].mxu0
    %9300 = vmatprep.mubr.f32.mxu0 0.0
    %v9301 = vand.u32 %v8615, 4294901760
    %9302 = vmatmul.mubr.f32.gmra.mrb[0].mxu0 %v9301
    %v9303 = vpop.f32.mrb[0].mxu0
    %v9304 = vadd.f32 %v8911, %v9303
    %v9305 = vpop.f32.mrb[0].mxu0
    %9306 = vmatprep.mubr.f32.mxu0 0.0
    %v9307 = vand.u32 %v8616, 4294901760
    %9308 = vmatmul.mubr.f32.gmra.mrb[0].mxu0 %v9307
    %v9309 = vpop.f32.mrb[0].mxu0
    %v9310 = vadd.f32 %v8921, %v9309
    %v9311 = vpop.f32.mrb[0].mxu0
    %9312 = vmatprep.mubr.f32.mxu0 0.0
    %v9313 = vand.u32 %v8617, 4294901760
    %9314 = vmatmul.mubr.f32.gmra.mrb[0].mxu0 %v9313
    %v9315 = vpop.f32.mrb[0].mxu0
    %v9316 = vadd.f32 %v8931, %v9315
    %v9317 = vpop.f32.mrb[0].mxu0
    %9318 = vmatprep.mubr.f32.mxu0 0.0
    %v9319 = vand.u32 %v8618, 4294901760
    %9320 = vmatmul.mubr.f32.gmra.mrb[0].mxu0 %v9319
    %v9321 = vpop.f32.mrb[0].mxu0
    %v9322 = vadd.f32 %v8941, %v9321
    %v9323 = vpop.f32.mrb[0].mxu0
    %9324 = vmatprep.mubr.f32.mxu0 0.0
    %v9325 = vand.u32 %v8619, 4294901760
    %9326 = vmatmul.mubr.f32.gmra.mrb[0].mxu0 %v9325
    %v9327 = vpop.f32.mrb[0].mxu0
    %v9328 = vadd.f32 %v8951, %v9327
    %v9329 = vpop.f32.mrb[0].mxu0
    %9330 = vmatprep.mubr.f32.mxu0 0.0
    %v9331 = vand.u32 %v8620, 4294901760
    %9332 = vmatmul.mubr.f32.gmra.mrb[0].mxu0 %v9331
    %v9333 = vpop.f32.mrb[0].mxu0
    %v9334 = vadd.f32 %v8961, %v9333
    %v9335 = vpop.f32.mrb[0].mxu0
    %9336 = vmatprep.mubr.f32.mxu0 0.0
    %v9337 = vand.u32 %v8621, 4294901760
    %9338 = vmatmul.mubr.f32.gmra.mrb[0].mxu0 %v9337
    %v9339 = vpop.f32.mrb[0].mxu0
    %v9340 = vadd.f32 %v8971, %v9339
    %v9341 = vpop.f32.mrb[0].mxu0
    %9342 = vmatprep.mubr.f32.mxu0 0.0
    %v9343 = vand.u32 %v8622, 4294901760
    %9344 = vmatmul.mubr.f32.gmra.mrb[0].mxu0 %v9343
    %v9345 = vpop.f32.mrb[0].mxu0
    %v9346 = vadd.f32 %v8981, %v9345
    %v9347 = vpop.f32.mrb[0].mxu0
    %9348 = vmatprep.mubr.f32.mxu0 0.0
    %v9349 = vand.u32 %v8623, 4294901760
    %9350 = vmatmul.mubr.f32.gmra.mrb[0].mxu0 %v9349
    %v9351 = vpop.f32.mrb[0].mxu0
    %v9352 = vadd.f32 %v8991, %v9351
    %v9353 = vpop.f32.mrb[0].mxu0
    %9354 = vmatprep.mubr.f32.mxu0 0.0
    %v9355 = vand.u32 %v8624, 4294901760
    %9356 = vmatmul.mubr.f32.gmra.mrb[0].mxu0 %v9355
    %v9357 = vpop.f32.mrb[0].mxu0
    %v9358 = vadd.f32 %v9001, %v9357
    %v9359 = vpop.f32.mrb[0].mxu0
    %9360 = vmatprep.mubr.f32.mxu0 0.0
    %v9361 = vand.u32 %v8625, 4294901760
    %9362 = vmatmul.mubr.f32.gmra.mrb[0].mxu0 %v9361
    %v9363 = vpop.f32.mrb[0].mxu0
    %v9364 = vadd.f32 %v9011, %v9363
    %v9365 = vpop.f32.mrb[0].mxu0
    %9366 = vmatprep.mubr.f32.mxu0 0.0
    %v9367 = vand.u32 %v8626, 4294901760
    %9368 = vmatmul.mubr.f32.gmra.mrb[0].mxu0 %v9367
    %v9369 = vpop.f32.mrb[0].mxu0
    %v9370 = vadd.f32 %v9021, %v9369
    %v9371 = vpop.f32.mrb[0].mxu0
    %9372 = vmatprep.mubr.f32.mxu0 0.0
    %v9373 = vand.u32 %v8627, 4294901760
    %9374 = vmatmul.mubr.f32.gmra.mrb[0].mxu0 %v9373
    %v9375 = vpop.f32.mrb[0].mxu0
    %v9376 = vadd.f32 %v9031, %v9375
    %v9377 = vpop.f32.mrb[0].mxu0
    %9378 = vmatprep.mubr.f32.mxu0 0.0
    %v9379 = vand.u32 %v8628, 4294901760
    %9380 = vmatmul.mubr.f32.gmra.mrb[0].mxu0 %v9379
    %v9381 = vpop.f32.mrb[0].mxu0
    %v9382 = vadd.f32 %v9041, %v9381
    %v9383 = vpop.f32.mrb[0].mxu0
    %9384 = vmatprep.mubr.f32.mxu0 0.0
    %v9385 = vand.u32 %v8629, 4294901760
    %9386 = vmatmul.mubr.f32.gmra.mrb[0].mxu0 %v9385
    %v9387 = vpop.f32.mrb[0].mxu0
    %v9388 = vadd.f32 %v9051, %v9387
    %v9389 = vpop.f32.mrb[0].mxu0
    %9390 = vdwg.mxu0
    %9391 = vmatprep.subr.mxu0 0.0
    %v9392 = vand.u32 %v8630, 4294901760
    %v9393 = vsub.f32 %v8630, %v9392
    %9394 = vmatpush1.msra.mxu0 %v9393
    %9395 = vmatprep.subr.mxu0 0.0
    %v9396 = vand.u32 %v8631, 4294901760
    %v9397 = vsub.f32 %v8631, %v9396
    %9398 = vmatpush1.msra.mxu0 %v9397
    %9399 = vmatprep.subr.mxu0 0.0
    %v9400 = vand.u32 %v8632, 4294901760
    %v9401 = vsub.f32 %v8632, %v9400
    %9402 = vmatpush1.msra.mxu0 %v9401
    %9403 = vmatprep.subr.mxu0 0.0
    %v9404 = vand.u32 %v8633, 4294901760
    %v9405 = vsub.f32 %v8633, %v9404
    %9406 = vmatpush1.msra.mxu0 %v9405
    %9407 = vmatprep.subr.mxu0 0.0
    %v9408 = vand.u32 %v8634, 4294901760
    %v9409 = vsub.f32 %v8634, %v9408
    %9410 = vmatpush1.msra.mxu0 %v9409
    %9411 = vmatprep.subr.mxu0 0.0
    %v9412 = vand.u32 %v8635, 4294901760
    %v9413 = vsub.f32 %v8635, %v9412
    %9414 = vmatpush1.msra.mxu0 %v9413
    %9415 = vmatprep.subr.mxu0 0.0
    %v9416 = vand.u32 %v8636, 4294901760
    %v9417 = vsub.f32 %v8636, %v9416
    %9418 = vmatpush1.msra.mxu0 %v9417
    %9419 = vmatprep.subr.mxu0 0.0
    %v9420 = vand.u32 %v8637, 4294901760
    %v9421 = vsub.f32 %v8637, %v9420
    %9422 = vmatpush1.msra.mxu0 %v9421
    %9423 = vmatprep.subr.mxu0 0.0
    %v9424 = vand.u32 %v8638, 4294901760
    %v9425 = vsub.f32 %v8638, %v9424
    %9426 = vmatpush1.msra.mxu0 %v9425
    %9427 = vmatprep.subr.mxu0 0.0
    %v9428 = vand.u32 %v8639, 4294901760
    %v9429 = vsub.f32 %v8639, %v9428
    %9430 = vmatpush1.msra.mxu0 %v9429
    %9431 = vmatprep.subr.mxu0 0.0
    %v9432 = vand.u32 %v8640, 4294901760
    %v9433 = vsub.f32 %v8640, %v9432
    %9434 = vmatpush1.msra.mxu0 %v9433
    %9435 = vmatprep.subr.mxu0 0.0
    %v9436 = vand.u32 %v8641, 4294901760
    %v9437 = vsub.f32 %v8641, %v9436
    %9438 = vmatpush1.msra.mxu0 %v9437
    %9439 = vmatprep.subr.mxu0 0.0
    %v9440 = vand.u32 %v8642, 4294901760
    %v9441 = vsub.f32 %v8642, %v9440
    %9442 = vmatpush1.msra.mxu0 %v9441
    %9443 = vmatprep.subr.mxu0 0.0
    %v9444 = vand.u32 %v8643, 4294901760
    %v9445 = vsub.f32 %v8643, %v9444
    %9446 = vmatpush1.msra.mxu0 %v9445
    %9447 = vmatprep.subr.mxu0 0.0
    %v9448 = vand.u32 %v8644, 4294901760
    %v9449 = vsub.f32 %v8644, %v9448
    %9450 = vmatpush1.msra.mxu0 %v9449
    %9451 = vmatprep.subr.mxu0 0.0
    %v9452 = vand.u32 %v8645, 4294901760
    %v9453 = vsub.f32 %v8645, %v9452
    %9454 = vmatpush1.msra.mxu0 %v9453
    %9455 = vmatprep.subr.mxu0 0.0
    %9456 = vmatpush1.msra.mxu0 0.0
    %9457 = vmatprep.subr.mxu0 0.0
    %9458 = vmatpush1.msra.mxu0 0.0
    %9459 = vmatprep.subr.mxu0 0.0
    %9460 = vmatpush1.msra.mxu0 0.0
    %9461 = vmatprep.subr.mxu0 0.0
    %9462 = vmatpush1.msra.mxu0 0.0
    %9463 = vmatprep.subr.mxu0 0.0
    %9464 = vmatpush1.msra.mxu0 0.0
    %9465 = vmatprep.subr.mxu0 0.0
    %9466 = vmatpush1.msra.mxu0 0.0
    %9467 = vmatprep.subr.mxu0 0.0
    %9468 = vmatpush1.msra.mxu0 0.0
    %9469 = vmatprep.subr.mxu0 0.0
    %9470 = vmatpush1.msra.mxu0 0.0
    %9471 = vmatprep.subr.mxu0 0.0
    %9472 = vmatpush1.msra.mxu0 0.0
    %9473 = vmatprep.subr.mxu0 0.0
    %9474 = vmatpush1.msra.mxu0 0.0
    %9475 = vmatprep.subr.mxu0 0.0
    %9476 = vmatpush1.msra.mxu0 0.0
    %9477 = vmatprep.subr.mxu0 0.0
    %9478 = vmatpush1.msra.mxu0 0.0
    %9479 = vmatprep.subr.mxu0 0.0
    %9480 = vmatpush1.msra.mxu0 0.0
    %9481 = vmatprep.subr.mxu0 0.0
    %9482 = vmatpush1.msra.mxu0 0.0
    %9483 = vmatprep.subr.mxu0 0.0
    %9484 = vmatpush1.msra.mxu0 0.0
    %9485 = vmatprep.subr.mxu0 0.0
    %9486 = vmatpush1.msra.mxu0 0.0
    %9487 = vmatprep.mubr.f32.mxu0 0.0
    %v9488 = vand.u32 %v8598, 4294901760
    %v9489 = vsub.f32 %v8598, %v9488
    %9490 = vmatmul.mubr.f32.gmra.mrb[0].mxu0 %v9489
    %v9491 = vpop.f32.mrb[0].mxu0
    %v9492 = vadd.f32 %v9202, %v9491
    %v9493 = vpop.f32.mrb[0].mxu0
    %9494 = vmatprep.mubr.f32.mxu0 0.0
    %v9495 = vand.u32 %v8599, 4294901760
    %v9496 = vsub.f32 %v8599, %v9495
    %9497 = vmatmul.mubr.f32.gmra.mrb[0].mxu0 %v9496
    %v9498 = vpop.f32.mrb[0].mxu0
    %v9499 = vadd.f32 %v9208, %v9498
    %v9500 = vpop.f32.mrb[0].mxu0
    %9501 = vmatprep.mubr.f32.mxu0 0.0
    %v9502 = vand.u32 %v8600, 4294901760
    %v9503 = vsub.f32 %v8600, %v9502
    %9504 = vmatmul.mubr.f32.gmra.mrb[0].mxu0 %v9503
    %v9505 = vpop.f32.mrb[0].mxu0
    %v9506 = vadd.f32 %v9214, %v9505
    %v9507 = vpop.f32.mrb[0].mxu0
    %9508 = vmatprep.mubr.f32.mxu0 0.0
    %v9509 = vand.u32 %v8601, 4294901760
    %v9510 = vsub.f32 %v8601, %v9509
    %9511 = vmatmul.mubr.f32.gmra.mrb[0].mxu0 %v9510
    %v9512 = vpop.f32.mrb[0].mxu0
    %v9513 = vadd.f32 %v9220, %v9512
    %v9514 = vpop.f32.mrb[0].mxu0
    %9515 = vmatprep.mubr.f32.mxu0 0.0
    %v9516 = vand.u32 %v8602, 4294901760
    %v9517 = vsub.f32 %v8602, %v9516
    %9518 = vmatmul.mubr.f32.gmra.mrb[0].mxu0 %v9517
    %v9519 = vpop.f32.mrb[0].mxu0
    %v9520 = vadd.f32 %v9226, %v9519
    %v9521 = vpop.f32.mrb[0].mxu0
    %9522 = vmatprep.mubr.f32.mxu0 0.0
    %v9523 = vand.u32 %v8603, 4294901760
    %v9524 = vsub.f32 %v8603, %v9523
    %9525 = vmatmul.mubr.f32.gmra.mrb[0].mxu0 %v9524
    %v9526 = vpop.f32.mrb[0].mxu0
    %v9527 = vadd.f32 %v9232, %v9526
    %v9528 = vpop.f32.mrb[0].mxu0
    %9529 = vmatprep.mubr.f32.mxu0 0.0
    %v9530 = vand.u32 %v8604, 4294901760
    %v9531 = vsub.f32 %v8604, %v9530
    %9532 = vmatmul.mubr.f32.gmra.mrb[0].mxu0 %v9531
    %v9533 = vpop.f32.mrb[0].mxu0
    %v9534 = vadd.f32 %v9238, %v9533
    %v9535 = vpop.f32.mrb[0].mxu0
    %9536 = vmatprep.mubr.f32.mxu0 0.0
    %v9537 = vand.u32 %v8605, 4294901760
    %v9538 = vsub.f32 %v8605, %v9537
    %9539 = vmatmul.mubr.f32.gmra.mrb[0].mxu0 %v9538
    %v9540 = vpop.f32.mrb[0].mxu0
    %v9541 = vadd.f32 %v9244, %v9540
    %v9542 = vpop.f32.mrb[0].mxu0
    %9543 = vmatprep.mubr.f32.mxu0 0.0
    %v9544 = vand.u32 %v8606, 4294901760
    %v9545 = vsub.f32 %v8606, %v9544
    %9546 = vmatmul.mubr.f32.gmra.mrb[0].mxu0 %v9545
    %v9547 = vpop.f32.mrb[0].mxu0
    %v9548 = vadd.f32 %v9250, %v9547
    %v9549 = vpop.f32.mrb[0].mxu0
    %9550 = vmatprep.mubr.f32.mxu0 0.0
    %v9551 = vand.u32 %v8607, 4294901760
    %v9552 = vsub.f32 %v8607, %v9551
    %9553 = vmatmul.mubr.f32.gmra.mrb[0].mxu0 %v9552
    %v9554 = vpop.f32.mrb[0].mxu0
    %v9555 = vadd.f32 %v9256, %v9554
    %v9556 = vpop.f32.mrb[0].mxu0
    %9557 = vmatprep.mubr.f32.mxu0 0.0
    %v9558 = vand.u32 %v8608, 4294901760
    %v9559 = vsub.f32 %v8608, %v9558
    %9560 = vmatmul.mubr.f32.gmra.mrb[0].mxu0 %v9559
    %v9561 = vpop.f32.mrb[0].mxu0
    %v9562 = vadd.f32 %v9262, %v9561
    %v9563 = vpop.f32.mrb[0].mxu0
    %9564 = vmatprep.mubr.f32.mxu0 0.0
    %v9565 = vand.u32 %v8609, 4294901760
    %v9566 = vsub.f32 %v8609, %v9565
    %9567 = vmatmul.mubr.f32.gmra.mrb[0].mxu0 %v9566
    %v9568 = vpop.f32.mrb[0].mxu0
    %v9569 = vadd.f32 %v9268, %v9568
    %v9570 = vpop.f32.mrb[0].mxu0
    %9571 = vmatprep.mubr.f32.mxu0 0.0
    %v9572 = vand.u32 %v8610, 4294901760
    %v9573 = vsub.f32 %v8610, %v9572
    %9574 = vmatmul.mubr.f32.gmra.mrb[0].mxu0 %v9573
    %v9575 = vpop.f32.mrb[0].mxu0
    %v9576 = vadd.f32 %v9274, %v9575
    %v9577 = vpop.f32.mrb[0].mxu0
    %9578 = vmatprep.mubr.f32.mxu0 0.0
    %v9579 = vand.u32 %v8611, 4294901760
    %v9580 = vsub.f32 %v8611, %v9579
    %9581 = vmatmul.mubr.f32.gmra.mrb[0].mxu0 %v9580
    %v9582 = vpop.f32.mrb[0].mxu0
    %v9583 = vadd.f32 %v9280, %v9582
    %v9584 = vpop.f32.mrb[0].mxu0
    %9585 = vmatprep.mubr.f32.mxu0 0.0
    %v9586 = vand.u32 %v8612, 4294901760
    %v9587 = vsub.f32 %v8612, %v9586
    %9588 = vmatmul.mubr.f32.gmra.mrb[0].mxu0 %v9587
    %v9589 = vpop.f32.mrb[0].mxu0
    %v9590 = vadd.f32 %v9286, %v9589
    %v9591 = vpop.f32.mrb[0].mxu0
    %9592 = vmatprep.mubr.f32.mxu0 0.0
    %v9593 = vand.u32 %v8613, 4294901760
    %v9594 = vsub.f32 %v8613, %v9593
    %9595 = vmatmul.mubr.f32.gmra.mrb[0].mxu0 %v9594
    %v9596 = vpop.f32.mrb[0].mxu0
    %v9597 = vadd.f32 %v9292, %v9596
    %v9598 = vpop.f32.mrb[0].mxu0
    %9599 = vmatprep.mubr.f32.mxu0 0.0
    %v9600 = vand.u32 %v8614, 4294901760
    %v9601 = vsub.f32 %v8614, %v9600
    %9602 = vmatmul.mubr.f32.gmra.mrb[0].mxu0 %v9601
    %v9603 = vpop.f32.mrb[0].mxu0
    %v9604 = vadd.f32 %v9298, %v9603
    %v9605 = vpop.f32.mrb[0].mxu0
    %9606 = vmatprep.mubr.f32.mxu0 0.0
    %v9607 = vand.u32 %v8615, 4294901760
    %v9608 = vsub.f32 %v8615, %v9607
    %9609 = vmatmul.mubr.f32.gmra.mrb[0].mxu0 %v9608
    %v9610 = vpop.f32.mrb[0].mxu0
    %v9611 = vadd.f32 %v9304, %v9610
    %v9612 = vpop.f32.mrb[0].mxu0
    %9613 = vmatprep.mubr.f32.mxu0 0.0
    %v9614 = vand.u32 %v8616, 4294901760
    %v9615 = vsub.f32 %v8616, %v9614
    %9616 = vmatmul.mubr.f32.gmra.mrb[0].mxu0 %v9615
    %v9617 = vpop.f32.mrb[0].mxu0
    %v9618 = vadd.f32 %v9310, %v9617
    %v9619 = vpop.f32.mrb[0].mxu0
    %9620 = vmatprep.mubr.f32.mxu0 0.0
    %v9621 = vand.u32 %v8617, 4294901760
    %v9622 = vsub.f32 %v8617, %v9621
    %9623 = vmatmul.mubr.f32.gmra.mrb[0].mxu0 %v9622
    %v9624 = vpop.f32.mrb[0].mxu0
    %v9625 = vadd.f32 %v9316, %v9624
    %v9626 = vpop.f32.mrb[0].mxu0
    %9627 = vmatprep.mubr.f32.mxu0 0.0
    %v9628 = vand.u32 %v8618, 4294901760
    %v9629 = vsub.f32 %v8618, %v9628
    %9630 = vmatmul.mubr.f32.gmra.mrb[0].mxu0 %v9629
    %v9631 = vpop.f32.mrb[0].mxu0
    %v9632 = vadd.f32 %v9322, %v9631
    %v9633 = vpop.f32.mrb[0].mxu0
    %9634 = vmatprep.mubr.f32.mxu0 0.0
    %v9635 = vand.u32 %v8619, 4294901760
    %v9636 = vsub.f32 %v8619, %v9635
    %9637 = vmatmul.mubr.f32.gmra.mrb[0].mxu0 %v9636
    %v9638 = vpop.f32.mrb[0].mxu0
    %v9639 = vadd.f32 %v9328, %v9638
    %v9640 = vpop.f32.mrb[0].mxu0
    %9641 = vmatprep.mubr.f32.mxu0 0.0
    %v9642 = vand.u32 %v8620, 4294901760
    %v9643 = vsub.f32 %v8620, %v9642
    %9644 = vmatmul.mubr.f32.gmra.mrb[0].mxu0 %v9643
    %v9645 = vpop.f32.mrb[0].mxu0
    %v9646 = vadd.f32 %v9334, %v9645
    %v9647 = vpop.f32.mrb[0].mxu0
    %9648 = vmatprep.mubr.f32.mxu0 0.0
    %v9649 = vand.u32 %v8621, 4294901760
    %v9650 = vsub.f32 %v8621, %v9649
    %9651 = vmatmul.mubr.f32.gmra.mrb[0].mxu0 %v9650
    %v9652 = vpop.f32.mrb[0].mxu0
    %v9653 = vadd.f32 %v9340, %v9652
    %v9654 = vpop.f32.mrb[0].mxu0
    %9655 = vmatprep.mubr.f32.mxu0 0.0
    %v9656 = vand.u32 %v8622, 4294901760
    %v9657 = vsub.f32 %v8622, %v9656
    %9658 = vmatmul.mubr.f32.gmra.mrb[0].mxu0 %v9657
    %v9659 = vpop.f32.mrb[0].mxu0
    %v9660 = vadd.f32 %v9346, %v9659
    %v9661 = vpop.f32.mrb[0].mxu0
    %9662 = vmatprep.mubr.f32.mxu0 0.0
    %v9663 = vand.u32 %v8623, 4294901760
    %v9664 = vsub.f32 %v8623, %v9663
    %9665 = vmatmul.mubr.f32.gmra.mrb[0].mxu0 %v9664
    %v9666 = vpop.f32.mrb[0].mxu0
    %v9667 = vadd.f32 %v9352, %v9666
    %v9668 = vpop.f32.mrb[0].mxu0
    %9669 = vmatprep.mubr.f32.mxu0 0.0
    %v9670 = vand.u32 %v8624, 4294901760
    %v9671 = vsub.f32 %v8624, %v9670
    %9672 = vmatmul.mubr.f32.gmra.mrb[0].mxu0 %v9671
    %v9673 = vpop.f32.mrb[0].mxu0
    %v9674 = vadd.f32 %v9358, %v9673
    %v9675 = vpop.f32.mrb[0].mxu0
    %9676 = vmatprep.mubr.f32.mxu0 0.0
    %v9677 = vand.u32 %v8625, 4294901760
    %v9678 = vsub.f32 %v8625, %v9677
    %9679 = vmatmul.mubr.f32.gmra.mrb[0].mxu0 %v9678
    %v9680 = vpop.f32.mrb[0].mxu0
    %v9681 = vadd.f32 %v9364, %v9680
    %v9682 = vpop.f32.mrb[0].mxu0
    %9683 = vmatprep.mubr.f32.mxu0 0.0
    %v9684 = vand.u32 %v8626, 4294901760
    %v9685 = vsub.f32 %v8626, %v9684
    %9686 = vmatmul.mubr.f32.gmra.mrb[0].mxu0 %v9685
    %v9687 = vpop.f32.mrb[0].mxu0
    %v9688 = vadd.f32 %v9370, %v9687
    %v9689 = vpop.f32.mrb[0].mxu0
    %9690 = vmatprep.mubr.f32.mxu0 0.0
    %v9691 = vand.u32 %v8627, 4294901760
    %v9692 = vsub.f32 %v8627, %v9691
    %9693 = vmatmul.mubr.f32.gmra.mrb[0].mxu0 %v9692
    %v9694 = vpop.f32.mrb[0].mxu0
    %v9695 = vadd.f32 %v9376, %v9694
    %v9696 = vpop.f32.mrb[0].mxu0
    %9697 = vmatprep.mubr.f32.mxu0 0.0
    %v9698 = vand.u32 %v8628, 4294901760
    %v9699 = vsub.f32 %v8628, %v9698
    %9700 = vmatmul.mubr.f32.gmra.mrb[0].mxu0 %v9699
    %v9701 = vpop.f32.mrb[0].mxu0
    %v9702 = vadd.f32 %v9382, %v9701
    %v9703 = vpop.f32.mrb[0].mxu0
    %9704 = vmatprep.mubr.f32.mxu0 0.0
    %v9705 = vand.u32 %v8629, 4294901760
    %v9706 = vsub.f32 %v8629, %v9705
    %9707 = vmatmul.mubr.f32.gmra.mrb[0].mxu0 %v9706
    %v9708 = vpop.f32.mrb[0].mxu0
    %v9709 = vadd.f32 %v9388, %v9708
    %v9710 = vpop.f32.mrb[0].mxu0
    %9711 = vdwg.mxu0
    %9712 = vmatprep.subr.mxu0 0.0
    %v9713 = vand.u32 %v8630, 4294901760
    %9714 = vmatpush1.msra.mxu0 %v9713
    %9715 = vmatprep.subr.mxu0 0.0
    %v9716 = vand.u32 %v8631, 4294901760
    %9717 = vmatpush1.msra.mxu0 %v9716
    %9718 = vmatprep.subr.mxu0 0.0
    %v9719 = vand.u32 %v8632, 4294901760
    %9720 = vmatpush1.msra.mxu0 %v9719
    %9721 = vmatprep.subr.mxu0 0.0
    %v9722 = vand.u32 %v8633, 4294901760
    %9723 = vmatpush1.msra.mxu0 %v9722
    %9724 = vmatprep.subr.mxu0 0.0
    %v9725 = vand.u32 %v8634, 4294901760
    %9726 = vmatpush1.msra.mxu0 %v9725
    %9727 = vmatprep.subr.mxu0 0.0
    %v9728 = vand.u32 %v8635, 4294901760
    %9729 = vmatpush1.msra.mxu0 %v9728
    %9730 = vmatprep.subr.mxu0 0.0
    %v9731 = vand.u32 %v8636, 4294901760
    %9732 = vmatpush1.msra.mxu0 %v9731
    %9733 = vmatprep.subr.mxu0 0.0
    %v9734 = vand.u32 %v8637, 4294901760
    %9735 = vmatpush1.msra.mxu0 %v9734
    %9736 = vmatprep.subr.mxu0 0.0
    %v9737 = vand.u32 %v8638, 4294901760
    %9738 = vmatpush1.msra.mxu0 %v9737
    %9739 = vmatprep.subr.mxu0 0.0
    %v9740 = vand.u32 %v8639, 4294901760
    %9741 = vmatpush1.msra.mxu0 %v9740
    %9742 = vmatprep.subr.mxu0 0.0
    %v9743 = vand.u32 %v8640, 4294901760
    %9744 = vmatpush1.msra.mxu0 %v9743
    %9745 = vmatprep.subr.mxu0 0.0
    %v9746 = vand.u32 %v8641, 4294901760
    %9747 = vmatpush1.msra.mxu0 %v9746
    %9748 = vmatprep.subr.mxu0 0.0
    %v9749 = vand.u32 %v8642, 4294901760
    %9750 = vmatpush1.msra.mxu0 %v9749
    %9751 = vmatprep.subr.mxu0 0.0
    %v9752 = vand.u32 %v8643, 4294901760
    %9753 = vmatpush1.msra.mxu0 %v9752
    %9754 = vmatprep.subr.mxu0 0.0
    %v9755 = vand.u32 %v8644, 4294901760
    %9756 = vmatpush1.msra.mxu0 %v9755
    %9757 = vmatprep.subr.mxu0 0.0
    %v9758 = vand.u32 %v8645, 4294901760
    %9759 = vmatpush1.msra.mxu0 %v9758
    %9760 = vmatprep.subr.mxu0 0.0
    %9761 = vmatpush1.msra.mxu0 0.0
    %9762 = vmatprep.subr.mxu0 0.0
    %9763 = vmatpush1.msra.mxu0 0.0
    %9764 = vmatprep.subr.mxu0 0.0
    %9765 = vmatpush1.msra.mxu0 0.0
    %9766 = vmatprep.subr.mxu0 0.0
    %9767 = vmatpush1.msra.mxu0 0.0
    %9768 = vmatprep.subr.mxu0 0.0
    %9769 = vmatpush1.msra.mxu0 0.0
    %9770 = vmatprep.subr.mxu0 0.0
    %9771 = vmatpush1.msra.mxu0 0.0
    %9772 = vmatprep.subr.mxu0 0.0
    %9773 = vmatpush1.msra.mxu0 0.0
    %9774 = vmatprep.subr.mxu0 0.0
    %9775 = vmatpush1.msra.mxu0 0.0
    %9776 = vmatprep.subr.mxu0 0.0
    %9777 = vmatpush1.msra.mxu0 0.0
    %9778 = vmatprep.subr.mxu0 0.0
    %9779 = vmatpush1.msra.mxu0 0.0
    %9780 = vmatprep.subr.mxu0 0.0
    %9781 = vmatpush1.msra.mxu0 0.0
    %9782 = vmatprep.subr.mxu0 0.0
    %9783 = vmatpush1.msra.mxu0 0.0
    %9784 = vmatprep.subr.mxu0 0.0
    %9785 = vmatpush1.msra.mxu0 0.0
    %9786 = vmatprep.subr.mxu0 0.0
    %9787 = vmatpush1.msra.mxu0 0.0
    %9788 = vmatprep.subr.mxu0 0.0
    %9789 = vmatpush1.msra.mxu0 0.0
    %9790 = vmatprep.subr.mxu0 0.0
    %9791 = vmatpush1.msra.mxu0 0.0
    %9792 = vmatprep.mubr.f32.mxu0 0.0
    %v9793 = vand.u32 %v8598, 4294901760
    %v9794 = vsub.f32 %v8598, %v9793
    %v9795 = vand.u32 %v9794, 4294901760
    %9796 = vmatmul.mubr.f32.gmra.mrb[0].mxu0 %v9795
    %v9797 = vpop.f32.mrb[0].mxu0
    %v9798 = vadd.f32 %v9492, %v9797
    %v9799 = vpop.f32.mrb[0].mxu0
    %9800 = vmatprep.mubr.f32.mxu0 0.0
    %v9801 = vand.u32 %v8599, 4294901760
    %v9802 = vsub.f32 %v8599, %v9801
    %v9803 = vand.u32 %v9802, 4294901760
    %9804 = vmatmul.mubr.f32.gmra.mrb[0].mxu0 %v9803
    %v9805 = vpop.f32.mrb[0].mxu0
    %v9806 = vadd.f32 %v9499, %v9805
    %v9807 = vpop.f32.mrb[0].mxu0
    %9808 = vmatprep.mubr.f32.mxu0 0.0
    %v9809 = vand.u32 %v8600, 4294901760
    %v9810 = vsub.f32 %v8600, %v9809
    %v9811 = vand.u32 %v9810, 4294901760
    %9812 = vmatmul.mubr.f32.gmra.mrb[0].mxu0 %v9811
    %v9813 = vpop.f32.mrb[0].mxu0
    %v9814 = vadd.f32 %v9506, %v9813
    %v9815 = vpop.f32.mrb[0].mxu0
    %9816 = vmatprep.mubr.f32.mxu0 0.0
    %v9817 = vand.u32 %v8601, 4294901760
    %v9818 = vsub.f32 %v8601, %v9817
    %v9819 = vand.u32 %v9818, 4294901760
    %9820 = vmatmul.mubr.f32.gmra.mrb[0].mxu0 %v9819
    %v9821 = vpop.f32.mrb[0].mxu0
    %v9822 = vadd.f32 %v9513, %v9821
    %v9823 = vpop.f32.mrb[0].mxu0
    %9824 = vmatprep.mubr.f32.mxu0 0.0
    %v9825 = vand.u32 %v8602, 4294901760
    %v9826 = vsub.f32 %v8602, %v9825
    %v9827 = vand.u32 %v9826, 4294901760
    %9828 = vmatmul.mubr.f32.gmra.mrb[0].mxu0 %v9827
    %v9829 = vpop.f32.mrb[0].mxu0
    %v9830 = vadd.f32 %v9520, %v9829
    %v9831 = vpop.f32.mrb[0].mxu0
    %9832 = vmatprep.mubr.f32.mxu0 0.0
    %v9833 = vand.u32 %v8603, 4294901760
    %v9834 = vsub.f32 %v8603, %v9833
    %v9835 = vand.u32 %v9834, 4294901760
    %9836 = vmatmul.mubr.f32.gmra.mrb[0].mxu0 %v9835
    %v9837 = vpop.f32.mrb[0].mxu0
    %v9838 = vadd.f32 %v9527, %v9837
    %v9839 = vpop.f32.mrb[0].mxu0
    %9840 = vmatprep.mubr.f32.mxu0 0.0
    %v9841 = vand.u32 %v8604, 4294901760
    %v9842 = vsub.f32 %v8604, %v9841
    %v9843 = vand.u32 %v9842, 4294901760
    %9844 = vmatmul.mubr.f32.gmra.mrb[0].mxu0 %v9843
    %v9845 = vpop.f32.mrb[0].mxu0
    %v9846 = vadd.f32 %v9534, %v9845
    %v9847 = vpop.f32.mrb[0].mxu0
    %9848 = vmatprep.mubr.f32.mxu0 0.0
    %v9849 = vand.u32 %v8605, 4294901760
    %v9850 = vsub.f32 %v8605, %v9849
    %v9851 = vand.u32 %v9850, 4294901760
    %9852 = vmatmul.mubr.f32.gmra.mrb[0].mxu0 %v9851
    %v9853 = vpop.f32.mrb[0].mxu0
    %v9854 = vadd.f32 %v9541, %v9853
    %v9855 = vpop.f32.mrb[0].mxu0
    %9856 = vmatprep.mubr.f32.mxu0 0.0
    %v9857 = vand.u32 %v8606, 4294901760
    %v9858 = vsub.f32 %v8606, %v9857
    %v9859 = vand.u32 %v9858, 4294901760
    %9860 = vmatmul.mubr.f32.gmra.mrb[0].mxu0 %v9859
    %v9861 = vpop.f32.mrb[0].mxu0
    %v9862 = vadd.f32 %v9548, %v9861
    %v9863 = vpop.f32.mrb[0].mxu0
    %9864 = vmatprep.mubr.f32.mxu0 0.0
    %v9865 = vand.u32 %v8607, 4294901760
    %v9866 = vsub.f32 %v8607, %v9865
    %v9867 = vand.u32 %v9866, 4294901760
    %9868 = vmatmul.mubr.f32.gmra.mrb[0].mxu0 %v9867
    %v9869 = vpop.f32.mrb[0].mxu0
    %v9870 = vadd.f32 %v9555, %v9869
    %v9871 = vpop.f32.mrb[0].mxu0
    %9872 = vmatprep.mubr.f32.mxu0 0.0
    %v9873 = vand.u32 %v8608, 4294901760
    %v9874 = vsub.f32 %v8608, %v9873
    %v9875 = vand.u32 %v9874, 4294901760
    %9876 = vmatmul.mubr.f32.gmra.mrb[0].mxu0 %v9875
    %v9877 = vpop.f32.mrb[0].mxu0
    %v9878 = vadd.f32 %v9562, %v9877
    %v9879 = vpop.f32.mrb[0].mxu0
    %9880 = vmatprep.mubr.f32.mxu0 0.0
    %v9881 = vand.u32 %v8609, 4294901760
    %v9882 = vsub.f32 %v8609, %v9881
    %v9883 = vand.u32 %v9882, 4294901760
    %9884 = vmatmul.mubr.f32.gmra.mrb[0].mxu0 %v9883
    %v9885 = vpop.f32.mrb[0].mxu0
    %v9886 = vadd.f32 %v9569, %v9885
    %v9887 = vpop.f32.mrb[0].mxu0
    %9888 = vmatprep.mubr.f32.mxu0 0.0
    %v9889 = vand.u32 %v8610, 4294901760
    %v9890 = vsub.f32 %v8610, %v9889
    %v9891 = vand.u32 %v9890, 4294901760
    %9892 = vmatmul.mubr.f32.gmra.mrb[0].mxu0 %v9891
    %v9893 = vpop.f32.mrb[0].mxu0
    %v9894 = vadd.f32 %v9576, %v9893
    %v9895 = vpop.f32.mrb[0].mxu0
    %9896 = vmatprep.mubr.f32.mxu0 0.0
    %v9897 = vand.u32 %v8611, 4294901760
    %v9898 = vsub.f32 %v8611, %v9897
    %v9899 = vand.u32 %v9898, 4294901760
    %9900 = vmatmul.mubr.f32.gmra.mrb[0].mxu0 %v9899
    %v9901 = vpop.f32.mrb[0].mxu0
    %v9902 = vadd.f32 %v9583, %v9901
    %v9903 = vpop.f32.mrb[0].mxu0
    %9904 = vmatprep.mubr.f32.mxu0 0.0
    %v9905 = vand.u32 %v8612, 4294901760
    %v9906 = vsub.f32 %v8612, %v9905
    %v9907 = vand.u32 %v9906, 4294901760
    %9908 = vmatmul.mubr.f32.gmra.mrb[0].mxu0 %v9907
    %v9909 = vpop.f32.mrb[0].mxu0
    %v9910 = vadd.f32 %v9590, %v9909
    %v9911 = vpop.f32.mrb[0].mxu0
    %9912 = vmatprep.mubr.f32.mxu0 0.0
    %v9913 = vand.u32 %v8613, 4294901760
    %v9914 = vsub.f32 %v8613, %v9913
    %v9915 = vand.u32 %v9914, 4294901760
    %9916 = vmatmul.mubr.f32.gmra.mrb[0].mxu0 %v9915
    %v9917 = vpop.f32.mrb[0].mxu0
    %v9918 = vadd.f32 %v9597, %v9917
    %v9919 = vpop.f32.mrb[0].mxu0
    %9920 = vmatprep.mubr.f32.mxu0 0.0
    %v9921 = vand.u32 %v8614, 4294901760
    %v9922 = vsub.f32 %v8614, %v9921
    %v9923 = vand.u32 %v9922, 4294901760
    %9924 = vmatmul.mubr.f32.gmra.mrb[0].mxu0 %v9923
    %v9925 = vpop.f32.mrb[0].mxu0
    %v9926 = vadd.f32 %v9604, %v9925
    %v9927 = vpop.f32.mrb[0].mxu0
    %9928 = vmatprep.mubr.f32.mxu0 0.0
    %v9929 = vand.u32 %v8615, 4294901760
    %v9930 = vsub.f32 %v8615, %v9929
    %v9931 = vand.u32 %v9930, 4294901760
    %9932 = vmatmul.mubr.f32.gmra.mrb[0].mxu0 %v9931
    %v9933 = vpop.f32.mrb[0].mxu0
    %v9934 = vadd.f32 %v9611, %v9933
    %v9935 = vpop.f32.mrb[0].mxu0
    %9936 = vmatprep.mubr.f32.mxu0 0.0
    %v9937 = vand.u32 %v8616, 4294901760
    %v9938 = vsub.f32 %v8616, %v9937
    %v9939 = vand.u32 %v9938, 4294901760
    %9940 = vmatmul.mubr.f32.gmra.mrb[0].mxu0 %v9939
    %v9941 = vpop.f32.mrb[0].mxu0
    %v9942 = vadd.f32 %v9618, %v9941
    %v9943 = vpop.f32.mrb[0].mxu0
    %9944 = vmatprep.mubr.f32.mxu0 0.0
    %v9945 = vand.u32 %v8617, 4294901760
    %v9946 = vsub.f32 %v8617, %v9945
    %v9947 = vand.u32 %v9946, 4294901760
    %9948 = vmatmul.mubr.f32.gmra.mrb[0].mxu0 %v9947
    %v9949 = vpop.f32.mrb[0].mxu0
    %v9950 = vadd.f32 %v9625, %v9949
    %v9951 = vpop.f32.mrb[0].mxu0
    %9952 = vmatprep.mubr.f32.mxu0 0.0
    %v9953 = vand.u32 %v8618, 4294901760
    %v9954 = vsub.f32 %v8618, %v9953
    %v9955 = vand.u32 %v9954, 4294901760
    %9956 = vmatmul.mubr.f32.gmra.mrb[0].mxu0 %v9955
    %v9957 = vpop.f32.mrb[0].mxu0
    %v9958 = vadd.f32 %v9632, %v9957
    %v9959 = vpop.f32.mrb[0].mxu0
    %9960 = vmatprep.mubr.f32.mxu0 0.0
    %v9961 = vand.u32 %v8619, 4294901760
    %v9962 = vsub.f32 %v8619, %v9961
    %v9963 = vand.u32 %v9962, 4294901760
    %9964 = vmatmul.mubr.f32.gmra.mrb[0].mxu0 %v9963
    %v9965 = vpop.f32.mrb[0].mxu0
    %v9966 = vadd.f32 %v9639, %v9965
    %v9967 = vpop.f32.mrb[0].mxu0
    %9968 = vmatprep.mubr.f32.mxu0 0.0
    %v9969 = vand.u32 %v8620, 4294901760
    %v9970 = vsub.f32 %v8620, %v9969
    %v9971 = vand.u32 %v9970, 4294901760
    %9972 = vmatmul.mubr.f32.gmra.mrb[0].mxu0 %v9971
    %v9973 = vpop.f32.mrb[0].mxu0
    %v9974 = vadd.f32 %v9646, %v9973
    %v9975 = vpop.f32.mrb[0].mxu0
    %9976 = vmatprep.mubr.f32.mxu0 0.0
    %v9977 = vand.u32 %v8621, 4294901760
    %v9978 = vsub.f32 %v8621, %v9977
    %v9979 = vand.u32 %v9978, 4294901760
    %9980 = vmatmul.mubr.f32.gmra.mrb[0].mxu0 %v9979
    %v9981 = vpop.f32.mrb[0].mxu0
    %v9982 = vadd.f32 %v9653, %v9981
    %v9983 = vpop.f32.mrb[0].mxu0
    %9984 = vmatprep.mubr.f32.mxu0 0.0
    %v9985 = vand.u32 %v8622, 4294901760
    %v9986 = vsub.f32 %v8622, %v9985
    %v9987 = vand.u32 %v9986, 4294901760
    %9988 = vmatmul.mubr.f32.gmra.mrb[0].mxu0 %v9987
    %v9989 = vpop.f32.mrb[0].mxu0
    %v9990 = vadd.f32 %v9660, %v9989
    %v9991 = vpop.f32.mrb[0].mxu0
    %9992 = vmatprep.mubr.f32.mxu0 0.0
    %v9993 = vand.u32 %v8623, 4294901760
    %v9994 = vsub.f32 %v8623, %v9993
    %v9995 = vand.u32 %v9994, 4294901760
    %9996 = vmatmul.mubr.f32.gmra.mrb[0].mxu0 %v9995
    %v9997 = vpop.f32.mrb[0].mxu0
    %v9998 = vadd.f32 %v9667, %v9997
    %v9999 = vpop.f32.mrb[0].mxu0
    %10000 = vmatprep.mubr.f32.mxu0 0.0
    %v10001 = vand.u32 %v8624, 4294901760
    %v10002 = vsub.f32 %v8624, %v10001
    %v10003 = vand.u32 %v10002, 4294901760
    %10004 = vmatmul.mubr.f32.gmra.mrb[0].mxu0 %v10003
    %v10005 = vpop.f32.mrb[0].mxu0
    %v10006 = vadd.f32 %v9674, %v10005
    %v10007 = vpop.f32.mrb[0].mxu0
    %10008 = vmatprep.mubr.f32.mxu0 0.0
    %v10009 = vand.u32 %v8625, 4294901760
    %v10010 = vsub.f32 %v8625, %v10009
    %v10011 = vand.u32 %v10010, 4294901760
    %10012 = vmatmul.mubr.f32.gmra.mrb[0].mxu0 %v10011
    %v10013 = vpop.f32.mrb[0].mxu0
    %v10014 = vadd.f32 %v9681, %v10013
    %v10015 = vpop.f32.mrb[0].mxu0
    %10016 = vmatprep.mubr.f32.mxu0 0.0
    %v10017 = vand.u32 %v8626, 4294901760
    %v10018 = vsub.f32 %v8626, %v10017
    %v10019 = vand.u32 %v10018, 4294901760
    %10020 = vmatmul.mubr.f32.gmra.mrb[0].mxu0 %v10019
    %v10021 = vpop.f32.mrb[0].mxu0
    %v10022 = vadd.f32 %v9688, %v10021
    %v10023 = vpop.f32.mrb[0].mxu0
    %10024 = vmatprep.mubr.f32.mxu0 0.0
    %v10025 = vand.u32 %v8627, 4294901760
    %v10026 = vsub.f32 %v8627, %v10025
    %v10027 = vand.u32 %v10026, 4294901760
    %10028 = vmatmul.mubr.f32.gmra.mrb[0].mxu0 %v10027
    %v10029 = vpop.f32.mrb[0].mxu0
    %v10030 = vadd.f32 %v9695, %v10029
    %v10031 = vpop.f32.mrb[0].mxu0
    %10032 = vmatprep.mubr.f32.mxu0 0.0
    %v10033 = vand.u32 %v8628, 4294901760
    %v10034 = vsub.f32 %v8628, %v10033
    %v10035 = vand.u32 %v10034, 4294901760
    %10036 = vmatmul.mubr.f32.gmra.mrb[0].mxu0 %v10035
    %v10037 = vpop.f32.mrb[0].mxu0
    %v10038 = vadd.f32 %v9702, %v10037
    %v10039 = vpop.f32.mrb[0].mxu0
    %10040 = vmatprep.mubr.f32.mxu0 0.0
    %v10041 = vand.u32 %v8629, 4294901760
    %v10042 = vsub.f32 %v8629, %v10041
    %v10043 = vand.u32 %v10042, 4294901760
    %10044 = vmatmul.mubr.f32.gmra.mrb[0].mxu0 %v10043
    %v10045 = vpop.f32.mrb[0].mxu0
    %v10046 = vadd.f32 %v9709, %v10045
    %v10047 = vpop.f32.mrb[0].mxu0
    %10048 = vdwg.mxu0
    %10049 = vmatprep.subr.mxu0 0.0
    %v10050 = vand.u32 %v8630, 4294901760
    %v10051 = vsub.f32 %v8630, %v10050
    %v10052 = vand.u32 %v10051, 4294901760
    %10053 = vmatpush1.msra.mxu0 %v10052
    %10054 = vmatprep.subr.mxu0 0.0
    %v10055 = vand.u32 %v8631, 4294901760
    %v10056 = vsub.f32 %v8631, %v10055
    %v10057 = vand.u32 %v10056, 4294901760
    %10058 = vmatpush1.msra.mxu0 %v10057
    %10059 = vmatprep.subr.mxu0 0.0
    %v10060 = vand.u32 %v8632, 4294901760
    %v10061 = vsub.f32 %v8632, %v10060
    %v10062 = vand.u32 %v10061, 4294901760
    %10063 = vmatpush1.msra.mxu0 %v10062
    %10064 = vmatprep.subr.mxu0 0.0
    %v10065 = vand.u32 %v8633, 4294901760
    %v10066 = vsub.f32 %v8633, %v10065
    %v10067 = vand.u32 %v10066, 4294901760
    %10068 = vmatpush1.msra.mxu0 %v10067
    %10069 = vmatprep.subr.mxu0 0.0
    %v10070 = vand.u32 %v8634, 4294901760
    %v10071 = vsub.f32 %v8634, %v10070
    %v10072 = vand.u32 %v10071, 4294901760
    %10073 = vmatpush1.msra.mxu0 %v10072
    %10074 = vmatprep.subr.mxu0 0.0
    %v10075 = vand.u32 %v8635, 4294901760
    %v10076 = vsub.f32 %v8635, %v10075
    %v10077 = vand.u32 %v10076, 4294901760
    %10078 = vmatpush1.msra.mxu0 %v10077
    %10079 = vmatprep.subr.mxu0 0.0
    %v10080 = vand.u32 %v8636, 4294901760
    %v10081 = vsub.f32 %v8636, %v10080
    %v10082 = vand.u32 %v10081, 4294901760
    %10083 = vmatpush1.msra.mxu0 %v10082
    %10084 = vmatprep.subr.mxu0 0.0
    %v10085 = vand.u32 %v8637, 4294901760
    %v10086 = vsub.f32 %v8637, %v10085
    %v10087 = vand.u32 %v10086, 4294901760
    %10088 = vmatpush1.msra.mxu0 %v10087
    %10089 = vmatprep.subr.mxu0 0.0
    %v10090 = vand.u32 %v8638, 4294901760
    %v10091 = vsub.f32 %v8638, %v10090
    %v10092 = vand.u32 %v10091, 4294901760
    %10093 = vmatpush1.msra.mxu0 %v10092
    %10094 = vmatprep.subr.mxu0 0.0
    %v10095 = vand.u32 %v8639, 4294901760
    %v10096 = vsub.f32 %v8639, %v10095
    %v10097 = vand.u32 %v10096, 4294901760
    %10098 = vmatpush1.msra.mxu0 %v10097
    %10099 = vmatprep.subr.mxu0 0.0
    %v10100 = vand.u32 %v8640, 4294901760
    %v10101 = vsub.f32 %v8640, %v10100
    %v10102 = vand.u32 %v10101, 4294901760
    %10103 = vmatpush1.msra.mxu0 %v10102
    %10104 = vmatprep.subr.mxu0 0.0
    %v10105 = vand.u32 %v8641, 4294901760
    %v10106 = vsub.f32 %v8641, %v10105
    %v10107 = vand.u32 %v10106, 4294901760
    %10108 = vmatpush1.msra.mxu0 %v10107
    %10109 = vmatprep.subr.mxu0 0.0
    %v10110 = vand.u32 %v8642, 4294901760
    %v10111 = vsub.f32 %v8642, %v10110
    %v10112 = vand.u32 %v10111, 4294901760
    %10113 = vmatpush1.msra.mxu0 %v10112
    %10114 = vmatprep.subr.mxu0 0.0
    %v10115 = vand.u32 %v8643, 4294901760
    %v10116 = vsub.f32 %v8643, %v10115
    %v10117 = vand.u32 %v10116, 4294901760
    %10118 = vmatpush1.msra.mxu0 %v10117
    %10119 = vmatprep.subr.mxu0 0.0
    %v10120 = vand.u32 %v8644, 4294901760
    %v10121 = vsub.f32 %v8644, %v10120
    %v10122 = vand.u32 %v10121, 4294901760
    %10123 = vmatpush1.msra.mxu0 %v10122
    %10124 = vmatprep.subr.mxu0 0.0
    %v10125 = vand.u32 %v8645, 4294901760
    %v10126 = vsub.f32 %v8645, %v10125
    %v10127 = vand.u32 %v10126, 4294901760
    %10128 = vmatpush1.msra.mxu0 %v10127
    %10129 = vmatprep.subr.mxu0 0.0
    %10130 = vmatpush1.msra.mxu0 0.0
    %10131 = vmatprep.subr.mxu0 0.0
    %10132 = vmatpush1.msra.mxu0 0.0
    %10133 = vmatprep.subr.mxu0 0.0
    %10134 = vmatpush1.msra.mxu0 0.0
    %10135 = vmatprep.subr.mxu0 0.0
    %10136 = vmatpush1.msra.mxu0 0.0
    %10137 = vmatprep.subr.mxu0 0.0
    %10138 = vmatpush1.msra.mxu0 0.0
    %10139 = vmatprep.subr.mxu0 0.0
    %10140 = vmatpush1.msra.mxu0 0.0
    %10141 = vmatprep.subr.mxu0 0.0
    %10142 = vmatpush1.msra.mxu0 0.0
    %10143 = vmatprep.subr.mxu0 0.0
    %10144 = vmatpush1.msra.mxu0 0.0
    %10145 = vmatprep.subr.mxu0 0.0
    %10146 = vmatpush1.msra.mxu0 0.0
    %10147 = vmatprep.subr.mxu0 0.0
    %10148 = vmatpush1.msra.mxu0 0.0
    %10149 = vmatprep.subr.mxu0 0.0
    %10150 = vmatpush1.msra.mxu0 0.0
    %10151 = vmatprep.subr.mxu0 0.0
    %10152 = vmatpush1.msra.mxu0 0.0
    %10153 = vmatprep.subr.mxu0 0.0
    %10154 = vmatpush1.msra.mxu0 0.0
    %10155 = vmatprep.subr.mxu0 0.0
    %10156 = vmatpush1.msra.mxu0 0.0
    %10157 = vmatprep.subr.mxu0 0.0
    %10158 = vmatpush1.msra.mxu0 0.0
    %10159 = vmatprep.subr.mxu0 0.0
    %10160 = vmatpush1.msra.mxu0 0.0
    %10161 = vmatprep.mubr.f32.mxu0 0.0
    %v10162 = vand.u32 %v8598, 4294901760
    %10163 = vmatmul.mubr.f32.gmra.mrb[0].mxu0 %v10162
    %v10164 = vpop.f32.mrb[0].mxu0
    %v10165 = vadd.f32 %v9798, %v10164
    %v10166 = vpop.f32.mrb[0].mxu0
    %10167 = vmatprep.mubr.f32.mxu0 0.0
    %v10168 = vand.u32 %v8599, 4294901760
    %10169 = vmatmul.mubr.f32.gmra.mrb[0].mxu0 %v10168
    %v10170 = vpop.f32.mrb[0].mxu0
    %v10171 = vadd.f32 %v9806, %v10170
    %v10172 = vpop.f32.mrb[0].mxu0
    %10173 = vmatprep.mubr.f32.mxu0 0.0
    %v10174 = vand.u32 %v8600, 4294901760
    %10175 = vmatmul.mubr.f32.gmra.mrb[0].mxu0 %v10174
    %v10176 = vpop.f32.mrb[0].mxu0
    %v10177 = vadd.f32 %v9814, %v10176
    %v10178 = vpop.f32.mrb[0].mxu0
    %10179 = vmatprep.mubr.f32.mxu0 0.0
    %v10180 = vand.u32 %v8601, 4294901760
    %10181 = vmatmul.mubr.f32.gmra.mrb[0].mxu0 %v10180
    %v10182 = vpop.f32.mrb[0].mxu0
    %v10183 = vadd.f32 %v9822, %v10182
    %v10184 = vpop.f32.mrb[0].mxu0
    %10185 = vmatprep.mubr.f32.mxu0 0.0
    %v10186 = vand.u32 %v8602, 4294901760
    %10187 = vmatmul.mubr.f32.gmra.mrb[0].mxu0 %v10186
    %v10188 = vpop.f32.mrb[0].mxu0
    %v10189 = vadd.f32 %v9830, %v10188
    %v10190 = vpop.f32.mrb[0].mxu0
    %10191 = vmatprep.mubr.f32.mxu0 0.0
    %v10192 = vand.u32 %v8603, 4294901760
    %10193 = vmatmul.mubr.f32.gmra.mrb[0].mxu0 %v10192
    %v10194 = vpop.f32.mrb[0].mxu0
    %v10195 = vadd.f32 %v9838, %v10194
    %v10196 = vpop.f32.mrb[0].mxu0
    %10197 = vmatprep.mubr.f32.mxu0 0.0
    %v10198 = vand.u32 %v8604, 4294901760
    %10199 = vmatmul.mubr.f32.gmra.mrb[0].mxu0 %v10198
    %v10200 = vpop.f32.mrb[0].mxu0
    %v10201 = vadd.f32 %v9846, %v10200
    %v10202 = vpop.f32.mrb[0].mxu0
    %10203 = vmatprep.mubr.f32.mxu0 0.0
    %v10204 = vand.u32 %v8605, 4294901760
    %10205 = vmatmul.mubr.f32.gmra.mrb[0].mxu0 %v10204
    %v10206 = vpop.f32.mrb[0].mxu0
    %v10207 = vadd.f32 %v9854, %v10206
    %v10208 = vpop.f32.mrb[0].mxu0
    %10209 = vmatprep.mubr.f32.mxu0 0.0
    %v10210 = vand.u32 %v8606, 4294901760
    %10211 = vmatmul.mubr.f32.gmra.mrb[0].mxu0 %v10210
    %v10212 = vpop.f32.mrb[0].mxu0
    %v10213 = vadd.f32 %v9862, %v10212
    %v10214 = vpop.f32.mrb[0].mxu0
    %10215 = vmatprep.mubr.f32.mxu0 0.0
    %v10216 = vand.u32 %v8607, 4294901760
    %10217 = vmatmul.mubr.f32.gmra.mrb[0].mxu0 %v10216
    %v10218 = vpop.f32.mrb[0].mxu0
    %v10219 = vadd.f32 %v9870, %v10218
    %v10220 = vpop.f32.mrb[0].mxu0
    %10221 = vmatprep.mubr.f32.mxu0 0.0
    %v10222 = vand.u32 %v8608, 4294901760
    %10223 = vmatmul.mubr.f32.gmra.mrb[0].mxu0 %v10222
    %v10224 = vpop.f32.mrb[0].mxu0
    %v10225 = vadd.f32 %v9878, %v10224
    %v10226 = vpop.f32.mrb[0].mxu0
    %10227 = vmatprep.mubr.f32.mxu0 0.0
    %v10228 = vand.u32 %v8609, 4294901760
    %10229 = vmatmul.mubr.f32.gmra.mrb[0].mxu0 %v10228
    %v10230 = vpop.f32.mrb[0].mxu0
    %v10231 = vadd.f32 %v9886, %v10230
    %v10232 = vpop.f32.mrb[0].mxu0
    %10233 = vmatprep.mubr.f32.mxu0 0.0
    %v10234 = vand.u32 %v8610, 4294901760
    %10235 = vmatmul.mubr.f32.gmra.mrb[0].mxu0 %v10234
    %v10236 = vpop.f32.mrb[0].mxu0
    %v10237 = vadd.f32 %v9894, %v10236
    %v10238 = vpop.f32.mrb[0].mxu0
    %10239 = vmatprep.mubr.f32.mxu0 0.0
    %v10240 = vand.u32 %v8611, 4294901760
    %10241 = vmatmul.mubr.f32.gmra.mrb[0].mxu0 %v10240
    %v10242 = vpop.f32.mrb[0].mxu0
    %v10243 = vadd.f32 %v9902, %v10242
    %v10244 = vpop.f32.mrb[0].mxu0
    %10245 = vmatprep.mubr.f32.mxu0 0.0
    %v10246 = vand.u32 %v8612, 4294901760
    %10247 = vmatmul.mubr.f32.gmra.mrb[0].mxu0 %v10246
    %v10248 = vpop.f32.mrb[0].mxu0
    %v10249 = vadd.f32 %v9910, %v10248
    %v10250 = vpop.f32.mrb[0].mxu0
    %10251 = vmatprep.mubr.f32.mxu0 0.0
    %v10252 = vand.u32 %v8613, 4294901760
    %10253 = vmatmul.mubr.f32.gmra.mrb[0].mxu0 %v10252
    %v10254 = vpop.f32.mrb[0].mxu0
    %v10255 = vadd.f32 %v9918, %v10254
    %v10256 = vpop.f32.mrb[0].mxu0
    %10257 = vmatprep.mubr.f32.mxu0 0.0
    %v10258 = vand.u32 %v8614, 4294901760
    %10259 = vmatmul.mubr.f32.gmra.mrb[0].mxu0 %v10258
    %v10260 = vpop.f32.mrb[0].mxu0
    %v10261 = vadd.f32 %v9926, %v10260
    %v10262 = vpop.f32.mrb[0].mxu0
    %10263 = vmatprep.mubr.f32.mxu0 0.0
    %v10264 = vand.u32 %v8615, 4294901760
    %10265 = vmatmul.mubr.f32.gmra.mrb[0].mxu0 %v10264
    %v10266 = vpop.f32.mrb[0].mxu0
    %v10267 = vadd.f32 %v9934, %v10266
    %v10268 = vpop.f32.mrb[0].mxu0
    %10269 = vmatprep.mubr.f32.mxu0 0.0
    %v10270 = vand.u32 %v8616, 4294901760
    %10271 = vmatmul.mubr.f32.gmra.mrb[0].mxu0 %v10270
    %v10272 = vpop.f32.mrb[0].mxu0
    %v10273 = vadd.f32 %v9942, %v10272
    %v10274 = vpop.f32.mrb[0].mxu0
    %10275 = vmatprep.mubr.f32.mxu0 0.0
    %v10276 = vand.u32 %v8617, 4294901760
    %10277 = vmatmul.mubr.f32.gmra.mrb[0].mxu0 %v10276
    %v10278 = vpop.f32.mrb[0].mxu0
    %v10279 = vadd.f32 %v9950, %v10278
    %v10280 = vpop.f32.mrb[0].mxu0
    %10281 = vmatprep.mubr.f32.mxu0 0.0
    %v10282 = vand.u32 %v8618, 4294901760
    %10283 = vmatmul.mubr.f32.gmra.mrb[0].mxu0 %v10282
    %v10284 = vpop.f32.mrb[0].mxu0
    %v10285 = vadd.f32 %v9958, %v10284
    %v10286 = vpop.f32.mrb[0].mxu0
    %10287 = vmatprep.mubr.f32.mxu0 0.0
    %v10288 = vand.u32 %v8619, 4294901760
    %10289 = vmatmul.mubr.f32.gmra.mrb[0].mxu0 %v10288
    %v10290 = vpop.f32.mrb[0].mxu0
    %v10291 = vadd.f32 %v9966, %v10290
    %v10292 = vpop.f32.mrb[0].mxu0
    %10293 = vmatprep.mubr.f32.mxu0 0.0
    %v10294 = vand.u32 %v8620, 4294901760
    %10295 = vmatmul.mubr.f32.gmra.mrb[0].mxu0 %v10294
    %v10296 = vpop.f32.mrb[0].mxu0
    %v10297 = vadd.f32 %v9974, %v10296
    %v10298 = vpop.f32.mrb[0].mxu0
    %10299 = vmatprep.mubr.f32.mxu0 0.0
    %v10300 = vand.u32 %v8621, 4294901760
    %10301 = vmatmul.mubr.f32.gmra.mrb[0].mxu0 %v10300
    %v10302 = vpop.f32.mrb[0].mxu0
    %v10303 = vadd.f32 %v9982, %v10302
    %v10304 = vpop.f32.mrb[0].mxu0
    %10305 = vmatprep.mubr.f32.mxu0 0.0
    %v10306 = vand.u32 %v8622, 4294901760
    %10307 = vmatmul.mubr.f32.gmra.mrb[0].mxu0 %v10306
    %v10308 = vpop.f32.mrb[0].mxu0
    %v10309 = vadd.f32 %v9990, %v10308
    %v10310 = vpop.f32.mrb[0].mxu0
    %10311 = vmatprep.mubr.f32.mxu0 0.0
    %v10312 = vand.u32 %v8623, 4294901760
    %10313 = vmatmul.mubr.f32.gmra.mrb[0].mxu0 %v10312
    %v10314 = vpop.f32.mrb[0].mxu0
    %v10315 = vadd.f32 %v9998, %v10314
    %v10316 = vpop.f32.mrb[0].mxu0
    %10317 = vmatprep.mubr.f32.mxu0 0.0
    %v10318 = vand.u32 %v8624, 4294901760
    %10319 = vmatmul.mubr.f32.gmra.mrb[0].mxu0 %v10318
    %v10320 = vpop.f32.mrb[0].mxu0
    %v10321 = vadd.f32 %v10006, %v10320
    %v10322 = vpop.f32.mrb[0].mxu0
    %10323 = vmatprep.mubr.f32.mxu0 0.0
    %v10324 = vand.u32 %v8625, 4294901760
    %10325 = vmatmul.mubr.f32.gmra.mrb[0].mxu0 %v10324
    %v10326 = vpop.f32.mrb[0].mxu0
    %v10327 = vadd.f32 %v10014, %v10326
    %v10328 = vpop.f32.mrb[0].mxu0
    %10329 = vmatprep.mubr.f32.mxu0 0.0
    %v10330 = vand.u32 %v8626, 4294901760
    %10331 = vmatmul.mubr.f32.gmra.mrb[0].mxu0 %v10330
    %v10332 = vpop.f32.mrb[0].mxu0
    %v10333 = vadd.f32 %v10022, %v10332
    %v10334 = vpop.f32.mrb[0].mxu0
    %10335 = vmatprep.mubr.f32.mxu0 0.0
    %v10336 = vand.u32 %v8627, 4294901760
    %10337 = vmatmul.mubr.f32.gmra.mrb[0].mxu0 %v10336
    %v10338 = vpop.f32.mrb[0].mxu0
    %v10339 = vadd.f32 %v10030, %v10338
    %v10340 = vpop.f32.mrb[0].mxu0
    %10341 = vmatprep.mubr.f32.mxu0 0.0
    %v10342 = vand.u32 %v8628, 4294901760
    %10343 = vmatmul.mubr.f32.gmra.mrb[0].mxu0 %v10342
    %v10344 = vpop.f32.mrb[0].mxu0
    %v10345 = vadd.f32 %v10038, %v10344
    %v10346 = vpop.f32.mrb[0].mxu0
    %10347 = vmatprep.mubr.f32.mxu0 0.0
    %v10348 = vand.u32 %v8629, 4294901760
    %10349 = vmatmul.mubr.f32.gmra.mrb[0].mxu0 %v10348
    %v10350 = vpop.f32.mrb[0].mxu0
    %v10351 = vadd.f32 %v10046, %v10350
    %v10352 = vpop.f32.mrb[0].mxu0
    %10353 = vdwg.mxu0
    %10354 = vmatprep.subr.mxu0 0.0
    %v10355 = vand.u32 %v8630, 4294901760
    %10356 = vmatpush1.msra.mxu0 %v10355
    %10357 = vmatprep.subr.mxu0 0.0
    %v10358 = vand.u32 %v8631, 4294901760
    %10359 = vmatpush1.msra.mxu0 %v10358
    %10360 = vmatprep.subr.mxu0 0.0
    %v10361 = vand.u32 %v8632, 4294901760
    %10362 = vmatpush1.msra.mxu0 %v10361
    %10363 = vmatprep.subr.mxu0 0.0
    %v10364 = vand.u32 %v8633, 4294901760
    %10365 = vmatpush1.msra.mxu0 %v10364
    %10366 = vmatprep.subr.mxu0 0.0
    %v10367 = vand.u32 %v8634, 4294901760
    %10368 = vmatpush1.msra.mxu0 %v10367
    %10369 = vmatprep.subr.mxu0 0.0
    %v10370 = vand.u32 %v8635, 4294901760
    %10371 = vmatpush1.msra.mxu0 %v10370
    %10372 = vmatprep.subr.mxu0 0.0
    %v10373 = vand.u32 %v8636, 4294901760
    %10374 = vmatpush1.msra.mxu0 %v10373
    %10375 = vmatprep.subr.mxu0 0.0
    %v10376 = vand.u32 %v8637, 4294901760
    %10377 = vmatpush1.msra.mxu0 %v10376
    %10378 = vmatprep.subr.mxu0 0.0
    %v10379 = vand.u32 %v8638, 4294901760
    %10380 = vmatpush1.msra.mxu0 %v10379
    %10381 = vmatprep.subr.mxu0 0.0
    %v10382 = vand.u32 %v8639, 4294901760
    %10383 = vmatpush1.msra.mxu0 %v10382
    %10384 = vmatprep.subr.mxu0 0.0
    %v10385 = vand.u32 %v8640, 4294901760
    %10386 = vmatpush1.msra.mxu0 %v10385
    %10387 = vmatprep.subr.mxu0 0.0
    %v10388 = vand.u32 %v8641, 4294901760
    %10389 = vmatpush1.msra.mxu0 %v10388
    %10390 = vmatprep.subr.mxu0 0.0
    %v10391 = vand.u32 %v8642, 4294901760
    %10392 = vmatpush1.msra.mxu0 %v10391
    %10393 = vmatprep.subr.mxu0 0.0
    %v10394 = vand.u32 %v8643, 4294901760
    %10395 = vmatpush1.msra.mxu0 %v10394
    %10396 = vmatprep.subr.mxu0 0.0
    %v10397 = vand.u32 %v8644, 4294901760
    %10398 = vmatpush1.msra.mxu0 %v10397
    %10399 = vmatprep.subr.mxu0 0.0
    %v10400 = vand.u32 %v8645, 4294901760
    %10401 = vmatpush1.msra.mxu0 %v10400
    %10402 = vmatprep.subr.mxu0 0.0
    %10403 = vmatpush1.msra.mxu0 0.0
    %10404 = vmatprep.subr.mxu0 0.0
    %10405 = vmatpush1.msra.mxu0 0.0
    %10406 = vmatprep.subr.mxu0 0.0
    %10407 = vmatpush1.msra.mxu0 0.0
    %10408 = vmatprep.subr.mxu0 0.0
    %10409 = vmatpush1.msra.mxu0 0.0
    %10410 = vmatprep.subr.mxu0 0.0
    %10411 = vmatpush1.msra.mxu0 0.0
    %10412 = vmatprep.subr.mxu0 0.0
    %10413 = vmatpush1.msra.mxu0 0.0
    %10414 = vmatprep.subr.mxu0 0.0
    %10415 = vmatpush1.msra.mxu0 0.0
    %10416 = vmatprep.subr.mxu0 0.0
    %10417 = vmatpush1.msra.mxu0 0.0
    %10418 = vmatprep.subr.mxu0 0.0
    %10419 = vmatpush1.msra.mxu0 0.0
    %10420 = vmatprep.subr.mxu0 0.0
    %10421 = vmatpush1.msra.mxu0 0.0
    %10422 = vmatprep.subr.mxu0 0.0
    %10423 = vmatpush1.msra.mxu0 0.0
    %10424 = vmatprep.subr.mxu0 0.0
    %10425 = vmatpush1.msra.mxu0 0.0
    %10426 = vmatprep.subr.mxu0 0.0
    %10427 = vmatpush1.msra.mxu0 0.0
    %10428 = vmatprep.subr.mxu0 0.0
    %10429 = vmatpush1.msra.mxu0 0.0
    %10430 = vmatprep.subr.mxu0 0.0
    %10431 = vmatpush1.msra.mxu0 0.0
    %10432 = vmatprep.subr.mxu0 0.0
    %10433 = vmatpush1.msra.mxu0 0.0
    %10434 = vmatprep.mubr.f32.mxu0 0.0
    %v10435 = vand.u32 %v8598, 4294901760
    %10436 = vmatmul.mubr.f32.gmra.mrb[0].mxu0 %v10435
    %v10437 = vpop.f32.mrb[0].mxu0
    %v10438 = vadd.f32 %v10165, %v10437
    %v10439 = vpop.f32.mrb[0].mxu0
    %10440 = vmatprep.mubr.f32.mxu0 0.0
    %v10441 = vand.u32 %v8599, 4294901760
    %10442 = vmatmul.mubr.f32.gmra.mrb[0].mxu0 %v10441
    %v10443 = vpop.f32.mrb[0].mxu0
    %v10444 = vadd.f32 %v10171, %v10443
    %v10445 = vpop.f32.mrb[0].mxu0
    %10446 = vmatprep.mubr.f32.mxu0 0.0
    %v10447 = vand.u32 %v8600, 4294901760
    %10448 = vmatmul.mubr.f32.gmra.mrb[0].mxu0 %v10447
    %v10449 = vpop.f32.mrb[0].mxu0
    %v10450 = vadd.f32 %v10177, %v10449
    %v10451 = vpop.f32.mrb[0].mxu0
    %10452 = vmatprep.mubr.f32.mxu0 0.0
    %v10453 = vand.u32 %v8601, 4294901760
    %10454 = vmatmul.mubr.f32.gmra.mrb[0].mxu0 %v10453
    %v10455 = vpop.f32.mrb[0].mxu0
    %v10456 = vadd.f32 %v10183, %v10455
    %v10457 = vpop.f32.mrb[0].mxu0
    %10458 = vmatprep.mubr.f32.mxu0 0.0
    %v10459 = vand.u32 %v8602, 4294901760
    %10460 = vmatmul.mubr.f32.gmra.mrb[0].mxu0 %v10459
    %v10461 = vpop.f32.mrb[0].mxu0
    %v10462 = vadd.f32 %v10189, %v10461
    %v10463 = vpop.f32.mrb[0].mxu0
    %10464 = vmatprep.mubr.f32.mxu0 0.0
    %v10465 = vand.u32 %v8603, 4294901760
    %10466 = vmatmul.mubr.f32.gmra.mrb[0].mxu0 %v10465
    %v10467 = vpop.f32.mrb[0].mxu0
    %v10468 = vadd.f32 %v10195, %v10467
    %v10469 = vpop.f32.mrb[0].mxu0
    %10470 = vmatprep.mubr.f32.mxu0 0.0
    %v10471 = vand.u32 %v8604, 4294901760
    %10472 = vmatmul.mubr.f32.gmra.mrb[0].mxu0 %v10471
    %v10473 = vpop.f32.mrb[0].mxu0
    %v10474 = vadd.f32 %v10201, %v10473
    %v10475 = vpop.f32.mrb[0].mxu0
    %10476 = vmatprep.mubr.f32.mxu0 0.0
    %v10477 = vand.u32 %v8605, 4294901760
    %10478 = vmatmul.mubr.f32.gmra.mrb[0].mxu0 %v10477
    %v10479 = vpop.f32.mrb[0].mxu0
    %v10480 = vadd.f32 %v10207, %v10479
    %v10481 = vpop.f32.mrb[0].mxu0
    %10482 = vmatprep.mubr.f32.mxu0 0.0
    %v10483 = vand.u32 %v8606, 4294901760
    %10484 = vmatmul.mubr.f32.gmra.mrb[0].mxu0 %v10483
    %v10485 = vpop.f32.mrb[0].mxu0
    %v10486 = vadd.f32 %v10213, %v10485
    %v10487 = vpop.f32.mrb[0].mxu0
    %10488 = vmatprep.mubr.f32.mxu0 0.0
    %v10489 = vand.u32 %v8607, 4294901760
    %10490 = vmatmul.mubr.f32.gmra.mrb[0].mxu0 %v10489
    %v10491 = vpop.f32.mrb[0].mxu0
    %v10492 = vadd.f32 %v10219, %v10491
    %v10493 = vpop.f32.mrb[0].mxu0
    %10494 = vmatprep.mubr.f32.mxu0 0.0
    %v10495 = vand.u32 %v8608, 4294901760
    %10496 = vmatmul.mubr.f32.gmra.mrb[0].mxu0 %v10495
    %v10497 = vpop.f32.mrb[0].mxu0
    %v10498 = vadd.f32 %v10225, %v10497
    %v10499 = vpop.f32.mrb[0].mxu0
    %10500 = vmatprep.mubr.f32.mxu0 0.0
    %v10501 = vand.u32 %v8609, 4294901760
    %10502 = vmatmul.mubr.f32.gmra.mrb[0].mxu0 %v10501
    %v10503 = vpop.f32.mrb[0].mxu0
    %v10504 = vadd.f32 %v10231, %v10503
    %v10505 = vpop.f32.mrb[0].mxu0
    %10506 = vmatprep.mubr.f32.mxu0 0.0
    %v10507 = vand.u32 %v8610, 4294901760
    %10508 = vmatmul.mubr.f32.gmra.mrb[0].mxu0 %v10507
    %v10509 = vpop.f32.mrb[0].mxu0
    %v10510 = vadd.f32 %v10237, %v10509
    %v10511 = vpop.f32.mrb[0].mxu0
    %10512 = vmatprep.mubr.f32.mxu0 0.0
    %v10513 = vand.u32 %v8611, 4294901760
    %10514 = vmatmul.mubr.f32.gmra.mrb[0].mxu0 %v10513
    %v10515 = vpop.f32.mrb[0].mxu0
    %v10516 = vadd.f32 %v10243, %v10515
    %v10517 = vpop.f32.mrb[0].mxu0
    %10518 = vmatprep.mubr.f32.mxu0 0.0
    %v10519 = vand.u32 %v8612, 4294901760
    %10520 = vmatmul.mubr.f32.gmra.mrb[0].mxu0 %v10519
    %v10521 = vpop.f32.mrb[0].mxu0
    %v10522 = vadd.f32 %v10249, %v10521
    %v10523 = vpop.f32.mrb[0].mxu0
    %10524 = vmatprep.mubr.f32.mxu0 0.0
    %v10525 = vand.u32 %v8613, 4294901760
    %10526 = vmatmul.mubr.f32.gmra.mrb[0].mxu0 %v10525
    %v10527 = vpop.f32.mrb[0].mxu0
    %v10528 = vadd.f32 %v10255, %v10527
    %v10529 = vpop.f32.mrb[0].mxu0
    %10530 = vmatprep.mubr.f32.mxu0 0.0
    %v10531 = vand.u32 %v8614, 4294901760
    %10532 = vmatmul.mubr.f32.gmra.mrb[0].mxu0 %v10531
    %v10533 = vpop.f32.mrb[0].mxu0
    %v10534 = vadd.f32 %v10261, %v10533
    %v10535 = vpop.f32.mrb[0].mxu0
    %10536 = vmatprep.mubr.f32.mxu0 0.0
    %v10537 = vand.u32 %v8615, 4294901760
    %10538 = vmatmul.mubr.f32.gmra.mrb[0].mxu0 %v10537
    %v10539 = vpop.f32.mrb[0].mxu0
    %v10540 = vadd.f32 %v10267, %v10539
    %v10541 = vpop.f32.mrb[0].mxu0
    %10542 = vmatprep.mubr.f32.mxu0 0.0
    %v10543 = vand.u32 %v8616, 4294901760
    %10544 = vmatmul.mubr.f32.gmra.mrb[0].mxu0 %v10543
    %v10545 = vpop.f32.mrb[0].mxu0
    %v10546 = vadd.f32 %v10273, %v10545
    %v10547 = vpop.f32.mrb[0].mxu0
    %10548 = vmatprep.mubr.f32.mxu0 0.0
    %v10549 = vand.u32 %v8617, 4294901760
    %10550 = vmatmul.mubr.f32.gmra.mrb[0].mxu0 %v10549
    %v10551 = vpop.f32.mrb[0].mxu0
    %v10552 = vadd.f32 %v10279, %v10551
    %v10553 = vpop.f32.mrb[0].mxu0
    %10554 = vmatprep.mubr.f32.mxu0 0.0
    %v10555 = vand.u32 %v8618, 4294901760
    %10556 = vmatmul.mubr.f32.gmra.mrb[0].mxu0 %v10555
    %v10557 = vpop.f32.mrb[0].mxu0
    %v10558 = vadd.f32 %v10285, %v10557
    %v10559 = vpop.f32.mrb[0].mxu0
    %10560 = vmatprep.mubr.f32.mxu0 0.0
    %v10561 = vand.u32 %v8619, 4294901760
    %10562 = vmatmul.mubr.f32.gmra.mrb[0].mxu0 %v10561
    %v10563 = vpop.f32.mrb[0].mxu0
    %v10564 = vadd.f32 %v10291, %v10563
    %v10565 = vpop.f32.mrb[0].mxu0
    %10566 = vmatprep.mubr.f32.mxu0 0.0
    %v10567 = vand.u32 %v8620, 4294901760
    %10568 = vmatmul.mubr.f32.gmra.mrb[0].mxu0 %v10567
    %v10569 = vpop.f32.mrb[0].mxu0
    %v10570 = vadd.f32 %v10297, %v10569
    %v10571 = vpop.f32.mrb[0].mxu0
    %10572 = vmatprep.mubr.f32.mxu0 0.0
    %v10573 = vand.u32 %v8621, 4294901760
    %10574 = vmatmul.mubr.f32.gmra.mrb[0].mxu0 %v10573
    %v10575 = vpop.f32.mrb[0].mxu0
    %v10576 = vadd.f32 %v10303, %v10575
    %v10577 = vpop.f32.mrb[0].mxu0
    %10578 = vmatprep.mubr.f32.mxu0 0.0
    %v10579 = vand.u32 %v8622, 4294901760
    %10580 = vmatmul.mubr.f32.gmra.mrb[0].mxu0 %v10579
    %v10581 = vpop.f32.mrb[0].mxu0
    %v10582 = vadd.f32 %v10309, %v10581
    %v10583 = vpop.f32.mrb[0].mxu0
    %10584 = vmatprep.mubr.f32.mxu0 0.0
    %v10585 = vand.u32 %v8623, 4294901760
    %10586 = vmatmul.mubr.f32.gmra.mrb[0].mxu0 %v10585
    %v10587 = vpop.f32.mrb[0].mxu0
    %v10588 = vadd.f32 %v10315, %v10587
    %v10589 = vpop.f32.mrb[0].mxu0
    %10590 = vmatprep.mubr.f32.mxu0 0.0
    %v10591 = vand.u32 %v8624, 4294901760
    %10592 = vmatmul.mubr.f32.gmra.mrb[0].mxu0 %v10591
    %v10593 = vpop.f32.mrb[0].mxu0
    %v10594 = vadd.f32 %v10321, %v10593
    %v10595 = vpop.f32.mrb[0].mxu0
    %10596 = vmatprep.mubr.f32.mxu0 0.0
    %v10597 = vand.u32 %v8625, 4294901760
    %10598 = vmatmul.mubr.f32.gmra.mrb[0].mxu0 %v10597
    %v10599 = vpop.f32.mrb[0].mxu0
    %v10600 = vadd.f32 %v10327, %v10599
    %v10601 = vpop.f32.mrb[0].mxu0
    %10602 = vmatprep.mubr.f32.mxu0 0.0
    %v10603 = vand.u32 %v8626, 4294901760
    %10604 = vmatmul.mubr.f32.gmra.mrb[0].mxu0 %v10603
    %v10605 = vpop.f32.mrb[0].mxu0
    %v10606 = vadd.f32 %v10333, %v10605
    %v10607 = vpop.f32.mrb[0].mxu0
    %10608 = vmatprep.mubr.f32.mxu0 0.0
    %v10609 = vand.u32 %v8627, 4294901760
    %10610 = vmatmul.mubr.f32.gmra.mrb[0].mxu0 %v10609
    %v10611 = vpop.f32.mrb[0].mxu0
    %v10612 = vadd.f32 %v10339, %v10611
    %v10613 = vpop.f32.mrb[0].mxu0
    %10614 = vmatprep.mubr.f32.mxu0 0.0
    %v10615 = vand.u32 %v8628, 4294901760
    %10616 = vmatmul.mubr.f32.gmra.mrb[0].mxu0 %v10615
    %v10617 = vpop.f32.mrb[0].mxu0
    %v10618 = vadd.f32 %v10345, %v10617
    %v10619 = vpop.f32.mrb[0].mxu0
    %10620 = vmatprep.mubr.f32.mxu0 0.0
    %v10621 = vand.u32 %v8629, 4294901760
    %10622 = vmatmul.mubr.f32.gmra.mrb[0].mxu0 %v10621
    %v10623 = vpop.f32.mrb[0].mxu0
    %v10624 = vadd.f32 %v10351, %v10623
    %v10625 = vpop.f32.mrb[0].mxu0
    %10626 = vdwg.mxu0
    %10627 = vst [vmem:[#allocation11] sm:$0xff] %v10438
    %10628 = vst [vmem:[#allocation11 + $0x8] sm:$0xff] %v10444
    %10629 = vst [vmem:[#allocation11 + $0x10] sm:$0xff] %v10450
    %10630 = vst [vmem:[#allocation11 + $0x18] sm:$0xff] %v10456
    %10631 = vst [vmem:[#allocation11 + $0x20] sm:$0xff] %v10462
    %10632 = vst [vmem:[#allocation11 + $0x28] sm:$0xff] %v10468
    %10633 = vst [vmem:[#allocation11 + $0x30] sm:$0xff] %v10474
    %10634 = vst [vmem:[#allocation11 + $0x38] sm:$0xff] %v10480
    %10635 = vst [vmem:[#allocation11 + $0x40] sm:$0xff] %v10486
    %10636 = vst [vmem:[#allocation11 + $0x48] sm:$0xff] %v10492
    %10637 = vst [vmem:[#allocation11 + $0x50] sm:$0xff] %v10498
    %10638 = vst [vmem:[#allocation11 + $0x58] sm:$0xff] %v10504
    %10639 = vst [vmem:[#allocation11 + $0x60] sm:$0xff] %v10510
    %10640 = vst [vmem:[#allocation11 + $0x68] sm:$0xff] %v10516
    %10641 = vst [vmem:[#allocation11 + $0x70] sm:$0xff] %v10522
    %10642 = vst [vmem:[#allocation11 + $0x78] sm:$0xff] %v10528
    %10643 = vst [vmem:[#allocation11 + $0x80] sm:$0xff] %v10534
    %10644 = vst [vmem:[#allocation11 + $0x88] sm:$0xff] %v10540
    %10645 = vst [vmem:[#allocation11 + $0x90] sm:$0xff] %v10546
    %10646 = vst [vmem:[#allocation11 + $0x98] sm:$0xff] %v10552
    %10647 = vst [vmem:[#allocation11 + $0xa0] sm:$0xff] %v10558
    %10648 = vst [vmem:[#allocation11 + $0xa8] sm:$0xff] %v10564
    %10649 = vst [vmem:[#allocation11 + $0xb0] sm:$0xff] %v10570
    %10650 = vst [vmem:[#allocation11 + $0xb8] sm:$0xff] %v10576
    %10651 = vst [vmem:[#allocation11 + $0xc0] sm:$0xff] %v10582
    %10652 = vst [vmem:[#allocation11 + $0xc8] sm:$0xff] %v10588
    %10653 = vst [vmem:[#allocation11 + $0xd0] sm:$0xff] %v10594
    %10654 = vst [vmem:[#allocation11 + $0xd8] sm:$0xff] %v10600
    %10655 = vst [vmem:[#allocation11 + $0xe0] sm:$0xff] %v10606
    %10656 = vst [vmem:[#allocation11 + $0xe8] sm:$0xff] %v10612
    %10657 = vst [vmem:[#allocation11 + $0xf0] sm:$0xff] %v10618
    %10658 = vst [vmem:[#allocation11 + $0xf8] sm:$0xff] %v10624
    // Predicated region
    $region58: #{tpu_custom_call.1} parent=1 // pred_check
      _
    $region59: #{tpu_custom_call.1} parent=1 // pred_check_branch
      %10660 = sbr.rel (0) target = $region61
    $region60: #{tpu_custom_call.1} parent=1 // pred_region
      %s10662 = ssub.s32 4096, 4096
      %10663 = vsyncadd [#allocation4], %s10662
      %s10664 = sshll.u32 [#allocation11], 4
      %s10665 = int_to_ptr.vmem [resolvable:$true] %s10664
      %10670 = dma.vmem_to_hbm [thread:$0]  %s10665, 4096, %s9, [#allocation4], 128, 128, 8
    $region61: #{tpu_custom_call.1} parent=1 // pred_fallthru
      _
    // Predicated region
    $region62: #{tpu_custom_call.1} parent=1 // pred_check
      _
    $region63: #{tpu_custom_call.1} parent=1 // pred_check_branch
      %10672 = sbr.rel (0) target = $region65
    $region64: #{tpu_custom_call.1} parent=1 // pred_region
      %10673 = dma.done [#allocation4], 4096
    $region65: #{tpu_custom_call.1} parent=1 // pred_fallthru
      _
    %10674 = vsyncpa [#allocation3], 1
    %10675 = vsyncpa [#allocation6], 1
    %10676 = vsyncpa [#allocation9], 1
    %10677 = vsyncpa [#allocation4], 1

</llo_original>
